<compile_context>
chip_gen: v7x
topology: tpu7x:2x2x1
jax: 0.10.0
libtpu: 0.0.40
codegen_flags: <defaults>
</compile_context>

<pallas_src>
import functools

import numpy as np

import jax
import jax.numpy as jnp
from jax.experimental import pallas as pl
from jax.experimental.pallas import tpu as pltpu

BLOCK_PARAMS = {2: {'kernel_size': 6, 'stride': 2, 'padding': 2},
                4: {'kernel_size': 8, 'stride': 4, 'padding': 2},
                8: {'kernel_size': 12, 'stride': 8, 'padding': 2}}


# ----------------------------- fused Pallas kernel --------------------------------------

def fused_rnet_d_kernel(x_ref, w1_ref, w2_ref, gall_ref, wd_ref, bd_ref, a_ref,
                        o_ref, frame, tmp, *, H, W, P, Wd, stage, N, K, Lo):
    """Whole RNet_D branch for the full (small) batch in one kernel invocation.

    x_ref   : (N, C, Ld) bf16   input embedded in its P-px zero border, flattened (Hd, Wd).
    w1/w2   : (stage, C, 10*C) bf16   3x3 conv weights as (Cout, taps*Cin) + bias column
                                      (column 9*C) + zero columns (10*C-9*C-1 of them).
    gall    : (Ld, K*K*Lo) bf16  0/1 gather matrix for the strided down-conv im2col.
    wd_ref  : (K*K, Cout, C) bf16  per-tap down-conv weight tiles.
    bd_ref  : (Cout, 1) f32      down-conv bias.
    a_ref   : (stage+1, 1) f32 in SMEM  (PReLU scalars: one per stage + one for the down-conv).
    o_ref   : (Cout, N*Lo) f32   lane-dense output, columns ordered (image, oh, ow).
    frame   : (N, C, Ld) bf16 VMEM scratch  -- persistent padded activation frame.
    tmp     : (N, C, Ld) bf16 VMEM scratch  -- padded conv1 output inside each ResnetBlock.
    """
    C = x_ref.shape[1]
    Lv = H * Wd                       # conv output block: image rows x all Wd columns
    row0 = P * Wd                     # flat offset of the centre block inside the frame
    KK = K * K
    # 3x3 tap offsets relative to the start of the output block (output row P, col 0).
    offs = [(P - 1 + a) * Wd + (b - 1) for a in range(3) for b in range(3)]

    frame[...] = x_ref[...]                      # padded input becomes the initial frame
    tmp[...] = jnp.zeros_like(tmp)               # zero borders; only the centre is rewritten

    # Valid-column mask: padded columns (outside [P, P+W)) must be forced to zero so the next
    # conv (and the final down-conv) see correct zero padding.
    col = jax.lax.broadcasted_iota(jnp.int32, (1, N * Lv), 1) % Wd
    valid = jnp.logical_and(col >= P, col < P + W)
    ones_blk = jnp.ones((C, N * Lv), jnp.bfloat16)   # bias row block (row 0 carries the bias)

    def conv3x3(src, wmat):
        # im2col tap folding: one (C, 10C) @ (10C, N*Lv) MXU matmul, bf16 in / f32 accumulate.
        pieces = []
        for o in offs:
            if N == 1:
                pieces.append(src[0, :, o:o + Lv])
            else:
                pieces.append(jnp.concatenate([src[n, :, o:o + Lv] for n in range(N)], axis=1))
        pieces.append(ones_blk)                                    # bias (folded into matmul)
        patches = jnp.concatenate(pieces, axis=0)                  # (10C, N*Lv) bf16
        return jnp.dot(wmat, patches, preferred_element_type=jnp.float32)

    for s in range(stage):                                         # static unroll (small stage)
        a = a_ref[s, 0]
        y1 = conv3x3(frame, w1_ref[s])                             # (C, N*Lv) f32
        y1 = jnp.where(y1 >= 0, y1, a * y1)                        # PReLU
        y1 = jnp.where(valid, y1, 0.0).astype(jnp.bfloat16)        # zero halo -> correct padding
        for n in range(N):
            tmp[n, :, row0:row0 + Lv] = y1[:, n * Lv:(n + 1) * Lv]
        y2 = conv3x3(tmp, w2_ref[s])
        if N == 1:
            resid = frame[0, :, row0:row0 + Lv]
        else:
            resid = jnp.concatenate([frame[n, :, row0:row0 + Lv] for n in range(N)], axis=1)
        y = y2 + resid.astype(jnp.float32)                         # residual connection
        y = jnp.where(y >= 0, y, a * y)
        y = jnp.where(valid, y, 0.0).astype(jnp.bfloat16)
        for n in range(N):
            frame[n, :, row0:row0 + Lv] = y[:, n * Lv:(n + 1) * Lv]

    # ---- final ConvBlock(base_2 -> base_1, K, S, P, 'prelu') from the resident frame ----
    ad = a_ref[stage, 0]
    outs = []
    for n in range(N):
        fr = frame[n]                                              # (C, Ld) bf16
        # one gather matmul pulls every strided tap: (C, Ld) @ (Ld, KK*Lo)
        pmat = jnp.dot(fr, gall_ref[...],
                       preferred_element_type=jnp.float32).astype(jnp.bfloat16)
        acc = None
        for t in range(KK):                                        # KK tiny accumulating dots
            d = jnp.dot(wd_ref[t], pmat[:, t * Lo:(t + 1) * Lo],
                        preferred_element_type=jnp.float32)
            acc = d if acc is None else acc + d
        acc = acc + bd_ref[...]
        outs.append(jnp.where(acc >= 0, acc, ad * acc))
    res = outs[0] if N == 1 else jnp.concatenate(outs, axis=1)     # (Cout, N*Lo) lane-dense
    o_ref[...] = res.astype(o_ref.dtype)


# ----------------------------- wrapper (glue in plain JAX) ------------------------------

def _pack3x3_bias(w, b):
    # HWIO (3,3,Cin,Cout) -> (Cout, 10*Cin): 9*Cin conv columns, then bias column, then zeros.
    cin, cout = w.shape[2], w.shape[3]
    wm = jnp.transpose(w, (3, 0, 1, 2)).reshape(cout, 9 * cin)
    bias_col = b.reshape(cout, 1)
    zeros = jnp.zeros((cout, cin - 1), w.dtype)
    return jnp.concatenate([wm, bias_col, zeros], axis=1)


def _build_gather(H, W, P, K, S):
    # 0/1 gather matrix for the strided-conv im2col: column (t, q) picks flat frame position
    # (oh*S + kh)*Wd + ow*S + kw, with t = kh*K + kw and q = oh*Wo + ow.
    Hd, Wd = H + 2 * P, W + 2 * P
    Ho, Wo = (Hd - K) // S + 1, (Wd - K) // S + 1
    Ld, KK, Lo = Hd * Wd, K * K, Ho * Wo
    kh, kw = np.meshgrid(np.arange(K), np.arange(K), indexing='ij')
    oh, ow = np.meshgrid(np.arange(Ho), np.arange(Wo), indexing='ij')
    p = ((oh.reshape(1, Lo) * S + kh.reshape(KK, 1)) * Wd
         + ow.reshape(1, Lo) * S + kw.reshape(KK, 1))              # (KK, Lo)
    G = np.zeros((Ld, KK * Lo), np.float32)
    G[p.reshape(-1), np.arange(KK * Lo)] = 1.0
    return G, Ho, Wo


def rnet_d_forward(x_nchw, params, *, scale_factor):
    bp = BLOCK_PARAMS[scale_factor]
    K, S, P = bp['kernel_size'], bp['stride'], bp['padding']
    N, C, H, W = x_nchw.shape
    Hd, Wd = H + 2 * P, W + 2 * P
    Ld = Hd * Wd
    res = params["res"]
    stage = len(res)
    wd, bd, ad = params["down"]
    Cout = wd.shape[-1]
    KK = K * K

    G_np, Ho, Wo = _build_gather(H, W, P, K, S)
    Lo = Ho * Wo

    # ---- pack parameters ----
    w1s = jnp.stack([_pack3x3_bias(p[0], p[1]) for p in res]).astype(jnp.bfloat16)  # (stage,C,10C)
    w2s = jnp.stack([_pack3x3_bias(p[2], p[3]) for p in res]).astype(jnp.bfloat16)
    wtap = jnp.transpose(wd, (0, 1, 3, 2)).reshape(KK, Cout, C).astype(jnp.bfloat16)
    bdm = bd.reshape(Cout, 1).astype(jnp.float32)
    alphas = jnp.concatenate([jnp.stack([p[4].reshape(1) for p in res]),
                              ad.reshape(1, 1)], axis=0).astype(jnp.float32)        # (stage+1,1)
    gall = jnp.asarray(G_np, dtype=jnp.bfloat16)                                    # (Ld, KK*Lo)

    # ---- initial frame: image embedded in its P-px zero border, flattened, bf16 ----
    xpad = jnp.pad(x_nchw.astype(jnp.float32), ((0, 0), (0, 0), (P, P), (P, P)))
    xe = xpad.reshape(N, C, Ld).astype(jnp.bfloat16)

    kern = functools.partial(fused_rnet_d_kernel, H=H, W=W, P=P, Wd=Wd,
                             stage=stage, N=N, K=K, Lo=Lo)
    out = pl.pallas_call(
        kern,
        out_shape=jax.ShapeDtypeStruct((Cout, N * Lo), jnp.float32),
        in_specs=[
            pl.BlockSpec(memory_space=pltpu.MemorySpace.VMEM),   # xe
            pl.BlockSpec(memory_space=pltpu.MemorySpace.VMEM),   # w1s
            pl.BlockSpec(memory_space=pltpu.MemorySpace.VMEM),   # w2s
            pl.BlockSpec(memory_space=pltpu.MemorySpace.VMEM),   # gather matrix
            pl.BlockSpec(memory_space=pltpu.MemorySpace.VMEM),   # down-conv weight tiles
            pl.BlockSpec(memory_space=pltpu.MemorySpace.VMEM),   # down-conv bias
            pl.BlockSpec(memory_space=pltpu.MemorySpace.SMEM),   # PReLU scalars
        ],
        out_specs=pl.BlockSpec(memory_space=pltpu.MemorySpace.VMEM),
        scratch_shapes=[pltpu.VMEM((N, C, Ld), jnp.bfloat16),    # persistent padded frame
                        pltpu.VMEM((N, C, Ld), jnp.bfloat16)],   # padded conv1 output
    )(xe, w1s, w2s, gall, wtap, bdm, alphas)

    # tiny final reshape/transpose of the already-compact (Cout, N*Ho*Wo) slab -> NCHW
    return out.reshape(Cout, N, Ho, Wo).transpose(1, 0, 2, 3)


# ----------------------------- reference (pure JAX, for verification) -------------------

def _prelu(x, a):
    return jnp.where(x >= 0, x, a * x)


def _conv_ref(x, w, b, stride, pad):
    # Same numerics as the kernel: bf16 operands, f32 accumulation.
    y = jax.lax.conv_general_dilated(
        x.astype(jnp.bfloat16), w.astype(jnp.bfloat16),
        window_strides=(stride, stride), padding=((pad, pad), (pad, pad)),
        dimension_numbers=("NCHW", "HWIO", "NCHW"),
        preferred_element_type=jnp.float32)
    return y + b.reshape(1, -1, 1, 1)


def rnet_d_reference(x_nchw, params, *, scale_factor):
    # Mirrors the kernel's precision choices: bf16 activations between convs, f32 elementwise.
    x = x_nchw.astype(jnp.bfloat16).astype(jnp.float32)
    for (w1, b1, w2, b2, a) in params["res"]:
        b1q = b1.astype(jnp.bfloat16).astype(jnp.float32)   # bias folded into bf16 matmul in-kernel
        b2q = b2.astype(jnp.bfloat16).astype(jnp.float32)
        y1 = _prelu(_conv_ref(x, w1, b1q, 1, 1), a[0])
        y1 = y1.astype(jnp.bfloat16).astype(jnp.float32)
        y2 = _conv_ref(y1, w2, b2q, 1, 1)
        x = _prelu(y2 + x, a[0])
        x = x.astype(jnp.bfloat16).astype(jnp.float32)
    wd, bd, ad = params["down"]
    bp = BLOCK_PARAMS[scale_factor]
    return _prelu(_conv_ref(x, wd, bd.astype(jnp.float32), bp['stride'], bp['padding']), ad[0])


# ----------------------------- params & main --------------------------------------------

def init_params(key, stage, base_2, base_1, scale_factor):
    K = BLOCK_PARAMS[scale_factor]['kernel_size']
    res = []
    for _ in range(stage):
        key, k1, k2, k3, k4 = jax.random.split(key, 5)
        res.append((
            0.1 * jax.random.normal(k1, (3, 3, base_2, base_2), jnp.float32),   # conv1 HWIO
            0.1 * jax.random.normal(k2, (1, base_2), jnp.float32),              # bias1
            0.1 * jax.random.normal(k3, (3, 3, base_2, base_2), jnp.float32),   # conv2 HWIO
            0.1 * jax.random.normal(k4, (1, base_2), jnp.float32),              # bias2
            jnp.full((1,), 0.25, jnp.float32),                                  # PReLU scalar
        ))
    key, k5, k6 = jax.random.split(key, 3)
    down = (
        0.05 * jax.random.normal(k5, (K, K, base_2, base_1), jnp.float32),      # down conv HWIO
        0.1 * jax.random.normal(k6, (1, base_1), jnp.float32),
        jnp.full((1,), 0.25, jnp.float32),
    )
    return {"res": res, "down": down}, key


if __name__ == "__main__":
    key = jax.random.PRNGKey(0)
    # small cfg: stage=2, BASE_1_CHANNELS=16, BASE_2_CHANNELS=8
    N, H, W = 2, 16, 16
    stage, base_1_channels, base_2_channels = 2, 16, 8

    for scale_factor in (2, 4):
        params, key = init_params(key, stage, base_2_channels, base_1_channels, scale_factor)
        key, xk = jax.random.split(key)
        x = jax.random.normal(xk, (N, base_2_channels, H, W), jnp.float32)      # NCHW input

        fwd = jax.jit(functools.partial(rnet_d_forward, scale_factor=scale_factor))
        out = jax.block_until_ready(fwd(x, params))

        ref = rnet_d_reference(x, params, scale_factor=scale_factor)
        expect = (N, base_1_channels, H // scale_factor, W // scale_factor)
        assert out.shape == expect, (scale_factor, out.shape)
        err = float(jnp.max(jnp.abs(out - ref)))
        assert err < 1e-2, (scale_factor, err)

    print("KERNEL_OK")
</pallas_src>

<mosaic_0001>
module attributes {stable_mosaic.version = 11 : i64} {
  func.func @fused_rnet_d_kernel(%arg0: memref<2x8x400xbf16, #tpu.memory_space<vmem>>, %arg1: memref<2x8x80xbf16, #tpu.memory_space<vmem>>, %arg2: memref<2x8x80xbf16, #tpu.memory_space<vmem>>, %arg3: memref<400x2304xbf16, #tpu.memory_space<vmem>>, %arg4: memref<36x16x8xbf16, #tpu.memory_space<vmem>>, %arg5: memref<16x1xf32, #tpu.memory_space<vmem>>, %arg6: memref<3x1xf32, #tpu.memory_space<smem>>, %arg7: memref<16x128xf32, #tpu.memory_space<vmem>>, %arg8: memref<2x8x400xbf16, #tpu.memory_space<vmem>>, %arg9: memref<2x8x400xbf16, #tpu.memory_space<vmem>>) attributes {dimension_semantics = [], scalar_prefetch = 0 : i64, scratch_operands = 2 : i64, tpu.core_type = #tpu.core_type<tc>} {
    %c0 = arith.constant 0 : index
    %c0_0 = arith.constant 0 : index
    %c0_1 = arith.constant 0 : index
    %0 = vector.load %arg0[%c0, %c0_0, %c0_1] : memref<2x8x400xbf16, #tpu.memory_space<vmem>>, vector<2x8x400xbf16>
    %c0_2 = arith.constant 0 : index
    %c0_3 = arith.constant 0 : index
    %c0_4 = arith.constant 0 : index
    %1 = vector.load %arg8[%c0_2, %c0_3, %c0_4] : memref<2x8x400xbf16, #tpu.memory_space<vmem>>, vector<2x8x400xbf16>
    tpu.vector_store %arg8[%c0_2, %c0_3, %c0_4], %0 {strides = array<i32>} : memref<2x8x400xbf16, #tpu.memory_space<vmem>>, vector<2x8x400xbf16>,
    %cst = arith.constant 0.000000e+00 : bf16
    %2 = vector.broadcast %cst : bf16 to vector<2x8x400xbf16>
    %c0_5 = arith.constant 0 : index
    %c0_6 = arith.constant 0 : index
    %c0_7 = arith.constant 0 : index
    %3 = vector.load %arg9[%c0_5, %c0_6, %c0_7] : memref<2x8x400xbf16, #tpu.memory_space<vmem>>, vector<2x8x400xbf16>
    tpu.vector_store %arg9[%c0_5, %c0_6, %c0_7], %2 {strides = array<i32>} : memref<2x8x400xbf16, #tpu.memory_space<vmem>>, vector<2x8x400xbf16>,
    %4 = tpu.iota {dimensions = array<i32: 1>} : vector<1x640xi32>
    %c20_i32 = arith.constant 20 : i32
    %c0_i32 = arith.constant 0 : i32
    %5 = arith.cmpi eq, %c20_i32, %c0_i32 : i32
    %c1_i32 = arith.constant 1 : i32
    %6 = arith.select %5, %c1_i32, %c20_i32 : i32
    %7 = vector.broadcast %6 : i32 to vector<1x640xi32>
    %8 = arith.remsi %4, %7 : vector<1x640xi32>
    %c0_i32_8 = arith.constant 0 : i32
    %9 = vector.broadcast %c0_i32_8 : i32 to vector<1x640xi32>
    %10 = arith.cmpi ne, %8, %9 : vector<1x640xi32>
    %c0_i32_9 = arith.constant 0 : i32
    %11 = vector.broadcast %c0_i32_9 : i32 to vector<1x640xi32>
    %12 = arith.cmpi slt, %8, %11 : vector<1x640xi32>
    %c0_i32_10 = arith.constant 0 : i32
    %13 = arith.cmpi slt, %6, %c0_i32_10 : i32
    %14 = vector.broadcast %13 : i1 to vector<1x640xi1>
    %15 = vector.broadcast %14 : vector<1x640xi1> to vector<1x640xi1>
    %16 = arith.xori %12, %15 : vector<1x640xi1>
    %17 = arith.andi %16, %10 : vector<1x640xi1>
    %18 = vector.broadcast %6 : i32 to vector<1x640xi32>
    %19 = arith.addi %8, %18 : vector<1x640xi32>
    %20 = arith.select %17, %19, %8 : vector<1x640xi1>, vector<1x640xi32>
    %c2_i32 = arith.constant 2 : i32
    %21 = vector.broadcast %c2_i32 : i32 to vector<1x640xi32>
    %22 = arith.cmpi sge, %20, %21 : vector<1x640xi32>
    %c18_i32 = arith.constant 18 : i32
    %23 = vector.broadcast %c18_i32 : i32 to vector<1x640xi32>
    %24 = arith.cmpi slt, %20, %23 : vector<1x640xi32>
    %25 = arith.andi %22, %24 : vector<1x640xi1>
    %cst_11 = arith.constant 1.000000e+00 : bf16
    %26 = vector.broadcast %cst_11 : bf16 to vector<8x640xbf16>
    %c0_12 = arith.constant 0 : index
    %c0_13 = arith.constant 0 : index
    %27 = memref.load %arg6[%c0_12, %c0_13] : memref<3x1xf32, #tpu.memory_space<smem>>
    %c0_14 = arith.constant 0 : index
    %c0_15 = arith.constant 0 : index
    %c0_16 = arith.constant 0 : index
    %28 = vector.load %arg1[%c0_14, %c0_15, %c0_16] : memref<2x8x80xbf16, #tpu.memory_space<vmem>>, vector<1x8x80xbf16>
    %29 = vector.shape_cast %28 : vector<1x8x80xbf16> to vector<8x80xbf16>
    %c0_17 = arith.constant 0 : index
    %c0_18 = arith.constant 0 : index
    %c19 = arith.constant 19 : index
    %30 = vector.load %arg8[%c0_17, %c0_18, %c19] : memref<2x8x400xbf16, #tpu.memory_space<vmem>>, vector<1x8x320xbf16>
    %31 = vector.shape_cast %30 : vector<1x8x320xbf16> to vector<8x320xbf16>
    %c1 = arith.constant 1 : index
    %c0_19 = arith.constant 0 : index
    %c19_20 = arith.constant 19 : index
    %32 = vector.load %arg8[%c1, %c0_19, %c19_20] : memref<2x8x400xbf16, #tpu.memory_space<vmem>>, vector<1x8x320xbf16>
    %33 = vector.shape_cast %32 : vector<1x8x320xbf16> to vector<8x320xbf16>
    %34 = tpu.concatenate %31, %33 in 1 : vector<8x320xbf16>, vector<8x320xbf16> -> vector<8x640xbf16>
    %c0_21 = arith.constant 0 : index
    %c0_22 = arith.constant 0 : index
    %c20 = arith.constant 20 : index
    %35 = vector.load %arg8[%c0_21, %c0_22, %c20] : memref<2x8x400xbf16, #tpu.memory_space<vmem>>, vector<1x8x320xbf16>
    %36 = vector.shape_cast %35 : vector<1x8x320xbf16> to vector<8x320xbf16>
    %c1_23 = arith.constant 1 : index
    %c0_24 = arith.constant 0 : index
    %c20_25 = arith.constant 20 : index
    %37 = vector.load %arg8[%c1_23, %c0_24, %c20_25] : memref<2x8x400xbf16, #tpu.memory_space<vmem>>, vector<1x8x320xbf16>
    %38 = vector.shape_cast %37 : vector<1x8x320xbf16> to vector<8x320xbf16>
    %39 = tpu.concatenate %36, %38 in 1 : vector<8x320xbf16>, vector<8x320xbf16> -> vector<8x640xbf16>
    %c0_26 = arith.constant 0 : index
    %c0_27 = arith.constant 0 : index
    %c21 = arith.constant 21 : index
    %40 = vector.load %arg8[%c0_26, %c0_27, %c21] : memref<2x8x400xbf16, #tpu.memory_space<vmem>>, vector<1x8x320xbf16>
    %41 = vector.shape_cast %40 : vector<1x8x320xbf16> to vector<8x320xbf16>
    %c1_28 = arith.constant 1 : index
    %c0_29 = arith.constant 0 : index
    %c21_30 = arith.constant 21 : index
    %42 = vector.load %arg8[%c1_28, %c0_29, %c21_30] : memref<2x8x400xbf16, #tpu.memory_space<vmem>>, vector<1x8x320xbf16>
    %43 = vector.shape_cast %42 : vector<1x8x320xbf16> to vector<8x320xbf16>
    %44 = tpu.concatenate %41, %43 in 1 : vector<8x320xbf16>, vector<8x320xbf16> -> vector<8x640xbf16>
    %c0_31 = arith.constant 0 : index
    %c0_32 = arith.constant 0 : index
    %c39 = arith.constant 39 : index
    %45 = vector.load %arg8[%c0_31, %c0_32, %c39] : memref<2x8x400xbf16, #tpu.memory_space<vmem>>, vector<1x8x320xbf16>
    %46 = vector.shape_cast %45 : vector<1x8x320xbf16> to vector<8x320xbf16>
    %c1_33 = arith.constant 1 : index
    %c0_34 = arith.constant 0 : index
    %c39_35 = arith.constant 39 : index
    %47 = vector.load %arg8[%c1_33, %c0_34, %c39_35] : memref<2x8x400xbf16, #tpu.memory_space<vmem>>, vector<1x8x320xbf16>
    %48 = vector.shape_cast %47 : vector<1x8x320xbf16> to vector<8x320xbf16>
    %49 = tpu.concatenate %46, %48 in 1 : vector<8x320xbf16>, vector<8x320xbf16> -> vector<8x640xbf16>
    %c0_36 = arith.constant 0 : index
    %c0_37 = arith.constant 0 : index
    %c40 = arith.constant 40 : index
    %50 = vector.load %arg8[%c0_36, %c0_37, %c40] : memref<2x8x400xbf16, #tpu.memory_space<vmem>>, vector<1x8x320xbf16>
    %51 = vector.shape_cast %50 : vector<1x8x320xbf16> to vector<8x320xbf16>
    %c1_38 = arith.constant 1 : index
    %c0_39 = arith.constant 0 : index
    %c40_40 = arith.constant 40 : index
    %52 = vector.load %arg8[%c1_38, %c0_39, %c40_40] : memref<2x8x400xbf16, #tpu.memory_space<vmem>>, vector<1x8x320xbf16>
    %53 = vector.shape_cast %52 : vector<1x8x320xbf16> to vector<8x320xbf16>
    %54 = tpu.concatenate %51, %53 in 1 : vector<8x320xbf16>, vector<8x320xbf16> -> vector<8x640xbf16>
    %c0_41 = arith.constant 0 : index
    %c0_42 = arith.constant 0 : index
    %c41 = arith.constant 41 : index
    %55 = vector.load %arg8[%c0_41, %c0_42, %c41] : memref<2x8x400xbf16, #tpu.memory_space<vmem>>, vector<1x8x320xbf16>
    %56 = vector.shape_cast %55 : vector<1x8x320xbf16> to vector<8x320xbf16>
    %c1_43 = arith.constant 1 : index
    %c0_44 = arith.constant 0 : index
    %c41_45 = arith.constant 41 : index
    %57 = vector.load %arg8[%c1_43, %c0_44, %c41_45] : memref<2x8x400xbf16, #tpu.memory_space<vmem>>, vector<1x8x320xbf16>
    %58 = vector.shape_cast %57 : vector<1x8x320xbf16> to vector<8x320xbf16>
    %59 = tpu.concatenate %56, %58 in 1 : vector<8x320xbf16>, vector<8x320xbf16> -> vector<8x640xbf16>
    %c0_46 = arith.constant 0 : index
    %c0_47 = arith.constant 0 : index
    %c59 = arith.constant 59 : index
    %60 = vector.load %arg8[%c0_46, %c0_47, %c59] : memref<2x8x400xbf16, #tpu.memory_space<vmem>>, vector<1x8x320xbf16>
    %61 = vector.shape_cast %60 : vector<1x8x320xbf16> to vector<8x320xbf16>
    %c1_48 = arith.constant 1 : index
    %c0_49 = arith.constant 0 : index
    %c59_50 = arith.constant 59 : index
    %62 = vector.load %arg8[%c1_48, %c0_49, %c59_50] : memref<2x8x400xbf16, #tpu.memory_space<vmem>>, vector<1x8x320xbf16>
    %63 = vector.shape_cast %62 : vector<1x8x320xbf16> to vector<8x320xbf16>
    %64 = tpu.concatenate %61, %63 in 1 : vector<8x320xbf16>, vector<8x320xbf16> -> vector<8x640xbf16>
    %c0_51 = arith.constant 0 : index
    %c0_52 = arith.constant 0 : index
    %c60 = arith.constant 60 : index
    %65 = vector.load %arg8[%c0_51, %c0_52, %c60] : memref<2x8x400xbf16, #tpu.memory_space<vmem>>, vector<1x8x320xbf16>
    %66 = vector.shape_cast %65 : vector<1x8x320xbf16> to vector<8x320xbf16>
    %c1_53 = arith.constant 1 : index
    %c0_54 = arith.constant 0 : index
    %c60_55 = arith.constant 60 : index
    %67 = vector.load %arg8[%c1_53, %c0_54, %c60_55] : memref<2x8x400xbf16, #tpu.memory_space<vmem>>, vector<1x8x320xbf16>
    %68 = vector.shape_cast %67 : vector<1x8x320xbf16> to vector<8x320xbf16>
    %69 = tpu.concatenate %66, %68 in 1 : vector<8x320xbf16>, vector<8x320xbf16> -> vector<8x640xbf16>
    %c0_56 = arith.constant 0 : index
    %c0_57 = arith.constant 0 : index
    %c61 = arith.constant 61 : index
    %70 = vector.load %arg8[%c0_56, %c0_57, %c61] : memref<2x8x400xbf16, #tpu.memory_space<vmem>>, vector<1x8x320xbf16>
    %71 = vector.shape_cast %70 : vector<1x8x320xbf16> to vector<8x320xbf16>
    %c1_58 = arith.constant 1 : index
    %c0_59 = arith.constant 0 : index
    %c61_60 = arith.constant 61 : index
    %72 = vector.load %arg8[%c1_58, %c0_59, %c61_60] : memref<2x8x400xbf16, #tpu.memory_space<vmem>>, vector<1x8x320xbf16>
    %73 = vector.shape_cast %72 : vector<1x8x320xbf16> to vector<8x320xbf16>
    %74 = tpu.concatenate %71, %73 in 1 : vector<8x320xbf16>, vector<8x320xbf16> -> vector<8x640xbf16>
    %75 = tpu.concatenate %34, %39, %44, %49, %54, %59, %64, %69, %74, %26 in 0 : vector<8x640xbf16>, vector<8x640xbf16>, vector<8x640xbf16>, vector<8x640xbf16>, vector<8x640xbf16>, vector<8x640xbf16>, vector<8x640xbf16>, vector<8x640xbf16>, vector<8x640xbf16>, vector<8x640xbf16> -> vector<80x640xbf16>
    %cst_61 = arith.constant dense<0.000000e+00> : vector<8x640xf32>
    %76 = tpu.matmul %29, %75, %cst_61 {dimension_numbers = #tpu.dot_dimension_numbers<[1], [0], [0], [1], [0, 0, 1, 1], [], []>} : vector<8x80xbf16>, vector<80x640xbf16>, vector<8x640xf32> -> vector<8x640xf32>
    %cst_62 = arith.constant 0.000000e+00 : f32
    %77 = vector.broadcast %cst_62 : f32 to vector<8x640xf32>
    %78 = arith.cmpf oge, %76, %77 : vector<8x640xf32>
    %79 = vector.broadcast %27 : f32 to vector<8x640xf32>
    %80 = arith.mulf %79, %76 : vector<8x640xf32>
    %81 = arith.select %78, %76, %80 : vector<8x640xi1>, vector<8x640xf32>
    %cst_63 = arith.constant 0.000000e+00 : f32
    %82 = vector.shape_cast %25 : vector<1x640xi1> to vector<1x640xi1>
    %83 = vector.broadcast %82 : vector<1x640xi1> to vector<8x640xi1>
    %84 = vector.broadcast %cst_63 : f32 to vector<8x640xf32>
    %85 = arith.select %83, %81, %84 : vector<8x640xi1>, vector<8x640xf32>
    %86 = arith.truncf %85 : vector<8x640xf32> to vector<8x640xbf16>
    %87 = vector.extract_strided_slice %86 {offsets = [0, 0], sizes = [8, 320], strides = [1, 1]} : vector<8x640xbf16> to vector<8x320xbf16>
    %c0_64 = arith.constant 0 : index
    %c0_65 = arith.constant 0 : index
    %c40_66 = arith.constant 40 : index
    %88 = vector.load %arg9[%c0_64, %c0_65, %c40_66] : memref<2x8x400xbf16, #tpu.memory_space<vmem>>, vector<1x8x320xbf16>
    %89 = vector.shape_cast %88 : vector<1x8x320xbf16> to vector<8x320xbf16>
    %90 = vector.shape_cast %87 : vector<8x320xbf16> to vector<1x8x320xbf16>
    tpu.vector_store %arg9[%c0_64, %c0_65, %c40_66], %90 {strides = array<i32>} : memref<2x8x400xbf16, #tpu.memory_space<vmem>>, vector<1x8x320xbf16>,
    %91 = vector.extract_strided_slice %86 {offsets = [0, 320], sizes = [8, 320], strides = [1, 1]} : vector<8x640xbf16> to vector<8x320xbf16>
    %c1_67 = arith.constant 1 : index
    %c0_68 = arith.constant 0 : index
    %c40_69 = arith.constant 40 : index
    %92 = vector.load %arg9[%c1_67, %c0_68, %c40_69] : memref<2x8x400xbf16, #tpu.memory_space<vmem>>, vector<1x8x320xbf16>
    %93 = vector.shape_cast %92 : vector<1x8x320xbf16> to vector<8x320xbf16>
    %94 = vector.shape_cast %91 : vector<8x320xbf16> to vector<1x8x320xbf16>
    tpu.vector_store %arg9[%c1_67, %c0_68, %c40_69], %94 {strides = array<i32>} : memref<2x8x400xbf16, #tpu.memory_space<vmem>>, vector<1x8x320xbf16>,
    %c0_70 = arith.constant 0 : index
    %c0_71 = arith.constant 0 : index
    %c0_72 = arith.constant 0 : index
    %95 = vector.load %arg2[%c0_70, %c0_71, %c0_72] : memref<2x8x80xbf16, #tpu.memory_space<vmem>>, vector<1x8x80xbf16>
    %96 = vector.shape_cast %95 : vector<1x8x80xbf16> to vector<8x80xbf16>
    %c0_73 = arith.constant 0 : index
    %c0_74 = arith.constant 0 : index
    %c19_75 = arith.constant 19 : index
    %97 = vector.load %arg9[%c0_73, %c0_74, %c19_75] : memref<2x8x400xbf16, #tpu.memory_space<vmem>>, vector<1x8x320xbf16>
    %98 = vector.shape_cast %97 : vector<1x8x320xbf16> to vector<8x320xbf16>
    %c1_76 = arith.constant 1 : index
    %c0_77 = arith.constant 0 : index
    %c19_78 = arith.constant 19 : index
    %99 = vector.load %arg9[%c1_76, %c0_77, %c19_78] : memref<2x8x400xbf16, #tpu.memory_space<vmem>>, vector<1x8x320xbf16>
    %100 = vector.shape_cast %99 : vector<1x8x320xbf16> to vector<8x320xbf16>
    %101 = tpu.concatenate %98, %100 in 1 : vector<8x320xbf16>, vector<8x320xbf16> -> vector<8x640xbf16>
    %c0_79 = arith.constant 0 : index
    %c0_80 = arith.constant 0 : index
    %c20_81 = arith.constant 20 : index
    %102 = vector.load %arg9[%c0_79, %c0_80, %c20_81] : memref<2x8x400xbf16, #tpu.memory_space<vmem>>, vector<1x8x320xbf16>
    %103 = vector.shape_cast %102 : vector<1x8x320xbf16> to vector<8x320xbf16>
    %c1_82 = arith.constant 1 : index
    %c0_83 = arith.constant 0 : index
    %c20_84 = arith.constant 20 : index
    %104 = vector.load %arg9[%c1_82, %c0_83, %c20_84] : memref<2x8x400xbf16, #tpu.memory_space<vmem>>, vector<1x8x320xbf16>
    %105 = vector.shape_cast %104 : vector<1x8x320xbf16> to vector<8x320xbf16>
    %106 = tpu.concatenate %103, %105 in 1 : vector<8x320xbf16>, vector<8x320xbf16> -> vector<8x640xbf16>
    %c0_85 = arith.constant 0 : index
    %c0_86 = arith.constant 0 : index
    %c21_87 = arith.constant 21 : index
    %107 = vector.load %arg9[%c0_85, %c0_86, %c21_87] : memref<2x8x400xbf16, #tpu.memory_space<vmem>>, vector<1x8x320xbf16>
    %108 = vector.shape_cast %107 : vector<1x8x320xbf16> to vector<8x320xbf16>
    %c1_88 = arith.constant 1 : index
    %c0_89 = arith.constant 0 : index
    %c21_90 = arith.constant 21 : index
    %109 = vector.load %arg9[%c1_88, %c0_89, %c21_90] : memref<2x8x400xbf16, #tpu.memory_space<vmem>>, vector<1x8x320xbf16>
    %110 = vector.shape_cast %109 : vector<1x8x320xbf16> to vector<8x320xbf16>
    %111 = tpu.concatenate %108, %110 in 1 : vector<8x320xbf16>, vector<8x320xbf16> -> vector<8x640xbf16>
    %c0_91 = arith.constant 0 : index
    %c0_92 = arith.constant 0 : index
    %c39_93 = arith.constant 39 : index
    %112 = vector.load %arg9[%c0_91, %c0_92, %c39_93] : memref<2x8x400xbf16, #tpu.memory_space<vmem>>, vector<1x8x320xbf16>
    %113 = vector.shape_cast %112 : vector<1x8x320xbf16> to vector<8x320xbf16>
    %c1_94 = arith.constant 1 : index
    %c0_95 = arith.constant 0 : index
    %c39_96 = arith.constant 39 : index
    %114 = vector.load %arg9[%c1_94, %c0_95, %c39_96] : memref<2x8x400xbf16, #tpu.memory_space<vmem>>, vector<1x8x320xbf16>
    %115 = vector.shape_cast %114 : vector<1x8x320xbf16> to vector<8x320xbf16>
    %116 = tpu.concatenate %113, %115 in 1 : vector<8x320xbf16>, vector<8x320xbf16> -> vector<8x640xbf16>
    %c0_97 = arith.constant 0 : index
    %c0_98 = arith.constant 0 : index
    %c40_99 = arith.constant 40 : index
    %117 = vector.load %arg9[%c0_97, %c0_98, %c40_99] : memref<2x8x400xbf16, #tpu.memory_space<vmem>>, vector<1x8x320xbf16>
    %118 = vector.shape_cast %117 : vector<1x8x320xbf16> to vector<8x320xbf16>
    %c1_100 = arith.constant 1 : index
    %c0_101 = arith.constant 0 : index
    %c40_102 = arith.constant 40 : index
    %119 = vector.load %arg9[%c1_100, %c0_101, %c40_102] : memref<2x8x400xbf16, #tpu.memory_space<vmem>>, vector<1x8x320xbf16>
    %120 = vector.shape_cast %119 : vector<1x8x320xbf16> to vector<8x320xbf16>
    %121 = tpu.concatenate %118, %120 in 1 : vector<8x320xbf16>, vector<8x320xbf16> -> vector<8x640xbf16>
    %c0_103 = arith.constant 0 : index
    %c0_104 = arith.constant 0 : index
    %c41_105 = arith.constant 41 : index
    %122 = vector.load %arg9[%c0_103, %c0_104, %c41_105] : memref<2x8x400xbf16, #tpu.memory_space<vmem>>, vector<1x8x320xbf16>
    %123 = vector.shape_cast %122 : vector<1x8x320xbf16> to vector<8x320xbf16>
    %c1_106 = arith.constant 1 : index
    %c0_107 = arith.constant 0 : index
    %c41_108 = arith.constant 41 : index
    %124 = vector.load %arg9[%c1_106, %c0_107, %c41_108] : memref<2x8x400xbf16, #tpu.memory_space<vmem>>, vector<1x8x320xbf16>
    %125 = vector.shape_cast %124 : vector<1x8x320xbf16> to vector<8x320xbf16>
    %126 = tpu.concatenate %123, %125 in 1 : vector<8x320xbf16>, vector<8x320xbf16> -> vector<8x640xbf16>
    %c0_109 = arith.constant 0 : index
    %c0_110 = arith.constant 0 : index
    %c59_111 = arith.constant 59 : index
    %127 = vector.load %arg9[%c0_109, %c0_110, %c59_111] : memref<2x8x400xbf16, #tpu.memory_space<vmem>>, vector<1x8x320xbf16>
    %128 = vector.shape_cast %127 : vector<1x8x320xbf16> to vector<8x320xbf16>
    %c1_112 = arith.constant 1 : index
    %c0_113 = arith.constant 0 : index
    %c59_114 = arith.constant 59 : index
    %129 = vector.load %arg9[%c1_112, %c0_113, %c59_114] : memref<2x8x400xbf16, #tpu.memory_space<vmem>>, vector<1x8x320xbf16>
    %130 = vector.shape_cast %129 : vector<1x8x320xbf16> to vector<8x320xbf16>
    %131 = tpu.concatenate %128, %130 in 1 : vector<8x320xbf16>, vector<8x320xbf16> -> vector<8x640xbf16>
    %c0_115 = arith.constant 0 : index
    %c0_116 = arith.constant 0 : index
    %c60_117 = arith.constant 60 : index
    %132 = vector.load %arg9[%c0_115, %c0_116, %c60_117] : memref<2x8x400xbf16, #tpu.memory_space<vmem>>, vector<1x8x320xbf16>
    %133 = vector.shape_cast %132 : vector<1x8x320xbf16> to vector<8x320xbf16>
    %c1_118 = arith.constant 1 : index
    %c0_119 = arith.constant 0 : index
    %c60_120 = arith.constant 60 : index
    %134 = vector.load %arg9[%c1_118, %c0_119, %c60_120] : memref<2x8x400xbf16, #tpu.memory_space<vmem>>, vector<1x8x320xbf16>
    %135 = vector.shape_cast %134 : vector<1x8x320xbf16> to vector<8x320xbf16>
    %136 = tpu.concatenate %133, %135 in 1 : vector<8x320xbf16>, vector<8x320xbf16> -> vector<8x640xbf16>
    %c0_121 = arith.constant 0 : index
    %c0_122 = arith.constant 0 : index
    %c61_123 = arith.constant 61 : index
    %137 = vector.load %arg9[%c0_121, %c0_122, %c61_123] : memref<2x8x400xbf16, #tpu.memory_space<vmem>>, vector<1x8x320xbf16>
    %138 = vector.shape_cast %137 : vector<1x8x320xbf16> to vector<8x320xbf16>
    %c1_124 = arith.constant 1 : index
    %c0_125 = arith.constant 0 : index
    %c61_126 = arith.constant 61 : index
    %139 = vector.load %arg9[%c1_124, %c0_125, %c61_126] : memref<2x8x400xbf16, #tpu.memory_space<vmem>>, vector<1x8x320xbf16>
    %140 = vector.shape_cast %139 : vector<1x8x320xbf16> to vector<8x320xbf16>
    %141 = tpu.concatenate %138, %140 in 1 : vector<8x320xbf16>, vector<8x320xbf16> -> vector<8x640xbf16>
    %142 = tpu.concatenate %101, %106, %111, %116, %121, %126, %131, %136, %141, %26 in 0 : vector<8x640xbf16>, vector<8x640xbf16>, vector<8x640xbf16>, vector<8x640xbf16>, vector<8x640xbf16>, vector<8x640xbf16>, vector<8x640xbf16>, vector<8x640xbf16>, vector<8x640xbf16>, vector<8x640xbf16> -> vector<80x640xbf16>
    %cst_127 = arith.constant dense<0.000000e+00> : vector<8x640xf32>
    %143 = tpu.matmul %96, %142, %cst_127 {dimension_numbers = #tpu.dot_dimension_numbers<[1], [0], [0], [1], [0, 0, 1, 1], [], []>} : vector<8x80xbf16>, vector<80x640xbf16>, vector<8x640xf32> -> vector<8x640xf32>
    %c0_128 = arith.constant 0 : index
    %c0_129 = arith.constant 0 : index
    %c40_130 = arith.constant 40 : index
    %144 = vector.load %arg8[%c0_128, %c0_129, %c40_130] : memref<2x8x400xbf16, #tpu.memory_space<vmem>>, vector<1x8x320xbf16>
    %145 = vector.shape_cast %144 : vector<1x8x320xbf16> to vector<8x320xbf16>
    %c1_131 = arith.constant 1 : index
    %c0_132 = arith.constant 0 : index
    %c40_133 = arith.constant 40 : index
    %146 = vector.load %arg8[%c1_131, %c0_132, %c40_133] : memref<2x8x400xbf16, #tpu.memory_space<vmem>>, vector<1x8x320xbf16>
    %147 = vector.shape_cast %146 : vector<1x8x320xbf16> to vector<8x320xbf16>
    %148 = tpu.concatenate %145, %147 in 1 : vector<8x320xbf16>, vector<8x320xbf16> -> vector<8x640xbf16>
    %149 = arith.extf %148 : vector<8x640xbf16> to vector<8x640xf32>
    %150 = arith.addf %143, %149 : vector<8x640xf32>
    %cst_134 = arith.constant 0.000000e+00 : f32
    %151 = vector.broadcast %cst_134 : f32 to vector<8x640xf32>
    %152 = arith.cmpf oge, %150, %151 : vector<8x640xf32>
    %153 = vector.broadcast %27 : f32 to vector<8x640xf32>
    %154 = arith.mulf %153, %150 : vector<8x640xf32>
    %155 = arith.select %152, %150, %154 : vector<8x640xi1>, vector<8x640xf32>
    %cst_135 = arith.constant 0.000000e+00 : f32
    %156 = vector.shape_cast %25 : vector<1x640xi1> to vector<1x640xi1>
    %157 = vector.broadcast %156 : vector<1x640xi1> to vector<8x640xi1>
    %158 = vector.broadcast %cst_135 : f32 to vector<8x640xf32>
    %159 = arith.select %157, %155, %158 : vector<8x640xi1>, vector<8x640xf32>
    %160 = arith.truncf %159 : vector<8x640xf32> to vector<8x640xbf16>
    %161 = vector.extract_strided_slice %160 {offsets = [0, 0], sizes = [8, 320], strides = [1, 1]} : vector<8x640xbf16> to vector<8x320xbf16>
    %c0_136 = arith.constant 0 : index
    %c0_137 = arith.constant 0 : index
    %c40_138 = arith.constant 40 : index
    %162 = vector.load %arg8[%c0_136, %c0_137, %c40_138] : memref<2x8x400xbf16, #tpu.memory_space<vmem>>, vector<1x8x320xbf16>
    %163 = vector.shape_cast %162 : vector<1x8x320xbf16> to vector<8x320xbf16>
    %164 = vector.shape_cast %161 : vector<8x320xbf16> to vector<1x8x320xbf16>
    tpu.vector_store %arg8[%c0_136, %c0_137, %c40_138], %164 {strides = array<i32>} : memref<2x8x400xbf16, #tpu.memory_space<vmem>>, vector<1x8x320xbf16>,
    %165 = vector.extract_strided_slice %160 {offsets = [0, 320], sizes = [8, 320], strides = [1, 1]} : vector<8x640xbf16> to vector<8x320xbf16>
    %c1_139 = arith.constant 1 : index
    %c0_140 = arith.constant 0 : index
    %c40_141 = arith.constant 40 : index
    %166 = vector.load %arg8[%c1_139, %c0_140, %c40_141] : memref<2x8x400xbf16, #tpu.memory_space<vmem>>, vector<1x8x320xbf16>
    %167 = vector.shape_cast %166 : vector<1x8x320xbf16> to vector<8x320xbf16>
    %168 = vector.shape_cast %165 : vector<8x320xbf16> to vector<1x8x320xbf16>
    tpu.vector_store %arg8[%c1_139, %c0_140, %c40_141], %168 {strides = array<i32>} : memref<2x8x400xbf16, #tpu.memory_space<vmem>>, vector<1x8x320xbf16>,
    %c1_142 = arith.constant 1 : index
    %c0_143 = arith.constant 0 : index
    %169 = memref.load %arg6[%c1_142, %c0_143] : memref<3x1xf32, #tpu.memory_space<smem>>
    %c1_144 = arith.constant 1 : index
    %c0_145 = arith.constant 0 : index
    %c0_146 = arith.constant 0 : index
    %170 = vector.load %arg1[%c1_144, %c0_145, %c0_146] : memref<2x8x80xbf16, #tpu.memory_space<vmem>>, vector<1x8x80xbf16>
    %171 = vector.shape_cast %170 : vector<1x8x80xbf16> to vector<8x80xbf16>
    %c0_147 = arith.constant 0 : index
    %c0_148 = arith.constant 0 : index
    %c19_149 = arith.constant 19 : index
    %172 = vector.load %arg8[%c0_147, %c0_148, %c19_149] : memref<2x8x400xbf16, #tpu.memory_space<vmem>>, vector<1x8x320xbf16>
    %173 = vector.shape_cast %172 : vector<1x8x320xbf16> to vector<8x320xbf16>
    %c1_150 = arith.constant 1 : index
    %c0_151 = arith.constant 0 : index
    %c19_152 = arith.constant 19 : index
    %174 = vector.load %arg8[%c1_150, %c0_151, %c19_152] : memref<2x8x400xbf16, #tpu.memory_space<vmem>>, vector<1x8x320xbf16>
    %175 = vector.shape_cast %174 : vector<1x8x320xbf16> to vector<8x320xbf16>
    %176 = tpu.concatenate %173, %175 in 1 : vector<8x320xbf16>, vector<8x320xbf16> -> vector<8x640xbf16>
    %c0_153 = arith.constant 0 : index
    %c0_154 = arith.constant 0 : index
    %c20_155 = arith.constant 20 : index
    %177 = vector.load %arg8[%c0_153, %c0_154, %c20_155] : memref<2x8x400xbf16, #tpu.memory_space<vmem>>, vector<1x8x320xbf16>
    %178 = vector.shape_cast %177 : vector<1x8x320xbf16> to vector<8x320xbf16>
    %c1_156 = arith.constant 1 : index
    %c0_157 = arith.constant 0 : index
    %c20_158 = arith.constant 20 : index
    %179 = vector.load %arg8[%c1_156, %c0_157, %c20_158] : memref<2x8x400xbf16, #tpu.memory_space<vmem>>, vector<1x8x320xbf16>
    %180 = vector.shape_cast %179 : vector<1x8x320xbf16> to vector<8x320xbf16>
    %181 = tpu.concatenate %178, %180 in 1 : vector<8x320xbf16>, vector<8x320xbf16> -> vector<8x640xbf16>
    %c0_159 = arith.constant 0 : index
    %c0_160 = arith.constant 0 : index
    %c21_161 = arith.constant 21 : index
    %182 = vector.load %arg8[%c0_159, %c0_160, %c21_161] : memref<2x8x400xbf16, #tpu.memory_space<vmem>>, vector<1x8x320xbf16>
    %183 = vector.shape_cast %182 : vector<1x8x320xbf16> to vector<8x320xbf16>
    %c1_162 = arith.constant 1 : index
    %c0_163 = arith.constant 0 : index
    %c21_164 = arith.constant 21 : index
    %184 = vector.load %arg8[%c1_162, %c0_163, %c21_164] : memref<2x8x400xbf16, #tpu.memory_space<vmem>>, vector<1x8x320xbf16>
    %185 = vector.shape_cast %184 : vector<1x8x320xbf16> to vector<8x320xbf16>
    %186 = tpu.concatenate %183, %185 in 1 : vector<8x320xbf16>, vector<8x320xbf16> -> vector<8x640xbf16>
    %c0_165 = arith.constant 0 : index
    %c0_166 = arith.constant 0 : index
    %c39_167 = arith.constant 39 : index
    %187 = vector.load %arg8[%c0_165, %c0_166, %c39_167] : memref<2x8x400xbf16, #tpu.memory_space<vmem>>, vector<1x8x320xbf16>
    %188 = vector.shape_cast %187 : vector<1x8x320xbf16> to vector<8x320xbf16>
    %c1_168 = arith.constant 1 : index
    %c0_169 = arith.constant 0 : index
    %c39_170 = arith.constant 39 : index
    %189 = vector.load %arg8[%c1_168, %c0_169, %c39_170] : memref<2x8x400xbf16, #tpu.memory_space<vmem>>, vector<1x8x320xbf16>
    %190 = vector.shape_cast %189 : vector<1x8x320xbf16> to vector<8x320xbf16>
    %191 = tpu.concatenate %188, %190 in 1 : vector<8x320xbf16>, vector<8x320xbf16> -> vector<8x640xbf16>
    %c0_171 = arith.constant 0 : index
    %c0_172 = arith.constant 0 : index
    %c40_173 = arith.constant 40 : index
    %192 = vector.load %arg8[%c0_171, %c0_172, %c40_173] : memref<2x8x400xbf16, #tpu.memory_space<vmem>>, vector<1x8x320xbf16>
    %193 = vector.shape_cast %192 : vector<1x8x320xbf16> to vector<8x320xbf16>
    %c1_174 = arith.constant 1 : index
    %c0_175 = arith.constant 0 : index
    %c40_176 = arith.constant 40 : index
    %194 = vector.load %arg8[%c1_174, %c0_175, %c40_176] : memref<2x8x400xbf16, #tpu.memory_space<vmem>>, vector<1x8x320xbf16>
    %195 = vector.shape_cast %194 : vector<1x8x320xbf16> to vector<8x320xbf16>
    %196 = tpu.concatenate %193, %195 in 1 : vector<8x320xbf16>, vector<8x320xbf16> -> vector<8x640xbf16>
    %c0_177 = arith.constant 0 : index
    %c0_178 = arith.constant 0 : index
    %c41_179 = arith.constant 41 : index
    %197 = vector.load %arg8[%c0_177, %c0_178, %c41_179] : memref<2x8x400xbf16, #tpu.memory_space<vmem>>, vector<1x8x320xbf16>
    %198 = vector.shape_cast %197 : vector<1x8x320xbf16> to vector<8x320xbf16>
    %c1_180 = arith.constant 1 : index
    %c0_181 = arith.constant 0 : index
    %c41_182 = arith.constant 41 : index
    %199 = vector.load %arg8[%c1_180, %c0_181, %c41_182] : memref<2x8x400xbf16, #tpu.memory_space<vmem>>, vector<1x8x320xbf16>
    %200 = vector.shape_cast %199 : vector<1x8x320xbf16> to vector<8x320xbf16>
    %201 = tpu.concatenate %198, %200 in 1 : vector<8x320xbf16>, vector<8x320xbf16> -> vector<8x640xbf16>
    %c0_183 = arith.constant 0 : index
    %c0_184 = arith.constant 0 : index
    %c59_185 = arith.constant 59 : index
    %202 = vector.load %arg8[%c0_183, %c0_184, %c59_185] : memref<2x8x400xbf16, #tpu.memory_space<vmem>>, vector<1x8x320xbf16>
    %203 = vector.shape_cast %202 : vector<1x8x320xbf16> to vector<8x320xbf16>
    %c1_186 = arith.constant 1 : index
    %c0_187 = arith.constant 0 : index
    %c59_188 = arith.constant 59 : index
    %204 = vector.load %arg8[%c1_186, %c0_187, %c59_188] : memref<2x8x400xbf16, #tpu.memory_space<vmem>>, vector<1x8x320xbf16>
    %205 = vector.shape_cast %204 : vector<1x8x320xbf16> to vector<8x320xbf16>
    %206 = tpu.concatenate %203, %205 in 1 : vector<8x320xbf16>, vector<8x320xbf16> -> vector<8x640xbf16>
    %c0_189 = arith.constant 0 : index
    %c0_190 = arith.constant 0 : index
    %c60_191 = arith.constant 60 : index
    %207 = vector.load %arg8[%c0_189, %c0_190, %c60_191] : memref<2x8x400xbf16, #tpu.memory_space<vmem>>, vector<1x8x320xbf16>
    %208 = vector.shape_cast %207 : vector<1x8x320xbf16> to vector<8x320xbf16>
    %c1_192 = arith.constant 1 : index
    %c0_193 = arith.constant 0 : index
    %c60_194 = arith.constant 60 : index
    %209 = vector.load %arg8[%c1_192, %c0_193, %c60_194] : memref<2x8x400xbf16, #tpu.memory_space<vmem>>, vector<1x8x320xbf16>
    %210 = vector.shape_cast %209 : vector<1x8x320xbf16> to vector<8x320xbf16>
    %211 = tpu.concatenate %208, %210 in 1 : vector<8x320xbf16>, vector<8x320xbf16> -> vector<8x640xbf16>
    %c0_195 = arith.constant 0 : index
    %c0_196 = arith.constant 0 : index
    %c61_197 = arith.constant 61 : index
    %212 = vector.load %arg8[%c0_195, %c0_196, %c61_197] : memref<2x8x400xbf16, #tpu.memory_space<vmem>>, vector<1x8x320xbf16>
    %213 = vector.shape_cast %212 : vector<1x8x320xbf16> to vector<8x320xbf16>
    %c1_198 = arith.constant 1 : index
    %c0_199 = arith.constant 0 : index
    %c61_200 = arith.constant 61 : index
    %214 = vector.load %arg8[%c1_198, %c0_199, %c61_200] : memref<2x8x400xbf16, #tpu.memory_space<vmem>>, vector<1x8x320xbf16>
    %215 = vector.shape_cast %214 : vector<1x8x320xbf16> to vector<8x320xbf16>
    %216 = tpu.concatenate %213, %215 in 1 : vector<8x320xbf16>, vector<8x320xbf16> -> vector<8x640xbf16>
    %217 = tpu.concatenate %176, %181, %186, %191, %196, %201, %206, %211, %216, %26 in 0 : vector<8x640xbf16>, vector<8x640xbf16>, vector<8x640xbf16>, vector<8x640xbf16>, vector<8x640xbf16>, vector<8x640xbf16>, vector<8x640xbf16>, vector<8x640xbf16>, vector<8x640xbf16>, vector<8x640xbf16> -> vector<80x640xbf16>
    %cst_201 = arith.constant dense<0.000000e+00> : vector<8x640xf32>
    %218 = tpu.matmul %171, %217, %cst_201 {dimension_numbers = #tpu.dot_dimension_numbers<[1], [0], [0], [1], [0, 0, 1, 1], [], []>} : vector<8x80xbf16>, vector<80x640xbf16>, vector<8x640xf32> -> vector<8x640xf32>
    %cst_202 = arith.constant 0.000000e+00 : f32
    %219 = vector.broadcast %cst_202 : f32 to vector<8x640xf32>
    %220 = arith.cmpf oge, %218, %219 : vector<8x640xf32>
    %221 = vector.broadcast %169 : f32 to vector<8x640xf32>
    %222 = arith.mulf %221, %218 : vector<8x640xf32>
    %223 = arith.select %220, %218, %222 : vector<8x640xi1>, vector<8x640xf32>
    %cst_203 = arith.constant 0.000000e+00 : f32
    %224 = vector.shape_cast %25 : vector<1x640xi1> to vector<1x640xi1>
    %225 = vector.broadcast %224 : vector<1x640xi1> to vector<8x640xi1>
    %226 = vector.broadcast %cst_203 : f32 to vector<8x640xf32>
    %227 = arith.select %225, %223, %226 : vector<8x640xi1>, vector<8x640xf32>
    %228 = arith.truncf %227 : vector<8x640xf32> to vector<8x640xbf16>
    %229 = vector.extract_strided_slice %228 {offsets = [0, 0], sizes = [8, 320], strides = [1, 1]} : vector<8x640xbf16> to vector<8x320xbf16>
    %c0_204 = arith.constant 0 : index
    %c0_205 = arith.constant 0 : index
    %c40_206 = arith.constant 40 : index
    %230 = vector.load %arg9[%c0_204, %c0_205, %c40_206] : memref<2x8x400xbf16, #tpu.memory_space<vmem>>, vector<1x8x320xbf16>
    %231 = vector.shape_cast %230 : vector<1x8x320xbf16> to vector<8x320xbf16>
    %232 = vector.shape_cast %229 : vector<8x320xbf16> to vector<1x8x320xbf16>
    tpu.vector_store %arg9[%c0_204, %c0_205, %c40_206], %232 {strides = array<i32>} : memref<2x8x400xbf16, #tpu.memory_space<vmem>>, vector<1x8x320xbf16>,
    %233 = vector.extract_strided_slice %228 {offsets = [0, 320], sizes = [8, 320], strides = [1, 1]} : vector<8x640xbf16> to vector<8x320xbf16>
    %c1_207 = arith.constant 1 : index
    %c0_208 = arith.constant 0 : index
    %c40_209 = arith.constant 40 : index
    %234 = vector.load %arg9[%c1_207, %c0_208, %c40_209] : memref<2x8x400xbf16, #tpu.memory_space<vmem>>, vector<1x8x320xbf16>
    %235 = vector.shape_cast %234 : vector<1x8x320xbf16> to vector<8x320xbf16>
    %236 = vector.shape_cast %233 : vector<8x320xbf16> to vector<1x8x320xbf16>
    tpu.vector_store %arg9[%c1_207, %c0_208, %c40_209], %236 {strides = array<i32>} : memref<2x8x400xbf16, #tpu.memory_space<vmem>>, vector<1x8x320xbf16>,
    %c1_210 = arith.constant 1 : index
    %c0_211 = arith.constant 0 : index
    %c0_212 = arith.constant 0 : index
    %237 = vector.load %arg2[%c1_210, %c0_211, %c0_212] : memref<2x8x80xbf16, #tpu.memory_space<vmem>>, vector<1x8x80xbf16>
    %238 = vector.shape_cast %237 : vector<1x8x80xbf16> to vector<8x80xbf16>
    %c0_213 = arith.constant 0 : index
    %c0_214 = arith.constant 0 : index
    %c19_215 = arith.constant 19 : index
    %239 = vector.load %arg9[%c0_213, %c0_214, %c19_215] : memref<2x8x400xbf16, #tpu.memory_space<vmem>>, vector<1x8x320xbf16>
    %240 = vector.shape_cast %239 : vector<1x8x320xbf16> to vector<8x320xbf16>
    %c1_216 = arith.constant 1 : index
    %c0_217 = arith.constant 0 : index
    %c19_218 = arith.constant 19 : index
    %241 = vector.load %arg9[%c1_216, %c0_217, %c19_218] : memref<2x8x400xbf16, #tpu.memory_space<vmem>>, vector<1x8x320xbf16>
    %242 = vector.shape_cast %241 : vector<1x8x320xbf16> to vector<8x320xbf16>
    %243 = tpu.concatenate %240, %242 in 1 : vector<8x320xbf16>, vector<8x320xbf16> -> vector<8x640xbf16>
    %c0_219 = arith.constant 0 : index
    %c0_220 = arith.constant 0 : index
    %c20_221 = arith.constant 20 : index
    %244 = vector.load %arg9[%c0_219, %c0_220, %c20_221] : memref<2x8x400xbf16, #tpu.memory_space<vmem>>, vector<1x8x320xbf16>
    %245 = vector.shape_cast %244 : vector<1x8x320xbf16> to vector<8x320xbf16>
    %c1_222 = arith.constant 1 : index
    %c0_223 = arith.constant 0 : index
    %c20_224 = arith.constant 20 : index
    %246 = vector.load %arg9[%c1_222, %c0_223, %c20_224] : memref<2x8x400xbf16, #tpu.memory_space<vmem>>, vector<1x8x320xbf16>
    %247 = vector.shape_cast %246 : vector<1x8x320xbf16> to vector<8x320xbf16>
    %248 = tpu.concatenate %245, %247 in 1 : vector<8x320xbf16>, vector<8x320xbf16> -> vector<8x640xbf16>
    %c0_225 = arith.constant 0 : index
    %c0_226 = arith.constant 0 : index
    %c21_227 = arith.constant 21 : index
    %249 = vector.load %arg9[%c0_225, %c0_226, %c21_227] : memref<2x8x400xbf16, #tpu.memory_space<vmem>>, vector<1x8x320xbf16>
    %250 = vector.shape_cast %249 : vector<1x8x320xbf16> to vector<8x320xbf16>
    %c1_228 = arith.constant 1 : index
    %c0_229 = arith.constant 0 : index
    %c21_230 = arith.constant 21 : index
    %251 = vector.load %arg9[%c1_228, %c0_229, %c21_230] : memref<2x8x400xbf16, #tpu.memory_space<vmem>>, vector<1x8x320xbf16>
    %252 = vector.shape_cast %251 : vector<1x8x320xbf16> to vector<8x320xbf16>
    %253 = tpu.concatenate %250, %252 in 1 : vector<8x320xbf16>, vector<8x320xbf16> -> vector<8x640xbf16>
    %c0_231 = arith.constant 0 : index
    %c0_232 = arith.constant 0 : index
    %c39_233 = arith.constant 39 : index
    %254 = vector.load %arg9[%c0_231, %c0_232, %c39_233] : memref<2x8x400xbf16, #tpu.memory_space<vmem>>, vector<1x8x320xbf16>
    %255 = vector.shape_cast %254 : vector<1x8x320xbf16> to vector<8x320xbf16>
    %c1_234 = arith.constant 1 : index
    %c0_235 = arith.constant 0 : index
    %c39_236 = arith.constant 39 : index
    %256 = vector.load %arg9[%c1_234, %c0_235, %c39_236] : memref<2x8x400xbf16, #tpu.memory_space<vmem>>, vector<1x8x320xbf16>
    %257 = vector.shape_cast %256 : vector<1x8x320xbf16> to vector<8x320xbf16>
    %258 = tpu.concatenate %255, %257 in 1 : vector<8x320xbf16>, vector<8x320xbf16> -> vector<8x640xbf16>
    %c0_237 = arith.constant 0 : index
    %c0_238 = arith.constant 0 : index
    %c40_239 = arith.constant 40 : index
    %259 = vector.load %arg9[%c0_237, %c0_238, %c40_239] : memref<2x8x400xbf16, #tpu.memory_space<vmem>>, vector<1x8x320xbf16>
    %260 = vector.shape_cast %259 : vector<1x8x320xbf16> to vector<8x320xbf16>
    %c1_240 = arith.constant 1 : index
    %c0_241 = arith.constant 0 : index
    %c40_242 = arith.constant 40 : index
    %261 = vector.load %arg9[%c1_240, %c0_241, %c40_242] : memref<2x8x400xbf16, #tpu.memory_space<vmem>>, vector<1x8x320xbf16>
    %262 = vector.shape_cast %261 : vector<1x8x320xbf16> to vector<8x320xbf16>
    %263 = tpu.concatenate %260, %262 in 1 : vector<8x320xbf16>, vector<8x320xbf16> -> vector<8x640xbf16>
    %c0_243 = arith.constant 0 : index
    %c0_244 = arith.constant 0 : index
    %c41_245 = arith.constant 41 : index
    %264 = vector.load %arg9[%c0_243, %c0_244, %c41_245] : memref<2x8x400xbf16, #tpu.memory_space<vmem>>, vector<1x8x320xbf16>
    %265 = vector.shape_cast %264 : vector<1x8x320xbf16> to vector<8x320xbf16>
    %c1_246 = arith.constant 1 : index
    %c0_247 = arith.constant 0 : index
    %c41_248 = arith.constant 41 : index
    %266 = vector.load %arg9[%c1_246, %c0_247, %c41_248] : memref<2x8x400xbf16, #tpu.memory_space<vmem>>, vector<1x8x320xbf16>
    %267 = vector.shape_cast %266 : vector<1x8x320xbf16> to vector<8x320xbf16>
    %268 = tpu.concatenate %265, %267 in 1 : vector<8x320xbf16>, vector<8x320xbf16> -> vector<8x640xbf16>
    %c0_249 = arith.constant 0 : index
    %c0_250 = arith.constant 0 : index
    %c59_251 = arith.constant 59 : index
    %269 = vector.load %arg9[%c0_249, %c0_250, %c59_251] : memref<2x8x400xbf16, #tpu.memory_space<vmem>>, vector<1x8x320xbf16>
    %270 = vector.shape_cast %269 : vector<1x8x320xbf16> to vector<8x320xbf16>
    %c1_252 = arith.constant 1 : index
    %c0_253 = arith.constant 0 : index
    %c59_254 = arith.constant 59 : index
    %271 = vector.load %arg9[%c1_252, %c0_253, %c59_254] : memref<2x8x400xbf16, #tpu.memory_space<vmem>>, vector<1x8x320xbf16>
    %272 = vector.shape_cast %271 : vector<1x8x320xbf16> to vector<8x320xbf16>
    %273 = tpu.concatenate %270, %272 in 1 : vector<8x320xbf16>, vector<8x320xbf16> -> vector<8x640xbf16>
    %c0_255 = arith.constant 0 : index
    %c0_256 = arith.constant 0 : index
    %c60_257 = arith.constant 60 : index
    %274 = vector.load %arg9[%c0_255, %c0_256, %c60_257] : memref<2x8x400xbf16, #tpu.memory_space<vmem>>, vector<1x8x320xbf16>
    %275 = vector.shape_cast %274 : vector<1x8x320xbf16> to vector<8x320xbf16>
    %c1_258 = arith.constant 1 : index
    %c0_259 = arith.constant 0 : index
    %c60_260 = arith.constant 60 : index
    %276 = vector.load %arg9[%c1_258, %c0_259, %c60_260] : memref<2x8x400xbf16, #tpu.memory_space<vmem>>, vector<1x8x320xbf16>
    %277 = vector.shape_cast %276 : vector<1x8x320xbf16> to vector<8x320xbf16>
    %278 = tpu.concatenate %275, %277 in 1 : vector<8x320xbf16>, vector<8x320xbf16> -> vector<8x640xbf16>
    %c0_261 = arith.constant 0 : index
    %c0_262 = arith.constant 0 : index
    %c61_263 = arith.constant 61 : index
    %279 = vector.load %arg9[%c0_261, %c0_262, %c61_263] : memref<2x8x400xbf16, #tpu.memory_space<vmem>>, vector<1x8x320xbf16>
    %280 = vector.shape_cast %279 : vector<1x8x320xbf16> to vector<8x320xbf16>
    %c1_264 = arith.constant 1 : index
    %c0_265 = arith.constant 0 : index
    %c61_266 = arith.constant 61 : index
    %281 = vector.load %arg9[%c1_264, %c0_265, %c61_266] : memref<2x8x400xbf16, #tpu.memory_space<vmem>>, vector<1x8x320xbf16>
    %282 = vector.shape_cast %281 : vector<1x8x320xbf16> to vector<8x320xbf16>
    %283 = tpu.concatenate %280, %282 in 1 : vector<8x320xbf16>, vector<8x320xbf16> -> vector<8x640xbf16>
    %284 = tpu.concatenate %243, %248, %253, %258, %263, %268, %273, %278, %283, %26 in 0 : vector<8x640xbf16>, vector<8x640xbf16>, vector<8x640xbf16>, vector<8x640xbf16>, vector<8x640xbf16>, vector<8x640xbf16>, vector<8x640xbf16>, vector<8x640xbf16>, vector<8x640xbf16>, vector<8x640xbf16> -> vector<80x640xbf16>
    %cst_267 = arith.constant dense<0.000000e+00> : vector<8x640xf32>
    %285 = tpu.matmul %238, %284, %cst_267 {dimension_numbers = #tpu.dot_dimension_numbers<[1], [0], [0], [1], [0, 0, 1, 1], [], []>} : vector<8x80xbf16>, vector<80x640xbf16>, vector<8x640xf32> -> vector<8x640xf32>
    %c0_268 = arith.constant 0 : index
    %c0_269 = arith.constant 0 : index
    %c40_270 = arith.constant 40 : index
    %286 = vector.load %arg8[%c0_268, %c0_269, %c40_270] : memref<2x8x400xbf16, #tpu.memory_space<vmem>>, vector<1x8x320xbf16>
    %287 = vector.shape_cast %286 : vector<1x8x320xbf16> to vector<8x320xbf16>
    %c1_271 = arith.constant 1 : index
    %c0_272 = arith.constant 0 : index
    %c40_273 = arith.constant 40 : index
    %288 = vector.load %arg8[%c1_271, %c0_272, %c40_273] : memref<2x8x400xbf16, #tpu.memory_space<vmem>>, vector<1x8x320xbf16>
    %289 = vector.shape_cast %288 : vector<1x8x320xbf16> to vector<8x320xbf16>
    %290 = tpu.concatenate %287, %289 in 1 : vector<8x320xbf16>, vector<8x320xbf16> -> vector<8x640xbf16>
    %291 = arith.extf %290 : vector<8x640xbf16> to vector<8x640xf32>
    %292 = arith.addf %285, %291 : vector<8x640xf32>
    %cst_274 = arith.constant 0.000000e+00 : f32
    %293 = vector.broadcast %cst_274 : f32 to vector<8x640xf32>
    %294 = arith.cmpf oge, %292, %293 : vector<8x640xf32>
    %295 = vector.broadcast %169 : f32 to vector<8x640xf32>
    %296 = arith.mulf %295, %292 : vector<8x640xf32>
    %297 = arith.select %294, %292, %296 : vector<8x640xi1>, vector<8x640xf32>
    %cst_275 = arith.constant 0.000000e+00 : f32
    %298 = vector.shape_cast %25 : vector<1x640xi1> to vector<1x640xi1>
    %299 = vector.broadcast %298 : vector<1x640xi1> to vector<8x640xi1>
    %300 = vector.broadcast %cst_275 : f32 to vector<8x640xf32>
    %301 = arith.select %299, %297, %300 : vector<8x640xi1>, vector<8x640xf32>
    %302 = arith.truncf %301 : vector<8x640xf32> to vector<8x640xbf16>
    %303 = vector.extract_strided_slice %302 {offsets = [0, 0], sizes = [8, 320], strides = [1, 1]} : vector<8x640xbf16> to vector<8x320xbf16>
    %c0_276 = arith.constant 0 : index
    %c0_277 = arith.constant 0 : index
    %c40_278 = arith.constant 40 : index
    %304 = vector.load %arg8[%c0_276, %c0_277, %c40_278] : memref<2x8x400xbf16, #tpu.memory_space<vmem>>, vector<1x8x320xbf16>
    %305 = vector.shape_cast %304 : vector<1x8x320xbf16> to vector<8x320xbf16>
    %306 = vector.shape_cast %303 : vector<8x320xbf16> to vector<1x8x320xbf16>
    tpu.vector_store %arg8[%c0_276, %c0_277, %c40_278], %306 {strides = array<i32>} : memref<2x8x400xbf16, #tpu.memory_space<vmem>>, vector<1x8x320xbf16>,
    %307 = vector.extract_strided_slice %302 {offsets = [0, 320], sizes = [8, 320], strides = [1, 1]} : vector<8x640xbf16> to vector<8x320xbf16>
    %c1_279 = arith.constant 1 : index
    %c0_280 = arith.constant 0 : index
    %c40_281 = arith.constant 40 : index
    %308 = vector.load %arg8[%c1_279, %c0_280, %c40_281] : memref<2x8x400xbf16, #tpu.memory_space<vmem>>, vector<1x8x320xbf16>
    %309 = vector.shape_cast %308 : vector<1x8x320xbf16> to vector<8x320xbf16>
    %310 = vector.shape_cast %307 : vector<8x320xbf16> to vector<1x8x320xbf16>
    tpu.vector_store %arg8[%c1_279, %c0_280, %c40_281], %310 {strides = array<i32>} : memref<2x8x400xbf16, #tpu.memory_space<vmem>>, vector<1x8x320xbf16>,
    %c2 = arith.constant 2 : index
    %c0_282 = arith.constant 0 : index
    %311 = memref.load %arg6[%c2, %c0_282] : memref<3x1xf32, #tpu.memory_space<smem>>
    %c0_283 = arith.constant 0 : index
    %c0_284 = arith.constant 0 : index
    %c0_285 = arith.constant 0 : index
    %312 = vector.load %arg8[%c0_283, %c0_284, %c0_285] : memref<2x8x400xbf16, #tpu.memory_space<vmem>>, vector<1x8x400xbf16>
    %313 = vector.shape_cast %312 : vector<1x8x400xbf16> to vector<8x400xbf16>
    %c0_286 = arith.constant 0 : index
    %c0_287 = arith.constant 0 : index
    %314 = vector.load %arg3[%c0_286, %c0_287] : memref<400x2304xbf16, #tpu.memory_space<vmem>>, vector<400x2304xbf16>
    %cst_288 = arith.constant dense<0.000000e+00> : vector<8x2304xf32>
    %315 = tpu.matmul %313, %314, %cst_288 {dimension_numbers = #tpu.dot_dimension_numbers<[1], [0], [0], [1], [0, 0, 1, 1], [], []>} : vector<8x400xbf16>, vector<400x2304xbf16>, vector<8x2304xf32> -> vector<8x2304xf32>
    %316 = arith.truncf %315 : vector<8x2304xf32> to vector<8x2304xbf16>
    %c0_289 = arith.constant 0 : index
    %c0_290 = arith.constant 0 : index
    %c0_291 = arith.constant 0 : index
    %317 = vector.load %arg4[%c0_289, %c0_290, %c0_291] : memref<36x16x8xbf16, #tpu.memory_space<vmem>>, vector<1x16x8xbf16>
    %318 = vector.shape_cast %317 : vector<1x16x8xbf16> to vector<16x8xbf16>
    %319 = vector.extract_strided_slice %316 {offsets = [0, 0], sizes = [8, 64], strides = [1, 1]} : vector<8x2304xbf16> to vector<8x64xbf16>
    %cst_292 = arith.constant dense<0.000000e+00> : vector<16x64xf32>
    %320 = tpu.matmul %318, %319, %cst_292 {dimension_numbers = #tpu.dot_dimension_numbers<[1], [0], [0], [1], [0, 0, 1, 1], [], []>} : vector<16x8xbf16>, vector<8x64xbf16>, vector<16x64xf32> -> vector<16x64xf32>
    %c1_293 = arith.constant 1 : index
    %c0_294 = arith.constant 0 : index
    %c0_295 = arith.constant 0 : index
    %321 = vector.load %arg4[%c1_293, %c0_294, %c0_295] : memref<36x16x8xbf16, #tpu.memory_space<vmem>>, vector<1x16x8xbf16>
    %322 = vector.shape_cast %321 : vector<1x16x8xbf16> to vector<16x8xbf16>
    %323 = vector.extract_strided_slice %316 {offsets = [0, 64], sizes = [8, 64], strides = [1, 1]} : vector<8x2304xbf16> to vector<8x64xbf16>
    %cst_296 = arith.constant dense<0.000000e+00> : vector<16x64xf32>
    %324 = tpu.matmul %322, %323, %cst_296 {dimension_numbers = #tpu.dot_dimension_numbers<[1], [0], [0], [1], [0, 0, 1, 1], [], []>} : vector<16x8xbf16>, vector<8x64xbf16>, vector<16x64xf32> -> vector<16x64xf32>
    %325 = arith.addf %320, %324 : vector<16x64xf32>
    %c2_297 = arith.constant 2 : index
    %c0_298 = arith.constant 0 : index
    %c0_299 = arith.constant 0 : index
    %326 = vector.load %arg4[%c2_297, %c0_298, %c0_299] : memref<36x16x8xbf16, #tpu.memory_space<vmem>>, vector<1x16x8xbf16>
    %327 = vector.shape_cast %326 : vector<1x16x8xbf16> to vector<16x8xbf16>
    %328 = vector.extract_strided_slice %316 {offsets = [0, 128], sizes = [8, 64], strides = [1, 1]} : vector<8x2304xbf16> to vector<8x64xbf16>
    %cst_300 = arith.constant dense<0.000000e+00> : vector<16x64xf32>
    %329 = tpu.matmul %327, %328, %cst_300 {dimension_numbers = #tpu.dot_dimension_numbers<[1], [0], [0], [1], [0, 0, 1, 1], [], []>} : vector<16x8xbf16>, vector<8x64xbf16>, vector<16x64xf32> -> vector<16x64xf32>
    %330 = arith.addf %325, %329 : vector<16x64xf32>
    %c3 = arith.constant 3 : index
    %c0_301 = arith.constant 0 : index
    %c0_302 = arith.constant 0 : index
    %331 = vector.load %arg4[%c3, %c0_301, %c0_302] : memref<36x16x8xbf16, #tpu.memory_space<vmem>>, vector<1x16x8xbf16>
    %332 = vector.shape_cast %331 : vector<1x16x8xbf16> to vector<16x8xbf16>
    %333 = vector.extract_strided_slice %316 {offsets = [0, 192], sizes = [8, 64], strides = [1, 1]} : vector<8x2304xbf16> to vector<8x64xbf16>
    %cst_303 = arith.constant dense<0.000000e+00> : vector<16x64xf32>
    %334 = tpu.matmul %332, %333, %cst_303 {dimension_numbers = #tpu.dot_dimension_numbers<[1], [0], [0], [1], [0, 0, 1, 1], [], []>} : vector<16x8xbf16>, vector<8x64xbf16>, vector<16x64xf32> -> vector<16x64xf32>
    %335 = arith.addf %330, %334 : vector<16x64xf32>
    %c4 = arith.constant 4 : index
    %c0_304 = arith.constant 0 : index
    %c0_305 = arith.constant 0 : index
    %336 = vector.load %arg4[%c4, %c0_304, %c0_305] : memref<36x16x8xbf16, #tpu.memory_space<vmem>>, vector<1x16x8xbf16>
    %337 = vector.shape_cast %336 : vector<1x16x8xbf16> to vector<16x8xbf16>
    %338 = vector.extract_strided_slice %316 {offsets = [0, 256], sizes = [8, 64], strides = [1, 1]} : vector<8x2304xbf16> to vector<8x64xbf16>
    %cst_306 = arith.constant dense<0.000000e+00> : vector<16x64xf32>
    %339 = tpu.matmul %337, %338, %cst_306 {dimension_numbers = #tpu.dot_dimension_numbers<[1], [0], [0], [1], [0, 0, 1, 1], [], []>} : vector<16x8xbf16>, vector<8x64xbf16>, vector<16x64xf32> -> vector<16x64xf32>
    %340 = arith.addf %335, %339 : vector<16x64xf32>
    %c5 = arith.constant 5 : index
    %c0_307 = arith.constant 0 : index
    %c0_308 = arith.constant 0 : index
    %341 = vector.load %arg4[%c5, %c0_307, %c0_308] : memref<36x16x8xbf16, #tpu.memory_space<vmem>>, vector<1x16x8xbf16>
    %342 = vector.shape_cast %341 : vector<1x16x8xbf16> to vector<16x8xbf16>
    %343 = vector.extract_strided_slice %316 {offsets = [0, 320], sizes = [8, 64], strides = [1, 1]} : vector<8x2304xbf16> to vector<8x64xbf16>
    %cst_309 = arith.constant dense<0.000000e+00> : vector<16x64xf32>
    %344 = tpu.matmul %342, %343, %cst_309 {dimension_numbers = #tpu.dot_dimension_numbers<[1], [0], [0], [1], [0, 0, 1, 1], [], []>} : vector<16x8xbf16>, vector<8x64xbf16>, vector<16x64xf32> -> vector<16x64xf32>
    %345 = arith.addf %340, %344 : vector<16x64xf32>
    %c6 = arith.constant 6 : index
    %c0_310 = arith.constant 0 : index
    %c0_311 = arith.constant 0 : index
    %346 = vector.load %arg4[%c6, %c0_310, %c0_311] : memref<36x16x8xbf16, #tpu.memory_space<vmem>>, vector<1x16x8xbf16>
    %347 = vector.shape_cast %346 : vector<1x16x8xbf16> to vector<16x8xbf16>
    %348 = vector.extract_strided_slice %316 {offsets = [0, 384], sizes = [8, 64], strides = [1, 1]} : vector<8x2304xbf16> to vector<8x64xbf16>
    %cst_312 = arith.constant dense<0.000000e+00> : vector<16x64xf32>
    %349 = tpu.matmul %347, %348, %cst_312 {dimension_numbers = #tpu.dot_dimension_numbers<[1], [0], [0], [1], [0, 0, 1, 1], [], []>} : vector<16x8xbf16>, vector<8x64xbf16>, vector<16x64xf32> -> vector<16x64xf32>
    %350 = arith.addf %345, %349 : vector<16x64xf32>
    %c7 = arith.constant 7 : index
    %c0_313 = arith.constant 0 : index
    %c0_314 = arith.constant 0 : index
    %351 = vector.load %arg4[%c7, %c0_313, %c0_314] : memref<36x16x8xbf16, #tpu.memory_space<vmem>>, vector<1x16x8xbf16>
    %352 = vector.shape_cast %351 : vector<1x16x8xbf16> to vector<16x8xbf16>
    %353 = vector.extract_strided_slice %316 {offsets = [0, 448], sizes = [8, 64], strides = [1, 1]} : vector<8x2304xbf16> to vector<8x64xbf16>
    %cst_315 = arith.constant dense<0.000000e+00> : vector<16x64xf32>
    %354 = tpu.matmul %352, %353, %cst_315 {dimension_numbers = #tpu.dot_dimension_numbers<[1], [0], [0], [1], [0, 0, 1, 1], [], []>} : vector<16x8xbf16>, vector<8x64xbf16>, vector<16x64xf32> -> vector<16x64xf32>
    %355 = arith.addf %350, %354 : vector<16x64xf32>
    %c8 = arith.constant 8 : index
    %c0_316 = arith.constant 0 : index
    %c0_317 = arith.constant 0 : index
    %356 = vector.load %arg4[%c8, %c0_316, %c0_317] : memref<36x16x8xbf16, #tpu.memory_space<vmem>>, vector<1x16x8xbf16>
    %357 = vector.shape_cast %356 : vector<1x16x8xbf16> to vector<16x8xbf16>
    %358 = vector.extract_strided_slice %316 {offsets = [0, 512], sizes = [8, 64], strides = [1, 1]} : vector<8x2304xbf16> to vector<8x64xbf16>
    %cst_318 = arith.constant dense<0.000000e+00> : vector<16x64xf32>
    %359 = tpu.matmul %357, %358, %cst_318 {dimension_numbers = #tpu.dot_dimension_numbers<[1], [0], [0], [1], [0, 0, 1, 1], [], []>} : vector<16x8xbf16>, vector<8x64xbf16>, vector<16x64xf32> -> vector<16x64xf32>
    %360 = arith.addf %355, %359 : vector<16x64xf32>
    %c9 = arith.constant 9 : index
    %c0_319 = arith.constant 0 : index
    %c0_320 = arith.constant 0 : index
    %361 = vector.load %arg4[%c9, %c0_319, %c0_320] : memref<36x16x8xbf16, #tpu.memory_space<vmem>>, vector<1x16x8xbf16>
    %362 = vector.shape_cast %361 : vector<1x16x8xbf16> to vector<16x8xbf16>
    %363 = vector.extract_strided_slice %316 {offsets = [0, 576], sizes = [8, 64], strides = [1, 1]} : vector<8x2304xbf16> to vector<8x64xbf16>
    %cst_321 = arith.constant dense<0.000000e+00> : vector<16x64xf32>
    %364 = tpu.matmul %362, %363, %cst_321 {dimension_numbers = #tpu.dot_dimension_numbers<[1], [0], [0], [1], [0, 0, 1, 1], [], []>} : vector<16x8xbf16>, vector<8x64xbf16>, vector<16x64xf32> -> vector<16x64xf32>
    %365 = arith.addf %360, %364 : vector<16x64xf32>
    %c10 = arith.constant 10 : index
    %c0_322 = arith.constant 0 : index
    %c0_323 = arith.constant 0 : index
    %366 = vector.load %arg4[%c10, %c0_322, %c0_323] : memref<36x16x8xbf16, #tpu.memory_space<vmem>>, vector<1x16x8xbf16>
    %367 = vector.shape_cast %366 : vector<1x16x8xbf16> to vector<16x8xbf16>
    %368 = vector.extract_strided_slice %316 {offsets = [0, 640], sizes = [8, 64], strides = [1, 1]} : vector<8x2304xbf16> to vector<8x64xbf16>
    %cst_324 = arith.constant dense<0.000000e+00> : vector<16x64xf32>
    %369 = tpu.matmul %367, %368, %cst_324 {dimension_numbers = #tpu.dot_dimension_numbers<[1], [0], [0], [1], [0, 0, 1, 1], [], []>} : vector<16x8xbf16>, vector<8x64xbf16>, vector<16x64xf32> -> vector<16x64xf32>
    %370 = arith.addf %365, %369 : vector<16x64xf32>
    %c11 = arith.constant 11 : index
    %c0_325 = arith.constant 0 : index
    %c0_326 = arith.constant 0 : index
    %371 = vector.load %arg4[%c11, %c0_325, %c0_326] : memref<36x16x8xbf16, #tpu.memory_space<vmem>>, vector<1x16x8xbf16>
    %372 = vector.shape_cast %371 : vector<1x16x8xbf16> to vector<16x8xbf16>
    %373 = vector.extract_strided_slice %316 {offsets = [0, 704], sizes = [8, 64], strides = [1, 1]} : vector<8x2304xbf16> to vector<8x64xbf16>
    %cst_327 = arith.constant dense<0.000000e+00> : vector<16x64xf32>
    %374 = tpu.matmul %372, %373, %cst_327 {dimension_numbers = #tpu.dot_dimension_numbers<[1], [0], [0], [1], [0, 0, 1, 1], [], []>} : vector<16x8xbf16>, vector<8x64xbf16>, vector<16x64xf32> -> vector<16x64xf32>
    %375 = arith.addf %370, %374 : vector<16x64xf32>
    %c12 = arith.constant 12 : index
    %c0_328 = arith.constant 0 : index
    %c0_329 = arith.constant 0 : index
    %376 = vector.load %arg4[%c12, %c0_328, %c0_329] : memref<36x16x8xbf16, #tpu.memory_space<vmem>>, vector<1x16x8xbf16>
    %377 = vector.shape_cast %376 : vector<1x16x8xbf16> to vector<16x8xbf16>
    %378 = vector.extract_strided_slice %316 {offsets = [0, 768], sizes = [8, 64], strides = [1, 1]} : vector<8x2304xbf16> to vector<8x64xbf16>
    %cst_330 = arith.constant dense<0.000000e+00> : vector<16x64xf32>
    %379 = tpu.matmul %377, %378, %cst_330 {dimension_numbers = #tpu.dot_dimension_numbers<[1], [0], [0], [1], [0, 0, 1, 1], [], []>} : vector<16x8xbf16>, vector<8x64xbf16>, vector<16x64xf32> -> vector<16x64xf32>
    %380 = arith.addf %375, %379 : vector<16x64xf32>
    %c13 = arith.constant 13 : index
    %c0_331 = arith.constant 0 : index
    %c0_332 = arith.constant 0 : index
    %381 = vector.load %arg4[%c13, %c0_331, %c0_332] : memref<36x16x8xbf16, #tpu.memory_space<vmem>>, vector<1x16x8xbf16>
    %382 = vector.shape_cast %381 : vector<1x16x8xbf16> to vector<16x8xbf16>
    %383 = vector.extract_strided_slice %316 {offsets = [0, 832], sizes = [8, 64], strides = [1, 1]} : vector<8x2304xbf16> to vector<8x64xbf16>
    %cst_333 = arith.constant dense<0.000000e+00> : vector<16x64xf32>
    %384 = tpu.matmul %382, %383, %cst_333 {dimension_numbers = #tpu.dot_dimension_numbers<[1], [0], [0], [1], [0, 0, 1, 1], [], []>} : vector<16x8xbf16>, vector<8x64xbf16>, vector<16x64xf32> -> vector<16x64xf32>
    %385 = arith.addf %380, %384 : vector<16x64xf32>
    %c14 = arith.constant 14 : index
    %c0_334 = arith.constant 0 : index
    %c0_335 = arith.constant 0 : index
    %386 = vector.load %arg4[%c14, %c0_334, %c0_335] : memref<36x16x8xbf16, #tpu.memory_space<vmem>>, vector<1x16x8xbf16>
    %387 = vector.shape_cast %386 : vector<1x16x8xbf16> to vector<16x8xbf16>
    %388 = vector.extract_strided_slice %316 {offsets = [0, 896], sizes = [8, 64], strides = [1, 1]} : vector<8x2304xbf16> to vector<8x64xbf16>
    %cst_336 = arith.constant dense<0.000000e+00> : vector<16x64xf32>
    %389 = tpu.matmul %387, %388, %cst_336 {dimension_numbers = #tpu.dot_dimension_numbers<[1], [0], [0], [1], [0, 0, 1, 1], [], []>} : vector<16x8xbf16>, vector<8x64xbf16>, vector<16x64xf32> -> vector<16x64xf32>
    %390 = arith.addf %385, %389 : vector<16x64xf32>
    %c15 = arith.constant 15 : index
    %c0_337 = arith.constant 0 : index
    %c0_338 = arith.constant 0 : index
    %391 = vector.load %arg4[%c15, %c0_337, %c0_338] : memref<36x16x8xbf16, #tpu.memory_space<vmem>>, vector<1x16x8xbf16>
    %392 = vector.shape_cast %391 : vector<1x16x8xbf16> to vector<16x8xbf16>
    %393 = vector.extract_strided_slice %316 {offsets = [0, 960], sizes = [8, 64], strides = [1, 1]} : vector<8x2304xbf16> to vector<8x64xbf16>
    %cst_339 = arith.constant dense<0.000000e+00> : vector<16x64xf32>
    %394 = tpu.matmul %392, %393, %cst_339 {dimension_numbers = #tpu.dot_dimension_numbers<[1], [0], [0], [1], [0, 0, 1, 1], [], []>} : vector<16x8xbf16>, vector<8x64xbf16>, vector<16x64xf32> -> vector<16x64xf32>
    %395 = arith.addf %390, %394 : vector<16x64xf32>
    %c16 = arith.constant 16 : index
    %c0_340 = arith.constant 0 : index
    %c0_341 = arith.constant 0 : index
    %396 = vector.load %arg4[%c16, %c0_340, %c0_341] : memref<36x16x8xbf16, #tpu.memory_space<vmem>>, vector<1x16x8xbf16>
    %397 = vector.shape_cast %396 : vector<1x16x8xbf16> to vector<16x8xbf16>
    %398 = vector.extract_strided_slice %316 {offsets = [0, 1024], sizes = [8, 64], strides = [1, 1]} : vector<8x2304xbf16> to vector<8x64xbf16>
    %cst_342 = arith.constant dense<0.000000e+00> : vector<16x64xf32>
    %399 = tpu.matmul %397, %398, %cst_342 {dimension_numbers = #tpu.dot_dimension_numbers<[1], [0], [0], [1], [0, 0, 1, 1], [], []>} : vector<16x8xbf16>, vector<8x64xbf16>, vector<16x64xf32> -> vector<16x64xf32>
    %400 = arith.addf %395, %399 : vector<16x64xf32>
    %c17 = arith.constant 17 : index
    %c0_343 = arith.constant 0 : index
    %c0_344 = arith.constant 0 : index
    %401 = vector.load %arg4[%c17, %c0_343, %c0_344] : memref<36x16x8xbf16, #tpu.memory_space<vmem>>, vector<1x16x8xbf16>
    %402 = vector.shape_cast %401 : vector<1x16x8xbf16> to vector<16x8xbf16>
    %403 = vector.extract_strided_slice %316 {offsets = [0, 1088], sizes = [8, 64], strides = [1, 1]} : vector<8x2304xbf16> to vector<8x64xbf16>
    %cst_345 = arith.constant dense<0.000000e+00> : vector<16x64xf32>
    %404 = tpu.matmul %402, %403, %cst_345 {dimension_numbers = #tpu.dot_dimension_numbers<[1], [0], [0], [1], [0, 0, 1, 1], [], []>} : vector<16x8xbf16>, vector<8x64xbf16>, vector<16x64xf32> -> vector<16x64xf32>
    %405 = arith.addf %400, %404 : vector<16x64xf32>
    %c18 = arith.constant 18 : index
    %c0_346 = arith.constant 0 : index
    %c0_347 = arith.constant 0 : index
    %406 = vector.load %arg4[%c18, %c0_346, %c0_347] : memref<36x16x8xbf16, #tpu.memory_space<vmem>>, vector<1x16x8xbf16>
    %407 = vector.shape_cast %406 : vector<1x16x8xbf16> to vector<16x8xbf16>
    %408 = vector.extract_strided_slice %316 {offsets = [0, 1152], sizes = [8, 64], strides = [1, 1]} : vector<8x2304xbf16> to vector<8x64xbf16>
    %cst_348 = arith.constant dense<0.000000e+00> : vector<16x64xf32>
    %409 = tpu.matmul %407, %408, %cst_348 {dimension_numbers = #tpu.dot_dimension_numbers<[1], [0], [0], [1], [0, 0, 1, 1], [], []>} : vector<16x8xbf16>, vector<8x64xbf16>, vector<16x64xf32> -> vector<16x64xf32>
    %410 = arith.addf %405, %409 : vector<16x64xf32>
    %c19_349 = arith.constant 19 : index
    %c0_350 = arith.constant 0 : index
    %c0_351 = arith.constant 0 : index
    %411 = vector.load %arg4[%c19_349, %c0_350, %c0_351] : memref<36x16x8xbf16, #tpu.memory_space<vmem>>, vector<1x16x8xbf16>
    %412 = vector.shape_cast %411 : vector<1x16x8xbf16> to vector<16x8xbf16>
    %413 = vector.extract_strided_slice %316 {offsets = [0, 1216], sizes = [8, 64], strides = [1, 1]} : vector<8x2304xbf16> to vector<8x64xbf16>
    %cst_352 = arith.constant dense<0.000000e+00> : vector<16x64xf32>
    %414 = tpu.matmul %412, %413, %cst_352 {dimension_numbers = #tpu.dot_dimension_numbers<[1], [0], [0], [1], [0, 0, 1, 1], [], []>} : vector<16x8xbf16>, vector<8x64xbf16>, vector<16x64xf32> -> vector<16x64xf32>
    %415 = arith.addf %410, %414 : vector<16x64xf32>
    %c20_353 = arith.constant 20 : index
    %c0_354 = arith.constant 0 : index
    %c0_355 = arith.constant 0 : index
    %416 = vector.load %arg4[%c20_353, %c0_354, %c0_355] : memref<36x16x8xbf16, #tpu.memory_space<vmem>>, vector<1x16x8xbf16>
    %417 = vector.shape_cast %416 : vector<1x16x8xbf16> to vector<16x8xbf16>
    %418 = vector.extract_strided_slice %316 {offsets = [0, 1280], sizes = [8, 64], strides = [1, 1]} : vector<8x2304xbf16> to vector<8x64xbf16>
    %cst_356 = arith.constant dense<0.000000e+00> : vector<16x64xf32>
    %419 = tpu.matmul %417, %418, %cst_356 {dimension_numbers = #tpu.dot_dimension_numbers<[1], [0], [0], [1], [0, 0, 1, 1], [], []>} : vector<16x8xbf16>, vector<8x64xbf16>, vector<16x64xf32> -> vector<16x64xf32>
    %420 = arith.addf %415, %419 : vector<16x64xf32>
    %c21_357 = arith.constant 21 : index
    %c0_358 = arith.constant 0 : index
    %c0_359 = arith.constant 0 : index
    %421 = vector.load %arg4[%c21_357, %c0_358, %c0_359] : memref<36x16x8xbf16, #tpu.memory_space<vmem>>, vector<1x16x8xbf16>
    %422 = vector.shape_cast %421 : vector<1x16x8xbf16> to vector<16x8xbf16>
    %423 = vector.extract_strided_slice %316 {offsets = [0, 1344], sizes = [8, 64], strides = [1, 1]} : vector<8x2304xbf16> to vector<8x64xbf16>
    %cst_360 = arith.constant dense<0.000000e+00> : vector<16x64xf32>
    %424 = tpu.matmul %422, %423, %cst_360 {dimension_numbers = #tpu.dot_dimension_numbers<[1], [0], [0], [1], [0, 0, 1, 1], [], []>} : vector<16x8xbf16>, vector<8x64xbf16>, vector<16x64xf32> -> vector<16x64xf32>
    %425 = arith.addf %420, %424 : vector<16x64xf32>
    %c22 = arith.constant 22 : index
    %c0_361 = arith.constant 0 : index
    %c0_362 = arith.constant 0 : index
    %426 = vector.load %arg4[%c22, %c0_361, %c0_362] : memref<36x16x8xbf16, #tpu.memory_space<vmem>>, vector<1x16x8xbf16>
    %427 = vector.shape_cast %426 : vector<1x16x8xbf16> to vector<16x8xbf16>
    %428 = vector.extract_strided_slice %316 {offsets = [0, 1408], sizes = [8, 64], strides = [1, 1]} : vector<8x2304xbf16> to vector<8x64xbf16>
    %cst_363 = arith.constant dense<0.000000e+00> : vector<16x64xf32>
    %429 = tpu.matmul %427, %428, %cst_363 {dimension_numbers = #tpu.dot_dimension_numbers<[1], [0], [0], [1], [0, 0, 1, 1], [], []>} : vector<16x8xbf16>, vector<8x64xbf16>, vector<16x64xf32> -> vector<16x64xf32>
    %430 = arith.addf %425, %429 : vector<16x64xf32>
    %c23 = arith.constant 23 : index
    %c0_364 = arith.constant 0 : index
    %c0_365 = arith.constant 0 : index
    %431 = vector.load %arg4[%c23, %c0_364, %c0_365] : memref<36x16x8xbf16, #tpu.memory_space<vmem>>, vector<1x16x8xbf16>
    %432 = vector.shape_cast %431 : vector<1x16x8xbf16> to vector<16x8xbf16>
    %433 = vector.extract_strided_slice %316 {offsets = [0, 1472], sizes = [8, 64], strides = [1, 1]} : vector<8x2304xbf16> to vector<8x64xbf16>
    %cst_366 = arith.constant dense<0.000000e+00> : vector<16x64xf32>
    %434 = tpu.matmul %432, %433, %cst_366 {dimension_numbers = #tpu.dot_dimension_numbers<[1], [0], [0], [1], [0, 0, 1, 1], [], []>} : vector<16x8xbf16>, vector<8x64xbf16>, vector<16x64xf32> -> vector<16x64xf32>
    %435 = arith.addf %430, %434 : vector<16x64xf32>
    %c24 = arith.constant 24 : index
    %c0_367 = arith.constant 0 : index
    %c0_368 = arith.constant 0 : index
    %436 = vector.load %arg4[%c24, %c0_367, %c0_368] : memref<36x16x8xbf16, #tpu.memory_space<vmem>>, vector<1x16x8xbf16>
    %437 = vector.shape_cast %436 : vector<1x16x8xbf16> to vector<16x8xbf16>
    %438 = vector.extract_strided_slice %316 {offsets = [0, 1536], sizes = [8, 64], strides = [1, 1]} : vector<8x2304xbf16> to vector<8x64xbf16>
    %cst_369 = arith.constant dense<0.000000e+00> : vector<16x64xf32>
    %439 = tpu.matmul %437, %438, %cst_369 {dimension_numbers = #tpu.dot_dimension_numbers<[1], [0], [0], [1], [0, 0, 1, 1], [], []>} : vector<16x8xbf16>, vector<8x64xbf16>, vector<16x64xf32> -> vector<16x64xf32>
    %440 = arith.addf %435, %439 : vector<16x64xf32>
    %c25 = arith.constant 25 : index
    %c0_370 = arith.constant 0 : index
    %c0_371 = arith.constant 0 : index
    %441 = vector.load %arg4[%c25, %c0_370, %c0_371] : memref<36x16x8xbf16, #tpu.memory_space<vmem>>, vector<1x16x8xbf16>
    %442 = vector.shape_cast %441 : vector<1x16x8xbf16> to vector<16x8xbf16>
    %443 = vector.extract_strided_slice %316 {offsets = [0, 1600], sizes = [8, 64], strides = [1, 1]} : vector<8x2304xbf16> to vector<8x64xbf16>
    %cst_372 = arith.constant dense<0.000000e+00> : vector<16x64xf32>
    %444 = tpu.matmul %442, %443, %cst_372 {dimension_numbers = #tpu.dot_dimension_numbers<[1], [0], [0], [1], [0, 0, 1, 1], [], []>} : vector<16x8xbf16>, vector<8x64xbf16>, vector<16x64xf32> -> vector<16x64xf32>
    %445 = arith.addf %440, %444 : vector<16x64xf32>
    %c26 = arith.constant 26 : index
    %c0_373 = arith.constant 0 : index
    %c0_374 = arith.constant 0 : index
    %446 = vector.load %arg4[%c26, %c0_373, %c0_374] : memref<36x16x8xbf16, #tpu.memory_space<vmem>>, vector<1x16x8xbf16>
    %447 = vector.shape_cast %446 : vector<1x16x8xbf16> to vector<16x8xbf16>
    %448 = vector.extract_strided_slice %316 {offsets = [0, 1664], sizes = [8, 64], strides = [1, 1]} : vector<8x2304xbf16> to vector<8x64xbf16>
    %cst_375 = arith.constant dense<0.000000e+00> : vector<16x64xf32>
    %449 = tpu.matmul %447, %448, %cst_375 {dimension_numbers = #tpu.dot_dimension_numbers<[1], [0], [0], [1], [0, 0, 1, 1], [], []>} : vector<16x8xbf16>, vector<8x64xbf16>, vector<16x64xf32> -> vector<16x64xf32>
    %450 = arith.addf %445, %449 : vector<16x64xf32>
    %c27 = arith.constant 27 : index
    %c0_376 = arith.constant 0 : index
    %c0_377 = arith.constant 0 : index
    %451 = vector.load %arg4[%c27, %c0_376, %c0_377] : memref<36x16x8xbf16, #tpu.memory_space<vmem>>, vector<1x16x8xbf16>
    %452 = vector.shape_cast %451 : vector<1x16x8xbf16> to vector<16x8xbf16>
    %453 = vector.extract_strided_slice %316 {offsets = [0, 1728], sizes = [8, 64], strides = [1, 1]} : vector<8x2304xbf16> to vector<8x64xbf16>
    %cst_378 = arith.constant dense<0.000000e+00> : vector<16x64xf32>
    %454 = tpu.matmul %452, %453, %cst_378 {dimension_numbers = #tpu.dot_dimension_numbers<[1], [0], [0], [1], [0, 0, 1, 1], [], []>} : vector<16x8xbf16>, vector<8x64xbf16>, vector<16x64xf32> -> vector<16x64xf32>
    %455 = arith.addf %450, %454 : vector<16x64xf32>
    %c28 = arith.constant 28 : index
    %c0_379 = arith.constant 0 : index
    %c0_380 = arith.constant 0 : index
    %456 = vector.load %arg4[%c28, %c0_379, %c0_380] : memref<36x16x8xbf16, #tpu.memory_space<vmem>>, vector<1x16x8xbf16>
    %457 = vector.shape_cast %456 : vector<1x16x8xbf16> to vector<16x8xbf16>
    %458 = vector.extract_strided_slice %316 {offsets = [0, 1792], sizes = [8, 64], strides = [1, 1]} : vector<8x2304xbf16> to vector<8x64xbf16>
    %cst_381 = arith.constant dense<0.000000e+00> : vector<16x64xf32>
    %459 = tpu.matmul %457, %458, %cst_381 {dimension_numbers = #tpu.dot_dimension_numbers<[1], [0], [0], [1], [0, 0, 1, 1], [], []>} : vector<16x8xbf16>, vector<8x64xbf16>, vector<16x64xf32> -> vector<16x64xf32>
    %460 = arith.addf %455, %459 : vector<16x64xf32>
    %c29 = arith.constant 29 : index
    %c0_382 = arith.constant 0 : index
    %c0_383 = arith.constant 0 : index
    %461 = vector.load %arg4[%c29, %c0_382, %c0_383] : memref<36x16x8xbf16, #tpu.memory_space<vmem>>, vector<1x16x8xbf16>
    %462 = vector.shape_cast %461 : vector<1x16x8xbf16> to vector<16x8xbf16>
    %463 = vector.extract_strided_slice %316 {offsets = [0, 1856], sizes = [8, 64], strides = [1, 1]} : vector<8x2304xbf16> to vector<8x64xbf16>
    %cst_384 = arith.constant dense<0.000000e+00> : vector<16x64xf32>
    %464 = tpu.matmul %462, %463, %cst_384 {dimension_numbers = #tpu.dot_dimension_numbers<[1], [0], [0], [1], [0, 0, 1, 1], [], []>} : vector<16x8xbf16>, vector<8x64xbf16>, vector<16x64xf32> -> vector<16x64xf32>
    %465 = arith.addf %460, %464 : vector<16x64xf32>
    %c30 = arith.constant 30 : index
    %c0_385 = arith.constant 0 : index
    %c0_386 = arith.constant 0 : index
    %466 = vector.load %arg4[%c30, %c0_385, %c0_386] : memref<36x16x8xbf16, #tpu.memory_space<vmem>>, vector<1x16x8xbf16>
    %467 = vector.shape_cast %466 : vector<1x16x8xbf16> to vector<16x8xbf16>
    %468 = vector.extract_strided_slice %316 {offsets = [0, 1920], sizes = [8, 64], strides = [1, 1]} : vector<8x2304xbf16> to vector<8x64xbf16>
    %cst_387 = arith.constant dense<0.000000e+00> : vector<16x64xf32>
    %469 = tpu.matmul %467, %468, %cst_387 {dimension_numbers = #tpu.dot_dimension_numbers<[1], [0], [0], [1], [0, 0, 1, 1], [], []>} : vector<16x8xbf16>, vector<8x64xbf16>, vector<16x64xf32> -> vector<16x64xf32>
    %470 = arith.addf %465, %469 : vector<16x64xf32>
    %c31 = arith.constant 31 : index
    %c0_388 = arith.constant 0 : index
    %c0_389 = arith.constant 0 : index
    %471 = vector.load %arg4[%c31, %c0_388, %c0_389] : memref<36x16x8xbf16, #tpu.memory_space<vmem>>, vector<1x16x8xbf16>
    %472 = vector.shape_cast %471 : vector<1x16x8xbf16> to vector<16x8xbf16>
    %473 = vector.extract_strided_slice %316 {offsets = [0, 1984], sizes = [8, 64], strides = [1, 1]} : vector<8x2304xbf16> to vector<8x64xbf16>
    %cst_390 = arith.constant dense<0.000000e+00> : vector<16x64xf32>
    %474 = tpu.matmul %472, %473, %cst_390 {dimension_numbers = #tpu.dot_dimension_numbers<[1], [0], [0], [1], [0, 0, 1, 1], [], []>} : vector<16x8xbf16>, vector<8x64xbf16>, vector<16x64xf32> -> vector<16x64xf32>
    %475 = arith.addf %470, %474 : vector<16x64xf32>
    %c32 = arith.constant 32 : index
    %c0_391 = arith.constant 0 : index
    %c0_392 = arith.constant 0 : index
    %476 = vector.load %arg4[%c32, %c0_391, %c0_392] : memref<36x16x8xbf16, #tpu.memory_space<vmem>>, vector<1x16x8xbf16>
    %477 = vector.shape_cast %476 : vector<1x16x8xbf16> to vector<16x8xbf16>
    %478 = vector.extract_strided_slice %316 {offsets = [0, 2048], sizes = [8, 64], strides = [1, 1]} : vector<8x2304xbf16> to vector<8x64xbf16>
    %cst_393 = arith.constant dense<0.000000e+00> : vector<16x64xf32>
    %479 = tpu.matmul %477, %478, %cst_393 {dimension_numbers = #tpu.dot_dimension_numbers<[1], [0], [0], [1], [0, 0, 1, 1], [], []>} : vector<16x8xbf16>, vector<8x64xbf16>, vector<16x64xf32> -> vector<16x64xf32>
    %480 = arith.addf %475, %479 : vector<16x64xf32>
    %c33 = arith.constant 33 : index
    %c0_394 = arith.constant 0 : index
    %c0_395 = arith.constant 0 : index
    %481 = vector.load %arg4[%c33, %c0_394, %c0_395] : memref<36x16x8xbf16, #tpu.memory_space<vmem>>, vector<1x16x8xbf16>
    %482 = vector.shape_cast %481 : vector<1x16x8xbf16> to vector<16x8xbf16>
    %483 = vector.extract_strided_slice %316 {offsets = [0, 2112], sizes = [8, 64], strides = [1, 1]} : vector<8x2304xbf16> to vector<8x64xbf16>
    %cst_396 = arith.constant dense<0.000000e+00> : vector<16x64xf32>
    %484 = tpu.matmul %482, %483, %cst_396 {dimension_numbers = #tpu.dot_dimension_numbers<[1], [0], [0], [1], [0, 0, 1, 1], [], []>} : vector<16x8xbf16>, vector<8x64xbf16>, vector<16x64xf32> -> vector<16x64xf32>
    %485 = arith.addf %480, %484 : vector<16x64xf32>
    %c34 = arith.constant 34 : index
    %c0_397 = arith.constant 0 : index
    %c0_398 = arith.constant 0 : index
    %486 = vector.load %arg4[%c34, %c0_397, %c0_398] : memref<36x16x8xbf16, #tpu.memory_space<vmem>>, vector<1x16x8xbf16>
    %487 = vector.shape_cast %486 : vector<1x16x8xbf16> to vector<16x8xbf16>
    %488 = vector.extract_strided_slice %316 {offsets = [0, 2176], sizes = [8, 64], strides = [1, 1]} : vector<8x2304xbf16> to vector<8x64xbf16>
    %cst_399 = arith.constant dense<0.000000e+00> : vector<16x64xf32>
    %489 = tpu.matmul %487, %488, %cst_399 {dimension_numbers = #tpu.dot_dimension_numbers<[1], [0], [0], [1], [0, 0, 1, 1], [], []>} : vector<16x8xbf16>, vector<8x64xbf16>, vector<16x64xf32> -> vector<16x64xf32>
    %490 = arith.addf %485, %489 : vector<16x64xf32>
    %c35 = arith.constant 35 : index
    %c0_400 = arith.constant 0 : index
    %c0_401 = arith.constant 0 : index
    %491 = vector.load %arg4[%c35, %c0_400, %c0_401] : memref<36x16x8xbf16, #tpu.memory_space<vmem>>, vector<1x16x8xbf16>
    %492 = vector.shape_cast %491 : vector<1x16x8xbf16> to vector<16x8xbf16>
    %493 = vector.extract_strided_slice %316 {offsets = [0, 2240], sizes = [8, 64], strides = [1, 1]} : vector<8x2304xbf16> to vector<8x64xbf16>
    %cst_402 = arith.constant dense<0.000000e+00> : vector<16x64xf32>
    %494 = tpu.matmul %492, %493, %cst_402 {dimension_numbers = #tpu.dot_dimension_numbers<[1], [0], [0], [1], [0, 0, 1, 1], [], []>} : vector<16x8xbf16>, vector<8x64xbf16>, vector<16x64xf32> -> vector<16x64xf32>
    %495 = arith.addf %490, %494 : vector<16x64xf32>
    %c0_403 = arith.constant 0 : index
    %c0_404 = arith.constant 0 : index
    %496 = vector.load %arg5[%c0_403, %c0_404] : memref<16x1xf32, #tpu.memory_space<vmem>>, vector<16x1xf32>
    %497 = vector.broadcast %496 : vector<16x1xf32> to vector<16x64xf32>
    %498 = arith.addf %495, %497 : vector<16x64xf32>
    %cst_405 = arith.constant 0.000000e+00 : f32
    %499 = vector.broadcast %cst_405 : f32 to vector<16x64xf32>
    %500 = arith.cmpf oge, %498, %499 : vector<16x64xf32>
    %501 = vector.broadcast %311 : f32 to vector<16x64xf32>
    %502 = arith.mulf %501, %498 : vector<16x64xf32>
    %503 = arith.select %500, %498, %502 : vector<16x64xi1>, vector<16x64xf32>
    %c1_406 = arith.constant 1 : index
    %c0_407 = arith.constant 0 : index
    %c0_408 = arith.constant 0 : index
    %504 = vector.load %arg8[%c1_406, %c0_407, %c0_408] : memref<2x8x400xbf16, #tpu.memory_space<vmem>>, vector<1x8x400xbf16>
    %505 = vector.shape_cast %504 : vector<1x8x400xbf16> to vector<8x400xbf16>
    %c0_409 = arith.constant 0 : index
    %c0_410 = arith.constant 0 : index
    %506 = vector.load %arg3[%c0_409, %c0_410] : memref<400x2304xbf16, #tpu.memory_space<vmem>>, vector<400x2304xbf16>
    %cst_411 = arith.constant dense<0.000000e+00> : vector<8x2304xf32>
    %507 = tpu.matmul %505, %506, %cst_411 {dimension_numbers = #tpu.dot_dimension_numbers<[1], [0], [0], [1], [0, 0, 1, 1], [], []>} : vector<8x400xbf16>, vector<400x2304xbf16>, vector<8x2304xf32> -> vector<8x2304xf32>
    %508 = arith.truncf %507 : vector<8x2304xf32> to vector<8x2304xbf16>
    %c0_412 = arith.constant 0 : index
    %c0_413 = arith.constant 0 : index
    %c0_414 = arith.constant 0 : index
    %509 = vector.load %arg4[%c0_412, %c0_413, %c0_414] : memref<36x16x8xbf16, #tpu.memory_space<vmem>>, vector<1x16x8xbf16>
    %510 = vector.shape_cast %509 : vector<1x16x8xbf16> to vector<16x8xbf16>
    %511 = vector.extract_strided_slice %508 {offsets = [0, 0], sizes = [8, 64], strides = [1, 1]} : vector<8x2304xbf16> to vector<8x64xbf16>
    %cst_415 = arith.constant dense<0.000000e+00> : vector<16x64xf32>
    %512 = tpu.matmul %510, %511, %cst_415 {dimension_numbers = #tpu.dot_dimension_numbers<[1], [0], [0], [1], [0, 0, 1, 1], [], []>} : vector<16x8xbf16>, vector<8x64xbf16>, vector<16x64xf32> -> vector<16x64xf32>
    %c1_416 = arith.constant 1 : index
    %c0_417 = arith.constant 0 : index
    %c0_418 = arith.constant 0 : index
    %513 = vector.load %arg4[%c1_416, %c0_417, %c0_418] : memref<36x16x8xbf16, #tpu.memory_space<vmem>>, vector<1x16x8xbf16>
    %514 = vector.shape_cast %513 : vector<1x16x8xbf16> to vector<16x8xbf16>
    %515 = vector.extract_strided_slice %508 {offsets = [0, 64], sizes = [8, 64], strides = [1, 1]} : vector<8x2304xbf16> to vector<8x64xbf16>
    %cst_419 = arith.constant dense<0.000000e+00> : vector<16x64xf32>
    %516 = tpu.matmul %514, %515, %cst_419 {dimension_numbers = #tpu.dot_dimension_numbers<[1], [0], [0], [1], [0, 0, 1, 1], [], []>} : vector<16x8xbf16>, vector<8x64xbf16>, vector<16x64xf32> -> vector<16x64xf32>
    %517 = arith.addf %512, %516 : vector<16x64xf32>
    %c2_420 = arith.constant 2 : index
    %c0_421 = arith.constant 0 : index
    %c0_422 = arith.constant 0 : index
    %518 = vector.load %arg4[%c2_420, %c0_421, %c0_422] : memref<36x16x8xbf16, #tpu.memory_space<vmem>>, vector<1x16x8xbf16>
    %519 = vector.shape_cast %518 : vector<1x16x8xbf16> to vector<16x8xbf16>
    %520 = vector.extract_strided_slice %508 {offsets = [0, 128], sizes = [8, 64], strides = [1, 1]} : vector<8x2304xbf16> to vector<8x64xbf16>
    %cst_423 = arith.constant dense<0.000000e+00> : vector<16x64xf32>
    %521 = tpu.matmul %519, %520, %cst_423 {dimension_numbers = #tpu.dot_dimension_numbers<[1], [0], [0], [1], [0, 0, 1, 1], [], []>} : vector<16x8xbf16>, vector<8x64xbf16>, vector<16x64xf32> -> vector<16x64xf32>
    %522 = arith.addf %517, %521 : vector<16x64xf32>
    %c3_424 = arith.constant 3 : index
    %c0_425 = arith.constant 0 : index
    %c0_426 = arith.constant 0 : index
    %523 = vector.load %arg4[%c3_424, %c0_425, %c0_426] : memref<36x16x8xbf16, #tpu.memory_space<vmem>>, vector<1x16x8xbf16>
    %524 = vector.shape_cast %523 : vector<1x16x8xbf16> to vector<16x8xbf16>
    %525 = vector.extract_strided_slice %508 {offsets = [0, 192], sizes = [8, 64], strides = [1, 1]} : vector<8x2304xbf16> to vector<8x64xbf16>
    %cst_427 = arith.constant dense<0.000000e+00> : vector<16x64xf32>
    %526 = tpu.matmul %524, %525, %cst_427 {dimension_numbers = #tpu.dot_dimension_numbers<[1], [0], [0], [1], [0, 0, 1, 1], [], []>} : vector<16x8xbf16>, vector<8x64xbf16>, vector<16x64xf32> -> vector<16x64xf32>
    %527 = arith.addf %522, %526 : vector<16x64xf32>
    %c4_428 = arith.constant 4 : index
    %c0_429 = arith.constant 0 : index
    %c0_430 = arith.constant 0 : index
    %528 = vector.load %arg4[%c4_428, %c0_429, %c0_430] : memref<36x16x8xbf16, #tpu.memory_space<vmem>>, vector<1x16x8xbf16>
    %529 = vector.shape_cast %528 : vector<1x16x8xbf16> to vector<16x8xbf16>
    %530 = vector.extract_strided_slice %508 {offsets = [0, 256], sizes = [8, 64], strides = [1, 1]} : vector<8x2304xbf16> to vector<8x64xbf16>
    %cst_431 = arith.constant dense<0.000000e+00> : vector<16x64xf32>
    %531 = tpu.matmul %529, %530, %cst_431 {dimension_numbers = #tpu.dot_dimension_numbers<[1], [0], [0], [1], [0, 0, 1, 1], [], []>} : vector<16x8xbf16>, vector<8x64xbf16>, vector<16x64xf32> -> vector<16x64xf32>
    %532 = arith.addf %527, %531 : vector<16x64xf32>
    %c5_432 = arith.constant 5 : index
    %c0_433 = arith.constant 0 : index
    %c0_434 = arith.constant 0 : index
    %533 = vector.load %arg4[%c5_432, %c0_433, %c0_434] : memref<36x16x8xbf16, #tpu.memory_space<vmem>>, vector<1x16x8xbf16>
    %534 = vector.shape_cast %533 : vector<1x16x8xbf16> to vector<16x8xbf16>
    %535 = vector.extract_strided_slice %508 {offsets = [0, 320], sizes = [8, 64], strides = [1, 1]} : vector<8x2304xbf16> to vector<8x64xbf16>
    %cst_435 = arith.constant dense<0.000000e+00> : vector<16x64xf32>
    %536 = tpu.matmul %534, %535, %cst_435 {dimension_numbers = #tpu.dot_dimension_numbers<[1], [0], [0], [1], [0, 0, 1, 1], [], []>} : vector<16x8xbf16>, vector<8x64xbf16>, vector<16x64xf32> -> vector<16x64xf32>
    %537 = arith.addf %532, %536 : vector<16x64xf32>
    %c6_436 = arith.constant 6 : index
    %c0_437 = arith.constant 0 : index
    %c0_438 = arith.constant 0 : index
    %538 = vector.load %arg4[%c6_436, %c0_437, %c0_438] : memref<36x16x8xbf16, #tpu.memory_space<vmem>>, vector<1x16x8xbf16>
    %539 = vector.shape_cast %538 : vector<1x16x8xbf16> to vector<16x8xbf16>
    %540 = vector.extract_strided_slice %508 {offsets = [0, 384], sizes = [8, 64], strides = [1, 1]} : vector<8x2304xbf16> to vector<8x64xbf16>
    %cst_439 = arith.constant dense<0.000000e+00> : vector<16x64xf32>
    %541 = tpu.matmul %539, %540, %cst_439 {dimension_numbers = #tpu.dot_dimension_numbers<[1], [0], [0], [1], [0, 0, 1, 1], [], []>} : vector<16x8xbf16>, vector<8x64xbf16>, vector<16x64xf32> -> vector<16x64xf32>
    %542 = arith.addf %537, %541 : vector<16x64xf32>
    %c7_440 = arith.constant 7 : index
    %c0_441 = arith.constant 0 : index
    %c0_442 = arith.constant 0 : index
    %543 = vector.load %arg4[%c7_440, %c0_441, %c0_442] : memref<36x16x8xbf16, #tpu.memory_space<vmem>>, vector<1x16x8xbf16>
    %544 = vector.shape_cast %543 : vector<1x16x8xbf16> to vector<16x8xbf16>
    %545 = vector.extract_strided_slice %508 {offsets = [0, 448], sizes = [8, 64], strides = [1, 1]} : vector<8x2304xbf16> to vector<8x64xbf16>
    %cst_443 = arith.constant dense<0.000000e+00> : vector<16x64xf32>
    %546 = tpu.matmul %544, %545, %cst_443 {dimension_numbers = #tpu.dot_dimension_numbers<[1], [0], [0], [1], [0, 0, 1, 1], [], []>} : vector<16x8xbf16>, vector<8x64xbf16>, vector<16x64xf32> -> vector<16x64xf32>
    %547 = arith.addf %542, %546 : vector<16x64xf32>
    %c8_444 = arith.constant 8 : index
    %c0_445 = arith.constant 0 : index
    %c0_446 = arith.constant 0 : index
    %548 = vector.load %arg4[%c8_444, %c0_445, %c0_446] : memref<36x16x8xbf16, #tpu.memory_space<vmem>>, vector<1x16x8xbf16>
    %549 = vector.shape_cast %548 : vector<1x16x8xbf16> to vector<16x8xbf16>
    %550 = vector.extract_strided_slice %508 {offsets = [0, 512], sizes = [8, 64], strides = [1, 1]} : vector<8x2304xbf16> to vector<8x64xbf16>
    %cst_447 = arith.constant dense<0.000000e+00> : vector<16x64xf32>
    %551 = tpu.matmul %549, %550, %cst_447 {dimension_numbers = #tpu.dot_dimension_numbers<[1], [0], [0], [1], [0, 0, 1, 1], [], []>} : vector<16x8xbf16>, vector<8x64xbf16>, vector<16x64xf32> -> vector<16x64xf32>
    %552 = arith.addf %547, %551 : vector<16x64xf32>
    %c9_448 = arith.constant 9 : index
    %c0_449 = arith.constant 0 : index
    %c0_450 = arith.constant 0 : index
    %553 = vector.load %arg4[%c9_448, %c0_449, %c0_450] : memref<36x16x8xbf16, #tpu.memory_space<vmem>>, vector<1x16x8xbf16>
    %554 = vector.shape_cast %553 : vector<1x16x8xbf16> to vector<16x8xbf16>
    %555 = vector.extract_strided_slice %508 {offsets = [0, 576], sizes = [8, 64], strides = [1, 1]} : vector<8x2304xbf16> to vector<8x64xbf16>
    %cst_451 = arith.constant dense<0.000000e+00> : vector<16x64xf32>
    %556 = tpu.matmul %554, %555, %cst_451 {dimension_numbers = #tpu.dot_dimension_numbers<[1], [0], [0], [1], [0, 0, 1, 1], [], []>} : vector<16x8xbf16>, vector<8x64xbf16>, vector<16x64xf32> -> vector<16x64xf32>
    %557 = arith.addf %552, %556 : vector<16x64xf32>
    %c10_452 = arith.constant 10 : index
    %c0_453 = arith.constant 0 : index
    %c0_454 = arith.constant 0 : index
    %558 = vector.load %arg4[%c10_452, %c0_453, %c0_454] : memref<36x16x8xbf16, #tpu.memory_space<vmem>>, vector<1x16x8xbf16>
    %559 = vector.shape_cast %558 : vector<1x16x8xbf16> to vector<16x8xbf16>
    %560 = vector.extract_strided_slice %508 {offsets = [0, 640], sizes = [8, 64], strides = [1, 1]} : vector<8x2304xbf16> to vector<8x64xbf16>
    %cst_455 = arith.constant dense<0.000000e+00> : vector<16x64xf32>
    %561 = tpu.matmul %559, %560, %cst_455 {dimension_numbers = #tpu.dot_dimension_numbers<[1], [0], [0], [1], [0, 0, 1, 1], [], []>} : vector<16x8xbf16>, vector<8x64xbf16>, vector<16x64xf32> -> vector<16x64xf32>
    %562 = arith.addf %557, %561 : vector<16x64xf32>
    %c11_456 = arith.constant 11 : index
    %c0_457 = arith.constant 0 : index
    %c0_458 = arith.constant 0 : index
    %563 = vector.load %arg4[%c11_456, %c0_457, %c0_458] : memref<36x16x8xbf16, #tpu.memory_space<vmem>>, vector<1x16x8xbf16>
    %564 = vector.shape_cast %563 : vector<1x16x8xbf16> to vector<16x8xbf16>
    %565 = vector.extract_strided_slice %508 {offsets = [0, 704], sizes = [8, 64], strides = [1, 1]} : vector<8x2304xbf16> to vector<8x64xbf16>
    %cst_459 = arith.constant dense<0.000000e+00> : vector<16x64xf32>
    %566 = tpu.matmul %564, %565, %cst_459 {dimension_numbers = #tpu.dot_dimension_numbers<[1], [0], [0], [1], [0, 0, 1, 1], [], []>} : vector<16x8xbf16>, vector<8x64xbf16>, vector<16x64xf32> -> vector<16x64xf32>
    %567 = arith.addf %562, %566 : vector<16x64xf32>
    %c12_460 = arith.constant 12 : index
    %c0_461 = arith.constant 0 : index
    %c0_462 = arith.constant 0 : index
    %568 = vector.load %arg4[%c12_460, %c0_461, %c0_462] : memref<36x16x8xbf16, #tpu.memory_space<vmem>>, vector<1x16x8xbf16>
    %569 = vector.shape_cast %568 : vector<1x16x8xbf16> to vector<16x8xbf16>
    %570 = vector.extract_strided_slice %508 {offsets = [0, 768], sizes = [8, 64], strides = [1, 1]} : vector<8x2304xbf16> to vector<8x64xbf16>
    %cst_463 = arith.constant dense<0.000000e+00> : vector<16x64xf32>
    %571 = tpu.matmul %569, %570, %cst_463 {dimension_numbers = #tpu.dot_dimension_numbers<[1], [0], [0], [1], [0, 0, 1, 1], [], []>} : vector<16x8xbf16>, vector<8x64xbf16>, vector<16x64xf32> -> vector<16x64xf32>
    %572 = arith.addf %567, %571 : vector<16x64xf32>
    %c13_464 = arith.constant 13 : index
    %c0_465 = arith.constant 0 : index
    %c0_466 = arith.constant 0 : index
    %573 = vector.load %arg4[%c13_464, %c0_465, %c0_466] : memref<36x16x8xbf16, #tpu.memory_space<vmem>>, vector<1x16x8xbf16>
    %574 = vector.shape_cast %573 : vector<1x16x8xbf16> to vector<16x8xbf16>
    %575 = vector.extract_strided_slice %508 {offsets = [0, 832], sizes = [8, 64], strides = [1, 1]} : vector<8x2304xbf16> to vector<8x64xbf16>
    %cst_467 = arith.constant dense<0.000000e+00> : vector<16x64xf32>
    %576 = tpu.matmul %574, %575, %cst_467 {dimension_numbers = #tpu.dot_dimension_numbers<[1], [0], [0], [1], [0, 0, 1, 1], [], []>} : vector<16x8xbf16>, vector<8x64xbf16>, vector<16x64xf32> -> vector<16x64xf32>
    %577 = arith.addf %572, %576 : vector<16x64xf32>
    %c14_468 = arith.constant 14 : index
    %c0_469 = arith.constant 0 : index
    %c0_470 = arith.constant 0 : index
    %578 = vector.load %arg4[%c14_468, %c0_469, %c0_470] : memref<36x16x8xbf16, #tpu.memory_space<vmem>>, vector<1x16x8xbf16>
    %579 = vector.shape_cast %578 : vector<1x16x8xbf16> to vector<16x8xbf16>
    %580 = vector.extract_strided_slice %508 {offsets = [0, 896], sizes = [8, 64], strides = [1, 1]} : vector<8x2304xbf16> to vector<8x64xbf16>
    %cst_471 = arith.constant dense<0.000000e+00> : vector<16x64xf32>
    %581 = tpu.matmul %579, %580, %cst_471 {dimension_numbers = #tpu.dot_dimension_numbers<[1], [0], [0], [1], [0, 0, 1, 1], [], []>} : vector<16x8xbf16>, vector<8x64xbf16>, vector<16x64xf32> -> vector<16x64xf32>
    %582 = arith.addf %577, %581 : vector<16x64xf32>
    %c15_472 = arith.constant 15 : index
    %c0_473 = arith.constant 0 : index
    %c0_474 = arith.constant 0 : index
    %583 = vector.load %arg4[%c15_472, %c0_473, %c0_474] : memref<36x16x8xbf16, #tpu.memory_space<vmem>>, vector<1x16x8xbf16>
    %584 = vector.shape_cast %583 : vector<1x16x8xbf16> to vector<16x8xbf16>
    %585 = vector.extract_strided_slice %508 {offsets = [0, 960], sizes = [8, 64], strides = [1, 1]} : vector<8x2304xbf16> to vector<8x64xbf16>
    %cst_475 = arith.constant dense<0.000000e+00> : vector<16x64xf32>
    %586 = tpu.matmul %584, %585, %cst_475 {dimension_numbers = #tpu.dot_dimension_numbers<[1], [0], [0], [1], [0, 0, 1, 1], [], []>} : vector<16x8xbf16>, vector<8x64xbf16>, vector<16x64xf32> -> vector<16x64xf32>
    %587 = arith.addf %582, %586 : vector<16x64xf32>
    %c16_476 = arith.constant 16 : index
    %c0_477 = arith.constant 0 : index
    %c0_478 = arith.constant 0 : index
    %588 = vector.load %arg4[%c16_476, %c0_477, %c0_478] : memref<36x16x8xbf16, #tpu.memory_space<vmem>>, vector<1x16x8xbf16>
    %589 = vector.shape_cast %588 : vector<1x16x8xbf16> to vector<16x8xbf16>
    %590 = vector.extract_strided_slice %508 {offsets = [0, 1024], sizes = [8, 64], strides = [1, 1]} : vector<8x2304xbf16> to vector<8x64xbf16>
    %cst_479 = arith.constant dense<0.000000e+00> : vector<16x64xf32>
    %591 = tpu.matmul %589, %590, %cst_479 {dimension_numbers = #tpu.dot_dimension_numbers<[1], [0], [0], [1], [0, 0, 1, 1], [], []>} : vector<16x8xbf16>, vector<8x64xbf16>, vector<16x64xf32> -> vector<16x64xf32>
    %592 = arith.addf %587, %591 : vector<16x64xf32>
    %c17_480 = arith.constant 17 : index
    %c0_481 = arith.constant 0 : index
    %c0_482 = arith.constant 0 : index
    %593 = vector.load %arg4[%c17_480, %c0_481, %c0_482] : memref<36x16x8xbf16, #tpu.memory_space<vmem>>, vector<1x16x8xbf16>
    %594 = vector.shape_cast %593 : vector<1x16x8xbf16> to vector<16x8xbf16>
    %595 = vector.extract_strided_slice %508 {offsets = [0, 1088], sizes = [8, 64], strides = [1, 1]} : vector<8x2304xbf16> to vector<8x64xbf16>
    %cst_483 = arith.constant dense<0.000000e+00> : vector<16x64xf32>
    %596 = tpu.matmul %594, %595, %cst_483 {dimension_numbers = #tpu.dot_dimension_numbers<[1], [0], [0], [1], [0, 0, 1, 1], [], []>} : vector<16x8xbf16>, vector<8x64xbf16>, vector<16x64xf32> -> vector<16x64xf32>
    %597 = arith.addf %592, %596 : vector<16x64xf32>
    %c18_484 = arith.constant 18 : index
    %c0_485 = arith.constant 0 : index
    %c0_486 = arith.constant 0 : index
    %598 = vector.load %arg4[%c18_484, %c0_485, %c0_486] : memref<36x16x8xbf16, #tpu.memory_space<vmem>>, vector<1x16x8xbf16>
    %599 = vector.shape_cast %598 : vector<1x16x8xbf16> to vector<16x8xbf16>
    %600 = vector.extract_strided_slice %508 {offsets = [0, 1152], sizes = [8, 64], strides = [1, 1]} : vector<8x2304xbf16> to vector<8x64xbf16>
    %cst_487 = arith.constant dense<0.000000e+00> : vector<16x64xf32>
    %601 = tpu.matmul %599, %600, %cst_487 {dimension_numbers = #tpu.dot_dimension_numbers<[1], [0], [0], [1], [0, 0, 1, 1], [], []>} : vector<16x8xbf16>, vector<8x64xbf16>, vector<16x64xf32> -> vector<16x64xf32>
    %602 = arith.addf %597, %601 : vector<16x64xf32>
    %c19_488 = arith.constant 19 : index
    %c0_489 = arith.constant 0 : index
    %c0_490 = arith.constant 0 : index
    %603 = vector.load %arg4[%c19_488, %c0_489, %c0_490] : memref<36x16x8xbf16, #tpu.memory_space<vmem>>, vector<1x16x8xbf16>
    %604 = vector.shape_cast %603 : vector<1x16x8xbf16> to vector<16x8xbf16>
    %605 = vector.extract_strided_slice %508 {offsets = [0, 1216], sizes = [8, 64], strides = [1, 1]} : vector<8x2304xbf16> to vector<8x64xbf16>
    %cst_491 = arith.constant dense<0.000000e+00> : vector<16x64xf32>
    %606 = tpu.matmul %604, %605, %cst_491 {dimension_numbers = #tpu.dot_dimension_numbers<[1], [0], [0], [1], [0, 0, 1, 1], [], []>} : vector<16x8xbf16>, vector<8x64xbf16>, vector<16x64xf32> -> vector<16x64xf32>
    %607 = arith.addf %602, %606 : vector<16x64xf32>
    %c20_492 = arith.constant 20 : index
    %c0_493 = arith.constant 0 : index
    %c0_494 = arith.constant 0 : index
    %608 = vector.load %arg4[%c20_492, %c0_493, %c0_494] : memref<36x16x8xbf16, #tpu.memory_space<vmem>>, vector<1x16x8xbf16>
    %609 = vector.shape_cast %608 : vector<1x16x8xbf16> to vector<16x8xbf16>
    %610 = vector.extract_strided_slice %508 {offsets = [0, 1280], sizes = [8, 64], strides = [1, 1]} : vector<8x2304xbf16> to vector<8x64xbf16>
    %cst_495 = arith.constant dense<0.000000e+00> : vector<16x64xf32>
    %611 = tpu.matmul %609, %610, %cst_495 {dimension_numbers = #tpu.dot_dimension_numbers<[1], [0], [0], [1], [0, 0, 1, 1], [], []>} : vector<16x8xbf16>, vector<8x64xbf16>, vector<16x64xf32> -> vector<16x64xf32>
    %612 = arith.addf %607, %611 : vector<16x64xf32>
    %c21_496 = arith.constant 21 : index
    %c0_497 = arith.constant 0 : index
    %c0_498 = arith.constant 0 : index
    %613 = vector.load %arg4[%c21_496, %c0_497, %c0_498] : memref<36x16x8xbf16, #tpu.memory_space<vmem>>, vector<1x16x8xbf16>
    %614 = vector.shape_cast %613 : vector<1x16x8xbf16> to vector<16x8xbf16>
    %615 = vector.extract_strided_slice %508 {offsets = [0, 1344], sizes = [8, 64], strides = [1, 1]} : vector<8x2304xbf16> to vector<8x64xbf16>
    %cst_499 = arith.constant dense<0.000000e+00> : vector<16x64xf32>
    %616 = tpu.matmul %614, %615, %cst_499 {dimension_numbers = #tpu.dot_dimension_numbers<[1], [0], [0], [1], [0, 0, 1, 1], [], []>} : vector<16x8xbf16>, vector<8x64xbf16>, vector<16x64xf32> -> vector<16x64xf32>
    %617 = arith.addf %612, %616 : vector<16x64xf32>
    %c22_500 = arith.constant 22 : index
    %c0_501 = arith.constant 0 : index
    %c0_502 = arith.constant 0 : index
    %618 = vector.load %arg4[%c22_500, %c0_501, %c0_502] : memref<36x16x8xbf16, #tpu.memory_space<vmem>>, vector<1x16x8xbf16>
    %619 = vector.shape_cast %618 : vector<1x16x8xbf16> to vector<16x8xbf16>
    %620 = vector.extract_strided_slice %508 {offsets = [0, 1408], sizes = [8, 64], strides = [1, 1]} : vector<8x2304xbf16> to vector<8x64xbf16>
    %cst_503 = arith.constant dense<0.000000e+00> : vector<16x64xf32>
    %621 = tpu.matmul %619, %620, %cst_503 {dimension_numbers = #tpu.dot_dimension_numbers<[1], [0], [0], [1], [0, 0, 1, 1], [], []>} : vector<16x8xbf16>, vector<8x64xbf16>, vector<16x64xf32> -> vector<16x64xf32>
    %622 = arith.addf %617, %621 : vector<16x64xf32>
    %c23_504 = arith.constant 23 : index
    %c0_505 = arith.constant 0 : index
    %c0_506 = arith.constant 0 : index
    %623 = vector.load %arg4[%c23_504, %c0_505, %c0_506] : memref<36x16x8xbf16, #tpu.memory_space<vmem>>, vector<1x16x8xbf16>
    %624 = vector.shape_cast %623 : vector<1x16x8xbf16> to vector<16x8xbf16>
    %625 = vector.extract_strided_slice %508 {offsets = [0, 1472], sizes = [8, 64], strides = [1, 1]} : vector<8x2304xbf16> to vector<8x64xbf16>
    %cst_507 = arith.constant dense<0.000000e+00> : vector<16x64xf32>
    %626 = tpu.matmul %624, %625, %cst_507 {dimension_numbers = #tpu.dot_dimension_numbers<[1], [0], [0], [1], [0, 0, 1, 1], [], []>} : vector<16x8xbf16>, vector<8x64xbf16>, vector<16x64xf32> -> vector<16x64xf32>
    %627 = arith.addf %622, %626 : vector<16x64xf32>
    %c24_508 = arith.constant 24 : index
    %c0_509 = arith.constant 0 : index
    %c0_510 = arith.constant 0 : index
    %628 = vector.load %arg4[%c24_508, %c0_509, %c0_510] : memref<36x16x8xbf16, #tpu.memory_space<vmem>>, vector<1x16x8xbf16>
    %629 = vector.shape_cast %628 : vector<1x16x8xbf16> to vector<16x8xbf16>
    %630 = vector.extract_strided_slice %508 {offsets = [0, 1536], sizes = [8, 64], strides = [1, 1]} : vector<8x2304xbf16> to vector<8x64xbf16>
    %cst_511 = arith.constant dense<0.000000e+00> : vector<16x64xf32>
    %631 = tpu.matmul %629, %630, %cst_511 {dimension_numbers = #tpu.dot_dimension_numbers<[1], [0], [0], [1], [0, 0, 1, 1], [], []>} : vector<16x8xbf16>, vector<8x64xbf16>, vector<16x64xf32> -> vector<16x64xf32>
    %632 = arith.addf %627, %631 : vector<16x64xf32>
    %c25_512 = arith.constant 25 : index
    %c0_513 = arith.constant 0 : index
    %c0_514 = arith.constant 0 : index
    %633 = vector.load %arg4[%c25_512, %c0_513, %c0_514] : memref<36x16x8xbf16, #tpu.memory_space<vmem>>, vector<1x16x8xbf16>
    %634 = vector.shape_cast %633 : vector<1x16x8xbf16> to vector<16x8xbf16>
    %635 = vector.extract_strided_slice %508 {offsets = [0, 1600], sizes = [8, 64], strides = [1, 1]} : vector<8x2304xbf16> to vector<8x64xbf16>
    %cst_515 = arith.constant dense<0.000000e+00> : vector<16x64xf32>
    %636 = tpu.matmul %634, %635, %cst_515 {dimension_numbers = #tpu.dot_dimension_numbers<[1], [0], [0], [1], [0, 0, 1, 1], [], []>} : vector<16x8xbf16>, vector<8x64xbf16>, vector<16x64xf32> -> vector<16x64xf32>
    %637 = arith.addf %632, %636 : vector<16x64xf32>
    %c26_516 = arith.constant 26 : index
    %c0_517 = arith.constant 0 : index
    %c0_518 = arith.constant 0 : index
    %638 = vector.load %arg4[%c26_516, %c0_517, %c0_518] : memref<36x16x8xbf16, #tpu.memory_space<vmem>>, vector<1x16x8xbf16>
    %639 = vector.shape_cast %638 : vector<1x16x8xbf16> to vector<16x8xbf16>
    %640 = vector.extract_strided_slice %508 {offsets = [0, 1664], sizes = [8, 64], strides = [1, 1]} : vector<8x2304xbf16> to vector<8x64xbf16>
    %cst_519 = arith.constant dense<0.000000e+00> : vector<16x64xf32>
    %641 = tpu.matmul %639, %640, %cst_519 {dimension_numbers = #tpu.dot_dimension_numbers<[1], [0], [0], [1], [0, 0, 1, 1], [], []>} : vector<16x8xbf16>, vector<8x64xbf16>, vector<16x64xf32> -> vector<16x64xf32>
    %642 = arith.addf %637, %641 : vector<16x64xf32>
    %c27_520 = arith.constant 27 : index
    %c0_521 = arith.constant 0 : index
    %c0_522 = arith.constant 0 : index
    %643 = vector.load %arg4[%c27_520, %c0_521, %c0_522] : memref<36x16x8xbf16, #tpu.memory_space<vmem>>, vector<1x16x8xbf16>
    %644 = vector.shape_cast %643 : vector<1x16x8xbf16> to vector<16x8xbf16>
    %645 = vector.extract_strided_slice %508 {offsets = [0, 1728], sizes = [8, 64], strides = [1, 1]} : vector<8x2304xbf16> to vector<8x64xbf16>
    %cst_523 = arith.constant dense<0.000000e+00> : vector<16x64xf32>
    %646 = tpu.matmul %644, %645, %cst_523 {dimension_numbers = #tpu.dot_dimension_numbers<[1], [0], [0], [1], [0, 0, 1, 1], [], []>} : vector<16x8xbf16>, vector<8x64xbf16>, vector<16x64xf32> -> vector<16x64xf32>
    %647 = arith.addf %642, %646 : vector<16x64xf32>
    %c28_524 = arith.constant 28 : index
    %c0_525 = arith.constant 0 : index
    %c0_526 = arith.constant 0 : index
    %648 = vector.load %arg4[%c28_524, %c0_525, %c0_526] : memref<36x16x8xbf16, #tpu.memory_space<vmem>>, vector<1x16x8xbf16>
    %649 = vector.shape_cast %648 : vector<1x16x8xbf16> to vector<16x8xbf16>
    %650 = vector.extract_strided_slice %508 {offsets = [0, 1792], sizes = [8, 64], strides = [1, 1]} : vector<8x2304xbf16> to vector<8x64xbf16>
    %cst_527 = arith.constant dense<0.000000e+00> : vector<16x64xf32>
    %651 = tpu.matmul %649, %650, %cst_527 {dimension_numbers = #tpu.dot_dimension_numbers<[1], [0], [0], [1], [0, 0, 1, 1], [], []>} : vector<16x8xbf16>, vector<8x64xbf16>, vector<16x64xf32> -> vector<16x64xf32>
    %652 = arith.addf %647, %651 : vector<16x64xf32>
    %c29_528 = arith.constant 29 : index
    %c0_529 = arith.constant 0 : index
    %c0_530 = arith.constant 0 : index
    %653 = vector.load %arg4[%c29_528, %c0_529, %c0_530] : memref<36x16x8xbf16, #tpu.memory_space<vmem>>, vector<1x16x8xbf16>
    %654 = vector.shape_cast %653 : vector<1x16x8xbf16> to vector<16x8xbf16>
    %655 = vector.extract_strided_slice %508 {offsets = [0, 1856], sizes = [8, 64], strides = [1, 1]} : vector<8x2304xbf16> to vector<8x64xbf16>
    %cst_531 = arith.constant dense<0.000000e+00> : vector<16x64xf32>
    %656 = tpu.matmul %654, %655, %cst_531 {dimension_numbers = #tpu.dot_dimension_numbers<[1], [0], [0], [1], [0, 0, 1, 1], [], []>} : vector<16x8xbf16>, vector<8x64xbf16>, vector<16x64xf32> -> vector<16x64xf32>
    %657 = arith.addf %652, %656 : vector<16x64xf32>
    %c30_532 = arith.constant 30 : index
    %c0_533 = arith.constant 0 : index
    %c0_534 = arith.constant 0 : index
    %658 = vector.load %arg4[%c30_532, %c0_533, %c0_534] : memref<36x16x8xbf16, #tpu.memory_space<vmem>>, vector<1x16x8xbf16>
    %659 = vector.shape_cast %658 : vector<1x16x8xbf16> to vector<16x8xbf16>
    %660 = vector.extract_strided_slice %508 {offsets = [0, 1920], sizes = [8, 64], strides = [1, 1]} : vector<8x2304xbf16> to vector<8x64xbf16>
    %cst_535 = arith.constant dense<0.000000e+00> : vector<16x64xf32>
    %661 = tpu.matmul %659, %660, %cst_535 {dimension_numbers = #tpu.dot_dimension_numbers<[1], [0], [0], [1], [0, 0, 1, 1], [], []>} : vector<16x8xbf16>, vector<8x64xbf16>, vector<16x64xf32> -> vector<16x64xf32>
    %662 = arith.addf %657, %661 : vector<16x64xf32>
    %c31_536 = arith.constant 31 : index
    %c0_537 = arith.constant 0 : index
    %c0_538 = arith.constant 0 : index
    %663 = vector.load %arg4[%c31_536, %c0_537, %c0_538] : memref<36x16x8xbf16, #tpu.memory_space<vmem>>, vector<1x16x8xbf16>
    %664 = vector.shape_cast %663 : vector<1x16x8xbf16> to vector<16x8xbf16>
    %665 = vector.extract_strided_slice %508 {offsets = [0, 1984], sizes = [8, 64], strides = [1, 1]} : vector<8x2304xbf16> to vector<8x64xbf16>
    %cst_539 = arith.constant dense<0.000000e+00> : vector<16x64xf32>
    %666 = tpu.matmul %664, %665, %cst_539 {dimension_numbers = #tpu.dot_dimension_numbers<[1], [0], [0], [1], [0, 0, 1, 1], [], []>} : vector<16x8xbf16>, vector<8x64xbf16>, vector<16x64xf32> -> vector<16x64xf32>
    %667 = arith.addf %662, %666 : vector<16x64xf32>
    %c32_540 = arith.constant 32 : index
    %c0_541 = arith.constant 0 : index
    %c0_542 = arith.constant 0 : index
    %668 = vector.load %arg4[%c32_540, %c0_541, %c0_542] : memref<36x16x8xbf16, #tpu.memory_space<vmem>>, vector<1x16x8xbf16>
    %669 = vector.shape_cast %668 : vector<1x16x8xbf16> to vector<16x8xbf16>
    %670 = vector.extract_strided_slice %508 {offsets = [0, 2048], sizes = [8, 64], strides = [1, 1]} : vector<8x2304xbf16> to vector<8x64xbf16>
    %cst_543 = arith.constant dense<0.000000e+00> : vector<16x64xf32>
    %671 = tpu.matmul %669, %670, %cst_543 {dimension_numbers = #tpu.dot_dimension_numbers<[1], [0], [0], [1], [0, 0, 1, 1], [], []>} : vector<16x8xbf16>, vector<8x64xbf16>, vector<16x64xf32> -> vector<16x64xf32>
    %672 = arith.addf %667, %671 : vector<16x64xf32>
    %c33_544 = arith.constant 33 : index
    %c0_545 = arith.constant 0 : index
    %c0_546 = arith.constant 0 : index
    %673 = vector.load %arg4[%c33_544, %c0_545, %c0_546] : memref<36x16x8xbf16, #tpu.memory_space<vmem>>, vector<1x16x8xbf16>
    %674 = vector.shape_cast %673 : vector<1x16x8xbf16> to vector<16x8xbf16>
    %675 = vector.extract_strided_slice %508 {offsets = [0, 2112], sizes = [8, 64], strides = [1, 1]} : vector<8x2304xbf16> to vector<8x64xbf16>
    %cst_547 = arith.constant dense<0.000000e+00> : vector<16x64xf32>
    %676 = tpu.matmul %674, %675, %cst_547 {dimension_numbers = #tpu.dot_dimension_numbers<[1], [0], [0], [1], [0, 0, 1, 1], [], []>} : vector<16x8xbf16>, vector<8x64xbf16>, vector<16x64xf32> -> vector<16x64xf32>
    %677 = arith.addf %672, %676 : vector<16x64xf32>
    %c34_548 = arith.constant 34 : index
    %c0_549 = arith.constant 0 : index
    %c0_550 = arith.constant 0 : index
    %678 = vector.load %arg4[%c34_548, %c0_549, %c0_550] : memref<36x16x8xbf16, #tpu.memory_space<vmem>>, vector<1x16x8xbf16>
    %679 = vector.shape_cast %678 : vector<1x16x8xbf16> to vector<16x8xbf16>
    %680 = vector.extract_strided_slice %508 {offsets = [0, 2176], sizes = [8, 64], strides = [1, 1]} : vector<8x2304xbf16> to vector<8x64xbf16>
    %cst_551 = arith.constant dense<0.000000e+00> : vector<16x64xf32>
    %681 = tpu.matmul %679, %680, %cst_551 {dimension_numbers = #tpu.dot_dimension_numbers<[1], [0], [0], [1], [0, 0, 1, 1], [], []>} : vector<16x8xbf16>, vector<8x64xbf16>, vector<16x64xf32> -> vector<16x64xf32>
    %682 = arith.addf %677, %681 : vector<16x64xf32>
    %c35_552 = arith.constant 35 : index
    %c0_553 = arith.constant 0 : index
    %c0_554 = arith.constant 0 : index
    %683 = vector.load %arg4[%c35_552, %c0_553, %c0_554] : memref<36x16x8xbf16, #tpu.memory_space<vmem>>, vector<1x16x8xbf16>
    %684 = vector.shape_cast %683 : vector<1x16x8xbf16> to vector<16x8xbf16>
    %685 = vector.extract_strided_slice %508 {offsets = [0, 2240], sizes = [8, 64], strides = [1, 1]} : vector<8x2304xbf16> to vector<8x64xbf16>
    %cst_555 = arith.constant dense<0.000000e+00> : vector<16x64xf32>
    %686 = tpu.matmul %684, %685, %cst_555 {dimension_numbers = #tpu.dot_dimension_numbers<[1], [0], [0], [1], [0, 0, 1, 1], [], []>} : vector<16x8xbf16>, vector<8x64xbf16>, vector<16x64xf32> -> vector<16x64xf32>
    %687 = arith.addf %682, %686 : vector<16x64xf32>
    %c0_556 = arith.constant 0 : index
    %c0_557 = arith.constant 0 : index
    %688 = vector.load %arg5[%c0_556, %c0_557] : memref<16x1xf32, #tpu.memory_space<vmem>>, vector<16x1xf32>
    %689 = vector.broadcast %688 : vector<16x1xf32> to vector<16x64xf32>
    %690 = arith.addf %687, %689 : vector<16x64xf32>
    %cst_558 = arith.constant 0.000000e+00 : f32
    %691 = vector.broadcast %cst_558 : f32 to vector<16x64xf32>
    %692 = arith.cmpf oge, %690, %691 : vector<16x64xf32>
    %693 = vector.broadcast %311 : f32 to vector<16x64xf32>
    %694 = arith.mulf %693, %690 : vector<16x64xf32>
    %695 = arith.select %692, %690, %694 : vector<16x64xi1>, vector<16x64xf32>
    %696 = tpu.concatenate %503, %695 in 1 : vector<16x64xf32>, vector<16x64xf32> -> vector<16x128xf32>
    %c0_559 = arith.constant 0 : index
    %c0_560 = arith.constant 0 : index
    %697 = vector.load %arg7[%c0_559, %c0_560] : memref<16x128xf32, #tpu.memory_space<vmem>>, vector<16x128xf32>
    tpu.vector_store %arg7[%c0_559, %c0_560], %696 {strides = array<i32>} : memref<16x128xf32, #tpu.memory_space<vmem>>, vector<16x128xf32>,
    return
  }
}

</mosaic_0001>

<llo_original>
// kernel: rnet_d_forward.1
$region0: #{rnet_d_forward.1}
  #allocation0 [shape = 'u32[]', space=smem, size = 0x4, offset = 0x4, fixed_abs, tag = 'smem constant byte address 0x4 - core index']
  #allocation1 [shape = 'u32[144,128]{1,0:T(1,128)}', space=vmem, size = 0x12000, scoped, tag = 'internal scratch']
  #allocation2 [shape = 'bf16[2,8,400]{2,1,0:T(8,128)(2,1)}', space=vmem, size = 0x4000, scoped, tag = 'scratch operand']
  #allocation3 [shape = 'bf16[2,8,400]{2,1,0:T(8,128)(2,1)}', space=vmem, size = 0x4000, scoped, tag = 'scratch operand']
  %s0 = inlined_call_operand.vmem [shape: bf16[2,8,400], index: 0, kind: input, shape index: {}]
  %s1 = inlined_call_operand.vmem [shape: bf16[2,8,80], index: 1, kind: input, shape index: {}]
  %s2 = inlined_call_operand.vmem [shape: bf16[2,8,80], index: 2, kind: input, shape index: {}]
  %s3 = inlined_call_operand.vmem [shape: bf16[400,2304], index: 3, kind: input, shape index: {}]
  %s4 = inlined_call_operand.vmem [shape: bf16[36,16,8], index: 4, kind: input, shape index: {}]
  %s5 = inlined_call_operand.vmem [shape: f32[16,1], index: 5, kind: input, shape index: {}]
  %s6 = inlined_call_operand.vmem [shape: f32[3,1], index: 6, kind: input, shape index: {}]
  %s7 = inlined_call_operand.vmem [shape: f32[16,128], index: 7, kind: output, shape index: {}]
  %s8 = sld [smem:[#allocation0]]
  $region42: #{rnet_d_forward.1} parent=0
    _
  %s10 = ssub.s32 1, %s8
  %s11 = scalar_select 0, %s10, %s8
  $region1: #{rnet_d_forward.1} parent=0
    #allocation4 [shape = 'u8[2048]{0}', space=smem, size = 0x800, scoped, tag = 'input window, operand 6, single buffered']
    #allocation5 [shape = 's32[1]{0}', space=sflag, size = 0x4, scoped, tag = 'scoped memory for rnet_d_forward.1']
    %12 = vsyncpa [#allocation5], 0
    // Predicated region
    $region2: #{rnet_d_forward.1} parent=1 // pred_check
      _
    $region3: #{rnet_d_forward.1} parent=1 // pred_check_branch
      %14 = sbr.rel (0) target = $region5
    $region4: #{rnet_d_forward.1} parent=1 // pred_region
      _
    $region5: #{rnet_d_forward.1} parent=1 // pred_fallthru
      _
    // Predicated region
    $region6: #{rnet_d_forward.1} parent=1 // pred_check
      _
    $region7: #{rnet_d_forward.1} parent=1 // pred_check_branch
      %16 = sbr.rel (0) target = $region9
    $region8: #{rnet_d_forward.1} parent=1 // pred_region
      _
    $region9: #{rnet_d_forward.1} parent=1 // pred_fallthru
      _
    // Predicated region
    $region10: #{rnet_d_forward.1} parent=1 // pred_check
      _
    $region11: #{rnet_d_forward.1} parent=1 // pred_check_branch
      %18 = sbr.rel (0) target = $region13
    $region12: #{rnet_d_forward.1} parent=1 // pred_region
      _
    $region13: #{rnet_d_forward.1} parent=1 // pred_fallthru
      _
    // Predicated region
    $region14: #{rnet_d_forward.1} parent=1 // pred_check
      _
    $region15: #{rnet_d_forward.1} parent=1 // pred_check_branch
      %20 = sbr.rel (0) target = $region17
    $region16: #{rnet_d_forward.1} parent=1 // pred_region
      _
    $region17: #{rnet_d_forward.1} parent=1 // pred_fallthru
      _
    // Predicated region
    $region18: #{rnet_d_forward.1} parent=1 // pred_check
      _
    $region19: #{rnet_d_forward.1} parent=1 // pred_check_branch
      %22 = sbr.rel (0) target = $region21
    $region20: #{rnet_d_forward.1} parent=1 // pred_region
      _
    $region21: #{rnet_d_forward.1} parent=1 // pred_fallthru
      _
    // Predicated region
    $region22: #{rnet_d_forward.1} parent=1 // pred_check
      _
    $region23: #{rnet_d_forward.1} parent=1 // pred_check_branch
      %24 = sbr.rel (0) target = $region25
    $region24: #{rnet_d_forward.1} parent=1 // pred_region
      _
    $region25: #{rnet_d_forward.1} parent=1 // pred_fallthru
      _
    // Predicated region
    $region26: #{rnet_d_forward.1} parent=1 // pred_check
      _
    $region27: #{rnet_d_forward.1} parent=1 // pred_check_branch
      %26 = sbr.rel (0) target = $region29
    $region28: #{rnet_d_forward.1} parent=1 // pred_region
      %s28 = ssub.s32 64, 64
      %29 = vsyncadd [#allocation5], %s28
      %s31 = sshll.u32 %s6, 4
      %s32 = int_to_ptr.vmem [resolvable:$true] %s31
      %34 = dma.vmem_to_smem %s32, 64, [#allocation4], [#allocation5]
    $region29: #{rnet_d_forward.1} parent=1 // pred_fallthru
      _
    // Predicated region
    $region30: #{rnet_d_forward.1} parent=1 // pred_check
      _
    $region31: #{rnet_d_forward.1} parent=1 // pred_check_branch
      %36 = sbr.rel (0) target = $region33
    $region32: #{rnet_d_forward.1} parent=1 // pred_region
      %37 = dma.done [#allocation5], 64
    $region33: #{rnet_d_forward.1} parent=1 // pred_fallthru
      _
    %38 = sfence
    %v41 = vld [vmem:[%s0] sm:$0xff]
    %v42 = vld [vmem:[%s0 + $0x8] sm:$0xff]
    %v43 = vld [vmem:[%s0 + $0x10] sm:$0xff]
    %v44 = vld [vmem:[%s0 + $0x18] sm:$0xff]
    %45 = vst [vmem:[#allocation2] sm:$0xff] %v41
    %vm46 = vcmask 1043456
    %vm47 = vcmask 130052
    %vm48 = vmor %vm47, %vm46
    %49 = vst.msk [vmem:[#allocation2 + $0x8] sm:$0xff] %vm48, %v42
    %50 = vst [vmem:[#allocation2 + $0x10] sm:$0xff] %v43
    %51 = vst.msk [vmem:[#allocation2 + $0x18] sm:$0xff] %vm48, %v44
    %52 = vst [vmem:[#allocation3] sm:$0xff] 0
    %53 = vst.msk [vmem:[#allocation3 + $0x8] sm:$0xff] %vm48, 0
    %54 = vst [vmem:[#allocation3 + $0x10] sm:$0xff] 0
    %55 = vst.msk [vmem:[#allocation3 + $0x18] sm:$0xff] %vm48, 0
    %v56 = vlaneseq
    %v57 = vand.u32 %v56, 127
    %v58 = vadd.s32 %v57, 128
    %v59 = vadd.s32 %v57, 256
    %v60 = vadd.s32 %v57, 384
    %v61 = vadd.s32 %v57, 512
    %vm62 = vcmp.lt.s32.totalorder %v57, 0
    %v63 = vsub.s32 0, %v57
    %v64 = vsel %vm62, %v63, %v57
    %v65 = vmul.u32.u64.compose %v64, 3435973837
    %v66 = vextract.low.u32 %v65
    %v67 = vextract.high.u32 %v65
    %v68 = vshrl.u32 %v67, 4
    %v69 = vmul.u32 %v68, 20
    %v70 = vsub.s32 %v64, %v69
    %v71 = vsub.s32 0, %v70
    %v72 = vsel %vm62, %v71, %v70
    %vm73 = vcmp.lt.s32.totalorder %v58, 0
    %v74 = vsub.s32 0, %v58
    %v75 = vsel %vm73, %v74, %v58
    %v76 = vmul.u32.u64.compose %v75, 3435973837
    %v77 = vextract.low.u32 %v76
    %v78 = vextract.high.u32 %v76
    %v79 = vshrl.u32 %v78, 4
    %v80 = vmul.u32 %v79, 20
    %v81 = vsub.s32 %v75, %v80
    %v82 = vsub.s32 0, %v81
    %v83 = vsel %vm73, %v82, %v81
    %vm84 = vcmp.lt.s32.totalorder %v59, 0
    %v85 = vsub.s32 0, %v59
    %v86 = vsel %vm84, %v85, %v59
    %v87 = vmul.u32.u64.compose %v86, 3435973837
    %v88 = vextract.low.u32 %v87
    %v89 = vextract.high.u32 %v87
    %v90 = vshrl.u32 %v89, 4
    %v91 = vmul.u32 %v90, 20
    %v92 = vsub.s32 %v86, %v91
    %v93 = vsub.s32 0, %v92
    %v94 = vsel %vm84, %v93, %v92
    %vm95 = vcmp.lt.s32.totalorder %v60, 0
    %v96 = vsub.s32 0, %v60
    %v97 = vsel %vm95, %v96, %v60
    %v98 = vmul.u32.u64.compose %v97, 3435973837
    %v99 = vextract.low.u32 %v98
    %v100 = vextract.high.u32 %v98
    %v101 = vshrl.u32 %v100, 4
    %v102 = vmul.u32 %v101, 20
    %v103 = vsub.s32 %v97, %v102
    %v104 = vsub.s32 0, %v103
    %v105 = vsel %vm95, %v104, %v103
    %vm106 = vcmp.lt.s32.totalorder %v61, 0
    %v107 = vsub.s32 0, %v61
    %v108 = vsel %vm106, %v107, %v61
    %v109 = vmul.u32.u64.compose %v108, 3435973837
    %v110 = vextract.low.u32 %v109
    %v111 = vextract.high.u32 %v109
    %v112 = vshrl.u32 %v111, 4
    %v113 = vmul.u32 %v112, 20
    %v114 = vsub.s32 %v108, %v113
    %v115 = vsub.s32 0, %v114
    %v116 = vsel %vm106, %v115, %v114
    %vm117 = vcmp.ne.s32.totalorder %v72, 0
    %vm118 = vcmp.ne.s32.totalorder %v83, 0
    %vm119 = vcmp.ne.s32.totalorder %v94, 0
    %vm120 = vcmp.ne.s32.totalorder %v105, 0
    %vm121 = vcmp.ne.s32.totalorder %v116, 0
    %vm122 = vcmp.lt.s32.totalorder %v72, 0
    %vm123 = vcmp.lt.s32.totalorder %v83, 0
    %vm124 = vcmp.lt.s32.totalorder %v94, 0
    %vm125 = vcmp.lt.s32.totalorder %v105, 0
    %vm126 = vcmp.lt.s32.totalorder %v116, 0
    %vm127 = vmand %vm122, %vm117
    %vm128 = vmand %vm123, %vm118
    %vm129 = vmand %vm124, %vm119
    %vm130 = vmand %vm125, %vm120
    %vm131 = vmand %vm126, %vm121
    %v132 = vadd.s32 %v72, 20
    %v133 = vadd.s32 %v83, 20
    %v134 = vadd.s32 %v94, 20
    %v135 = vadd.s32 %v105, 20
    %v136 = vadd.s32 %v116, 20
    %v137 = vsel %vm127, %v132, %v72
    %v138 = vsel %vm128, %v133, %v83
    %v139 = vsel %vm129, %v134, %v94
    %v140 = vsel %vm130, %v135, %v105
    %v141 = vsel %vm131, %v136, %v116
    %vm142 = vcmp.ge.s32.totalorder %v137, 2
    %vm143 = vcmp.ge.s32.totalorder %v138, 2
    %vm144 = vcmp.ge.s32.totalorder %v139, 2
    %vm145 = vcmp.ge.s32.totalorder %v140, 2
    %vm146 = vcmp.ge.s32.totalorder %v141, 2
    %vm147 = vcmp.lt.s32.totalorder %v137, 18
    %vm148 = vcmp.lt.s32.totalorder %v138, 18
    %vm149 = vcmp.lt.s32.totalorder %v139, 18
    %vm150 = vcmp.lt.s32.totalorder %v140, 18
    %vm151 = vcmp.lt.s32.totalorder %v141, 18
    %vm152 = vmand %vm142, %vm147
    %vm153 = vmand %vm143, %vm148
    %vm154 = vmand %vm144, %vm149
    %vm155 = vmand %vm145, %vm150
    %vm156 = vmand %vm146, %vm151
    %s157 = sld [smem:[#allocation4]]
    %v158 = vld [vmem:[%s1] sm:$0xf]
    %v159 = vld [vmem:[#allocation2] sm:$0xff]
    %v160 = vld [vmem:[#allocation2 + $0x8] sm:$0xf]
    %s161 = scalar_lea.vmem [#allocation2], 16
    %v162 = vld [vmem:[%s161] sm:$0xff]
    %v163 = vld [vmem:[%s161 + $0x8] sm:$0xf]
    %v166 = vunpack.c.l.b16 %v159
    %v167 = vunpack.c.h.b16 %v159
    %v168 = vunpack.c.l.b16 %v160
    %v169 = vpack.c.b16 %v166, %v166
    %v170 = vpack.c.b16 %v167, %v167
    %v171 = vpack.c.b16 %v168, %v168
    %172 = vrot.lane.b32.xlu0 %v169, 109
    %v173 = vpop.permute.xlu0 %172
    %174 = vrot.lane.b32.xlu0 %v170, 109
    %v175 = vpop.permute.xlu0 %174
    %176 = vrot.lane.b32.xlu0 %v171, 109
    %v177 = vpop.permute.xlu0 %176
    %vm178 = vcmask 891904
    %v179 = vsel %vm178, %v173, %v175
    %v180 = vsel %vm178, %v175, %v177
    %v183 = vunpack.c.l.b16 %v162
    %v184 = vunpack.c.h.b16 %v162
    %v185 = vunpack.c.l.b16 %v163
    %v186 = vpack.c.b16 %v183, %v183
    %v187 = vpack.c.b16 %v184, %v184
    %v188 = vpack.c.b16 %v185, %v185
    %189 = vrot.lane.b32.xlu0 %v186, 45
    %v190 = vpop.permute.xlu0 %189
    %191 = vrot.lane.b32.xlu0 %v187, 45
    %v192 = vpop.permute.xlu0 %191
    %193 = vrot.lane.b32.xlu0 %v188, 45
    %v194 = vpop.permute.xlu0 %193
    %vm195 = vcmask 367616
    %v196 = vsel %vm195, %v190, %v192
    %v197 = vsel %vm195, %v192, %v194
    %vm198 = vcmask 523264
    %v201 = vsel %vm198, %v177, %v190
    %202 = vrot.lane.b32.xlu0 %v169, 108
    %v203 = vpop.permute.xlu0 %202
    %204 = vrot.lane.b32.xlu0 %v170, 108
    %v205 = vpop.permute.xlu0 %204
    %206 = vrot.lane.b32.xlu0 %v171, 108
    %v207 = vpop.permute.xlu0 %206
    %vm208 = vcmask 883712
    %v209 = vsel %vm208, %v203, %v205
    %v210 = vsel %vm208, %v205, %v207
    %211 = vrot.lane.b32.xlu0 %v186, 44
    %v212 = vpop.permute.xlu0 %211
    %213 = vrot.lane.b32.xlu0 %v187, 44
    %v214 = vpop.permute.xlu0 %213
    %215 = vrot.lane.b32.xlu0 %v188, 44
    %v216 = vpop.permute.xlu0 %215
    %vm217 = vcmask 359424
    %v218 = vsel %vm217, %v212, %v214
    %v219 = vsel %vm217, %v214, %v216
    %v222 = vsel %vm198, %v207, %v212
    %223 = vrot.lane.b32.xlu0 %v169, 107
    %v224 = vpop.permute.xlu0 %223
    %225 = vrot.lane.b32.xlu0 %v170, 107
    %v226 = vpop.permute.xlu0 %225
    %227 = vrot.lane.b32.xlu0 %v171, 107
    %v228 = vpop.permute.xlu0 %227
    %vm229 = vcmask 875520
    %v230 = vsel %vm229, %v224, %v226
    %v231 = vsel %vm229, %v226, %v228
    %232 = vrot.lane.b32.xlu0 %v186, 43
    %v233 = vpop.permute.xlu0 %232
    %234 = vrot.lane.b32.xlu0 %v187, 43
    %v235 = vpop.permute.xlu0 %234
    %236 = vrot.lane.b32.xlu0 %v188, 43
    %v237 = vpop.permute.xlu0 %236
    %vm238 = vcmask 351232
    %v239 = vsel %vm238, %v233, %v235
    %v240 = vsel %vm238, %v235, %v237
    %v243 = vsel %vm198, %v228, %v233
    %244 = vrot.lane.b32.xlu0 %v169, 89
    %v245 = vpop.permute.xlu0 %244
    %246 = vrot.lane.b32.xlu0 %v170, 89
    %v247 = vpop.permute.xlu0 %246
    %248 = vrot.lane.b32.xlu0 %v171, 89
    %v249 = vpop.permute.xlu0 %248
    %vm250 = vcmask 728064
    %v251 = vsel %vm250, %v245, %v247
    %v252 = vsel %vm250, %v247, %v249
    %253 = vrot.lane.b32.xlu0 %v186, 25
    %v254 = vpop.permute.xlu0 %253
    %255 = vrot.lane.b32.xlu0 %v187, 25
    %v256 = vpop.permute.xlu0 %255
    %257 = vrot.lane.b32.xlu0 %v188, 25
    %v258 = vpop.permute.xlu0 %257
    %vm259 = vcmask 203776
    %v260 = vsel %vm259, %v254, %v256
    %v261 = vsel %vm259, %v256, %v258
    %v264 = vsel %vm198, %v249, %v254
    %265 = vrot.lane.b32.xlu0 %v169, 88
    %v266 = vpop.permute.xlu0 %265
    %267 = vrot.lane.b32.xlu0 %v170, 88
    %v268 = vpop.permute.xlu0 %267
    %269 = vrot.lane.b32.xlu0 %v171, 88
    %v270 = vpop.permute.xlu0 %269
    %vm271 = vcmask 719872
    %v272 = vsel %vm271, %v266, %v268
    %v273 = vsel %vm271, %v268, %v270
    %274 = vrot.lane.b32.xlu0 %v186, 24
    %v275 = vpop.permute.xlu0 %274
    %276 = vrot.lane.b32.xlu0 %v187, 24
    %v277 = vpop.permute.xlu0 %276
    %278 = vrot.lane.b32.xlu0 %v188, 24
    %v279 = vpop.permute.xlu0 %278
    %vm280 = vcmask 195584
    %v281 = vsel %vm280, %v275, %v277
    %v282 = vsel %vm280, %v277, %v279
    %v285 = vsel %vm198, %v270, %v275
    %286 = vrot.lane.b32.xlu0 %v169, 87
    %v287 = vpop.permute.xlu0 %286
    %288 = vrot.lane.b32.xlu0 %v170, 87
    %v289 = vpop.permute.xlu0 %288
    %290 = vrot.lane.b32.xlu0 %v171, 87
    %v291 = vpop.permute.xlu0 %290
    %vm292 = vcmask 711680
    %v293 = vsel %vm292, %v287, %v289
    %v294 = vsel %vm292, %v289, %v291
    %295 = vrot.lane.b32.xlu0 %v186, 23
    %v296 = vpop.permute.xlu0 %295
    %297 = vrot.lane.b32.xlu0 %v187, 23
    %v298 = vpop.permute.xlu0 %297
    %299 = vrot.lane.b32.xlu0 %v188, 23
    %v300 = vpop.permute.xlu0 %299
    %vm301 = vcmask 187392
    %v302 = vsel %vm301, %v296, %v298
    %v303 = vsel %vm301, %v298, %v300
    %v306 = vsel %vm198, %v291, %v296
    %307 = vrot.lane.b32.xlu0 %v169, 69
    %v308 = vpop.permute.xlu0 %307
    %309 = vrot.lane.b32.xlu0 %v170, 69
    %v310 = vpop.permute.xlu0 %309
    %311 = vrot.lane.b32.xlu0 %v171, 69
    %v312 = vpop.permute.xlu0 %311
    %vm313 = vcmask 564224
    %v314 = vsel %vm313, %v308, %v310
    %v315 = vsel %vm313, %v310, %v312
    %316 = vrot.lane.b32.xlu0 %v186, 5
    %v317 = vpop.permute.xlu0 %316
    %318 = vrot.lane.b32.xlu0 %v187, 5
    %v319 = vpop.permute.xlu0 %318
    %320 = vrot.lane.b32.xlu0 %v188, 5
    %v321 = vpop.permute.xlu0 %320
    %vm322 = vcmask 39936
    %v323 = vsel %vm322, %v317, %v319
    %v324 = vsel %vm322, %v319, %v321
    %v327 = vsel %vm198, %v312, %v317
    %328 = vrot.lane.b32.xlu0 %v169, 68
    %v329 = vpop.permute.xlu0 %328
    %330 = vrot.lane.b32.xlu0 %v170, 68
    %v331 = vpop.permute.xlu0 %330
    %332 = vrot.lane.b32.xlu0 %v171, 68
    %v333 = vpop.permute.xlu0 %332
    %vm334 = vcmask 556032
    %v335 = vsel %vm334, %v329, %v331
    %v336 = vsel %vm334, %v331, %v333
    %337 = vrot.lane.b32.xlu0 %v186, 4
    %v338 = vpop.permute.xlu0 %337
    %339 = vrot.lane.b32.xlu0 %v187, 4
    %v340 = vpop.permute.xlu0 %339
    %341 = vrot.lane.b32.xlu0 %v188, 4
    %v342 = vpop.permute.xlu0 %341
    %vm343 = vcmask 31744
    %v344 = vsel %vm343, %v338, %v340
    %v345 = vsel %vm343, %v340, %v342
    %v348 = vsel %vm198, %v333, %v338
    %349 = vrot.lane.b32.xlu0 %v169, 67
    %v350 = vpop.permute.xlu0 %349
    %351 = vrot.lane.b32.xlu0 %v170, 67
    %v352 = vpop.permute.xlu0 %351
    %353 = vrot.lane.b32.xlu0 %v171, 67
    %v354 = vpop.permute.xlu0 %353
    %vm355 = vcmask 547840
    %v356 = vsel %vm355, %v350, %v352
    %v357 = vsel %vm355, %v352, %v354
    %358 = vrot.lane.b32.xlu0 %v186, 3
    %v359 = vpop.permute.xlu0 %358
    %360 = vrot.lane.b32.xlu0 %v187, 3
    %v361 = vpop.permute.xlu0 %360
    %362 = vrot.lane.b32.xlu0 %v188, 3
    %v363 = vpop.permute.xlu0 %362
    %vm364 = vcmask 23552
    %v365 = vsel %vm364, %v359, %v361
    %v366 = vsel %vm364, %v361, %v363
    %v369 = vsel %vm198, %v354, %v359
    %v371 = vrot.slane %v209, 4
    %v372 = vrot.slane %v210, 4
    %v373 = vrot.slane %v222, 4
    %v374 = vrot.slane %v218, 4
    %v375 = vrot.slane %v219, 4
    %v377 = vrot.slane %v251, 4
    %v378 = vrot.slane %v252, 4
    %v379 = vrot.slane %v264, 4
    %v380 = vrot.slane %v260, 4
    %v381 = vrot.slane %v261, 4
    %v383 = vrot.slane %v293, 4
    %v384 = vrot.slane %v294, 4
    %v385 = vrot.slane %v306, 4
    %v386 = vrot.slane %v302, 4
    %v387 = vrot.slane %v303, 4
    %v389 = vrot.slane %v335, 4
    %v390 = vrot.slane %v336, 4
    %v391 = vrot.slane %v348, 4
    %v392 = vrot.slane %v344, 4
    %v393 = vrot.slane %v345, 4
    %v396 = vsel %vm46, %v179, %v371
    %v400 = vsel %vm46, %v180, %v372
    %v403 = vsel %vm46, %v201, %v373
    %v407 = vsel %vm46, %v196, %v374
    %v411 = vsel %vm46, %v197, %v375
    %v415 = vsel %vm46, %v230, %v377
    %v419 = vsel %vm46, %v231, %v378
    %v422 = vsel %vm46, %v243, %v379
    %v426 = vsel %vm46, %v239, %v380
    %v430 = vsel %vm46, %v240, %v381
    %v434 = vsel %vm46, %v272, %v383
    %v438 = vsel %vm46, %v273, %v384
    %v441 = vsel %vm46, %v285, %v385
    %v445 = vsel %vm46, %v281, %v386
    %v449 = vsel %vm46, %v282, %v387
    %v453 = vsel %vm46, %v314, %v389
    %v457 = vsel %vm46, %v315, %v390
    %v460 = vsel %vm46, %v327, %v391
    %v464 = vsel %vm46, %v323, %v392
    %v468 = vsel %vm46, %v324, %v393
    %v472 = vsel %vm46, %v356, 1065369472
    %v475 = vsel %vm46, %v357, 1065369472
    %v477 = vsel %vm46, %v369, 1065369472
    %v480 = vsel %vm46, %v365, 1065369472
    %v483 = vsel %vm46, %v366, 1065369472
    %vm485 = vcmask 654336
    %v487 = vsel %vm485, %v158, 0
    %489 = vmatprep.subr.bf16.mxu0 %v400
    %490 = vmatpush1.bf16.msra.mxu0 %v396
    %491 = vmatprep.subr.bf16.mxu0 %v419
    %492 = vmatpush1.bf16.msra.mxu0 %v415
    %493 = vmatprep.subr.bf16.mxu0 %v438
    %494 = vmatpush1.bf16.msra.mxu0 %v434
    %495 = vmatprep.subr.bf16.mxu0 %v457
    %496 = vmatpush1.bf16.msra.mxu0 %v453
    %497 = vmatprep.subr.bf16.mxu0 %v475
    %498 = vmatpush1.bf16.msra.mxu0 %v472
    %499 = vmatprep.subr.bf16.mxu0 0
    %500 = vmatpush1.bf16.msra.mxu0 0
    %501 = vmatprep.subr.bf16.mxu0 0
    %502 = vmatpush1.bf16.msra.mxu0 0
    %503 = vmatprep.subr.bf16.mxu0 0
    %504 = vmatpush1.bf16.msra.mxu0 0
    %505 = vmatprep.subr.bf16.mxu0 0
    %506 = vmatpush1.bf16.msra.mxu0 0
    %507 = vmatprep.subr.bf16.mxu0 0
    %508 = vmatpush1.bf16.msra.mxu0 0
    %509 = vmatprep.subr.bf16.mxu0 0
    %510 = vmatpush1.bf16.msra.mxu0 0
    %511 = vmatprep.subr.bf16.mxu0 0
    %512 = vmatpush1.bf16.msra.mxu0 0
    %513 = vmatprep.subr.bf16.mxu0 0
    %514 = vmatpush1.bf16.msra.mxu0 0
    %515 = vmatprep.subr.bf16.mxu0 0
    %516 = vmatpush1.bf16.msra.mxu0 0
    %517 = vmatprep.subr.bf16.mxu0 0
    %518 = vmatpush1.bf16.msra.mxu0 0
    %519 = vmatprep.subr.bf16.mxu0 0
    %520 = vmatpush1.bf16.msra.mxu0 0
    %521 = vmatprep.mubr.bf16.mxu0 0
    %522 = vmatmul.mubr.bf16.gmra.mrb[0].mxu0 %v487
    %v523 = vpop.f32.mrb[0].mxu0
    %v524 = vadd.f32 0.0, %v523
    %v525 = vpop.f32.mrb[0].mxu0
    %v526 = vadd.f32 0.0, %v525
    %v527 = vpop.f32.mrb[0].mxu0
    %v528 = vpop.f32.mrb[0].mxu0
    %529 = vdwg.mxu0
    %530 = vmatprep.subr.bf16.mxu0 %v407
    %531 = vmatpush1.bf16.msra.mxu0 %v403
    %532 = vmatprep.subr.bf16.mxu0 %v426
    %533 = vmatpush1.bf16.msra.mxu0 %v422
    %534 = vmatprep.subr.bf16.mxu0 %v445
    %535 = vmatpush1.bf16.msra.mxu0 %v441
    %536 = vmatprep.subr.bf16.mxu0 %v464
    %537 = vmatpush1.bf16.msra.mxu0 %v460
    %538 = vmatprep.subr.bf16.mxu0 %v480
    %539 = vmatpush1.bf16.msra.mxu0 %v477
    %540 = vmatprep.subr.bf16.mxu0 0
    %541 = vmatpush1.bf16.msra.mxu0 0
    %542 = vmatprep.subr.bf16.mxu0 0
    %543 = vmatpush1.bf16.msra.mxu0 0
    %544 = vmatprep.subr.bf16.mxu0 0
    %545 = vmatpush1.bf16.msra.mxu0 0
    %546 = vmatprep.subr.bf16.mxu0 0
    %547 = vmatpush1.bf16.msra.mxu0 0
    %548 = vmatprep.subr.bf16.mxu0 0
    %549 = vmatpush1.bf16.msra.mxu0 0
    %550 = vmatprep.subr.bf16.mxu0 0
    %551 = vmatpush1.bf16.msra.mxu0 0
    %552 = vmatprep.subr.bf16.mxu0 0
    %553 = vmatpush1.bf16.msra.mxu0 0
    %554 = vmatprep.subr.bf16.mxu0 0
    %555 = vmatpush1.bf16.msra.mxu0 0
    %556 = vmatprep.subr.bf16.mxu0 0
    %557 = vmatpush1.bf16.msra.mxu0 0
    %558 = vmatprep.subr.bf16.mxu0 0
    %559 = vmatpush1.bf16.msra.mxu0 0
    %560 = vmatprep.subr.bf16.mxu0 0
    %561 = vmatpush1.bf16.msra.mxu0 0
    %562 = vmatprep.mubr.bf16.mxu0 0
    %563 = vmatmul.mubr.bf16.gmra.mrb[0].mxu0 %v487
    %v564 = vpop.f32.mrb[0].mxu0
    %v565 = vadd.f32 0.0, %v564
    %v566 = vpop.f32.mrb[0].mxu0
    %v567 = vadd.f32 0.0, %v566
    %v568 = vpop.f32.mrb[0].mxu0
    %v569 = vpop.f32.mrb[0].mxu0
    %570 = vdwg.mxu0
    %571 = vmatprep.subr.bf16.mxu0 0
    %572 = vmatpush1.bf16.msra.mxu0 %v411
    %573 = vmatprep.subr.bf16.mxu0 0
    %574 = vmatpush1.bf16.msra.mxu0 %v430
    %575 = vmatprep.subr.bf16.mxu0 0
    %576 = vmatpush1.bf16.msra.mxu0 %v449
    %577 = vmatprep.subr.bf16.mxu0 0
    %578 = vmatpush1.bf16.msra.mxu0 %v468
    %579 = vmatprep.subr.bf16.mxu0 0
    %580 = vmatpush1.bf16.msra.mxu0 %v483
    %581 = vmatprep.subr.bf16.mxu0 0
    %582 = vmatpush1.bf16.msra.mxu0 0
    %583 = vmatprep.subr.bf16.mxu0 0
    %584 = vmatpush1.bf16.msra.mxu0 0
    %585 = vmatprep.subr.bf16.mxu0 0
    %586 = vmatpush1.bf16.msra.mxu0 0
    %587 = vmatprep.subr.bf16.mxu0 0
    %588 = vmatpush1.bf16.msra.mxu0 0
    %589 = vmatprep.subr.bf16.mxu0 0
    %590 = vmatpush1.bf16.msra.mxu0 0
    %591 = vmatprep.subr.bf16.mxu0 0
    %592 = vmatpush1.bf16.msra.mxu0 0
    %593 = vmatprep.subr.bf16.mxu0 0
    %594 = vmatpush1.bf16.msra.mxu0 0
    %595 = vmatprep.subr.bf16.mxu0 0
    %596 = vmatpush1.bf16.msra.mxu0 0
    %597 = vmatprep.subr.bf16.mxu0 0
    %598 = vmatpush1.bf16.msra.mxu0 0
    %599 = vmatprep.subr.bf16.mxu0 0
    %600 = vmatpush1.bf16.msra.mxu0 0
    %601 = vmatprep.subr.bf16.mxu0 0
    %602 = vmatpush1.bf16.msra.mxu0 0
    %603 = vmatprep.mubr.bf16.mxu0 0
    %604 = vmatmul.mubr.bf16.gmra.mrb[0].mxu0 %v487
    %v605 = vpop.f32.mrb[0].mxu0
    %v606 = vadd.f32 0.0, %v605
    %v607 = vpop.f32.mrb[0].mxu0
    %v608 = vpop.f32.mrb[0].mxu0
    %v609 = vpop.f32.mrb[0].mxu0
    %610 = vdwg.mxu0
    %vm611 = vcmp.ge.f32.partialorder %v524, 0.0
    %vm612 = vcmp.ge.f32.partialorder %v526, 0.0
    %vm613 = vcmp.ge.f32.partialorder %v565, 0.0
    %vm614 = vcmp.ge.f32.partialorder %v567, 0.0
    %vm615 = vcmp.ge.f32.partialorder %v606, 0.0
    %v616 = vstv %s157
    %v617 = vmul.f32 %v616, %v524
    %v618 = vmul.f32 %v616, %v526
    %v619 = vmul.f32 %v616, %v565
    %v620 = vmul.f32 %v616, %v567
    %v621 = vmul.f32 %v616, %v606
    %v622 = vsel %vm611, %v524, %v617
    %v623 = vsel %vm612, %v526, %v618
    %v624 = vsel %vm613, %v565, %v619
    %v625 = vsel %vm614, %v567, %v620
    %v626 = vsel %vm615, %v606, %v621
    %v627 = vsel %vm152, 1, 0
    %v628 = vsel %vm153, 1, 0
    %v629 = vsel %vm154, 1, 0
    %v630 = vsel %vm155, 1, 0
    %v631 = vsel %vm156, 1, 0
    %vm632 = vcmp.eq.s32.totalorder %v627, 1
    %vm633 = vcmp.eq.s32.totalorder %v628, 1
    %vm634 = vcmp.eq.s32.totalorder %v629, 1
    %vm635 = vcmp.eq.s32.totalorder %v630, 1
    %vm636 = vcmp.eq.s32.totalorder %v631, 1
    %v637 = vsel %vm632, %v622, 0.0
    %v638 = vsel %vm633, %v623, 0.0
    %v639 = vsel %vm634, %v624, 0.0
    %v640 = vsel %vm635, %v625, 0.0
    %v641 = vsel %vm636, %v626, 0.0
    %v642 = vpack.c.bf16 %v637, %v637
    %v643 = vpack.c.bf16 %v638, %v638
    %v644 = vpack.c.bf16 %v639, %v639
    %v645 = vpack.c.bf16 %v640, %v640
    %v646 = vpack.c.bf16 %v641, %v641
    %v650 = vunpack.c.l.b16 %v642
    %v651 = vunpack.c.l.b16 %v643
    %v652 = vunpack.c.l.b16 %v644
    %v653 = vpack.c.b16 %v651, %v650
    %v654 = vpack.c.b16 %v652, %v652
    %655 = vrot.lane.b32.xlu0 %v653, 40
    %v656 = vpop.permute.xlu0 %655
    %657 = vrot.lane.b32.xlu0 %v654, 40
    %v658 = vpop.permute.xlu0 %657
    %v659 = vrot.slane %v656, 4
    %vm660 = vcmask 326656
    %v661 = vsel %vm660, %v659, %v656
    %v662 = vsel %vm660, %v659, %v658
    %vm665 = vcmask 1043776
    %vm666 = vcmask 1047556
    %vm667 = vmor %vm666, %vm665
    %668 = vst.msk [vmem:[#allocation3] sm:$0xff] %vm667, %v661
    %vm669 = vcmask 846848
    %670 = vst.msk [vmem:[#allocation3 + $0x8] sm:$0xf] %vm669, %v662
    %v673 = vunpack.c.l.b16 %v645
    %v674 = vunpack.c.l.b16 %v646
    %v675 = vpack.c.b16 %v673, %v652
    %v676 = vpack.c.b16 %v674, %v674
    %677 = vrot.lane.b32.xlu0 %v675, 104
    %v678 = vpop.permute.xlu0 %677
    %679 = vrot.lane.b32.xlu0 %v676, 104
    %v680 = vpop.permute.xlu0 %679
    %v681 = vrot.slane %v678, 4
    %v682 = vrot.slane %v680, 4
    %vm683 = vcmask 1043456
    %v684 = vsel %vm683, %v681, %v682
    %vm685 = vcmask 850944
    %v686 = vsel %vm685, %v678, %v684
    %s689 = scalar_lea.vmem [#allocation3], 16
    %690 = vst.msk [vmem:[%s689] sm:$0xff] %vm667, %v686
    %691 = vst.msk [vmem:[%s689 + $0x8] sm:$0xf] %vm669, %v680
    %v692 = vld [vmem:[%s2] sm:$0xf]
    %v693 = vld [vmem:[#allocation3] sm:$0xff]
    %v694 = vld [vmem:[#allocation3 + $0x8] sm:$0xf]
    %v695 = vld [vmem:[%s689] sm:$0xff]
    %v696 = vld [vmem:[%s689 + $0x8] sm:$0xf]
    %v699 = vunpack.c.l.b16 %v693
    %v700 = vunpack.c.h.b16 %v693
    %v701 = vunpack.c.l.b16 %v694
    %v702 = vpack.c.b16 %v699, %v699
    %v703 = vpack.c.b16 %v700, %v700
    %v704 = vpack.c.b16 %v701, %v701
    %705 = vrot.lane.b32.xlu0 %v702, 109
    %v706 = vpop.permute.xlu0 %705
    %707 = vrot.lane.b32.xlu0 %v703, 109
    %v708 = vpop.permute.xlu0 %707
    %709 = vrot.lane.b32.xlu0 %v704, 109
    %v710 = vpop.permute.xlu0 %709
    %v711 = vsel %vm178, %v706, %v708
    %v712 = vsel %vm178, %v708, %v710
    %v715 = vunpack.c.l.b16 %v695
    %v716 = vunpack.c.h.b16 %v695
    %v717 = vunpack.c.l.b16 %v696
    %v718 = vpack.c.b16 %v715, %v715
    %v719 = vpack.c.b16 %v716, %v716
    %v720 = vpack.c.b16 %v717, %v717
    %721 = vrot.lane.b32.xlu0 %v718, 45
    %v722 = vpop.permute.xlu0 %721
    %723 = vrot.lane.b32.xlu0 %v719, 45
    %v724 = vpop.permute.xlu0 %723
    %725 = vrot.lane.b32.xlu0 %v720, 45
    %v726 = vpop.permute.xlu0 %725
    %v727 = vsel %vm195, %v722, %v724
    %v728 = vsel %vm195, %v724, %v726
    %v731 = vsel %vm198, %v710, %v722
    %732 = vrot.lane.b32.xlu0 %v702, 108
    %v733 = vpop.permute.xlu0 %732
    %734 = vrot.lane.b32.xlu0 %v703, 108
    %v735 = vpop.permute.xlu0 %734
    %736 = vrot.lane.b32.xlu0 %v704, 108
    %v737 = vpop.permute.xlu0 %736
    %v738 = vsel %vm208, %v733, %v735
    %v739 = vsel %vm208, %v735, %v737
    %740 = vrot.lane.b32.xlu0 %v718, 44
    %v741 = vpop.permute.xlu0 %740
    %742 = vrot.lane.b32.xlu0 %v719, 44
    %v743 = vpop.permute.xlu0 %742
    %744 = vrot.lane.b32.xlu0 %v720, 44
    %v745 = vpop.permute.xlu0 %744
    %v746 = vsel %vm217, %v741, %v743
    %v747 = vsel %vm217, %v743, %v745
    %v750 = vsel %vm198, %v737, %v741
    %751 = vrot.lane.b32.xlu0 %v702, 107
    %v752 = vpop.permute.xlu0 %751
    %753 = vrot.lane.b32.xlu0 %v703, 107
    %v754 = vpop.permute.xlu0 %753
    %755 = vrot.lane.b32.xlu0 %v704, 107
    %v756 = vpop.permute.xlu0 %755
    %v757 = vsel %vm229, %v752, %v754
    %v758 = vsel %vm229, %v754, %v756
    %759 = vrot.lane.b32.xlu0 %v718, 43
    %v760 = vpop.permute.xlu0 %759
    %761 = vrot.lane.b32.xlu0 %v719, 43
    %v762 = vpop.permute.xlu0 %761
    %763 = vrot.lane.b32.xlu0 %v720, 43
    %v764 = vpop.permute.xlu0 %763
    %v765 = vsel %vm238, %v760, %v762
    %v766 = vsel %vm238, %v762, %v764
    %v769 = vsel %vm198, %v756, %v760
    %770 = vrot.lane.b32.xlu0 %v702, 89
    %v771 = vpop.permute.xlu0 %770
    %772 = vrot.lane.b32.xlu0 %v703, 89
    %v773 = vpop.permute.xlu0 %772
    %774 = vrot.lane.b32.xlu0 %v704, 89
    %v775 = vpop.permute.xlu0 %774
    %v776 = vsel %vm250, %v771, %v773
    %v777 = vsel %vm250, %v773, %v775
    %778 = vrot.lane.b32.xlu0 %v718, 25
    %v779 = vpop.permute.xlu0 %778
    %780 = vrot.lane.b32.xlu0 %v719, 25
    %v781 = vpop.permute.xlu0 %780
    %782 = vrot.lane.b32.xlu0 %v720, 25
    %v783 = vpop.permute.xlu0 %782
    %v784 = vsel %vm259, %v779, %v781
    %v785 = vsel %vm259, %v781, %v783
    %v788 = vsel %vm198, %v775, %v779
    %789 = vrot.lane.b32.xlu0 %v702, 88
    %v790 = vpop.permute.xlu0 %789
    %791 = vrot.lane.b32.xlu0 %v703, 88
    %v792 = vpop.permute.xlu0 %791
    %793 = vrot.lane.b32.xlu0 %v704, 88
    %v794 = vpop.permute.xlu0 %793
    %v795 = vsel %vm271, %v790, %v792
    %v796 = vsel %vm271, %v792, %v794
    %797 = vrot.lane.b32.xlu0 %v718, 24
    %v798 = vpop.permute.xlu0 %797
    %799 = vrot.lane.b32.xlu0 %v719, 24
    %v800 = vpop.permute.xlu0 %799
    %801 = vrot.lane.b32.xlu0 %v720, 24
    %v802 = vpop.permute.xlu0 %801
    %v803 = vsel %vm280, %v798, %v800
    %v804 = vsel %vm280, %v800, %v802
    %v807 = vsel %vm198, %v794, %v798
    %808 = vrot.lane.b32.xlu0 %v702, 87
    %v809 = vpop.permute.xlu0 %808
    %810 = vrot.lane.b32.xlu0 %v703, 87
    %v811 = vpop.permute.xlu0 %810
    %812 = vrot.lane.b32.xlu0 %v704, 87
    %v813 = vpop.permute.xlu0 %812
    %v814 = vsel %vm292, %v809, %v811
    %v815 = vsel %vm292, %v811, %v813
    %816 = vrot.lane.b32.xlu0 %v718, 23
    %v817 = vpop.permute.xlu0 %816
    %818 = vrot.lane.b32.xlu0 %v719, 23
    %v819 = vpop.permute.xlu0 %818
    %820 = vrot.lane.b32.xlu0 %v720, 23
    %v821 = vpop.permute.xlu0 %820
    %v822 = vsel %vm301, %v817, %v819
    %v823 = vsel %vm301, %v819, %v821
    %v826 = vsel %vm198, %v813, %v817
    %827 = vrot.lane.b32.xlu0 %v702, 69
    %v828 = vpop.permute.xlu0 %827
    %829 = vrot.lane.b32.xlu0 %v703, 69
    %v830 = vpop.permute.xlu0 %829
    %831 = vrot.lane.b32.xlu0 %v704, 69
    %v832 = vpop.permute.xlu0 %831
    %v833 = vsel %vm313, %v828, %v830
    %v834 = vsel %vm313, %v830, %v832
    %835 = vrot.lane.b32.xlu0 %v718, 5
    %v836 = vpop.permute.xlu0 %835
    %837 = vrot.lane.b32.xlu0 %v719, 5
    %v838 = vpop.permute.xlu0 %837
    %839 = vrot.lane.b32.xlu0 %v720, 5
    %v840 = vpop.permute.xlu0 %839
    %v841 = vsel %vm322, %v836, %v838
    %v842 = vsel %vm322, %v838, %v840
    %v845 = vsel %vm198, %v832, %v836
    %846 = vrot.lane.b32.xlu0 %v702, 68
    %v847 = vpop.permute.xlu0 %846
    %848 = vrot.lane.b32.xlu0 %v703, 68
    %v849 = vpop.permute.xlu0 %848
    %850 = vrot.lane.b32.xlu0 %v704, 68
    %v851 = vpop.permute.xlu0 %850
    %v852 = vsel %vm334, %v847, %v849
    %v853 = vsel %vm334, %v849, %v851
    %854 = vrot.lane.b32.xlu0 %v718, 4
    %v855 = vpop.permute.xlu0 %854
    %856 = vrot.lane.b32.xlu0 %v719, 4
    %v857 = vpop.permute.xlu0 %856
    %858 = vrot.lane.b32.xlu0 %v720, 4
    %v859 = vpop.permute.xlu0 %858
    %v860 = vsel %vm343, %v855, %v857
    %v861 = vsel %vm343, %v857, %v859
    %v864 = vsel %vm198, %v851, %v855
    %865 = vrot.lane.b32.xlu0 %v702, 67
    %v866 = vpop.permute.xlu0 %865
    %867 = vrot.lane.b32.xlu0 %v703, 67
    %v868 = vpop.permute.xlu0 %867
    %869 = vrot.lane.b32.xlu0 %v704, 67
    %v870 = vpop.permute.xlu0 %869
    %v871 = vsel %vm355, %v866, %v868
    %v872 = vsel %vm355, %v868, %v870
    %873 = vrot.lane.b32.xlu0 %v718, 3
    %v874 = vpop.permute.xlu0 %873
    %875 = vrot.lane.b32.xlu0 %v719, 3
    %v876 = vpop.permute.xlu0 %875
    %877 = vrot.lane.b32.xlu0 %v720, 3
    %v878 = vpop.permute.xlu0 %877
    %v879 = vsel %vm364, %v874, %v876
    %v880 = vsel %vm364, %v876, %v878
    %v883 = vsel %vm198, %v870, %v874
    %v885 = vrot.slane %v738, 4
    %v886 = vrot.slane %v739, 4
    %v887 = vrot.slane %v750, 4
    %v888 = vrot.slane %v746, 4
    %v889 = vrot.slane %v747, 4
    %v891 = vrot.slane %v776, 4
    %v892 = vrot.slane %v777, 4
    %v893 = vrot.slane %v788, 4
    %v894 = vrot.slane %v784, 4
    %v895 = vrot.slane %v785, 4
    %v897 = vrot.slane %v814, 4
    %v898 = vrot.slane %v815, 4
    %v899 = vrot.slane %v826, 4
    %v900 = vrot.slane %v822, 4
    %v901 = vrot.slane %v823, 4
    %v903 = vrot.slane %v852, 4
    %v904 = vrot.slane %v853, 4
    %v905 = vrot.slane %v864, 4
    %v906 = vrot.slane %v860, 4
    %v907 = vrot.slane %v861, 4
    %v910 = vsel %vm46, %v711, %v885
    %v914 = vsel %vm46, %v712, %v886
    %v917 = vsel %vm46, %v731, %v887
    %v921 = vsel %vm46, %v727, %v888
    %v925 = vsel %vm46, %v728, %v889
    %v929 = vsel %vm46, %v757, %v891
    %v933 = vsel %vm46, %v758, %v892
    %v936 = vsel %vm46, %v769, %v893
    %v940 = vsel %vm46, %v765, %v894
    %v944 = vsel %vm46, %v766, %v895
    %v948 = vsel %vm46, %v795, %v897
    %v952 = vsel %vm46, %v796, %v898
    %v955 = vsel %vm46, %v807, %v899
    %v959 = vsel %vm46, %v803, %v900
    %v963 = vsel %vm46, %v804, %v901
    %v967 = vsel %vm46, %v833, %v903
    %v971 = vsel %vm46, %v834, %v904
    %v974 = vsel %vm46, %v845, %v905
    %v978 = vsel %vm46, %v841, %v906
    %v982 = vsel %vm46, %v842, %v907
    %v985 = vsel %vm46, %v871, 1065369472
    %v988 = vsel %vm46, %v872, 1065369472
    %v990 = vsel %vm46, %v883, 1065369472
    %v993 = vsel %vm46, %v879, 1065369472
    %v996 = vsel %vm46, %v880, 1065369472
    %v998 = vld [vmem:[#allocation2] sm:$0xff]
    %v999 = vld [vmem:[#allocation2 + $0x8] sm:$0xf]
    %v1000 = vld [vmem:[%s161] sm:$0xff]
    %v1001 = vld [vmem:[%s161 + $0x8] sm:$0xf]
    %v1004 = vunpack.c.l.b16 %v998
    %v1005 = vunpack.c.h.b16 %v998
    %v1006 = vunpack.c.l.b16 %v999
    %v1007 = vpack.c.b16 %v1004, %v1004
    %v1008 = vpack.c.b16 %v1005, %v1005
    %v1009 = vpack.c.b16 %v1006, %v1006
    %1010 = vrot.lane.b32.xlu0 %v1007, 88
    %v1011 = vpop.permute.xlu0 %1010
    %1012 = vrot.lane.b32.xlu0 %v1008, 88
    %v1013 = vpop.permute.xlu0 %1012
    %1014 = vrot.lane.b32.xlu0 %v1009, 88
    %v1015 = vpop.permute.xlu0 %1014
    %v1016 = vsel %vm271, %v1011, %v1013
    %v1017 = vsel %vm271, %v1013, %v1015
    %v1022 = vunpack.c.l.b16 %v1000
    %v1023 = vunpack.c.h.b16 %v1000
    %v1024 = vunpack.c.l.b16 %v1001
    %v1025 = vpack.c.b16 %v1022, %v1022
    %v1026 = vpack.c.b16 %v1023, %v1023
    %v1027 = vpack.c.b16 %v1024, %v1024
    %1028 = vrot.lane.b32.xlu0 %v1025, 24
    %v1029 = vpop.permute.xlu0 %1028
    %1030 = vrot.lane.b32.xlu0 %v1026, 24
    %v1031 = vpop.permute.xlu0 %1030
    %1032 = vrot.lane.b32.xlu0 %v1027, 24
    %v1033 = vpop.permute.xlu0 %1032
    %v1034 = vsel %vm280, %v1029, %v1031
    %v1035 = vsel %vm280, %v1031, %v1033
    %v1040 = vsel %vm198, %v1015, %v1029
    %v1042 = vunpack.c.l.bf16 %v1016
    %v1043 = vunpack.c.l.bf16 %v1017
    %v1044 = vunpack.c.l.bf16 %v1040
    %v1045 = vunpack.c.l.bf16 %v1034
    %v1046 = vunpack.c.l.bf16 %v1035
    %v1048 = vsel %vm485, %v692, 0
    %1050 = vmatprep.subr.bf16.mxu0 %v914
    %1051 = vmatpush1.bf16.msra.mxu0 %v910
    %1052 = vmatprep.subr.bf16.mxu0 %v933
    %1053 = vmatpush1.bf16.msra.mxu0 %v929
    %1054 = vmatprep.subr.bf16.mxu0 %v952
    %1055 = vmatpush1.bf16.msra.mxu0 %v948
    %1056 = vmatprep.subr.bf16.mxu0 %v971
    %1057 = vmatpush1.bf16.msra.mxu0 %v967
    %1058 = vmatprep.subr.bf16.mxu0 %v988
    %1059 = vmatpush1.bf16.msra.mxu0 %v985
    %1060 = vmatprep.subr.bf16.mxu0 0
    %1061 = vmatpush1.bf16.msra.mxu0 0
    %1062 = vmatprep.subr.bf16.mxu0 0
    %1063 = vmatpush1.bf16.msra.mxu0 0
    %1064 = vmatprep.subr.bf16.mxu0 0
    %1065 = vmatpush1.bf16.msra.mxu0 0
    %1066 = vmatprep.subr.bf16.mxu0 0
    %1067 = vmatpush1.bf16.msra.mxu0 0
    %1068 = vmatprep.subr.bf16.mxu0 0
    %1069 = vmatpush1.bf16.msra.mxu0 0
    %1070 = vmatprep.subr.bf16.mxu0 0
    %1071 = vmatpush1.bf16.msra.mxu0 0
    %1072 = vmatprep.subr.bf16.mxu0 0
    %1073 = vmatpush1.bf16.msra.mxu0 0
    %1074 = vmatprep.subr.bf16.mxu0 0
    %1075 = vmatpush1.bf16.msra.mxu0 0
    %1076 = vmatprep.subr.bf16.mxu0 0
    %1077 = vmatpush1.bf16.msra.mxu0 0
    %1078 = vmatprep.subr.bf16.mxu0 0
    %1079 = vmatpush1.bf16.msra.mxu0 0
    %1080 = vmatprep.subr.bf16.mxu0 0
    %1081 = vmatpush1.bf16.msra.mxu0 0
    %1082 = vmatprep.mubr.bf16.mxu0 0
    %1083 = vmatmul.mubr.bf16.gmra.mrb[0].mxu0 %v1048
    %v1084 = vpop.f32.mrb[0].mxu0
    %v1085 = vadd.f32 %v1042, %v1084
    %v1086 = vpop.f32.mrb[0].mxu0
    %v1087 = vadd.f32 %v1043, %v1086
    %v1088 = vpop.f32.mrb[0].mxu0
    %v1089 = vpop.f32.mrb[0].mxu0
    %1090 = vdwg.mxu0
    %1091 = vmatprep.subr.bf16.mxu0 %v921
    %1092 = vmatpush1.bf16.msra.mxu0 %v917
    %1093 = vmatprep.subr.bf16.mxu0 %v940
    %1094 = vmatpush1.bf16.msra.mxu0 %v936
    %1095 = vmatprep.subr.bf16.mxu0 %v959
    %1096 = vmatpush1.bf16.msra.mxu0 %v955
    %1097 = vmatprep.subr.bf16.mxu0 %v978
    %1098 = vmatpush1.bf16.msra.mxu0 %v974
    %1099 = vmatprep.subr.bf16.mxu0 %v993
    %1100 = vmatpush1.bf16.msra.mxu0 %v990
    %1101 = vmatprep.subr.bf16.mxu0 0
    %1102 = vmatpush1.bf16.msra.mxu0 0
    %1103 = vmatprep.subr.bf16.mxu0 0
    %1104 = vmatpush1.bf16.msra.mxu0 0
    %1105 = vmatprep.subr.bf16.mxu0 0
    %1106 = vmatpush1.bf16.msra.mxu0 0
    %1107 = vmatprep.subr.bf16.mxu0 0
    %1108 = vmatpush1.bf16.msra.mxu0 0
    %1109 = vmatprep.subr.bf16.mxu0 0
    %1110 = vmatpush1.bf16.msra.mxu0 0
    %1111 = vmatprep.subr.bf16.mxu0 0
    %1112 = vmatpush1.bf16.msra.mxu0 0
    %1113 = vmatprep.subr.bf16.mxu0 0
    %1114 = vmatpush1.bf16.msra.mxu0 0
    %1115 = vmatprep.subr.bf16.mxu0 0
    %1116 = vmatpush1.bf16.msra.mxu0 0
    %1117 = vmatprep.subr.bf16.mxu0 0
    %1118 = vmatpush1.bf16.msra.mxu0 0
    %1119 = vmatprep.subr.bf16.mxu0 0
    %1120 = vmatpush1.bf16.msra.mxu0 0
    %1121 = vmatprep.subr.bf16.mxu0 0
    %1122 = vmatpush1.bf16.msra.mxu0 0
    %1123 = vmatprep.mubr.bf16.mxu0 0
    %1124 = vmatmul.mubr.bf16.gmra.mrb[0].mxu0 %v1048
    %v1125 = vpop.f32.mrb[0].mxu0
    %v1126 = vadd.f32 %v1044, %v1125
    %v1127 = vpop.f32.mrb[0].mxu0
    %v1128 = vadd.f32 %v1045, %v1127
    %v1129 = vpop.f32.mrb[0].mxu0
    %v1130 = vpop.f32.mrb[0].mxu0
    %1131 = vdwg.mxu0
    %1132 = vmatprep.subr.bf16.mxu0 0
    %1133 = vmatpush1.bf16.msra.mxu0 %v925
    %1134 = vmatprep.subr.bf16.mxu0 0
    %1135 = vmatpush1.bf16.msra.mxu0 %v944
    %1136 = vmatprep.subr.bf16.mxu0 0
    %1137 = vmatpush1.bf16.msra.mxu0 %v963
    %1138 = vmatprep.subr.bf16.mxu0 0
    %1139 = vmatpush1.bf16.msra.mxu0 %v982
    %1140 = vmatprep.subr.bf16.mxu0 0
    %1141 = vmatpush1.bf16.msra.mxu0 %v996
    %1142 = vmatprep.subr.bf16.mxu0 0
    %1143 = vmatpush1.bf16.msra.mxu0 0
    %1144 = vmatprep.subr.bf16.mxu0 0
    %1145 = vmatpush1.bf16.msra.mxu0 0
    %1146 = vmatprep.subr.bf16.mxu0 0
    %1147 = vmatpush1.bf16.msra.mxu0 0
    %1148 = vmatprep.subr.bf16.mxu0 0
    %1149 = vmatpush1.bf16.msra.mxu0 0
    %1150 = vmatprep.subr.bf16.mxu0 0
    %1151 = vmatpush1.bf16.msra.mxu0 0
    %1152 = vmatprep.subr.bf16.mxu0 0
    %1153 = vmatpush1.bf16.msra.mxu0 0
    %1154 = vmatprep.subr.bf16.mxu0 0
    %1155 = vmatpush1.bf16.msra.mxu0 0
    %1156 = vmatprep.subr.bf16.mxu0 0
    %1157 = vmatpush1.bf16.msra.mxu0 0
    %1158 = vmatprep.subr.bf16.mxu0 0
    %1159 = vmatpush1.bf16.msra.mxu0 0
    %1160 = vmatprep.subr.bf16.mxu0 0
    %1161 = vmatpush1.bf16.msra.mxu0 0
    %1162 = vmatprep.subr.bf16.mxu0 0
    %1163 = vmatpush1.bf16.msra.mxu0 0
    %1164 = vmatprep.mubr.bf16.mxu0 0
    %1165 = vmatmul.mubr.bf16.gmra.mrb[0].mxu0 %v1048
    %v1166 = vpop.f32.mrb[0].mxu0
    %v1167 = vadd.f32 %v1046, %v1166
    %v1168 = vpop.f32.mrb[0].mxu0
    %v1169 = vpop.f32.mrb[0].mxu0
    %v1170 = vpop.f32.mrb[0].mxu0
    %1171 = vdwg.mxu0
    %vm1172 = vcmp.ge.f32.partialorder %v1085, 0.0
    %vm1173 = vcmp.ge.f32.partialorder %v1087, 0.0
    %vm1174 = vcmp.ge.f32.partialorder %v1126, 0.0
    %vm1175 = vcmp.ge.f32.partialorder %v1128, 0.0
    %vm1176 = vcmp.ge.f32.partialorder %v1167, 0.0
    %v1177 = vmul.f32 %v616, %v1085
    %v1178 = vmul.f32 %v616, %v1087
    %v1179 = vmul.f32 %v616, %v1126
    %v1180 = vmul.f32 %v616, %v1128
    %v1181 = vmul.f32 %v616, %v1167
    %v1182 = vsel %vm1172, %v1085, %v1177
    %v1183 = vsel %vm1173, %v1087, %v1178
    %v1184 = vsel %vm1174, %v1126, %v1179
    %v1185 = vsel %vm1175, %v1128, %v1180
    %v1186 = vsel %vm1176, %v1167, %v1181
    %v1187 = vsel %vm632, %v1182, 0.0
    %v1188 = vsel %vm633, %v1183, 0.0
    %v1189 = vsel %vm634, %v1184, 0.0
    %v1190 = vsel %vm635, %v1185, 0.0
    %v1191 = vsel %vm636, %v1186, 0.0
    %v1192 = vpack.c.bf16 %v1187, %v1187
    %v1193 = vpack.c.bf16 %v1188, %v1188
    %v1194 = vpack.c.bf16 %v1189, %v1189
    %v1195 = vpack.c.bf16 %v1190, %v1190
    %v1196 = vpack.c.bf16 %v1191, %v1191
    %v1200 = vunpack.c.l.b16 %v1192
    %v1201 = vunpack.c.l.b16 %v1193
    %v1202 = vunpack.c.l.b16 %v1194
    %v1203 = vpack.c.b16 %v1201, %v1200
    %v1204 = vpack.c.b16 %v1202, %v1202
    %1205 = vrot.lane.b32.xlu0 %v1203, 40
    %v1206 = vpop.permute.xlu0 %1205
    %1207 = vrot.lane.b32.xlu0 %v1204, 40
    %v1208 = vpop.permute.xlu0 %1207
    %v1209 = vrot.slane %v1206, 4
    %v1210 = vsel %vm660, %v1209, %v1206
    %v1211 = vsel %vm660, %v1209, %v1208
    %1214 = vst.msk [vmem:[#allocation2] sm:$0xff] %vm667, %v1210
    %1215 = vst.msk [vmem:[#allocation2 + $0x8] sm:$0xf] %vm669, %v1211
    %v1218 = vunpack.c.l.b16 %v1195
    %v1219 = vunpack.c.l.b16 %v1196
    %v1220 = vpack.c.b16 %v1218, %v1202
    %v1221 = vpack.c.b16 %v1219, %v1219
    %1222 = vrot.lane.b32.xlu0 %v1220, 104
    %v1223 = vpop.permute.xlu0 %1222
    %1224 = vrot.lane.b32.xlu0 %v1221, 104
    %v1225 = vpop.permute.xlu0 %1224
    %v1226 = vrot.slane %v1223, 4
    %v1227 = vrot.slane %v1225, 4
    %v1228 = vsel %vm683, %v1226, %v1227
    %v1229 = vsel %vm685, %v1223, %v1228
    %1232 = vst.msk [vmem:[%s161] sm:$0xff] %vm667, %v1229
    %1233 = vst.msk [vmem:[%s161 + $0x8] sm:$0xf] %vm669, %v1225
    %s1234 = sld [smem:[#allocation4 + $0x80]]
    %s1235 = scalar_lea.vmem %s1, 4
    %v1236 = vld [vmem:[%s1235] sm:$0xf]
    %v1237 = vld [vmem:[#allocation2] sm:$0xff]
    %v1238 = vld [vmem:[#allocation2 + $0x8] sm:$0xf]
    %v1239 = vld [vmem:[%s161] sm:$0xff]
    %v1240 = vld [vmem:[%s161 + $0x8] sm:$0xf]
    %v1243 = vunpack.c.l.b16 %v1237
    %v1244 = vunpack.c.h.b16 %v1237
    %v1245 = vunpack.c.l.b16 %v1238
    %v1246 = vpack.c.b16 %v1243, %v1243
    %v1247 = vpack.c.b16 %v1244, %v1244
    %v1248 = vpack.c.b16 %v1245, %v1245
    %1249 = vrot.lane.b32.xlu0 %v1246, 109
    %v1250 = vpop.permute.xlu0 %1249
    %1251 = vrot.lane.b32.xlu0 %v1247, 109
    %v1252 = vpop.permute.xlu0 %1251
    %1253 = vrot.lane.b32.xlu0 %v1248, 109
    %v1254 = vpop.permute.xlu0 %1253
    %v1255 = vsel %vm178, %v1250, %v1252
    %v1256 = vsel %vm178, %v1252, %v1254
    %v1259 = vunpack.c.l.b16 %v1239
    %v1260 = vunpack.c.h.b16 %v1239
    %v1261 = vunpack.c.l.b16 %v1240
    %v1262 = vpack.c.b16 %v1259, %v1259
    %v1263 = vpack.c.b16 %v1260, %v1260
    %v1264 = vpack.c.b16 %v1261, %v1261
    %1265 = vrot.lane.b32.xlu0 %v1262, 45
    %v1266 = vpop.permute.xlu0 %1265
    %1267 = vrot.lane.b32.xlu0 %v1263, 45
    %v1268 = vpop.permute.xlu0 %1267
    %1269 = vrot.lane.b32.xlu0 %v1264, 45
    %v1270 = vpop.permute.xlu0 %1269
    %v1271 = vsel %vm195, %v1266, %v1268
    %v1272 = vsel %vm195, %v1268, %v1270
    %v1275 = vsel %vm198, %v1254, %v1266
    %1276 = vrot.lane.b32.xlu0 %v1246, 108
    %v1277 = vpop.permute.xlu0 %1276
    %1278 = vrot.lane.b32.xlu0 %v1247, 108
    %v1279 = vpop.permute.xlu0 %1278
    %1280 = vrot.lane.b32.xlu0 %v1248, 108
    %v1281 = vpop.permute.xlu0 %1280
    %v1282 = vsel %vm208, %v1277, %v1279
    %v1283 = vsel %vm208, %v1279, %v1281
    %1284 = vrot.lane.b32.xlu0 %v1262, 44
    %v1285 = vpop.permute.xlu0 %1284
    %1286 = vrot.lane.b32.xlu0 %v1263, 44
    %v1287 = vpop.permute.xlu0 %1286
    %1288 = vrot.lane.b32.xlu0 %v1264, 44
    %v1289 = vpop.permute.xlu0 %1288
    %v1290 = vsel %vm217, %v1285, %v1287
    %v1291 = vsel %vm217, %v1287, %v1289
    %v1294 = vsel %vm198, %v1281, %v1285
    %1295 = vrot.lane.b32.xlu0 %v1246, 107
    %v1296 = vpop.permute.xlu0 %1295
    %1297 = vrot.lane.b32.xlu0 %v1247, 107
    %v1298 = vpop.permute.xlu0 %1297
    %1299 = vrot.lane.b32.xlu0 %v1248, 107
    %v1300 = vpop.permute.xlu0 %1299
    %v1301 = vsel %vm229, %v1296, %v1298
    %v1302 = vsel %vm229, %v1298, %v1300
    %1303 = vrot.lane.b32.xlu0 %v1262, 43
    %v1304 = vpop.permute.xlu0 %1303
    %1305 = vrot.lane.b32.xlu0 %v1263, 43
    %v1306 = vpop.permute.xlu0 %1305
    %1307 = vrot.lane.b32.xlu0 %v1264, 43
    %v1308 = vpop.permute.xlu0 %1307
    %v1309 = vsel %vm238, %v1304, %v1306
    %v1310 = vsel %vm238, %v1306, %v1308
    %v1313 = vsel %vm198, %v1300, %v1304
    %1314 = vrot.lane.b32.xlu0 %v1246, 89
    %v1315 = vpop.permute.xlu0 %1314
    %1316 = vrot.lane.b32.xlu0 %v1247, 89
    %v1317 = vpop.permute.xlu0 %1316
    %1318 = vrot.lane.b32.xlu0 %v1248, 89
    %v1319 = vpop.permute.xlu0 %1318
    %v1320 = vsel %vm250, %v1315, %v1317
    %v1321 = vsel %vm250, %v1317, %v1319
    %1322 = vrot.lane.b32.xlu0 %v1262, 25
    %v1323 = vpop.permute.xlu0 %1322
    %1324 = vrot.lane.b32.xlu0 %v1263, 25
    %v1325 = vpop.permute.xlu0 %1324
    %1326 = vrot.lane.b32.xlu0 %v1264, 25
    %v1327 = vpop.permute.xlu0 %1326
    %v1328 = vsel %vm259, %v1323, %v1325
    %v1329 = vsel %vm259, %v1325, %v1327
    %v1332 = vsel %vm198, %v1319, %v1323
    %1333 = vrot.lane.b32.xlu0 %v1246, 88
    %v1334 = vpop.permute.xlu0 %1333
    %1335 = vrot.lane.b32.xlu0 %v1247, 88
    %v1336 = vpop.permute.xlu0 %1335
    %1337 = vrot.lane.b32.xlu0 %v1248, 88
    %v1338 = vpop.permute.xlu0 %1337
    %v1339 = vsel %vm271, %v1334, %v1336
    %v1340 = vsel %vm271, %v1336, %v1338
    %1341 = vrot.lane.b32.xlu0 %v1262, 24
    %v1342 = vpop.permute.xlu0 %1341
    %1343 = vrot.lane.b32.xlu0 %v1263, 24
    %v1344 = vpop.permute.xlu0 %1343
    %1345 = vrot.lane.b32.xlu0 %v1264, 24
    %v1346 = vpop.permute.xlu0 %1345
    %v1347 = vsel %vm280, %v1342, %v1344
    %v1348 = vsel %vm280, %v1344, %v1346
    %v1351 = vsel %vm198, %v1338, %v1342
    %1352 = vrot.lane.b32.xlu0 %v1246, 87
    %v1353 = vpop.permute.xlu0 %1352
    %1354 = vrot.lane.b32.xlu0 %v1247, 87
    %v1355 = vpop.permute.xlu0 %1354
    %1356 = vrot.lane.b32.xlu0 %v1248, 87
    %v1357 = vpop.permute.xlu0 %1356
    %v1358 = vsel %vm292, %v1353, %v1355
    %v1359 = vsel %vm292, %v1355, %v1357
    %1360 = vrot.lane.b32.xlu0 %v1262, 23
    %v1361 = vpop.permute.xlu0 %1360
    %1362 = vrot.lane.b32.xlu0 %v1263, 23
    %v1363 = vpop.permute.xlu0 %1362
    %1364 = vrot.lane.b32.xlu0 %v1264, 23
    %v1365 = vpop.permute.xlu0 %1364
    %v1366 = vsel %vm301, %v1361, %v1363
    %v1367 = vsel %vm301, %v1363, %v1365
    %v1370 = vsel %vm198, %v1357, %v1361
    %1371 = vrot.lane.b32.xlu0 %v1246, 69
    %v1372 = vpop.permute.xlu0 %1371
    %1373 = vrot.lane.b32.xlu0 %v1247, 69
    %v1374 = vpop.permute.xlu0 %1373
    %1375 = vrot.lane.b32.xlu0 %v1248, 69
    %v1376 = vpop.permute.xlu0 %1375
    %v1377 = vsel %vm313, %v1372, %v1374
    %v1378 = vsel %vm313, %v1374, %v1376
    %1379 = vrot.lane.b32.xlu0 %v1262, 5
    %v1380 = vpop.permute.xlu0 %1379
    %1381 = vrot.lane.b32.xlu0 %v1263, 5
    %v1382 = vpop.permute.xlu0 %1381
    %1383 = vrot.lane.b32.xlu0 %v1264, 5
    %v1384 = vpop.permute.xlu0 %1383
    %v1385 = vsel %vm322, %v1380, %v1382
    %v1386 = vsel %vm322, %v1382, %v1384
    %v1389 = vsel %vm198, %v1376, %v1380
    %1390 = vrot.lane.b32.xlu0 %v1246, 68
    %v1391 = vpop.permute.xlu0 %1390
    %1392 = vrot.lane.b32.xlu0 %v1247, 68
    %v1393 = vpop.permute.xlu0 %1392
    %1394 = vrot.lane.b32.xlu0 %v1248, 68
    %v1395 = vpop.permute.xlu0 %1394
    %v1396 = vsel %vm334, %v1391, %v1393
    %v1397 = vsel %vm334, %v1393, %v1395
    %1398 = vrot.lane.b32.xlu0 %v1262, 4
    %v1399 = vpop.permute.xlu0 %1398
    %1400 = vrot.lane.b32.xlu0 %v1263, 4
    %v1401 = vpop.permute.xlu0 %1400
    %1402 = vrot.lane.b32.xlu0 %v1264, 4
    %v1403 = vpop.permute.xlu0 %1402
    %v1404 = vsel %vm343, %v1399, %v1401
    %v1405 = vsel %vm343, %v1401, %v1403
    %v1408 = vsel %vm198, %v1395, %v1399
    %1409 = vrot.lane.b32.xlu0 %v1246, 67
    %v1410 = vpop.permute.xlu0 %1409
    %1411 = vrot.lane.b32.xlu0 %v1247, 67
    %v1412 = vpop.permute.xlu0 %1411
    %1413 = vrot.lane.b32.xlu0 %v1248, 67
    %v1414 = vpop.permute.xlu0 %1413
    %v1415 = vsel %vm355, %v1410, %v1412
    %v1416 = vsel %vm355, %v1412, %v1414
    %1417 = vrot.lane.b32.xlu0 %v1262, 3
    %v1418 = vpop.permute.xlu0 %1417
    %1419 = vrot.lane.b32.xlu0 %v1263, 3
    %v1420 = vpop.permute.xlu0 %1419
    %1421 = vrot.lane.b32.xlu0 %v1264, 3
    %v1422 = vpop.permute.xlu0 %1421
    %v1423 = vsel %vm364, %v1418, %v1420
    %v1424 = vsel %vm364, %v1420, %v1422
    %v1427 = vsel %vm198, %v1414, %v1418
    %v1429 = vrot.slane %v1282, 4
    %v1430 = vrot.slane %v1283, 4
    %v1431 = vrot.slane %v1294, 4
    %v1432 = vrot.slane %v1290, 4
    %v1433 = vrot.slane %v1291, 4
    %v1435 = vrot.slane %v1320, 4
    %v1436 = vrot.slane %v1321, 4
    %v1437 = vrot.slane %v1332, 4
    %v1438 = vrot.slane %v1328, 4
    %v1439 = vrot.slane %v1329, 4
    %v1441 = vrot.slane %v1358, 4
    %v1442 = vrot.slane %v1359, 4
    %v1443 = vrot.slane %v1370, 4
    %v1444 = vrot.slane %v1366, 4
    %v1445 = vrot.slane %v1367, 4
    %v1447 = vrot.slane %v1396, 4
    %v1448 = vrot.slane %v1397, 4
    %v1449 = vrot.slane %v1408, 4
    %v1450 = vrot.slane %v1404, 4
    %v1451 = vrot.slane %v1405, 4
    %v1454 = vsel %vm46, %v1255, %v1429
    %v1458 = vsel %vm46, %v1256, %v1430
    %v1461 = vsel %vm46, %v1275, %v1431
    %v1465 = vsel %vm46, %v1271, %v1432
    %v1469 = vsel %vm46, %v1272, %v1433
    %v1473 = vsel %vm46, %v1301, %v1435
    %v1477 = vsel %vm46, %v1302, %v1436
    %v1480 = vsel %vm46, %v1313, %v1437
    %v1484 = vsel %vm46, %v1309, %v1438
    %v1488 = vsel %vm46, %v1310, %v1439
    %v1492 = vsel %vm46, %v1339, %v1441
    %v1496 = vsel %vm46, %v1340, %v1442
    %v1499 = vsel %vm46, %v1351, %v1443
    %v1503 = vsel %vm46, %v1347, %v1444
    %v1507 = vsel %vm46, %v1348, %v1445
    %v1511 = vsel %vm46, %v1377, %v1447
    %v1515 = vsel %vm46, %v1378, %v1448
    %v1518 = vsel %vm46, %v1389, %v1449
    %v1522 = vsel %vm46, %v1385, %v1450
    %v1526 = vsel %vm46, %v1386, %v1451
    %v1529 = vsel %vm46, %v1415, 1065369472
    %v1532 = vsel %vm46, %v1416, 1065369472
    %v1534 = vsel %vm46, %v1427, 1065369472
    %v1537 = vsel %vm46, %v1423, 1065369472
    %v1540 = vsel %vm46, %v1424, 1065369472
    %v1543 = vsel %vm485, %v1236, 0
    %1545 = vmatprep.subr.bf16.mxu0 %v1458
    %1546 = vmatpush1.bf16.msra.mxu0 %v1454
    %1547 = vmatprep.subr.bf16.mxu0 %v1477
    %1548 = vmatpush1.bf16.msra.mxu0 %v1473
    %1549 = vmatprep.subr.bf16.mxu0 %v1496
    %1550 = vmatpush1.bf16.msra.mxu0 %v1492
    %1551 = vmatprep.subr.bf16.mxu0 %v1515
    %1552 = vmatpush1.bf16.msra.mxu0 %v1511
    %1553 = vmatprep.subr.bf16.mxu0 %v1532
    %1554 = vmatpush1.bf16.msra.mxu0 %v1529
    %1555 = vmatprep.subr.bf16.mxu0 0
    %1556 = vmatpush1.bf16.msra.mxu0 0
    %1557 = vmatprep.subr.bf16.mxu0 0
    %1558 = vmatpush1.bf16.msra.mxu0 0
    %1559 = vmatprep.subr.bf16.mxu0 0
    %1560 = vmatpush1.bf16.msra.mxu0 0
    %1561 = vmatprep.subr.bf16.mxu0 0
    %1562 = vmatpush1.bf16.msra.mxu0 0
    %1563 = vmatprep.subr.bf16.mxu0 0
    %1564 = vmatpush1.bf16.msra.mxu0 0
    %1565 = vmatprep.subr.bf16.mxu0 0
    %1566 = vmatpush1.bf16.msra.mxu0 0
    %1567 = vmatprep.subr.bf16.mxu0 0
    %1568 = vmatpush1.bf16.msra.mxu0 0
    %1569 = vmatprep.subr.bf16.mxu0 0
    %1570 = vmatpush1.bf16.msra.mxu0 0
    %1571 = vmatprep.subr.bf16.mxu0 0
    %1572 = vmatpush1.bf16.msra.mxu0 0
    %1573 = vmatprep.subr.bf16.mxu0 0
    %1574 = vmatpush1.bf16.msra.mxu0 0
    %1575 = vmatprep.subr.bf16.mxu0 0
    %1576 = vmatpush1.bf16.msra.mxu0 0
    %1577 = vmatprep.mubr.bf16.mxu0 0
    %1578 = vmatmul.mubr.bf16.gmra.mrb[0].mxu0 %v1543
    %v1579 = vpop.f32.mrb[0].mxu0
    %v1580 = vadd.f32 0.0, %v1579
    %v1581 = vpop.f32.mrb[0].mxu0
    %v1582 = vadd.f32 0.0, %v1581
    %v1583 = vpop.f32.mrb[0].mxu0
    %v1584 = vpop.f32.mrb[0].mxu0
    %1585 = vdwg.mxu0
    %1586 = vmatprep.subr.bf16.mxu0 %v1465
    %1587 = vmatpush1.bf16.msra.mxu0 %v1461
    %1588 = vmatprep.subr.bf16.mxu0 %v1484
    %1589 = vmatpush1.bf16.msra.mxu0 %v1480
    %1590 = vmatprep.subr.bf16.mxu0 %v1503
    %1591 = vmatpush1.bf16.msra.mxu0 %v1499
    %1592 = vmatprep.subr.bf16.mxu0 %v1522
    %1593 = vmatpush1.bf16.msra.mxu0 %v1518
    %1594 = vmatprep.subr.bf16.mxu0 %v1537
    %1595 = vmatpush1.bf16.msra.mxu0 %v1534
    %1596 = vmatprep.subr.bf16.mxu0 0
    %1597 = vmatpush1.bf16.msra.mxu0 0
    %1598 = vmatprep.subr.bf16.mxu0 0
    %1599 = vmatpush1.bf16.msra.mxu0 0
    %1600 = vmatprep.subr.bf16.mxu0 0
    %1601 = vmatpush1.bf16.msra.mxu0 0
    %1602 = vmatprep.subr.bf16.mxu0 0
    %1603 = vmatpush1.bf16.msra.mxu0 0
    %1604 = vmatprep.subr.bf16.mxu0 0
    %1605 = vmatpush1.bf16.msra.mxu0 0
    %1606 = vmatprep.subr.bf16.mxu0 0
    %1607 = vmatpush1.bf16.msra.mxu0 0
    %1608 = vmatprep.subr.bf16.mxu0 0
    %1609 = vmatpush1.bf16.msra.mxu0 0
    %1610 = vmatprep.subr.bf16.mxu0 0
    %1611 = vmatpush1.bf16.msra.mxu0 0
    %1612 = vmatprep.subr.bf16.mxu0 0
    %1613 = vmatpush1.bf16.msra.mxu0 0
    %1614 = vmatprep.subr.bf16.mxu0 0
    %1615 = vmatpush1.bf16.msra.mxu0 0
    %1616 = vmatprep.subr.bf16.mxu0 0
    %1617 = vmatpush1.bf16.msra.mxu0 0
    %1618 = vmatprep.mubr.bf16.mxu0 0
    %1619 = vmatmul.mubr.bf16.gmra.mrb[0].mxu0 %v1543
    %v1620 = vpop.f32.mrb[0].mxu0
    %v1621 = vadd.f32 0.0, %v1620
    %v1622 = vpop.f32.mrb[0].mxu0
    %v1623 = vadd.f32 0.0, %v1622
    %v1624 = vpop.f32.mrb[0].mxu0
    %v1625 = vpop.f32.mrb[0].mxu0
    %1626 = vdwg.mxu0
    %1627 = vmatprep.subr.bf16.mxu0 0
    %1628 = vmatpush1.bf16.msra.mxu0 %v1469
    %1629 = vmatprep.subr.bf16.mxu0 0
    %1630 = vmatpush1.bf16.msra.mxu0 %v1488
    %1631 = vmatprep.subr.bf16.mxu0 0
    %1632 = vmatpush1.bf16.msra.mxu0 %v1507
    %1633 = vmatprep.subr.bf16.mxu0 0
    %1634 = vmatpush1.bf16.msra.mxu0 %v1526
    %1635 = vmatprep.subr.bf16.mxu0 0
    %1636 = vmatpush1.bf16.msra.mxu0 %v1540
    %1637 = vmatprep.subr.bf16.mxu0 0
    %1638 = vmatpush1.bf16.msra.mxu0 0
    %1639 = vmatprep.subr.bf16.mxu0 0
    %1640 = vmatpush1.bf16.msra.mxu0 0
    %1641 = vmatprep.subr.bf16.mxu0 0
    %1642 = vmatpush1.bf16.msra.mxu0 0
    %1643 = vmatprep.subr.bf16.mxu0 0
    %1644 = vmatpush1.bf16.msra.mxu0 0
    %1645 = vmatprep.subr.bf16.mxu0 0
    %1646 = vmatpush1.bf16.msra.mxu0 0
    %1647 = vmatprep.subr.bf16.mxu0 0
    %1648 = vmatpush1.bf16.msra.mxu0 0
    %1649 = vmatprep.subr.bf16.mxu0 0
    %1650 = vmatpush1.bf16.msra.mxu0 0
    %1651 = vmatprep.subr.bf16.mxu0 0
    %1652 = vmatpush1.bf16.msra.mxu0 0
    %1653 = vmatprep.subr.bf16.mxu0 0
    %1654 = vmatpush1.bf16.msra.mxu0 0
    %1655 = vmatprep.subr.bf16.mxu0 0
    %1656 = vmatpush1.bf16.msra.mxu0 0
    %1657 = vmatprep.subr.bf16.mxu0 0
    %1658 = vmatpush1.bf16.msra.mxu0 0
    %1659 = vmatprep.mubr.bf16.mxu0 0
    %1660 = vmatmul.mubr.bf16.gmra.mrb[0].mxu0 %v1543
    %v1661 = vpop.f32.mrb[0].mxu0
    %v1662 = vadd.f32 0.0, %v1661
    %v1663 = vpop.f32.mrb[0].mxu0
    %v1664 = vpop.f32.mrb[0].mxu0
    %v1665 = vpop.f32.mrb[0].mxu0
    %1666 = vdwg.mxu0
    %vm1667 = vcmp.ge.f32.partialorder %v1580, 0.0
    %vm1668 = vcmp.ge.f32.partialorder %v1582, 0.0
    %vm1669 = vcmp.ge.f32.partialorder %v1621, 0.0
    %vm1670 = vcmp.ge.f32.partialorder %v1623, 0.0
    %vm1671 = vcmp.ge.f32.partialorder %v1662, 0.0
    %v1672 = vstv %s1234
    %v1673 = vmul.f32 %v1672, %v1580
    %v1674 = vmul.f32 %v1672, %v1582
    %v1675 = vmul.f32 %v1672, %v1621
    %v1676 = vmul.f32 %v1672, %v1623
    %v1677 = vmul.f32 %v1672, %v1662
    %v1678 = vsel %vm1667, %v1580, %v1673
    %v1679 = vsel %vm1668, %v1582, %v1674
    %v1680 = vsel %vm1669, %v1621, %v1675
    %v1681 = vsel %vm1670, %v1623, %v1676
    %v1682 = vsel %vm1671, %v1662, %v1677
    %v1683 = vsel %vm632, %v1678, 0.0
    %v1684 = vsel %vm633, %v1679, 0.0
    %v1685 = vsel %vm634, %v1680, 0.0
    %v1686 = vsel %vm635, %v1681, 0.0
    %v1687 = vsel %vm636, %v1682, 0.0
    %v1688 = vpack.c.bf16 %v1683, %v1683
    %v1689 = vpack.c.bf16 %v1684, %v1684
    %v1690 = vpack.c.bf16 %v1685, %v1685
    %v1691 = vpack.c.bf16 %v1686, %v1686
    %v1692 = vpack.c.bf16 %v1687, %v1687
    %v1696 = vunpack.c.l.b16 %v1688
    %v1697 = vunpack.c.l.b16 %v1689
    %v1698 = vunpack.c.l.b16 %v1690
    %v1699 = vpack.c.b16 %v1697, %v1696
    %v1700 = vpack.c.b16 %v1698, %v1698
    %1701 = vrot.lane.b32.xlu0 %v1699, 40
    %v1702 = vpop.permute.xlu0 %1701
    %1703 = vrot.lane.b32.xlu0 %v1700, 40
    %v1704 = vpop.permute.xlu0 %1703
    %v1705 = vrot.slane %v1702, 4
    %v1706 = vsel %vm660, %v1705, %v1702
    %v1707 = vsel %vm660, %v1705, %v1704
    %1710 = vst.msk [vmem:[#allocation3] sm:$0xff] %vm667, %v1706
    %1711 = vst.msk [vmem:[#allocation3 + $0x8] sm:$0xf] %vm669, %v1707
    %v1714 = vunpack.c.l.b16 %v1691
    %v1715 = vunpack.c.l.b16 %v1692
    %v1716 = vpack.c.b16 %v1714, %v1698
    %v1717 = vpack.c.b16 %v1715, %v1715
    %1718 = vrot.lane.b32.xlu0 %v1716, 104
    %v1719 = vpop.permute.xlu0 %1718
    %1720 = vrot.lane.b32.xlu0 %v1717, 104
    %v1721 = vpop.permute.xlu0 %1720
    %v1722 = vrot.slane %v1719, 4
    %v1723 = vrot.slane %v1721, 4
    %v1724 = vsel %vm683, %v1722, %v1723
    %v1725 = vsel %vm685, %v1719, %v1724
    %1728 = vst.msk [vmem:[%s689] sm:$0xff] %vm667, %v1725
    %1729 = vst.msk [vmem:[%s689 + $0x8] sm:$0xf] %vm669, %v1721
    %s1730 = scalar_lea.vmem %s2, 4
    %v1731 = vld [vmem:[%s1730] sm:$0xf]
    %v1732 = vld [vmem:[#allocation3] sm:$0xff]
    %v1733 = vld [vmem:[#allocation3 + $0x8] sm:$0xf]
    %v1734 = vld [vmem:[%s689] sm:$0xff]
    %v1735 = vld [vmem:[%s689 + $0x8] sm:$0xf]
    %v1738 = vunpack.c.l.b16 %v1732
    %v1739 = vunpack.c.h.b16 %v1732
    %v1740 = vunpack.c.l.b16 %v1733
    %v1741 = vpack.c.b16 %v1738, %v1738
    %v1742 = vpack.c.b16 %v1739, %v1739
    %v1743 = vpack.c.b16 %v1740, %v1740
    %1744 = vrot.lane.b32.xlu0 %v1741, 109
    %v1745 = vpop.permute.xlu0 %1744
    %1746 = vrot.lane.b32.xlu0 %v1742, 109
    %v1747 = vpop.permute.xlu0 %1746
    %1748 = vrot.lane.b32.xlu0 %v1743, 109
    %v1749 = vpop.permute.xlu0 %1748
    %v1750 = vsel %vm178, %v1745, %v1747
    %v1751 = vsel %vm178, %v1747, %v1749
    %v1754 = vunpack.c.l.b16 %v1734
    %v1755 = vunpack.c.h.b16 %v1734
    %v1756 = vunpack.c.l.b16 %v1735
    %v1757 = vpack.c.b16 %v1754, %v1754
    %v1758 = vpack.c.b16 %v1755, %v1755
    %v1759 = vpack.c.b16 %v1756, %v1756
    %1760 = vrot.lane.b32.xlu0 %v1757, 45
    %v1761 = vpop.permute.xlu0 %1760
    %1762 = vrot.lane.b32.xlu0 %v1758, 45
    %v1763 = vpop.permute.xlu0 %1762
    %1764 = vrot.lane.b32.xlu0 %v1759, 45
    %v1765 = vpop.permute.xlu0 %1764
    %v1766 = vsel %vm195, %v1761, %v1763
    %v1767 = vsel %vm195, %v1763, %v1765
    %v1770 = vsel %vm198, %v1749, %v1761
    %1771 = vrot.lane.b32.xlu0 %v1741, 108
    %v1772 = vpop.permute.xlu0 %1771
    %1773 = vrot.lane.b32.xlu0 %v1742, 108
    %v1774 = vpop.permute.xlu0 %1773
    %1775 = vrot.lane.b32.xlu0 %v1743, 108
    %v1776 = vpop.permute.xlu0 %1775
    %v1777 = vsel %vm208, %v1772, %v1774
    %v1778 = vsel %vm208, %v1774, %v1776
    %1779 = vrot.lane.b32.xlu0 %v1757, 44
    %v1780 = vpop.permute.xlu0 %1779
    %1781 = vrot.lane.b32.xlu0 %v1758, 44
    %v1782 = vpop.permute.xlu0 %1781
    %1783 = vrot.lane.b32.xlu0 %v1759, 44
    %v1784 = vpop.permute.xlu0 %1783
    %v1785 = vsel %vm217, %v1780, %v1782
    %v1786 = vsel %vm217, %v1782, %v1784
    %v1789 = vsel %vm198, %v1776, %v1780
    %1790 = vrot.lane.b32.xlu0 %v1741, 107
    %v1791 = vpop.permute.xlu0 %1790
    %1792 = vrot.lane.b32.xlu0 %v1742, 107
    %v1793 = vpop.permute.xlu0 %1792
    %1794 = vrot.lane.b32.xlu0 %v1743, 107
    %v1795 = vpop.permute.xlu0 %1794
    %v1796 = vsel %vm229, %v1791, %v1793
    %v1797 = vsel %vm229, %v1793, %v1795
    %1798 = vrot.lane.b32.xlu0 %v1757, 43
    %v1799 = vpop.permute.xlu0 %1798
    %1800 = vrot.lane.b32.xlu0 %v1758, 43
    %v1801 = vpop.permute.xlu0 %1800
    %1802 = vrot.lane.b32.xlu0 %v1759, 43
    %v1803 = vpop.permute.xlu0 %1802
    %v1804 = vsel %vm238, %v1799, %v1801
    %v1805 = vsel %vm238, %v1801, %v1803
    %v1808 = vsel %vm198, %v1795, %v1799
    %1809 = vrot.lane.b32.xlu0 %v1741, 89
    %v1810 = vpop.permute.xlu0 %1809
    %1811 = vrot.lane.b32.xlu0 %v1742, 89
    %v1812 = vpop.permute.xlu0 %1811
    %1813 = vrot.lane.b32.xlu0 %v1743, 89
    %v1814 = vpop.permute.xlu0 %1813
    %v1815 = vsel %vm250, %v1810, %v1812
    %v1816 = vsel %vm250, %v1812, %v1814
    %1817 = vrot.lane.b32.xlu0 %v1757, 25
    %v1818 = vpop.permute.xlu0 %1817
    %1819 = vrot.lane.b32.xlu0 %v1758, 25
    %v1820 = vpop.permute.xlu0 %1819
    %1821 = vrot.lane.b32.xlu0 %v1759, 25
    %v1822 = vpop.permute.xlu0 %1821
    %v1823 = vsel %vm259, %v1818, %v1820
    %v1824 = vsel %vm259, %v1820, %v1822
    %v1827 = vsel %vm198, %v1814, %v1818
    %1828 = vrot.lane.b32.xlu0 %v1741, 88
    %v1829 = vpop.permute.xlu0 %1828
    %1830 = vrot.lane.b32.xlu0 %v1742, 88
    %v1831 = vpop.permute.xlu0 %1830
    %1832 = vrot.lane.b32.xlu0 %v1743, 88
    %v1833 = vpop.permute.xlu0 %1832
    %v1834 = vsel %vm271, %v1829, %v1831
    %v1835 = vsel %vm271, %v1831, %v1833
    %1836 = vrot.lane.b32.xlu0 %v1757, 24
    %v1837 = vpop.permute.xlu0 %1836
    %1838 = vrot.lane.b32.xlu0 %v1758, 24
    %v1839 = vpop.permute.xlu0 %1838
    %1840 = vrot.lane.b32.xlu0 %v1759, 24
    %v1841 = vpop.permute.xlu0 %1840
    %v1842 = vsel %vm280, %v1837, %v1839
    %v1843 = vsel %vm280, %v1839, %v1841
    %v1846 = vsel %vm198, %v1833, %v1837
    %1847 = vrot.lane.b32.xlu0 %v1741, 87
    %v1848 = vpop.permute.xlu0 %1847
    %1849 = vrot.lane.b32.xlu0 %v1742, 87
    %v1850 = vpop.permute.xlu0 %1849
    %1851 = vrot.lane.b32.xlu0 %v1743, 87
    %v1852 = vpop.permute.xlu0 %1851
    %v1853 = vsel %vm292, %v1848, %v1850
    %v1854 = vsel %vm292, %v1850, %v1852
    %1855 = vrot.lane.b32.xlu0 %v1757, 23
    %v1856 = vpop.permute.xlu0 %1855
    %1857 = vrot.lane.b32.xlu0 %v1758, 23
    %v1858 = vpop.permute.xlu0 %1857
    %1859 = vrot.lane.b32.xlu0 %v1759, 23
    %v1860 = vpop.permute.xlu0 %1859
    %v1861 = vsel %vm301, %v1856, %v1858
    %v1862 = vsel %vm301, %v1858, %v1860
    %v1865 = vsel %vm198, %v1852, %v1856
    %1866 = vrot.lane.b32.xlu0 %v1741, 69
    %v1867 = vpop.permute.xlu0 %1866
    %1868 = vrot.lane.b32.xlu0 %v1742, 69
    %v1869 = vpop.permute.xlu0 %1868
    %1870 = vrot.lane.b32.xlu0 %v1743, 69
    %v1871 = vpop.permute.xlu0 %1870
    %v1872 = vsel %vm313, %v1867, %v1869
    %v1873 = vsel %vm313, %v1869, %v1871
    %1874 = vrot.lane.b32.xlu0 %v1757, 5
    %v1875 = vpop.permute.xlu0 %1874
    %1876 = vrot.lane.b32.xlu0 %v1758, 5
    %v1877 = vpop.permute.xlu0 %1876
    %1878 = vrot.lane.b32.xlu0 %v1759, 5
    %v1879 = vpop.permute.xlu0 %1878
    %v1880 = vsel %vm322, %v1875, %v1877
    %v1881 = vsel %vm322, %v1877, %v1879
    %v1884 = vsel %vm198, %v1871, %v1875
    %1885 = vrot.lane.b32.xlu0 %v1741, 68
    %v1886 = vpop.permute.xlu0 %1885
    %1887 = vrot.lane.b32.xlu0 %v1742, 68
    %v1888 = vpop.permute.xlu0 %1887
    %1889 = vrot.lane.b32.xlu0 %v1743, 68
    %v1890 = vpop.permute.xlu0 %1889
    %v1891 = vsel %vm334, %v1886, %v1888
    %v1892 = vsel %vm334, %v1888, %v1890
    %1893 = vrot.lane.b32.xlu0 %v1757, 4
    %v1894 = vpop.permute.xlu0 %1893
    %1895 = vrot.lane.b32.xlu0 %v1758, 4
    %v1896 = vpop.permute.xlu0 %1895
    %1897 = vrot.lane.b32.xlu0 %v1759, 4
    %v1898 = vpop.permute.xlu0 %1897
    %v1899 = vsel %vm343, %v1894, %v1896
    %v1900 = vsel %vm343, %v1896, %v1898
    %v1903 = vsel %vm198, %v1890, %v1894
    %1904 = vrot.lane.b32.xlu0 %v1741, 67
    %v1905 = vpop.permute.xlu0 %1904
    %1906 = vrot.lane.b32.xlu0 %v1742, 67
    %v1907 = vpop.permute.xlu0 %1906
    %1908 = vrot.lane.b32.xlu0 %v1743, 67
    %v1909 = vpop.permute.xlu0 %1908
    %v1910 = vsel %vm355, %v1905, %v1907
    %v1911 = vsel %vm355, %v1907, %v1909
    %1912 = vrot.lane.b32.xlu0 %v1757, 3
    %v1913 = vpop.permute.xlu0 %1912
    %1914 = vrot.lane.b32.xlu0 %v1758, 3
    %v1915 = vpop.permute.xlu0 %1914
    %1916 = vrot.lane.b32.xlu0 %v1759, 3
    %v1917 = vpop.permute.xlu0 %1916
    %v1918 = vsel %vm364, %v1913, %v1915
    %v1919 = vsel %vm364, %v1915, %v1917
    %v1922 = vsel %vm198, %v1909, %v1913
    %v1924 = vrot.slane %v1777, 4
    %v1925 = vrot.slane %v1778, 4
    %v1926 = vrot.slane %v1789, 4
    %v1927 = vrot.slane %v1785, 4
    %v1928 = vrot.slane %v1786, 4
    %v1930 = vrot.slane %v1815, 4
    %v1931 = vrot.slane %v1816, 4
    %v1932 = vrot.slane %v1827, 4
    %v1933 = vrot.slane %v1823, 4
    %v1934 = vrot.slane %v1824, 4
    %v1936 = vrot.slane %v1853, 4
    %v1937 = vrot.slane %v1854, 4
    %v1938 = vrot.slane %v1865, 4
    %v1939 = vrot.slane %v1861, 4
    %v1940 = vrot.slane %v1862, 4
    %v1942 = vrot.slane %v1891, 4
    %v1943 = vrot.slane %v1892, 4
    %v1944 = vrot.slane %v1903, 4
    %v1945 = vrot.slane %v1899, 4
    %v1946 = vrot.slane %v1900, 4
    %v1949 = vsel %vm46, %v1750, %v1924
    %v1953 = vsel %vm46, %v1751, %v1925
    %v1956 = vsel %vm46, %v1770, %v1926
    %v1960 = vsel %vm46, %v1766, %v1927
    %v1964 = vsel %vm46, %v1767, %v1928
    %v1968 = vsel %vm46, %v1796, %v1930
    %v1972 = vsel %vm46, %v1797, %v1931
    %v1975 = vsel %vm46, %v1808, %v1932
    %v1979 = vsel %vm46, %v1804, %v1933
    %v1983 = vsel %vm46, %v1805, %v1934
    %v1987 = vsel %vm46, %v1834, %v1936
    %v1991 = vsel %vm46, %v1835, %v1937
    %v1994 = vsel %vm46, %v1846, %v1938
    %v1998 = vsel %vm46, %v1842, %v1939
    %v2002 = vsel %vm46, %v1843, %v1940
    %v2006 = vsel %vm46, %v1872, %v1942
    %v2010 = vsel %vm46, %v1873, %v1943
    %v2013 = vsel %vm46, %v1884, %v1944
    %v2017 = vsel %vm46, %v1880, %v1945
    %v2021 = vsel %vm46, %v1881, %v1946
    %v2024 = vsel %vm46, %v1910, 1065369472
    %v2027 = vsel %vm46, %v1911, 1065369472
    %v2029 = vsel %vm46, %v1922, 1065369472
    %v2032 = vsel %vm46, %v1918, 1065369472
    %v2035 = vsel %vm46, %v1919, 1065369472
    %v2037 = vld [vmem:[#allocation2] sm:$0xff]
    %v2038 = vld [vmem:[#allocation2 + $0x8] sm:$0xf]
    %v2039 = vld [vmem:[%s161] sm:$0xff]
    %v2040 = vld [vmem:[%s161 + $0x8] sm:$0xf]
    %v2043 = vunpack.c.l.b16 %v2037
    %v2044 = vunpack.c.h.b16 %v2037
    %v2045 = vunpack.c.l.b16 %v2038
    %v2046 = vpack.c.b16 %v2043, %v2043
    %v2047 = vpack.c.b16 %v2044, %v2044
    %v2048 = vpack.c.b16 %v2045, %v2045
    %2049 = vrot.lane.b32.xlu0 %v2046, 88
    %v2050 = vpop.permute.xlu0 %2049
    %2051 = vrot.lane.b32.xlu0 %v2047, 88
    %v2052 = vpop.permute.xlu0 %2051
    %2053 = vrot.lane.b32.xlu0 %v2048, 88
    %v2054 = vpop.permute.xlu0 %2053
    %v2055 = vsel %vm271, %v2050, %v2052
    %v2056 = vsel %vm271, %v2052, %v2054
    %v2061 = vunpack.c.l.b16 %v2039
    %v2062 = vunpack.c.h.b16 %v2039
    %v2063 = vunpack.c.l.b16 %v2040
    %v2064 = vpack.c.b16 %v2061, %v2061
    %v2065 = vpack.c.b16 %v2062, %v2062
    %v2066 = vpack.c.b16 %v2063, %v2063
    %2067 = vrot.lane.b32.xlu0 %v2064, 24
    %v2068 = vpop.permute.xlu0 %2067
    %2069 = vrot.lane.b32.xlu0 %v2065, 24
    %v2070 = vpop.permute.xlu0 %2069
    %2071 = vrot.lane.b32.xlu0 %v2066, 24
    %v2072 = vpop.permute.xlu0 %2071
    %v2073 = vsel %vm280, %v2068, %v2070
    %v2074 = vsel %vm280, %v2070, %v2072
    %v2079 = vsel %vm198, %v2054, %v2068
    %v2081 = vunpack.c.l.bf16 %v2055
    %v2082 = vunpack.c.l.bf16 %v2056
    %v2083 = vunpack.c.l.bf16 %v2079
    %v2084 = vunpack.c.l.bf16 %v2073
    %v2085 = vunpack.c.l.bf16 %v2074
    %v2087 = vsel %vm485, %v1731, 0
    %2089 = vmatprep.subr.bf16.mxu0 %v1953
    %2090 = vmatpush1.bf16.msra.mxu0 %v1949
    %2091 = vmatprep.subr.bf16.mxu0 %v1972
    %2092 = vmatpush1.bf16.msra.mxu0 %v1968
    %2093 = vmatprep.subr.bf16.mxu0 %v1991
    %2094 = vmatpush1.bf16.msra.mxu0 %v1987
    %2095 = vmatprep.subr.bf16.mxu0 %v2010
    %2096 = vmatpush1.bf16.msra.mxu0 %v2006
    %2097 = vmatprep.subr.bf16.mxu0 %v2027
    %2098 = vmatpush1.bf16.msra.mxu0 %v2024
    %2099 = vmatprep.subr.bf16.mxu0 0
    %2100 = vmatpush1.bf16.msra.mxu0 0
    %2101 = vmatprep.subr.bf16.mxu0 0
    %2102 = vmatpush1.bf16.msra.mxu0 0
    %2103 = vmatprep.subr.bf16.mxu0 0
    %2104 = vmatpush1.bf16.msra.mxu0 0
    %2105 = vmatprep.subr.bf16.mxu0 0
    %2106 = vmatpush1.bf16.msra.mxu0 0
    %2107 = vmatprep.subr.bf16.mxu0 0
    %2108 = vmatpush1.bf16.msra.mxu0 0
    %2109 = vmatprep.subr.bf16.mxu0 0
    %2110 = vmatpush1.bf16.msra.mxu0 0
    %2111 = vmatprep.subr.bf16.mxu0 0
    %2112 = vmatpush1.bf16.msra.mxu0 0
    %2113 = vmatprep.subr.bf16.mxu0 0
    %2114 = vmatpush1.bf16.msra.mxu0 0
    %2115 = vmatprep.subr.bf16.mxu0 0
    %2116 = vmatpush1.bf16.msra.mxu0 0
    %2117 = vmatprep.subr.bf16.mxu0 0
    %2118 = vmatpush1.bf16.msra.mxu0 0
    %2119 = vmatprep.subr.bf16.mxu0 0
    %2120 = vmatpush1.bf16.msra.mxu0 0
    %2121 = vmatprep.mubr.bf16.mxu0 0
    %2122 = vmatmul.mubr.bf16.gmra.mrb[0].mxu0 %v2087
    %v2123 = vpop.f32.mrb[0].mxu0
    %v2124 = vadd.f32 %v2081, %v2123
    %v2125 = vpop.f32.mrb[0].mxu0
    %v2126 = vadd.f32 %v2082, %v2125
    %v2127 = vpop.f32.mrb[0].mxu0
    %v2128 = vpop.f32.mrb[0].mxu0
    %2129 = vdwg.mxu0
    %2130 = vmatprep.subr.bf16.mxu0 %v1960
    %2131 = vmatpush1.bf16.msra.mxu0 %v1956
    %2132 = vmatprep.subr.bf16.mxu0 %v1979
    %2133 = vmatpush1.bf16.msra.mxu0 %v1975
    %2134 = vmatprep.subr.bf16.mxu0 %v1998
    %2135 = vmatpush1.bf16.msra.mxu0 %v1994
    %2136 = vmatprep.subr.bf16.mxu0 %v2017
    %2137 = vmatpush1.bf16.msra.mxu0 %v2013
    %2138 = vmatprep.subr.bf16.mxu0 %v2032
    %2139 = vmatpush1.bf16.msra.mxu0 %v2029
    %2140 = vmatprep.subr.bf16.mxu0 0
    %2141 = vmatpush1.bf16.msra.mxu0 0
    %2142 = vmatprep.subr.bf16.mxu0 0
    %2143 = vmatpush1.bf16.msra.mxu0 0
    %2144 = vmatprep.subr.bf16.mxu0 0
    %2145 = vmatpush1.bf16.msra.mxu0 0
    %2146 = vmatprep.subr.bf16.mxu0 0
    %2147 = vmatpush1.bf16.msra.mxu0 0
    %2148 = vmatprep.subr.bf16.mxu0 0
    %2149 = vmatpush1.bf16.msra.mxu0 0
    %2150 = vmatprep.subr.bf16.mxu0 0
    %2151 = vmatpush1.bf16.msra.mxu0 0
    %2152 = vmatprep.subr.bf16.mxu0 0
    %2153 = vmatpush1.bf16.msra.mxu0 0
    %2154 = vmatprep.subr.bf16.mxu0 0
    %2155 = vmatpush1.bf16.msra.mxu0 0
    %2156 = vmatprep.subr.bf16.mxu0 0
    %2157 = vmatpush1.bf16.msra.mxu0 0
    %2158 = vmatprep.subr.bf16.mxu0 0
    %2159 = vmatpush1.bf16.msra.mxu0 0
    %2160 = vmatprep.subr.bf16.mxu0 0
    %2161 = vmatpush1.bf16.msra.mxu0 0
    %2162 = vmatprep.mubr.bf16.mxu0 0
    %2163 = vmatmul.mubr.bf16.gmra.mrb[0].mxu0 %v2087
    %v2164 = vpop.f32.mrb[0].mxu0
    %v2165 = vadd.f32 %v2083, %v2164
    %v2166 = vpop.f32.mrb[0].mxu0
    %v2167 = vadd.f32 %v2084, %v2166
    %v2168 = vpop.f32.mrb[0].mxu0
    %v2169 = vpop.f32.mrb[0].mxu0
    %2170 = vdwg.mxu0
    %2171 = vmatprep.subr.bf16.mxu0 0
    %2172 = vmatpush1.bf16.msra.mxu0 %v1964
    %2173 = vmatprep.subr.bf16.mxu0 0
    %2174 = vmatpush1.bf16.msra.mxu0 %v1983
    %2175 = vmatprep.subr.bf16.mxu0 0
    %2176 = vmatpush1.bf16.msra.mxu0 %v2002
    %2177 = vmatprep.subr.bf16.mxu0 0
    %2178 = vmatpush1.bf16.msra.mxu0 %v2021
    %2179 = vmatprep.subr.bf16.mxu0 0
    %2180 = vmatpush1.bf16.msra.mxu0 %v2035
    %2181 = vmatprep.subr.bf16.mxu0 0
    %2182 = vmatpush1.bf16.msra.mxu0 0
    %2183 = vmatprep.subr.bf16.mxu0 0
    %2184 = vmatpush1.bf16.msra.mxu0 0
    %2185 = vmatprep.subr.bf16.mxu0 0
    %2186 = vmatpush1.bf16.msra.mxu0 0
    %2187 = vmatprep.subr.bf16.mxu0 0
    %2188 = vmatpush1.bf16.msra.mxu0 0
    %2189 = vmatprep.subr.bf16.mxu0 0
    %2190 = vmatpush1.bf16.msra.mxu0 0
    %2191 = vmatprep.subr.bf16.mxu0 0
    %2192 = vmatpush1.bf16.msra.mxu0 0
    %2193 = vmatprep.subr.bf16.mxu0 0
    %2194 = vmatpush1.bf16.msra.mxu0 0
    %2195 = vmatprep.subr.bf16.mxu0 0
    %2196 = vmatpush1.bf16.msra.mxu0 0
    %2197 = vmatprep.subr.bf16.mxu0 0
    %2198 = vmatpush1.bf16.msra.mxu0 0
    %2199 = vmatprep.subr.bf16.mxu0 0
    %2200 = vmatpush1.bf16.msra.mxu0 0
    %2201 = vmatprep.subr.bf16.mxu0 0
    %2202 = vmatpush1.bf16.msra.mxu0 0
    %2203 = vmatprep.mubr.bf16.mxu0 0
    %2204 = vmatmul.mubr.bf16.gmra.mrb[0].mxu0 %v2087
    %v2205 = vpop.f32.mrb[0].mxu0
    %v2206 = vadd.f32 %v2085, %v2205
    %v2207 = vpop.f32.mrb[0].mxu0
    %v2208 = vpop.f32.mrb[0].mxu0
    %v2209 = vpop.f32.mrb[0].mxu0
    %2210 = vdwg.mxu0
    %vm2211 = vcmp.ge.f32.partialorder %v2124, 0.0
    %vm2212 = vcmp.ge.f32.partialorder %v2126, 0.0
    %vm2213 = vcmp.ge.f32.partialorder %v2165, 0.0
    %vm2214 = vcmp.ge.f32.partialorder %v2167, 0.0
    %vm2215 = vcmp.ge.f32.partialorder %v2206, 0.0
    %v2216 = vmul.f32 %v1672, %v2124
    %v2217 = vmul.f32 %v1672, %v2126
    %v2218 = vmul.f32 %v1672, %v2165
    %v2219 = vmul.f32 %v1672, %v2167
    %v2220 = vmul.f32 %v1672, %v2206
    %v2221 = vsel %vm2211, %v2124, %v2216
    %v2222 = vsel %vm2212, %v2126, %v2217
    %v2223 = vsel %vm2213, %v2165, %v2218
    %v2224 = vsel %vm2214, %v2167, %v2219
    %v2225 = vsel %vm2215, %v2206, %v2220
    %v2226 = vsel %vm632, %v2221, 0.0
    %v2227 = vsel %vm633, %v2222, 0.0
    %v2228 = vsel %vm634, %v2223, 0.0
    %v2229 = vsel %vm635, %v2224, 0.0
    %v2230 = vsel %vm636, %v2225, 0.0
    %v2231 = vpack.c.bf16 %v2226, %v2226
    %v2232 = vpack.c.bf16 %v2227, %v2227
    %v2233 = vpack.c.bf16 %v2228, %v2228
    %v2234 = vpack.c.bf16 %v2229, %v2229
    %v2235 = vpack.c.bf16 %v2230, %v2230
    %v2239 = vunpack.c.l.b16 %v2231
    %v2240 = vunpack.c.l.b16 %v2232
    %v2241 = vunpack.c.l.b16 %v2233
    %v2242 = vpack.c.b16 %v2240, %v2239
    %v2243 = vpack.c.b16 %v2241, %v2241
    %2244 = vrot.lane.b32.xlu0 %v2242, 40
    %v2245 = vpop.permute.xlu0 %2244
    %2246 = vrot.lane.b32.xlu0 %v2243, 40
    %v2247 = vpop.permute.xlu0 %2246
    %v2248 = vrot.slane %v2245, 4
    %v2249 = vsel %vm660, %v2248, %v2245
    %v2250 = vsel %vm660, %v2248, %v2247
    %2253 = vst.msk [vmem:[#allocation2] sm:$0xff] %vm667, %v2249
    %2254 = vst.msk [vmem:[#allocation2 + $0x8] sm:$0xf] %vm669, %v2250
    %v2257 = vunpack.c.l.b16 %v2234
    %v2258 = vunpack.c.l.b16 %v2235
    %v2259 = vpack.c.b16 %v2257, %v2241
    %v2260 = vpack.c.b16 %v2258, %v2258
    %2261 = vrot.lane.b32.xlu0 %v2259, 104
    %v2262 = vpop.permute.xlu0 %2261
    %2263 = vrot.lane.b32.xlu0 %v2260, 104
    %v2264 = vpop.permute.xlu0 %2263
    %v2265 = vrot.slane %v2262, 4
    %v2266 = vrot.slane %v2264, 4
    %v2267 = vsel %vm683, %v2265, %v2266
    %v2268 = vsel %vm685, %v2262, %v2267
    %2271 = vst.msk [vmem:[%s161] sm:$0xff] %vm667, %v2268
    %2272 = vst.msk [vmem:[%s161 + $0x8] sm:$0xf] %vm669, %v2264
    %s2273 = sld [smem:[#allocation4 + $0x100]]
    %v2274 = vld [vmem:[#allocation2] sm:$0xff]
    %v2275 = vld [vmem:[#allocation2 + $0x8] sm:$0xff]
    %v2276 = vld [vmem:[%s3] sm:$0xff]
    %v2277 = vld [vmem:[%s3 + $0x8] sm:$0xff]
    %v2278 = vld [vmem:[%s3 + $0x10] sm:$0xff]
    %v2279 = vld [vmem:[%s3 + $0x18] sm:$0xff]
    %v2280 = vld [vmem:[%s3 + $0x20] sm:$0xff]
    %v2281 = vld [vmem:[%s3 + $0x28] sm:$0xff]
    %v2282 = vld [vmem:[%s3 + $0x30] sm:$0xff]
    %v2283 = vld [vmem:[%s3 + $0x38] sm:$0xff]
    %v2284 = vld [vmem:[%s3 + $0x40] sm:$0xff]
    %v2285 = vld [vmem:[%s3 + $0x48] sm:$0xff]
    %v2286 = vld [vmem:[%s3 + $0x50] sm:$0xff]
    %v2287 = vld [vmem:[%s3 + $0x58] sm:$0xff]
    %v2288 = vld [vmem:[%s3 + $0x60] sm:$0xff]
    %v2289 = vld [vmem:[%s3 + $0x68] sm:$0xff]
    %v2290 = vld [vmem:[%s3 + $0x70] sm:$0xff]
    %v2291 = vld [vmem:[%s3 + $0x78] sm:$0xff]
    %v2292 = vld [vmem:[%s3 + $0x80] sm:$0xff]
    %v2293 = vld [vmem:[%s3 + $0x88] sm:$0xff]
    %v2294 = vld [vmem:[%s3 + $0x90] sm:$0xff]
    %v2295 = vld [vmem:[%s3 + $0x98] sm:$0xff]
    %v2296 = vld [vmem:[%s3 + $0xa0] sm:$0xff]
    %v2297 = vld [vmem:[%s3 + $0xa8] sm:$0xff]
    %v2298 = vld [vmem:[%s3 + $0xb0] sm:$0xff]
    %v2299 = vld [vmem:[%s3 + $0xb8] sm:$0xff]
    %v2300 = vld [vmem:[%s3 + $0xc0] sm:$0xff]
    %v2301 = vld [vmem:[%s3 + $0xc8] sm:$0xff]
    %v2302 = vld [vmem:[%s3 + $0xd0] sm:$0xff]
    %v2303 = vld [vmem:[%s3 + $0xd8] sm:$0xff]
    %v2304 = vld [vmem:[%s3 + $0xe0] sm:$0xff]
    %v2305 = vld [vmem:[%s3 + $0xe8] sm:$0xff]
    %v2306 = vld [vmem:[%s3 + $0xf0] sm:$0xff]
    %v2307 = vld [vmem:[%s3 + $0xf8] sm:$0xff]
    %v2308 = vld [vmem:[%s3 + $0x100] sm:$0xff]
    %v2309 = vld [vmem:[%s3 + $0x108] sm:$0xff]
    %v2310 = vld [vmem:[%s3 + $0x110] sm:$0xff]
    %v2311 = vld [vmem:[%s3 + $0x118] sm:$0xff]
    %v2312 = vld [vmem:[%s3 + $0x120] sm:$0xff]
    %v2313 = vld [vmem:[%s3 + $0x128] sm:$0xff]
    %v2314 = vld [vmem:[%s3 + $0x130] sm:$0xff]
    %v2315 = vld [vmem:[%s3 + $0x138] sm:$0xff]
    %v2316 = vld [vmem:[%s3 + $0x140] sm:$0xff]
    %v2317 = vld [vmem:[%s3 + $0x148] sm:$0xff]
    %v2318 = vld [vmem:[%s3 + $0x150] sm:$0xff]
    %v2319 = vld [vmem:[%s3 + $0x158] sm:$0xff]
    %v2320 = vld [vmem:[%s3 + $0x160] sm:$0xff]
    %v2321 = vld [vmem:[%s3 + $0x168] sm:$0xff]
    %v2322 = vld [vmem:[%s3 + $0x170] sm:$0xff]
    %v2323 = vld [vmem:[%s3 + $0x178] sm:$0xff]
    %v2324 = vld [vmem:[%s3 + $0x180] sm:$0xff]
    %v2325 = vld [vmem:[%s3 + $0x188] sm:$0xff]
    %v2326 = vld [vmem:[%s3 + $0x190] sm:$0xff]
    %v2327 = vld [vmem:[%s3 + $0x198] sm:$0xff]
    %v2328 = vld [vmem:[%s3 + $0x1a0] sm:$0xff]
    %v2329 = vld [vmem:[%s3 + $0x1a8] sm:$0xff]
    %v2330 = vld [vmem:[%s3 + $0x1b0] sm:$0xff]
    %v2331 = vld [vmem:[%s3 + $0x1b8] sm:$0xff]
    %v2332 = vld [vmem:[%s3 + $0x1c0] sm:$0xff]
    %v2333 = vld [vmem:[%s3 + $0x1c8] sm:$0xff]
    %v2334 = vld [vmem:[%s3 + $0x1d0] sm:$0xff]
    %v2335 = vld [vmem:[%s3 + $0x1d8] sm:$0xff]
    %v2336 = vld [vmem:[%s3 + $0x1e0] sm:$0xff]
    %v2337 = vld [vmem:[%s3 + $0x1e8] sm:$0xff]
    %v2338 = vld [vmem:[%s3 + $0x1f0] sm:$0xff]
    %v2339 = vld [vmem:[%s3 + $0x1f8] sm:$0xff]
    %v2340 = vld [vmem:[%s3 + $0x200] sm:$0xff]
    %v2341 = vld [vmem:[%s3 + $0x208] sm:$0xff]
    %v2342 = vld [vmem:[%s3 + $0x210] sm:$0xff]
    %v2343 = vld [vmem:[%s3 + $0x218] sm:$0xff]
    %v2344 = vld [vmem:[%s3 + $0x220] sm:$0xff]
    %v2345 = vld [vmem:[%s3 + $0x228] sm:$0xff]
    %v2346 = vld [vmem:[%s3 + $0x230] sm:$0xff]
    %v2347 = vld [vmem:[%s3 + $0x238] sm:$0xff]
    %v2348 = vld [vmem:[%s3 + $0x240] sm:$0xff]
    %v2349 = vld [vmem:[%s3 + $0x248] sm:$0xff]
    %v2350 = vld [vmem:[%s3 + $0x250] sm:$0xff]
    %v2351 = vld [vmem:[%s3 + $0x258] sm:$0xff]
    %v2352 = vld [vmem:[%s3 + $0x260] sm:$0xff]
    %v2353 = vld [vmem:[%s3 + $0x268] sm:$0xff]
    %v2354 = vld [vmem:[%s3 + $0x270] sm:$0xff]
    %v2355 = vld [vmem:[%s3 + $0x278] sm:$0xff]
    %v2356 = vld [vmem:[%s3 + $0x280] sm:$0xff]
    %v2357 = vld [vmem:[%s3 + $0x288] sm:$0xff]
    %v2358 = vld [vmem:[%s3 + $0x290] sm:$0xff]
    %v2359 = vld [vmem:[%s3 + $0x298] sm:$0xff]
    %v2360 = vld [vmem:[%s3 + $0x2a0] sm:$0xff]
    %v2361 = vld [vmem:[%s3 + $0x2a8] sm:$0xff]
    %v2362 = vld [vmem:[%s3 + $0x2b0] sm:$0xff]
    %v2363 = vld [vmem:[%s3 + $0x2b8] sm:$0xff]
    %v2364 = vld [vmem:[%s3 + $0x2c0] sm:$0xff]
    %v2365 = vld [vmem:[%s3 + $0x2c8] sm:$0xff]
    %v2366 = vld [vmem:[%s3 + $0x2d0] sm:$0xff]
    %v2367 = vld [vmem:[%s3 + $0x2d8] sm:$0xff]
    %v2368 = vld [vmem:[%s3 + $0x2e0] sm:$0xff]
    %v2369 = vld [vmem:[%s3 + $0x2e8] sm:$0xff]
    %v2370 = vld [vmem:[%s3 + $0x2f0] sm:$0xff]
    %v2371 = vld [vmem:[%s3 + $0x2f8] sm:$0xff]
    %v2372 = vld [vmem:[%s3 + $0x300] sm:$0xff]
    %v2373 = vld [vmem:[%s3 + $0x308] sm:$0xff]
    %v2374 = vld [vmem:[%s3 + $0x310] sm:$0xff]
    %v2375 = vld [vmem:[%s3 + $0x318] sm:$0xff]
    %v2376 = vld [vmem:[%s3 + $0x320] sm:$0xff]
    %v2377 = vld [vmem:[%s3 + $0x328] sm:$0xff]
    %v2378 = vld [vmem:[%s3 + $0x330] sm:$0xff]
    %v2379 = vld [vmem:[%s3 + $0x338] sm:$0xff]
    %v2380 = vld [vmem:[%s3 + $0x340] sm:$0xff]
    %v2381 = vld [vmem:[%s3 + $0x348] sm:$0xff]
    %v2382 = vld [vmem:[%s3 + $0x350] sm:$0xff]
    %v2383 = vld [vmem:[%s3 + $0x358] sm:$0xff]
    %v2384 = vld [vmem:[%s3 + $0x360] sm:$0xff]
    %v2385 = vld [vmem:[%s3 + $0x368] sm:$0xff]
    %v2386 = vld [vmem:[%s3 + $0x370] sm:$0xff]
    %v2387 = vld [vmem:[%s3 + $0x378] sm:$0xff]
    %v2388 = vld [vmem:[%s3 + $0x380] sm:$0xff]
    %v2389 = vld [vmem:[%s3 + $0x388] sm:$0xff]
    %v2390 = vld [vmem:[%s3 + $0x390] sm:$0xff]
    %v2391 = vld [vmem:[%s3 + $0x398] sm:$0xff]
    %v2392 = vld [vmem:[%s3 + $0x3a0] sm:$0xff]
    %v2393 = vld [vmem:[%s3 + $0x3a8] sm:$0xff]
    %v2394 = vld [vmem:[%s3 + $0x3b0] sm:$0xff]
    %v2395 = vld [vmem:[%s3 + $0x3b8] sm:$0xff]
    %v2396 = vld [vmem:[%s3 + $0x3c0] sm:$0xff]
    %v2397 = vld [vmem:[%s3 + $0x3c8] sm:$0xff]
    %v2398 = vld [vmem:[%s3 + $0x3d0] sm:$0xff]
    %v2399 = vld [vmem:[%s3 + $0x3d8] sm:$0xff]
    %v2400 = vld [vmem:[%s3 + $0x3e0] sm:$0xff]
    %v2401 = vld [vmem:[%s3 + $0x3e8] sm:$0xff]
    %v2402 = vld [vmem:[%s3 + $0x3f0] sm:$0xff]
    %v2403 = vld [vmem:[%s3 + $0x3f8] sm:$0xff]
    %v2404 = vld [vmem:[%s3 + $0x400] sm:$0xff]
    %v2405 = vld [vmem:[%s3 + $0x408] sm:$0xff]
    %v2406 = vld [vmem:[%s3 + $0x410] sm:$0xff]
    %v2407 = vld [vmem:[%s3 + $0x418] sm:$0xff]
    %v2408 = vld [vmem:[%s3 + $0x420] sm:$0xff]
    %v2409 = vld [vmem:[%s3 + $0x428] sm:$0xff]
    %v2410 = vld [vmem:[%s3 + $0x430] sm:$0xff]
    %v2411 = vld [vmem:[%s3 + $0x438] sm:$0xff]
    %v2412 = vld [vmem:[%s3 + $0x440] sm:$0xff]
    %v2413 = vld [vmem:[%s3 + $0x448] sm:$0xff]
    %v2414 = vld [vmem:[%s3 + $0x450] sm:$0xff]
    %v2415 = vld [vmem:[%s3 + $0x458] sm:$0xff]
    %v2416 = vld [vmem:[%s3 + $0x460] sm:$0xff]
    %v2417 = vld [vmem:[%s3 + $0x468] sm:$0xff]
    %v2418 = vld [vmem:[%s3 + $0x470] sm:$0xff]
    %v2419 = vld [vmem:[%s3 + $0x478] sm:$0xff]
    %v2420 = vld [vmem:[%s3 + $0x480] sm:$0xff]
    %v2421 = vld [vmem:[%s3 + $0x488] sm:$0xff]
    %v2422 = vld [vmem:[%s3 + $0x490] sm:$0xff]
    %v2423 = vld [vmem:[%s3 + $0x498] sm:$0xff]
    %v2424 = vld [vmem:[%s3 + $0x4a0] sm:$0xff]
    %v2425 = vld [vmem:[%s3 + $0x4a8] sm:$0xff]
    %v2426 = vld [vmem:[%s3 + $0x4b0] sm:$0xff]
    %v2427 = vld [vmem:[%s3 + $0x4b8] sm:$0xff]
    %v2428 = vld [vmem:[%s3 + $0x4c0] sm:$0xff]
    %v2429 = vld [vmem:[%s3 + $0x4c8] sm:$0xff]
    %v2430 = vld [vmem:[%s3 + $0x4d0] sm:$0xff]
    %v2431 = vld [vmem:[%s3 + $0x4d8] sm:$0xff]
    %v2432 = vld [vmem:[%s3 + $0x4e0] sm:$0xff]
    %v2433 = vld [vmem:[%s3 + $0x4e8] sm:$0xff]
    %v2434 = vld [vmem:[%s3 + $0x4f0] sm:$0xff]
    %v2435 = vld [vmem:[%s3 + $0x4f8] sm:$0xff]
    %v2436 = vld [vmem:[%s3 + $0x500] sm:$0xff]
    %v2437 = vld [vmem:[%s3 + $0x508] sm:$0xff]
    %v2438 = vld [vmem:[%s3 + $0x510] sm:$0xff]
    %v2439 = vld [vmem:[%s3 + $0x518] sm:$0xff]
    %v2440 = vld [vmem:[%s3 + $0x520] sm:$0xff]
    %v2441 = vld [vmem:[%s3 + $0x528] sm:$0xff]
    %v2442 = vld [vmem:[%s3 + $0x530] sm:$0xff]
    %v2443 = vld [vmem:[%s3 + $0x538] sm:$0xff]
    %v2444 = vld [vmem:[%s3 + $0x540] sm:$0xff]
    %v2445 = vld [vmem:[%s3 + $0x548] sm:$0xff]
    %v2446 = vld [vmem:[%s3 + $0x550] sm:$0xff]
    %v2447 = vld [vmem:[%s3 + $0x558] sm:$0xff]
    %v2448 = vld [vmem:[%s3 + $0x560] sm:$0xff]
    %v2449 = vld [vmem:[%s3 + $0x568] sm:$0xff]
    %v2450 = vld [vmem:[%s3 + $0x570] sm:$0xff]
    %v2451 = vld [vmem:[%s3 + $0x578] sm:$0xff]
    %v2452 = vld [vmem:[%s3 + $0x580] sm:$0xff]
    %v2453 = vld [vmem:[%s3 + $0x588] sm:$0xff]
    %v2454 = vld [vmem:[%s3 + $0x590] sm:$0xff]
    %v2455 = vld [vmem:[%s3 + $0x598] sm:$0xff]
    %v2456 = vld [vmem:[%s3 + $0x5a0] sm:$0xff]
    %v2457 = vld [vmem:[%s3 + $0x5a8] sm:$0xff]
    %v2458 = vld [vmem:[%s3 + $0x5b0] sm:$0xff]
    %v2459 = vld [vmem:[%s3 + $0x5b8] sm:$0xff]
    %v2460 = vld [vmem:[%s3 + $0x5c0] sm:$0xff]
    %v2461 = vld [vmem:[%s3 + $0x5c8] sm:$0xff]
    %v2462 = vld [vmem:[%s3 + $0x5d0] sm:$0xff]
    %v2463 = vld [vmem:[%s3 + $0x5d8] sm:$0xff]
    %v2464 = vld [vmem:[%s3 + $0x5e0] sm:$0xff]
    %v2465 = vld [vmem:[%s3 + $0x5e8] sm:$0xff]
    %v2466 = vld [vmem:[%s3 + $0x5f0] sm:$0xff]
    %v2467 = vld [vmem:[%s3 + $0x5f8] sm:$0xff]
    %v2468 = vld [vmem:[%s3 + $0x600] sm:$0xff]
    %v2469 = vld [vmem:[%s3 + $0x608] sm:$0xff]
    %v2470 = vld [vmem:[%s3 + $0x610] sm:$0xff]
    %v2471 = vld [vmem:[%s3 + $0x618] sm:$0xff]
    %v2472 = vld [vmem:[%s3 + $0x620] sm:$0xff]
    %v2473 = vld [vmem:[%s3 + $0x628] sm:$0xff]
    %v2474 = vld [vmem:[%s3 + $0x630] sm:$0xff]
    %v2475 = vld [vmem:[%s3 + $0x638] sm:$0xff]
    %v2476 = vld [vmem:[%s3 + $0x640] sm:$0xff]
    %v2477 = vld [vmem:[%s3 + $0x648] sm:$0xff]
    %v2478 = vld [vmem:[%s3 + $0x650] sm:$0xff]
    %v2479 = vld [vmem:[%s3 + $0x658] sm:$0xff]
    %v2480 = vld [vmem:[%s3 + $0x660] sm:$0xff]
    %v2481 = vld [vmem:[%s3 + $0x668] sm:$0xff]
    %v2482 = vld [vmem:[%s3 + $0x670] sm:$0xff]
    %v2483 = vld [vmem:[%s3 + $0x678] sm:$0xff]
    %v2484 = vld [vmem:[%s3 + $0x680] sm:$0xff]
    %v2485 = vld [vmem:[%s3 + $0x688] sm:$0xff]
    %v2486 = vld [vmem:[%s3 + $0x690] sm:$0xff]
    %v2487 = vld [vmem:[%s3 + $0x698] sm:$0xff]
    %v2488 = vld [vmem:[%s3 + $0x6a0] sm:$0xff]
    %v2489 = vld [vmem:[%s3 + $0x6a8] sm:$0xff]
    %v2490 = vld [vmem:[%s3 + $0x6b0] sm:$0xff]
    %v2491 = vld [vmem:[%s3 + $0x6b8] sm:$0xff]
    %v2492 = vld [vmem:[%s3 + $0x6c0] sm:$0xff]
    %v2493 = vld [vmem:[%s3 + $0x6c8] sm:$0xff]
    %v2494 = vld [vmem:[%s3 + $0x6d0] sm:$0xff]
    %v2495 = vld [vmem:[%s3 + $0x6d8] sm:$0xff]
    %v2496 = vld [vmem:[%s3 + $0x6e0] sm:$0xff]
    %v2497 = vld [vmem:[%s3 + $0x6e8] sm:$0xff]
    %v2498 = vld [vmem:[%s3 + $0x6f0] sm:$0xff]
    %v2499 = vld [vmem:[%s3 + $0x6f8] sm:$0xff]
    %v2500 = vld [vmem:[%s3 + $0x700] sm:$0xff]
    %v2501 = vld [vmem:[%s3 + $0x708] sm:$0xff]
    %v2502 = vld [vmem:[%s3 + $0x710] sm:$0xff]
    %v2503 = vld [vmem:[%s3 + $0x718] sm:$0xff]
    %v2504 = vld [vmem:[%s3 + $0x720] sm:$0xff]
    %v2505 = vld [vmem:[%s3 + $0x728] sm:$0xff]
    %v2506 = vld [vmem:[%s3 + $0x730] sm:$0xff]
    %v2507 = vld [vmem:[%s3 + $0x738] sm:$0xff]
    %v2508 = vld [vmem:[%s3 + $0x740] sm:$0xff]
    %v2509 = vld [vmem:[%s3 + $0x748] sm:$0xff]
    %v2510 = vld [vmem:[%s3 + $0x750] sm:$0xff]
    %v2511 = vld [vmem:[%s3 + $0x758] sm:$0xff]
    %v2512 = vld [vmem:[%s3 + $0x760] sm:$0xff]
    %v2513 = vld [vmem:[%s3 + $0x768] sm:$0xff]
    %v2514 = vld [vmem:[%s3 + $0x770] sm:$0xff]
    %v2515 = vld [vmem:[%s3 + $0x778] sm:$0xff]
    %v2516 = vld [vmem:[%s3 + $0x780] sm:$0xff]
    %v2517 = vld [vmem:[%s3 + $0x788] sm:$0xff]
    %v2518 = vld [vmem:[%s3 + $0x790] sm:$0xff]
    %v2519 = vld [vmem:[%s3 + $0x798] sm:$0xff]
    %v2520 = vld [vmem:[%s3 + $0x7a0] sm:$0xff]
    %v2521 = vld [vmem:[%s3 + $0x7a8] sm:$0xff]
    %v2522 = vld [vmem:[%s3 + $0x7b0] sm:$0xff]
    %v2523 = vld [vmem:[%s3 + $0x7b8] sm:$0xff]
    %v2524 = vld [vmem:[%s3 + $0x7c0] sm:$0xff]
    %v2525 = vld [vmem:[%s3 + $0x7c8] sm:$0xff]
    %v2526 = vld [vmem:[%s3 + $0x7d0] sm:$0xff]
    %v2527 = vld [vmem:[%s3 + $0x7d8] sm:$0xff]
    %v2528 = vld [vmem:[%s3 + $0x7e0] sm:$0xff]
    %v2529 = vld [vmem:[%s3 + $0x7e8] sm:$0xff]
    %v2530 = vld [vmem:[%s3 + $0x7f0] sm:$0xff]
    %v2531 = vld [vmem:[%s3 + $0x7f8] sm:$0xff]
    %v2532 = vld [vmem:[%s3 + $0x800] sm:$0xff]
    %v2533 = vld [vmem:[%s3 + $0x808] sm:$0xff]
    %v2534 = vld [vmem:[%s3 + $0x810] sm:$0xff]
    %v2535 = vld [vmem:[%s3 + $0x818] sm:$0xff]
    %v2536 = vld [vmem:[%s3 + $0x820] sm:$0xff]
    %v2537 = vld [vmem:[%s3 + $0x828] sm:$0xff]
    %v2538 = vld [vmem:[%s3 + $0x830] sm:$0xff]
    %v2539 = vld [vmem:[%s3 + $0x838] sm:$0xff]
    %v2540 = vld [vmem:[%s3 + $0x840] sm:$0xff]
    %v2541 = vld [vmem:[%s3 + $0x848] sm:$0xff]
    %v2542 = vld [vmem:[%s3 + $0x850] sm:$0xff]
    %v2543 = vld [vmem:[%s3 + $0x858] sm:$0xff]
    %v2544 = vld [vmem:[%s3 + $0x860] sm:$0xff]
    %v2545 = vld [vmem:[%s3 + $0x868] sm:$0xff]
    %v2546 = vld [vmem:[%s3 + $0x870] sm:$0xff]
    %v2547 = vld [vmem:[%s3 + $0x878] sm:$0xff]
    %v2548 = vld [vmem:[%s3 + $0x880] sm:$0xff]
    %v2549 = vld [vmem:[%s3 + $0x888] sm:$0xff]
    %v2550 = vld [vmem:[%s3 + $0x890] sm:$0xff]
    %v2551 = vld [vmem:[%s3 + $0x898] sm:$0xff]
    %v2552 = vld [vmem:[%s3 + $0x8a0] sm:$0xff]
    %v2553 = vld [vmem:[%s3 + $0x8a8] sm:$0xff]
    %v2554 = vld [vmem:[%s3 + $0x8b0] sm:$0xff]
    %v2555 = vld [vmem:[%s3 + $0x8b8] sm:$0xff]
    %v2556 = vld [vmem:[%s3 + $0x8c0] sm:$0xff]
    %v2557 = vld [vmem:[%s3 + $0x8c8] sm:$0xff]
    %v2558 = vld [vmem:[%s3 + $0x8d0] sm:$0xff]
    %v2559 = vld [vmem:[%s3 + $0x8d8] sm:$0xff]
    %v2560 = vld [vmem:[%s3 + $0x8e0] sm:$0xff]
    %v2561 = vld [vmem:[%s3 + $0x8e8] sm:$0xff]
    %v2562 = vld [vmem:[%s3 + $0x8f0] sm:$0xff]
    %v2563 = vld [vmem:[%s3 + $0x8f8] sm:$0xff]
    %v2564 = vld [vmem:[%s3 + $0x900] sm:$0xff]
    %v2565 = vld [vmem:[%s3 + $0x908] sm:$0xff]
    %v2566 = vld [vmem:[%s3 + $0x910] sm:$0xff]
    %v2567 = vld [vmem:[%s3 + $0x918] sm:$0xff]
    %v2568 = vld [vmem:[%s3 + $0x920] sm:$0xff]
    %v2569 = vld [vmem:[%s3 + $0x928] sm:$0xff]
    %v2570 = vld [vmem:[%s3 + $0x930] sm:$0xff]
    %v2571 = vld [vmem:[%s3 + $0x938] sm:$0xff]
    %v2572 = vld [vmem:[%s3 + $0x940] sm:$0xff]
    %v2573 = vld [vmem:[%s3 + $0x948] sm:$0xff]
    %v2574 = vld [vmem:[%s3 + $0x950] sm:$0xff]
    %v2575 = vld [vmem:[%s3 + $0x958] sm:$0xff]
    %v2576 = vld [vmem:[%s3 + $0x960] sm:$0xff]
    %v2577 = vld [vmem:[%s3 + $0x968] sm:$0xff]
    %v2578 = vld [vmem:[%s3 + $0x970] sm:$0xff]
    %v2579 = vld [vmem:[%s3 + $0x978] sm:$0xff]
    %v2580 = vld [vmem:[%s3 + $0x980] sm:$0xff]
    %v2581 = vld [vmem:[%s3 + $0x988] sm:$0xff]
    %v2582 = vld [vmem:[%s3 + $0x990] sm:$0xff]
    %v2583 = vld [vmem:[%s3 + $0x998] sm:$0xff]
    %v2584 = vld [vmem:[%s3 + $0x9a0] sm:$0xff]
    %v2585 = vld [vmem:[%s3 + $0x9a8] sm:$0xff]
    %v2586 = vld [vmem:[%s3 + $0x9b0] sm:$0xff]
    %v2587 = vld [vmem:[%s3 + $0x9b8] sm:$0xff]
    %v2588 = vld [vmem:[%s3 + $0x9c0] sm:$0xff]
    %v2589 = vld [vmem:[%s3 + $0x9c8] sm:$0xff]
    %v2590 = vld [vmem:[%s3 + $0x9d0] sm:$0xff]
    %v2591 = vld [vmem:[%s3 + $0x9d8] sm:$0xff]
    %v2592 = vld [vmem:[%s3 + $0x9e0] sm:$0xff]
    %v2593 = vld [vmem:[%s3 + $0x9e8] sm:$0xff]
    %v2594 = vld [vmem:[%s3 + $0x9f0] sm:$0xff]
    %v2595 = vld [vmem:[%s3 + $0x9f8] sm:$0xff]
    %v2596 = vld [vmem:[%s3 + $0xa00] sm:$0xff]
    %v2597 = vld [vmem:[%s3 + $0xa08] sm:$0xff]
    %v2598 = vld [vmem:[%s3 + $0xa10] sm:$0xff]
    %v2599 = vld [vmem:[%s3 + $0xa18] sm:$0xff]
    %v2600 = vld [vmem:[%s3 + $0xa20] sm:$0xff]
    %v2601 = vld [vmem:[%s3 + $0xa28] sm:$0xff]
    %v2602 = vld [vmem:[%s3 + $0xa30] sm:$0xff]
    %v2603 = vld [vmem:[%s3 + $0xa38] sm:$0xff]
    %v2604 = vld [vmem:[%s3 + $0xa40] sm:$0xff]
    %v2605 = vld [vmem:[%s3 + $0xa48] sm:$0xff]
    %v2606 = vld [vmem:[%s3 + $0xa50] sm:$0xff]
    %v2607 = vld [vmem:[%s3 + $0xa58] sm:$0xff]
    %v2608 = vld [vmem:[%s3 + $0xa60] sm:$0xff]
    %v2609 = vld [vmem:[%s3 + $0xa68] sm:$0xff]
    %v2610 = vld [vmem:[%s3 + $0xa70] sm:$0xff]
    %v2611 = vld [vmem:[%s3 + $0xa78] sm:$0xff]
    %v2612 = vld [vmem:[%s3 + $0xa80] sm:$0xff]
    %v2613 = vld [vmem:[%s3 + $0xa88] sm:$0xff]
    %v2614 = vld [vmem:[%s3 + $0xa90] sm:$0xff]
    %v2615 = vld [vmem:[%s3 + $0xa98] sm:$0xff]
    %v2616 = vld [vmem:[%s3 + $0xaa0] sm:$0xff]
    %v2617 = vld [vmem:[%s3 + $0xaa8] sm:$0xff]
    %v2618 = vld [vmem:[%s3 + $0xab0] sm:$0xff]
    %v2619 = vld [vmem:[%s3 + $0xab8] sm:$0xff]
    %v2620 = vld [vmem:[%s3 + $0xac0] sm:$0xff]
    %v2621 = vld [vmem:[%s3 + $0xac8] sm:$0xff]
    %v2622 = vld [vmem:[%s3 + $0xad0] sm:$0xff]
    %v2623 = vld [vmem:[%s3 + $0xad8] sm:$0xff]
    %v2624 = vld [vmem:[%s3 + $0xae0] sm:$0xff]
    %v2625 = vld [vmem:[%s3 + $0xae8] sm:$0xff]
    %v2626 = vld [vmem:[%s3 + $0xaf0] sm:$0xff]
    %v2627 = vld [vmem:[%s3 + $0xaf8] sm:$0xff]
    %v2628 = vld [vmem:[%s3 + $0xb00] sm:$0xff]
    %v2629 = vld [vmem:[%s3 + $0xb08] sm:$0xff]
    %v2630 = vld [vmem:[%s3 + $0xb10] sm:$0xff]
    %v2631 = vld [vmem:[%s3 + $0xb18] sm:$0xff]
    %v2632 = vld [vmem:[%s3 + $0xb20] sm:$0xff]
    %v2633 = vld [vmem:[%s3 + $0xb28] sm:$0xff]
    %v2634 = vld [vmem:[%s3 + $0xb30] sm:$0xff]
    %v2635 = vld [vmem:[%s3 + $0xb38] sm:$0xff]
    %v2636 = vld [vmem:[%s3 + $0xb40] sm:$0xff]
    %v2637 = vld [vmem:[%s3 + $0xb48] sm:$0xff]
    %v2638 = vld [vmem:[%s3 + $0xb50] sm:$0xff]
    %v2639 = vld [vmem:[%s3 + $0xb58] sm:$0xff]
    %v2640 = vld [vmem:[%s3 + $0xb60] sm:$0xff]
    %v2641 = vld [vmem:[%s3 + $0xb68] sm:$0xff]
    %v2642 = vld [vmem:[%s3 + $0xb70] sm:$0xff]
    %v2643 = vld [vmem:[%s3 + $0xb78] sm:$0xff]
    %v2644 = vld [vmem:[%s3 + $0xb80] sm:$0xff]
    %v2645 = vld [vmem:[%s3 + $0xb88] sm:$0xff]
    %v2646 = vld [vmem:[%s3 + $0xb90] sm:$0xff]
    %v2647 = vld [vmem:[%s3 + $0xb98] sm:$0xff]
    %v2648 = vld [vmem:[%s3 + $0xba0] sm:$0xff]
    %v2649 = vld [vmem:[%s3 + $0xba8] sm:$0xff]
    %v2650 = vld [vmem:[%s3 + $0xbb0] sm:$0xff]
    %v2651 = vld [vmem:[%s3 + $0xbb8] sm:$0xff]
    %v2652 = vld [vmem:[%s3 + $0xbc0] sm:$0xff]
    %v2653 = vld [vmem:[%s3 + $0xbc8] sm:$0xff]
    %v2654 = vld [vmem:[%s3 + $0xbd0] sm:$0xff]
    %v2655 = vld [vmem:[%s3 + $0xbd8] sm:$0xff]
    %v2656 = vld [vmem:[%s3 + $0xbe0] sm:$0xff]
    %v2657 = vld [vmem:[%s3 + $0xbe8] sm:$0xff]
    %v2658 = vld [vmem:[%s3 + $0xbf0] sm:$0xff]
    %v2659 = vld [vmem:[%s3 + $0xbf8] sm:$0xff]
    %v2660 = vld [vmem:[%s3 + $0xc00] sm:$0xff]
    %v2661 = vld [vmem:[%s3 + $0xc08] sm:$0xff]
    %v2662 = vld [vmem:[%s3 + $0xc10] sm:$0xff]
    %v2663 = vld [vmem:[%s3 + $0xc18] sm:$0xff]
    %v2664 = vld [vmem:[%s3 + $0xc20] sm:$0xff]
    %v2665 = vld [vmem:[%s3 + $0xc28] sm:$0xff]
    %v2666 = vld [vmem:[%s3 + $0xc30] sm:$0xff]
    %v2667 = vld [vmem:[%s3 + $0xc38] sm:$0xff]
    %v2668 = vld [vmem:[%s3 + $0xc40] sm:$0xff]
    %v2669 = vld [vmem:[%s3 + $0xc48] sm:$0xff]
    %v2670 = vld [vmem:[%s3 + $0xc50] sm:$0xff]
    %v2671 = vld [vmem:[%s3 + $0xc58] sm:$0xff]
    %v2672 = vld [vmem:[%s3 + $0xc60] sm:$0xff]
    %v2673 = vld [vmem:[%s3 + $0xc68] sm:$0xff]
    %v2674 = vld [vmem:[%s3 + $0xc70] sm:$0xff]
    %v2675 = vld [vmem:[%s3 + $0xc78] sm:$0xff]
    %v2676 = vld [vmem:[%s3 + $0xc80] sm:$0xff]
    %v2677 = vld [vmem:[%s3 + $0xc88] sm:$0xff]
    %v2678 = vld [vmem:[%s3 + $0xc90] sm:$0xff]
    %v2679 = vld [vmem:[%s3 + $0xc98] sm:$0xff]
    %v2680 = vld [vmem:[%s3 + $0xca0] sm:$0xff]
    %v2681 = vld [vmem:[%s3 + $0xca8] sm:$0xff]
    %v2682 = vld [vmem:[%s3 + $0xcb0] sm:$0xff]
    %v2683 = vld [vmem:[%s3 + $0xcb8] sm:$0xff]
    %v2684 = vld [vmem:[%s3 + $0xcc0] sm:$0xff]
    %v2685 = vld [vmem:[%s3 + $0xcc8] sm:$0xff]
    %v2686 = vld [vmem:[%s3 + $0xcd0] sm:$0xff]
    %v2687 = vld [vmem:[%s3 + $0xcd8] sm:$0xff]
    %v2688 = vld [vmem:[%s3 + $0xce0] sm:$0xff]
    %v2689 = vld [vmem:[%s3 + $0xce8] sm:$0xff]
    %v2690 = vld [vmem:[%s3 + $0xcf0] sm:$0xff]
    %v2691 = vld [vmem:[%s3 + $0xcf8] sm:$0xff]
    %v2692 = vld [vmem:[%s3 + $0xd00] sm:$0xff]
    %v2693 = vld [vmem:[%s3 + $0xd08] sm:$0xff]
    %v2694 = vld [vmem:[%s3 + $0xd10] sm:$0xff]
    %v2695 = vld [vmem:[%s3 + $0xd18] sm:$0xff]
    %v2696 = vld [vmem:[%s3 + $0xd20] sm:$0xff]
    %v2697 = vld [vmem:[%s3 + $0xd28] sm:$0xff]
    %v2698 = vld [vmem:[%s3 + $0xd30] sm:$0xff]
    %v2699 = vld [vmem:[%s3 + $0xd38] sm:$0xff]
    %v2700 = vld [vmem:[%s3 + $0xd40] sm:$0xff]
    %v2701 = vld [vmem:[%s3 + $0xd48] sm:$0xff]
    %v2702 = vld [vmem:[%s3 + $0xd50] sm:$0xff]
    %v2703 = vld [vmem:[%s3 + $0xd58] sm:$0xff]
    %v2704 = vld [vmem:[%s3 + $0xd60] sm:$0xff]
    %v2705 = vld [vmem:[%s3 + $0xd68] sm:$0xff]
    %v2706 = vld [vmem:[%s3 + $0xd70] sm:$0xff]
    %v2707 = vld [vmem:[%s3 + $0xd78] sm:$0xff]
    %v2708 = vld [vmem:[%s3 + $0xd80] sm:$0xff]
    %v2709 = vld [vmem:[%s3 + $0xd88] sm:$0xff]
    %v2710 = vld [vmem:[%s3 + $0xd90] sm:$0xff]
    %v2711 = vld [vmem:[%s3 + $0xd98] sm:$0xff]
    %v2712 = vld [vmem:[%s3 + $0xda0] sm:$0xff]
    %v2713 = vld [vmem:[%s3 + $0xda8] sm:$0xff]
    %v2714 = vld [vmem:[%s3 + $0xdb0] sm:$0xff]
    %v2715 = vld [vmem:[%s3 + $0xdb8] sm:$0xff]
    %v2716 = vld [vmem:[%s3 + $0xdc0] sm:$0xff]
    %v2717 = vld [vmem:[%s3 + $0xdc8] sm:$0xff]
    %v2718 = vld [vmem:[%s3 + $0xdd0] sm:$0xff]
    %v2719 = vld [vmem:[%s3 + $0xdd8] sm:$0xff]
    %v2720 = vld [vmem:[%s3 + $0xde0] sm:$0xff]
    %v2721 = vld [vmem:[%s3 + $0xde8] sm:$0xff]
    %v2722 = vld [vmem:[%s3 + $0xdf0] sm:$0xff]
    %v2723 = vld [vmem:[%s3 + $0xdf8] sm:$0xff]
    %v2724 = vld [vmem:[%s3 + $0xe00] sm:$0xff]
    %v2725 = vld [vmem:[%s3 + $0xe08] sm:$0xff]
    %v2728 = vunpack.c.l.b16 %v2274
    %v2729 = vunpack.c.h.b16 %v2274
    %v2730 = vunpack.c.l.b16 %v2275
    %v2731 = vunpack.c.h.b16 %v2275
    %v2732 = vpack.c.b16 %v2728, %v2728
    %v2733 = vpack.c.b16 %v2729, %v2729
    %v2734 = vpack.c.b16 %v2730, %v2730
    %v2735 = vpack.c.b16 %v2731, %v2731
    %v3189 = vunpack.c.l.b16 %v2276
    %v3190 = vunpack.c.h.b16 %v2276
    %v3191 = vunpack.c.l.b16 %v2277
    %v3192 = vunpack.c.h.b16 %v2277
    %v3193 = vunpack.c.l.b16 %v2278
    %v3194 = vunpack.c.h.b16 %v2278
    %v3195 = vunpack.c.l.b16 %v2279
    %v3196 = vunpack.c.h.b16 %v2279
    %v3197 = vunpack.c.l.b16 %v2280
    %v3198 = vunpack.c.h.b16 %v2280
    %v3199 = vunpack.c.l.b16 %v2281
    %v3200 = vunpack.c.h.b16 %v2281
    %v3201 = vunpack.c.l.b16 %v2282
    %v3202 = vunpack.c.h.b16 %v2282
    %v3203 = vunpack.c.l.b16 %v2283
    %v3204 = vunpack.c.h.b16 %v2283
    %v3205 = vunpack.c.l.b16 %v2284
    %v3206 = vunpack.c.h.b16 %v2284
    %v3207 = vunpack.c.l.b16 %v2285
    %v3208 = vunpack.c.h.b16 %v2285
    %v3209 = vunpack.c.l.b16 %v2286
    %v3210 = vunpack.c.h.b16 %v2286
    %v3211 = vunpack.c.l.b16 %v2287
    %v3212 = vunpack.c.h.b16 %v2287
    %v3213 = vunpack.c.l.b16 %v2288
    %v3214 = vunpack.c.h.b16 %v2288
    %v3215 = vunpack.c.l.b16 %v2289
    %v3216 = vunpack.c.h.b16 %v2289
    %v3217 = vunpack.c.l.b16 %v2290
    %v3218 = vunpack.c.h.b16 %v2290
    %v3219 = vunpack.c.l.b16 %v2291
    %v3220 = vunpack.c.h.b16 %v2291
    %v3221 = vunpack.c.l.b16 %v2292
    %v3222 = vunpack.c.h.b16 %v2292
    %v3223 = vunpack.c.l.b16 %v2293
    %v3224 = vunpack.c.h.b16 %v2293
    %v3225 = vunpack.c.l.b16 %v2294
    %v3226 = vunpack.c.h.b16 %v2294
    %v3227 = vunpack.c.l.b16 %v2295
    %v3228 = vunpack.c.h.b16 %v2295
    %v3229 = vunpack.c.l.b16 %v2296
    %v3230 = vunpack.c.h.b16 %v2296
    %v3231 = vunpack.c.l.b16 %v2297
    %v3232 = vunpack.c.h.b16 %v2297
    %v3233 = vunpack.c.l.b16 %v2298
    %v3234 = vunpack.c.h.b16 %v2298
    %v3235 = vunpack.c.l.b16 %v2299
    %v3236 = vunpack.c.h.b16 %v2299
    %v3237 = vunpack.c.l.b16 %v2300
    %v3238 = vunpack.c.h.b16 %v2300
    %v3239 = vunpack.c.l.b16 %v2301
    %v3240 = vunpack.c.h.b16 %v2301
    %v3241 = vunpack.c.l.b16 %v2302
    %v3242 = vunpack.c.h.b16 %v2302
    %v3243 = vunpack.c.l.b16 %v2303
    %v3244 = vunpack.c.h.b16 %v2303
    %v3245 = vunpack.c.l.b16 %v2304
    %v3246 = vunpack.c.h.b16 %v2304
    %v3247 = vunpack.c.l.b16 %v2305
    %v3248 = vunpack.c.h.b16 %v2305
    %v3249 = vunpack.c.l.b16 %v2306
    %v3250 = vunpack.c.h.b16 %v2306
    %v3251 = vunpack.c.l.b16 %v2307
    %v3252 = vunpack.c.h.b16 %v2307
    %v3253 = vunpack.c.l.b16 %v2308
    %v3254 = vunpack.c.h.b16 %v2308
    %v3255 = vunpack.c.l.b16 %v2309
    %v3256 = vunpack.c.h.b16 %v2309
    %v3257 = vunpack.c.l.b16 %v2310
    %v3258 = vunpack.c.h.b16 %v2310
    %v3259 = vunpack.c.l.b16 %v2311
    %v3260 = vunpack.c.h.b16 %v2311
    %v3261 = vunpack.c.l.b16 %v2312
    %v3262 = vunpack.c.h.b16 %v2312
    %v3263 = vunpack.c.l.b16 %v2313
    %v3264 = vunpack.c.h.b16 %v2313
    %v3265 = vunpack.c.l.b16 %v2314
    %v3266 = vunpack.c.h.b16 %v2314
    %v3267 = vunpack.c.l.b16 %v2315
    %v3268 = vunpack.c.h.b16 %v2315
    %v3269 = vunpack.c.l.b16 %v2316
    %v3270 = vunpack.c.h.b16 %v2316
    %v3271 = vunpack.c.l.b16 %v2317
    %v3272 = vunpack.c.h.b16 %v2317
    %v3273 = vunpack.c.l.b16 %v2318
    %v3274 = vunpack.c.h.b16 %v2318
    %v3275 = vunpack.c.l.b16 %v2319
    %v3276 = vunpack.c.h.b16 %v2319
    %v3277 = vunpack.c.l.b16 %v2320
    %v3278 = vunpack.c.h.b16 %v2320
    %v3279 = vunpack.c.l.b16 %v2321
    %v3280 = vunpack.c.h.b16 %v2321
    %v3281 = vunpack.c.l.b16 %v2322
    %v3282 = vunpack.c.h.b16 %v2322
    %v3283 = vunpack.c.l.b16 %v2323
    %v3284 = vunpack.c.h.b16 %v2323
    %v3285 = vunpack.c.l.b16 %v2324
    %v3286 = vunpack.c.h.b16 %v2324
    %v3287 = vunpack.c.l.b16 %v2325
    %v3288 = vunpack.c.h.b16 %v2325
    %v3289 = vunpack.c.l.b16 %v2326
    %v3290 = vunpack.c.h.b16 %v2326
    %v3291 = vunpack.c.l.b16 %v2327
    %v3292 = vunpack.c.h.b16 %v2327
    %v3293 = vunpack.c.l.b16 %v2328
    %v3294 = vunpack.c.h.b16 %v2328
    %v3295 = vunpack.c.l.b16 %v2329
    %v3296 = vunpack.c.h.b16 %v2329
    %v3297 = vunpack.c.l.b16 %v2330
    %v3298 = vunpack.c.h.b16 %v2330
    %v3299 = vunpack.c.l.b16 %v2331
    %v3300 = vunpack.c.h.b16 %v2331
    %v3301 = vunpack.c.l.b16 %v2332
    %v3302 = vunpack.c.h.b16 %v2332
    %v3303 = vunpack.c.l.b16 %v2333
    %v3304 = vunpack.c.h.b16 %v2333
    %v3305 = vunpack.c.l.b16 %v2334
    %v3306 = vunpack.c.h.b16 %v2334
    %v3307 = vunpack.c.l.b16 %v2335
    %v3308 = vunpack.c.h.b16 %v2335
    %v3309 = vunpack.c.l.b16 %v2336
    %v3310 = vunpack.c.h.b16 %v2336
    %v3311 = vunpack.c.l.b16 %v2337
    %v3312 = vunpack.c.h.b16 %v2337
    %v3313 = vunpack.c.l.b16 %v2338
    %v3314 = vunpack.c.h.b16 %v2338
    %v3315 = vunpack.c.l.b16 %v2339
    %v3316 = vunpack.c.h.b16 %v2339
    %v3317 = vunpack.c.l.b16 %v2340
    %v3318 = vunpack.c.h.b16 %v2340
    %v3319 = vunpack.c.l.b16 %v2341
    %v3320 = vunpack.c.h.b16 %v2341
    %v3321 = vunpack.c.l.b16 %v2342
    %v3322 = vunpack.c.h.b16 %v2342
    %v3323 = vunpack.c.l.b16 %v2343
    %v3324 = vunpack.c.h.b16 %v2343
    %v3325 = vunpack.c.l.b16 %v2344
    %v3326 = vunpack.c.h.b16 %v2344
    %v3327 = vunpack.c.l.b16 %v2345
    %v3328 = vunpack.c.h.b16 %v2345
    %v3329 = vunpack.c.l.b16 %v2346
    %v3330 = vunpack.c.h.b16 %v2346
    %v3331 = vunpack.c.l.b16 %v2347
    %v3332 = vunpack.c.h.b16 %v2347
    %v3333 = vunpack.c.l.b16 %v2348
    %v3334 = vunpack.c.h.b16 %v2348
    %v3335 = vunpack.c.l.b16 %v2349
    %v3336 = vunpack.c.h.b16 %v2349
    %v3337 = vunpack.c.l.b16 %v2350
    %v3338 = vunpack.c.h.b16 %v2350
    %v3339 = vunpack.c.l.b16 %v2351
    %v3340 = vunpack.c.h.b16 %v2351
    %v3341 = vunpack.c.l.b16 %v2352
    %v3342 = vunpack.c.h.b16 %v2352
    %v3343 = vunpack.c.l.b16 %v2353
    %v3344 = vunpack.c.h.b16 %v2353
    %v3345 = vunpack.c.l.b16 %v2354
    %v3346 = vunpack.c.h.b16 %v2354
    %v3347 = vunpack.c.l.b16 %v2355
    %v3348 = vunpack.c.h.b16 %v2355
    %v3349 = vunpack.c.l.b16 %v2356
    %v3350 = vunpack.c.h.b16 %v2356
    %v3351 = vunpack.c.l.b16 %v2357
    %v3352 = vunpack.c.h.b16 %v2357
    %v3353 = vunpack.c.l.b16 %v2358
    %v3354 = vunpack.c.h.b16 %v2358
    %v3355 = vunpack.c.l.b16 %v2359
    %v3356 = vunpack.c.h.b16 %v2359
    %v3357 = vunpack.c.l.b16 %v2360
    %v3358 = vunpack.c.h.b16 %v2360
    %v3359 = vunpack.c.l.b16 %v2361
    %v3360 = vunpack.c.h.b16 %v2361
    %v3361 = vunpack.c.l.b16 %v2362
    %v3362 = vunpack.c.h.b16 %v2362
    %v3363 = vunpack.c.l.b16 %v2363
    %v3364 = vunpack.c.h.b16 %v2363
    %v3365 = vunpack.c.l.b16 %v2364
    %v3366 = vunpack.c.h.b16 %v2364
    %v3367 = vunpack.c.l.b16 %v2365
    %v3368 = vunpack.c.h.b16 %v2365
    %v3369 = vunpack.c.l.b16 %v2366
    %v3370 = vunpack.c.h.b16 %v2366
    %v3371 = vunpack.c.l.b16 %v2367
    %v3372 = vunpack.c.h.b16 %v2367
    %v3373 = vunpack.c.l.b16 %v2368
    %v3374 = vunpack.c.h.b16 %v2368
    %v3375 = vunpack.c.l.b16 %v2369
    %v3376 = vunpack.c.h.b16 %v2369
    %v3377 = vunpack.c.l.b16 %v2370
    %v3378 = vunpack.c.h.b16 %v2370
    %v3379 = vunpack.c.l.b16 %v2371
    %v3380 = vunpack.c.h.b16 %v2371
    %v3381 = vunpack.c.l.b16 %v2372
    %v3382 = vunpack.c.h.b16 %v2372
    %v3383 = vunpack.c.l.b16 %v2373
    %v3384 = vunpack.c.h.b16 %v2373
    %v3385 = vunpack.c.l.b16 %v2374
    %v3386 = vunpack.c.h.b16 %v2374
    %v3387 = vunpack.c.l.b16 %v2375
    %v3388 = vunpack.c.h.b16 %v2375
    %v3389 = vunpack.c.l.b16 %v2376
    %v3390 = vunpack.c.h.b16 %v2376
    %v3391 = vunpack.c.l.b16 %v2377
    %v3392 = vunpack.c.h.b16 %v2377
    %v3393 = vunpack.c.l.b16 %v2378
    %v3394 = vunpack.c.h.b16 %v2378
    %v3395 = vunpack.c.l.b16 %v2379
    %v3396 = vunpack.c.h.b16 %v2379
    %v3397 = vunpack.c.l.b16 %v2380
    %v3398 = vunpack.c.h.b16 %v2380
    %v3399 = vunpack.c.l.b16 %v2381
    %v3400 = vunpack.c.h.b16 %v2381
    %v3401 = vunpack.c.l.b16 %v2382
    %v3402 = vunpack.c.h.b16 %v2382
    %v3403 = vunpack.c.l.b16 %v2383
    %v3404 = vunpack.c.h.b16 %v2383
    %v3405 = vunpack.c.l.b16 %v2384
    %v3406 = vunpack.c.h.b16 %v2384
    %v3407 = vunpack.c.l.b16 %v2385
    %v3408 = vunpack.c.h.b16 %v2385
    %v3409 = vunpack.c.l.b16 %v2386
    %v3410 = vunpack.c.h.b16 %v2386
    %v3411 = vunpack.c.l.b16 %v2387
    %v3412 = vunpack.c.h.b16 %v2387
    %v3413 = vunpack.c.l.b16 %v2388
    %v3414 = vunpack.c.h.b16 %v2388
    %v3415 = vunpack.c.l.b16 %v2389
    %v3416 = vunpack.c.h.b16 %v2389
    %v3417 = vunpack.c.l.b16 %v2390
    %v3418 = vunpack.c.h.b16 %v2390
    %v3419 = vunpack.c.l.b16 %v2391
    %v3420 = vunpack.c.h.b16 %v2391
    %v3421 = vunpack.c.l.b16 %v2392
    %v3422 = vunpack.c.h.b16 %v2392
    %v3423 = vunpack.c.l.b16 %v2393
    %v3424 = vunpack.c.h.b16 %v2393
    %v3425 = vunpack.c.l.b16 %v2394
    %v3426 = vunpack.c.h.b16 %v2394
    %v3427 = vunpack.c.l.b16 %v2395
    %v3428 = vunpack.c.h.b16 %v2395
    %v3429 = vunpack.c.l.b16 %v2396
    %v3430 = vunpack.c.h.b16 %v2396
    %v3431 = vunpack.c.l.b16 %v2397
    %v3432 = vunpack.c.h.b16 %v2397
    %v3433 = vunpack.c.l.b16 %v2398
    %v3434 = vunpack.c.h.b16 %v2398
    %v3435 = vunpack.c.l.b16 %v2399
    %v3436 = vunpack.c.h.b16 %v2399
    %v3437 = vunpack.c.l.b16 %v2400
    %v3438 = vunpack.c.h.b16 %v2400
    %v3439 = vunpack.c.l.b16 %v2401
    %v3440 = vunpack.c.h.b16 %v2401
    %v3441 = vunpack.c.l.b16 %v2402
    %v3442 = vunpack.c.h.b16 %v2402
    %v3443 = vunpack.c.l.b16 %v2403
    %v3444 = vunpack.c.h.b16 %v2403
    %v3445 = vunpack.c.l.b16 %v2404
    %v3446 = vunpack.c.h.b16 %v2404
    %v3447 = vunpack.c.l.b16 %v2405
    %v3448 = vunpack.c.h.b16 %v2405
    %v3449 = vunpack.c.l.b16 %v2406
    %v3450 = vunpack.c.h.b16 %v2406
    %v3451 = vunpack.c.l.b16 %v2407
    %v3452 = vunpack.c.h.b16 %v2407
    %v3453 = vunpack.c.l.b16 %v2408
    %v3454 = vunpack.c.h.b16 %v2408
    %v3455 = vunpack.c.l.b16 %v2409
    %v3456 = vunpack.c.h.b16 %v2409
    %v3457 = vunpack.c.l.b16 %v2410
    %v3458 = vunpack.c.h.b16 %v2410
    %v3459 = vunpack.c.l.b16 %v2411
    %v3460 = vunpack.c.h.b16 %v2411
    %v3461 = vunpack.c.l.b16 %v2412
    %v3462 = vunpack.c.h.b16 %v2412
    %v3463 = vunpack.c.l.b16 %v2413
    %v3464 = vunpack.c.h.b16 %v2413
    %v3465 = vunpack.c.l.b16 %v2414
    %v3466 = vunpack.c.h.b16 %v2414
    %v3467 = vunpack.c.l.b16 %v2415
    %v3468 = vunpack.c.h.b16 %v2415
    %v3469 = vunpack.c.l.b16 %v2416
    %v3470 = vunpack.c.h.b16 %v2416
    %v3471 = vunpack.c.l.b16 %v2417
    %v3472 = vunpack.c.h.b16 %v2417
    %v3473 = vunpack.c.l.b16 %v2418
    %v3474 = vunpack.c.h.b16 %v2418
    %v3475 = vunpack.c.l.b16 %v2419
    %v3476 = vunpack.c.h.b16 %v2419
    %v3477 = vunpack.c.l.b16 %v2420
    %v3478 = vunpack.c.h.b16 %v2420
    %v3479 = vunpack.c.l.b16 %v2421
    %v3480 = vunpack.c.h.b16 %v2421
    %v3481 = vunpack.c.l.b16 %v2422
    %v3482 = vunpack.c.h.b16 %v2422
    %v3483 = vunpack.c.l.b16 %v2423
    %v3484 = vunpack.c.h.b16 %v2423
    %v3485 = vunpack.c.l.b16 %v2424
    %v3486 = vunpack.c.h.b16 %v2424
    %v3487 = vunpack.c.l.b16 %v2425
    %v3488 = vunpack.c.h.b16 %v2425
    %v3489 = vunpack.c.l.b16 %v2426
    %v3490 = vunpack.c.h.b16 %v2426
    %v3491 = vunpack.c.l.b16 %v2427
    %v3492 = vunpack.c.h.b16 %v2427
    %v3493 = vunpack.c.l.b16 %v2428
    %v3494 = vunpack.c.h.b16 %v2428
    %v3495 = vunpack.c.l.b16 %v2429
    %v3496 = vunpack.c.h.b16 %v2429
    %v3497 = vunpack.c.l.b16 %v2430
    %v3498 = vunpack.c.h.b16 %v2430
    %v3499 = vunpack.c.l.b16 %v2431
    %v3500 = vunpack.c.h.b16 %v2431
    %v3501 = vunpack.c.l.b16 %v2432
    %v3502 = vunpack.c.h.b16 %v2432
    %v3503 = vunpack.c.l.b16 %v2433
    %v3504 = vunpack.c.h.b16 %v2433
    %v3505 = vunpack.c.l.b16 %v2434
    %v3506 = vunpack.c.h.b16 %v2434
    %v3507 = vunpack.c.l.b16 %v2435
    %v3508 = vunpack.c.h.b16 %v2435
    %v3509 = vunpack.c.l.b16 %v2436
    %v3510 = vunpack.c.h.b16 %v2436
    %v3511 = vunpack.c.l.b16 %v2437
    %v3512 = vunpack.c.h.b16 %v2437
    %v3513 = vunpack.c.l.b16 %v2438
    %v3514 = vunpack.c.h.b16 %v2438
    %v3515 = vunpack.c.l.b16 %v2439
    %v3516 = vunpack.c.h.b16 %v2439
    %v3517 = vunpack.c.l.b16 %v2440
    %v3518 = vunpack.c.h.b16 %v2440
    %v3519 = vunpack.c.l.b16 %v2441
    %v3520 = vunpack.c.h.b16 %v2441
    %v3521 = vunpack.c.l.b16 %v2442
    %v3522 = vunpack.c.h.b16 %v2442
    %v3523 = vunpack.c.l.b16 %v2443
    %v3524 = vunpack.c.h.b16 %v2443
    %v3525 = vunpack.c.l.b16 %v2444
    %v3526 = vunpack.c.h.b16 %v2444
    %v3527 = vunpack.c.l.b16 %v2445
    %v3528 = vunpack.c.h.b16 %v2445
    %v3529 = vunpack.c.l.b16 %v2446
    %v3530 = vunpack.c.h.b16 %v2446
    %v3531 = vunpack.c.l.b16 %v2447
    %v3532 = vunpack.c.h.b16 %v2447
    %v3533 = vunpack.c.l.b16 %v2448
    %v3534 = vunpack.c.h.b16 %v2448
    %v3535 = vunpack.c.l.b16 %v2449
    %v3536 = vunpack.c.h.b16 %v2449
    %v3537 = vunpack.c.l.b16 %v2450
    %v3538 = vunpack.c.h.b16 %v2450
    %v3539 = vunpack.c.l.b16 %v2451
    %v3540 = vunpack.c.h.b16 %v2451
    %v3541 = vunpack.c.l.b16 %v2452
    %v3542 = vunpack.c.h.b16 %v2452
    %v3543 = vunpack.c.l.b16 %v2453
    %v3544 = vunpack.c.h.b16 %v2453
    %v3545 = vunpack.c.l.b16 %v2454
    %v3546 = vunpack.c.h.b16 %v2454
    %v3547 = vunpack.c.l.b16 %v2455
    %v3548 = vunpack.c.h.b16 %v2455
    %v3549 = vunpack.c.l.b16 %v2456
    %v3550 = vunpack.c.h.b16 %v2456
    %v3551 = vunpack.c.l.b16 %v2457
    %v3552 = vunpack.c.h.b16 %v2457
    %v3553 = vunpack.c.l.b16 %v2458
    %v3554 = vunpack.c.h.b16 %v2458
    %v3555 = vunpack.c.l.b16 %v2459
    %v3556 = vunpack.c.h.b16 %v2459
    %v3557 = vunpack.c.l.b16 %v2460
    %v3558 = vunpack.c.h.b16 %v2460
    %v3559 = vunpack.c.l.b16 %v2461
    %v3560 = vunpack.c.h.b16 %v2461
    %v3561 = vunpack.c.l.b16 %v2462
    %v3562 = vunpack.c.h.b16 %v2462
    %v3563 = vunpack.c.l.b16 %v2463
    %v3564 = vunpack.c.h.b16 %v2463
    %v3565 = vunpack.c.l.b16 %v2464
    %v3566 = vunpack.c.h.b16 %v2464
    %v3567 = vunpack.c.l.b16 %v2465
    %v3568 = vunpack.c.h.b16 %v2465
    %v3569 = vunpack.c.l.b16 %v2466
    %v3570 = vunpack.c.h.b16 %v2466
    %v3571 = vunpack.c.l.b16 %v2467
    %v3572 = vunpack.c.h.b16 %v2467
    %v3573 = vunpack.c.l.b16 %v2468
    %v3574 = vunpack.c.h.b16 %v2468
    %v3575 = vunpack.c.l.b16 %v2469
    %v3576 = vunpack.c.h.b16 %v2469
    %v3577 = vunpack.c.l.b16 %v2470
    %v3578 = vunpack.c.h.b16 %v2470
    %v3579 = vunpack.c.l.b16 %v2471
    %v3580 = vunpack.c.h.b16 %v2471
    %v3581 = vunpack.c.l.b16 %v2472
    %v3582 = vunpack.c.h.b16 %v2472
    %v3583 = vunpack.c.l.b16 %v2473
    %v3584 = vunpack.c.h.b16 %v2473
    %v3585 = vunpack.c.l.b16 %v2474
    %v3586 = vunpack.c.h.b16 %v2474
    %v3587 = vunpack.c.l.b16 %v2475
    %v3588 = vunpack.c.h.b16 %v2475
    %v3589 = vunpack.c.l.b16 %v2476
    %v3590 = vunpack.c.h.b16 %v2476
    %v3591 = vunpack.c.l.b16 %v2477
    %v3592 = vunpack.c.h.b16 %v2477
    %v3593 = vunpack.c.l.b16 %v2478
    %v3594 = vunpack.c.h.b16 %v2478
    %v3595 = vunpack.c.l.b16 %v2479
    %v3596 = vunpack.c.h.b16 %v2479
    %v3597 = vunpack.c.l.b16 %v2480
    %v3598 = vunpack.c.h.b16 %v2480
    %v3599 = vunpack.c.l.b16 %v2481
    %v3600 = vunpack.c.h.b16 %v2481
    %v3601 = vunpack.c.l.b16 %v2482
    %v3602 = vunpack.c.h.b16 %v2482
    %v3603 = vunpack.c.l.b16 %v2483
    %v3604 = vunpack.c.h.b16 %v2483
    %v3605 = vunpack.c.l.b16 %v2484
    %v3606 = vunpack.c.h.b16 %v2484
    %v3607 = vunpack.c.l.b16 %v2485
    %v3608 = vunpack.c.h.b16 %v2485
    %v3609 = vunpack.c.l.b16 %v2486
    %v3610 = vunpack.c.h.b16 %v2486
    %v3611 = vunpack.c.l.b16 %v2487
    %v3612 = vunpack.c.h.b16 %v2487
    %v3613 = vunpack.c.l.b16 %v2488
    %v3614 = vunpack.c.h.b16 %v2488
    %v3615 = vunpack.c.l.b16 %v2489
    %v3616 = vunpack.c.h.b16 %v2489
    %v3617 = vunpack.c.l.b16 %v2490
    %v3618 = vunpack.c.h.b16 %v2490
    %v3619 = vunpack.c.l.b16 %v2491
    %v3620 = vunpack.c.h.b16 %v2491
    %v3621 = vunpack.c.l.b16 %v2492
    %v3622 = vunpack.c.h.b16 %v2492
    %v3623 = vunpack.c.l.b16 %v2493
    %v3624 = vunpack.c.h.b16 %v2493
    %v3625 = vunpack.c.l.b16 %v2494
    %v3626 = vunpack.c.h.b16 %v2494
    %v3627 = vunpack.c.l.b16 %v2495
    %v3628 = vunpack.c.h.b16 %v2495
    %v3629 = vunpack.c.l.b16 %v2496
    %v3630 = vunpack.c.h.b16 %v2496
    %v3631 = vunpack.c.l.b16 %v2497
    %v3632 = vunpack.c.h.b16 %v2497
    %v3633 = vunpack.c.l.b16 %v2498
    %v3634 = vunpack.c.h.b16 %v2498
    %v3635 = vunpack.c.l.b16 %v2499
    %v3636 = vunpack.c.h.b16 %v2499
    %v3637 = vunpack.c.l.b16 %v2500
    %v3638 = vunpack.c.h.b16 %v2500
    %v3639 = vunpack.c.l.b16 %v2501
    %v3640 = vunpack.c.h.b16 %v2501
    %v3641 = vunpack.c.l.b16 %v2502
    %v3642 = vunpack.c.h.b16 %v2502
    %v3643 = vunpack.c.l.b16 %v2503
    %v3644 = vunpack.c.h.b16 %v2503
    %v3645 = vunpack.c.l.b16 %v2504
    %v3646 = vunpack.c.h.b16 %v2504
    %v3647 = vunpack.c.l.b16 %v2505
    %v3648 = vunpack.c.h.b16 %v2505
    %v3649 = vunpack.c.l.b16 %v2506
    %v3650 = vunpack.c.h.b16 %v2506
    %v3651 = vunpack.c.l.b16 %v2507
    %v3652 = vunpack.c.h.b16 %v2507
    %v3653 = vunpack.c.l.b16 %v2508
    %v3654 = vunpack.c.h.b16 %v2508
    %v3655 = vunpack.c.l.b16 %v2509
    %v3656 = vunpack.c.h.b16 %v2509
    %v3657 = vunpack.c.l.b16 %v2510
    %v3658 = vunpack.c.h.b16 %v2510
    %v3659 = vunpack.c.l.b16 %v2511
    %v3660 = vunpack.c.h.b16 %v2511
    %v3661 = vunpack.c.l.b16 %v2512
    %v3662 = vunpack.c.h.b16 %v2512
    %v3663 = vunpack.c.l.b16 %v2513
    %v3664 = vunpack.c.h.b16 %v2513
    %v3665 = vunpack.c.l.b16 %v2514
    %v3666 = vunpack.c.h.b16 %v2514
    %v3667 = vunpack.c.l.b16 %v2515
    %v3668 = vunpack.c.h.b16 %v2515
    %v3669 = vunpack.c.l.b16 %v2516
    %v3670 = vunpack.c.h.b16 %v2516
    %v3671 = vunpack.c.l.b16 %v2517
    %v3672 = vunpack.c.h.b16 %v2517
    %v3673 = vunpack.c.l.b16 %v2518
    %v3674 = vunpack.c.h.b16 %v2518
    %v3675 = vunpack.c.l.b16 %v2519
    %v3676 = vunpack.c.h.b16 %v2519
    %v3677 = vunpack.c.l.b16 %v2520
    %v3678 = vunpack.c.h.b16 %v2520
    %v3679 = vunpack.c.l.b16 %v2521
    %v3680 = vunpack.c.h.b16 %v2521
    %v3681 = vunpack.c.l.b16 %v2522
    %v3682 = vunpack.c.h.b16 %v2522
    %v3683 = vunpack.c.l.b16 %v2523
    %v3684 = vunpack.c.h.b16 %v2523
    %v3685 = vunpack.c.l.b16 %v2524
    %v3686 = vunpack.c.h.b16 %v2524
    %v3687 = vunpack.c.l.b16 %v2525
    %v3688 = vunpack.c.h.b16 %v2525
    %v3689 = vunpack.c.l.b16 %v2526
    %v3690 = vunpack.c.h.b16 %v2526
    %v3691 = vunpack.c.l.b16 %v2527
    %v3692 = vunpack.c.h.b16 %v2527
    %v3693 = vunpack.c.l.b16 %v2528
    %v3694 = vunpack.c.h.b16 %v2528
    %v3695 = vunpack.c.l.b16 %v2529
    %v3696 = vunpack.c.h.b16 %v2529
    %v3697 = vunpack.c.l.b16 %v2530
    %v3698 = vunpack.c.h.b16 %v2530
    %v3699 = vunpack.c.l.b16 %v2531
    %v3700 = vunpack.c.h.b16 %v2531
    %v3701 = vunpack.c.l.b16 %v2532
    %v3702 = vunpack.c.h.b16 %v2532
    %v3703 = vunpack.c.l.b16 %v2533
    %v3704 = vunpack.c.h.b16 %v2533
    %v3705 = vunpack.c.l.b16 %v2534
    %v3706 = vunpack.c.h.b16 %v2534
    %v3707 = vunpack.c.l.b16 %v2535
    %v3708 = vunpack.c.h.b16 %v2535
    %v3709 = vunpack.c.l.b16 %v2536
    %v3710 = vunpack.c.h.b16 %v2536
    %v3711 = vunpack.c.l.b16 %v2537
    %v3712 = vunpack.c.h.b16 %v2537
    %v3713 = vunpack.c.l.b16 %v2538
    %v3714 = vunpack.c.h.b16 %v2538
    %v3715 = vunpack.c.l.b16 %v2539
    %v3716 = vunpack.c.h.b16 %v2539
    %v3717 = vunpack.c.l.b16 %v2540
    %v3718 = vunpack.c.h.b16 %v2540
    %v3719 = vunpack.c.l.b16 %v2541
    %v3720 = vunpack.c.h.b16 %v2541
    %v3721 = vunpack.c.l.b16 %v2542
    %v3722 = vunpack.c.h.b16 %v2542
    %v3723 = vunpack.c.l.b16 %v2543
    %v3724 = vunpack.c.h.b16 %v2543
    %v3725 = vunpack.c.l.b16 %v2544
    %v3726 = vunpack.c.h.b16 %v2544
    %v3727 = vunpack.c.l.b16 %v2545
    %v3728 = vunpack.c.h.b16 %v2545
    %v3729 = vunpack.c.l.b16 %v2546
    %v3730 = vunpack.c.h.b16 %v2546
    %v3731 = vunpack.c.l.b16 %v2547
    %v3732 = vunpack.c.h.b16 %v2547
    %v3733 = vunpack.c.l.b16 %v2548
    %v3734 = vunpack.c.h.b16 %v2548
    %v3735 = vunpack.c.l.b16 %v2549
    %v3736 = vunpack.c.h.b16 %v2549
    %v3737 = vunpack.c.l.b16 %v2550
    %v3738 = vunpack.c.h.b16 %v2550
    %v3739 = vunpack.c.l.b16 %v2551
    %v3740 = vunpack.c.h.b16 %v2551
    %v3741 = vunpack.c.l.b16 %v2552
    %v3742 = vunpack.c.h.b16 %v2552
    %v3743 = vunpack.c.l.b16 %v2553
    %v3744 = vunpack.c.h.b16 %v2553
    %v3745 = vunpack.c.l.b16 %v2554
    %v3746 = vunpack.c.h.b16 %v2554
    %v3747 = vunpack.c.l.b16 %v2555
    %v3748 = vunpack.c.h.b16 %v2555
    %v3749 = vunpack.c.l.b16 %v2556
    %v3750 = vunpack.c.h.b16 %v2556
    %v3751 = vunpack.c.l.b16 %v2557
    %v3752 = vunpack.c.h.b16 %v2557
    %v3753 = vunpack.c.l.b16 %v2558
    %v3754 = vunpack.c.h.b16 %v2558
    %v3755 = vunpack.c.l.b16 %v2559
    %v3756 = vunpack.c.h.b16 %v2559
    %v3757 = vunpack.c.l.b16 %v2560
    %v3758 = vunpack.c.h.b16 %v2560
    %v3759 = vunpack.c.l.b16 %v2561
    %v3760 = vunpack.c.h.b16 %v2561
    %v3761 = vunpack.c.l.b16 %v2562
    %v3762 = vunpack.c.h.b16 %v2562
    %v3763 = vunpack.c.l.b16 %v2563
    %v3764 = vunpack.c.h.b16 %v2563
    %v3765 = vunpack.c.l.b16 %v2564
    %v3766 = vunpack.c.h.b16 %v2564
    %v3767 = vunpack.c.l.b16 %v2565
    %v3768 = vunpack.c.h.b16 %v2565
    %v3769 = vunpack.c.l.b16 %v2566
    %v3770 = vunpack.c.h.b16 %v2566
    %v3771 = vunpack.c.l.b16 %v2567
    %v3772 = vunpack.c.h.b16 %v2567
    %v3773 = vunpack.c.l.b16 %v2568
    %v3774 = vunpack.c.h.b16 %v2568
    %v3775 = vunpack.c.l.b16 %v2569
    %v3776 = vunpack.c.h.b16 %v2569
    %v3777 = vunpack.c.l.b16 %v2570
    %v3778 = vunpack.c.h.b16 %v2570
    %v3779 = vunpack.c.l.b16 %v2571
    %v3780 = vunpack.c.h.b16 %v2571
    %v3781 = vunpack.c.l.b16 %v2572
    %v3782 = vunpack.c.h.b16 %v2572
    %v3783 = vunpack.c.l.b16 %v2573
    %v3784 = vunpack.c.h.b16 %v2573
    %v3785 = vunpack.c.l.b16 %v2574
    %v3786 = vunpack.c.h.b16 %v2574
    %v3787 = vunpack.c.l.b16 %v2575
    %v3788 = vunpack.c.h.b16 %v2575
    %v3789 = vunpack.c.l.b16 %v2576
    %v3790 = vunpack.c.h.b16 %v2576
    %v3791 = vunpack.c.l.b16 %v2577
    %v3792 = vunpack.c.h.b16 %v2577
    %v3793 = vunpack.c.l.b16 %v2578
    %v3794 = vunpack.c.h.b16 %v2578
    %v3795 = vunpack.c.l.b16 %v2579
    %v3796 = vunpack.c.h.b16 %v2579
    %v3797 = vunpack.c.l.b16 %v2580
    %v3798 = vunpack.c.h.b16 %v2580
    %v3799 = vunpack.c.l.b16 %v2581
    %v3800 = vunpack.c.h.b16 %v2581
    %v3801 = vunpack.c.l.b16 %v2582
    %v3802 = vunpack.c.h.b16 %v2582
    %v3803 = vunpack.c.l.b16 %v2583
    %v3804 = vunpack.c.h.b16 %v2583
    %v3805 = vunpack.c.l.b16 %v2584
    %v3806 = vunpack.c.h.b16 %v2584
    %v3807 = vunpack.c.l.b16 %v2585
    %v3808 = vunpack.c.h.b16 %v2585
    %v3809 = vunpack.c.l.b16 %v2586
    %v3810 = vunpack.c.h.b16 %v2586
    %v3811 = vunpack.c.l.b16 %v2587
    %v3812 = vunpack.c.h.b16 %v2587
    %v3813 = vunpack.c.l.b16 %v2588
    %v3814 = vunpack.c.h.b16 %v2588
    %v3815 = vunpack.c.l.b16 %v2589
    %v3816 = vunpack.c.h.b16 %v2589
    %v3817 = vunpack.c.l.b16 %v2590
    %v3818 = vunpack.c.h.b16 %v2590
    %v3819 = vunpack.c.l.b16 %v2591
    %v3820 = vunpack.c.h.b16 %v2591
    %v3821 = vunpack.c.l.b16 %v2592
    %v3822 = vunpack.c.h.b16 %v2592
    %v3823 = vunpack.c.l.b16 %v2593
    %v3824 = vunpack.c.h.b16 %v2593
    %v3825 = vunpack.c.l.b16 %v2594
    %v3826 = vunpack.c.h.b16 %v2594
    %v3827 = vunpack.c.l.b16 %v2595
    %v3828 = vunpack.c.h.b16 %v2595
    %v3829 = vunpack.c.l.b16 %v2596
    %v3830 = vunpack.c.h.b16 %v2596
    %v3831 = vunpack.c.l.b16 %v2597
    %v3832 = vunpack.c.h.b16 %v2597
    %v3833 = vunpack.c.l.b16 %v2598
    %v3834 = vunpack.c.h.b16 %v2598
    %v3835 = vunpack.c.l.b16 %v2599
    %v3836 = vunpack.c.h.b16 %v2599
    %v3837 = vunpack.c.l.b16 %v2600
    %v3838 = vunpack.c.h.b16 %v2600
    %v3839 = vunpack.c.l.b16 %v2601
    %v3840 = vunpack.c.h.b16 %v2601
    %v3841 = vunpack.c.l.b16 %v2602
    %v3842 = vunpack.c.h.b16 %v2602
    %v3843 = vunpack.c.l.b16 %v2603
    %v3844 = vunpack.c.h.b16 %v2603
    %v3845 = vunpack.c.l.b16 %v2604
    %v3846 = vunpack.c.h.b16 %v2604
    %v3847 = vunpack.c.l.b16 %v2605
    %v3848 = vunpack.c.h.b16 %v2605
    %v3849 = vunpack.c.l.b16 %v2606
    %v3850 = vunpack.c.h.b16 %v2606
    %v3851 = vunpack.c.l.b16 %v2607
    %v3852 = vunpack.c.h.b16 %v2607
    %v3853 = vunpack.c.l.b16 %v2608
    %v3854 = vunpack.c.h.b16 %v2608
    %v3855 = vunpack.c.l.b16 %v2609
    %v3856 = vunpack.c.h.b16 %v2609
    %v3857 = vunpack.c.l.b16 %v2610
    %v3858 = vunpack.c.h.b16 %v2610
    %v3859 = vunpack.c.l.b16 %v2611
    %v3860 = vunpack.c.h.b16 %v2611
    %v3861 = vunpack.c.l.b16 %v2612
    %v3862 = vunpack.c.h.b16 %v2612
    %v3863 = vunpack.c.l.b16 %v2613
    %v3864 = vunpack.c.h.b16 %v2613
    %v3865 = vunpack.c.l.b16 %v2614
    %v3866 = vunpack.c.h.b16 %v2614
    %v3867 = vunpack.c.l.b16 %v2615
    %v3868 = vunpack.c.h.b16 %v2615
    %v3869 = vunpack.c.l.b16 %v2616
    %v3870 = vunpack.c.h.b16 %v2616
    %v3871 = vunpack.c.l.b16 %v2617
    %v3872 = vunpack.c.h.b16 %v2617
    %v3873 = vunpack.c.l.b16 %v2618
    %v3874 = vunpack.c.h.b16 %v2618
    %v3875 = vunpack.c.l.b16 %v2619
    %v3876 = vunpack.c.h.b16 %v2619
    %v3877 = vunpack.c.l.b16 %v2620
    %v3878 = vunpack.c.h.b16 %v2620
    %v3879 = vunpack.c.l.b16 %v2621
    %v3880 = vunpack.c.h.b16 %v2621
    %v3881 = vunpack.c.l.b16 %v2622
    %v3882 = vunpack.c.h.b16 %v2622
    %v3883 = vunpack.c.l.b16 %v2623
    %v3884 = vunpack.c.h.b16 %v2623
    %v3885 = vunpack.c.l.b16 %v2624
    %v3886 = vunpack.c.h.b16 %v2624
    %v3887 = vunpack.c.l.b16 %v2625
    %v3888 = vunpack.c.h.b16 %v2625
    %v3889 = vunpack.c.l.b16 %v2626
    %v3890 = vunpack.c.h.b16 %v2626
    %v3891 = vunpack.c.l.b16 %v2627
    %v3892 = vunpack.c.h.b16 %v2627
    %v3893 = vunpack.c.l.b16 %v2628
    %v3894 = vunpack.c.h.b16 %v2628
    %v3895 = vunpack.c.l.b16 %v2629
    %v3896 = vunpack.c.h.b16 %v2629
    %v3897 = vunpack.c.l.b16 %v2630
    %v3898 = vunpack.c.h.b16 %v2630
    %v3899 = vunpack.c.l.b16 %v2631
    %v3900 = vunpack.c.h.b16 %v2631
    %v3901 = vunpack.c.l.b16 %v2632
    %v3902 = vunpack.c.h.b16 %v2632
    %v3903 = vunpack.c.l.b16 %v2633
    %v3904 = vunpack.c.h.b16 %v2633
    %v3905 = vunpack.c.l.b16 %v2634
    %v3906 = vunpack.c.h.b16 %v2634
    %v3907 = vunpack.c.l.b16 %v2635
    %v3908 = vunpack.c.h.b16 %v2635
    %v3909 = vunpack.c.l.b16 %v2636
    %v3910 = vunpack.c.h.b16 %v2636
    %v3911 = vunpack.c.l.b16 %v2637
    %v3912 = vunpack.c.h.b16 %v2637
    %v3913 = vunpack.c.l.b16 %v2638
    %v3914 = vunpack.c.h.b16 %v2638
    %v3915 = vunpack.c.l.b16 %v2639
    %v3916 = vunpack.c.h.b16 %v2639
    %v3917 = vunpack.c.l.b16 %v2640
    %v3918 = vunpack.c.h.b16 %v2640
    %v3919 = vunpack.c.l.b16 %v2641
    %v3920 = vunpack.c.h.b16 %v2641
    %v3921 = vunpack.c.l.b16 %v2642
    %v3922 = vunpack.c.h.b16 %v2642
    %v3923 = vunpack.c.l.b16 %v2643
    %v3924 = vunpack.c.h.b16 %v2643
    %v3925 = vunpack.c.l.b16 %v2644
    %v3926 = vunpack.c.h.b16 %v2644
    %v3927 = vunpack.c.l.b16 %v2645
    %v3928 = vunpack.c.h.b16 %v2645
    %v3929 = vunpack.c.l.b16 %v2646
    %v3930 = vunpack.c.h.b16 %v2646
    %v3931 = vunpack.c.l.b16 %v2647
    %v3932 = vunpack.c.h.b16 %v2647
    %v3933 = vunpack.c.l.b16 %v2648
    %v3934 = vunpack.c.h.b16 %v2648
    %v3935 = vunpack.c.l.b16 %v2649
    %v3936 = vunpack.c.h.b16 %v2649
    %v3937 = vunpack.c.l.b16 %v2650
    %v3938 = vunpack.c.h.b16 %v2650
    %v3939 = vunpack.c.l.b16 %v2651
    %v3940 = vunpack.c.h.b16 %v2651
    %v3941 = vunpack.c.l.b16 %v2652
    %v3942 = vunpack.c.h.b16 %v2652
    %v3943 = vunpack.c.l.b16 %v2653
    %v3944 = vunpack.c.h.b16 %v2653
    %v3945 = vunpack.c.l.b16 %v2654
    %v3946 = vunpack.c.h.b16 %v2654
    %v3947 = vunpack.c.l.b16 %v2655
    %v3948 = vunpack.c.h.b16 %v2655
    %v3949 = vunpack.c.l.b16 %v2656
    %v3950 = vunpack.c.h.b16 %v2656
    %v3951 = vunpack.c.l.b16 %v2657
    %v3952 = vunpack.c.h.b16 %v2657
    %v3953 = vunpack.c.l.b16 %v2658
    %v3954 = vunpack.c.h.b16 %v2658
    %v3955 = vunpack.c.l.b16 %v2659
    %v3956 = vunpack.c.h.b16 %v2659
    %v3957 = vunpack.c.l.b16 %v2660
    %v3958 = vunpack.c.h.b16 %v2660
    %v3959 = vunpack.c.l.b16 %v2661
    %v3960 = vunpack.c.h.b16 %v2661
    %v3961 = vunpack.c.l.b16 %v2662
    %v3962 = vunpack.c.h.b16 %v2662
    %v3963 = vunpack.c.l.b16 %v2663
    %v3964 = vunpack.c.h.b16 %v2663
    %v3965 = vunpack.c.l.b16 %v2664
    %v3966 = vunpack.c.h.b16 %v2664
    %v3967 = vunpack.c.l.b16 %v2665
    %v3968 = vunpack.c.h.b16 %v2665
    %v3969 = vunpack.c.l.b16 %v2666
    %v3970 = vunpack.c.h.b16 %v2666
    %v3971 = vunpack.c.l.b16 %v2667
    %v3972 = vunpack.c.h.b16 %v2667
    %v3973 = vunpack.c.l.b16 %v2668
    %v3974 = vunpack.c.h.b16 %v2668
    %v3975 = vunpack.c.l.b16 %v2669
    %v3976 = vunpack.c.h.b16 %v2669
    %v3977 = vunpack.c.l.b16 %v2670
    %v3978 = vunpack.c.h.b16 %v2670
    %v3979 = vunpack.c.l.b16 %v2671
    %v3980 = vunpack.c.h.b16 %v2671
    %v3981 = vunpack.c.l.b16 %v2672
    %v3982 = vunpack.c.h.b16 %v2672
    %v3983 = vunpack.c.l.b16 %v2673
    %v3984 = vunpack.c.h.b16 %v2673
    %v3985 = vunpack.c.l.b16 %v2674
    %v3986 = vunpack.c.h.b16 %v2674
    %v3987 = vunpack.c.l.b16 %v2675
    %v3988 = vunpack.c.h.b16 %v2675
    %v3989 = vunpack.c.l.b16 %v2676
    %v3990 = vunpack.c.h.b16 %v2676
    %v3991 = vunpack.c.l.b16 %v2677
    %v3992 = vunpack.c.h.b16 %v2677
    %v3993 = vunpack.c.l.b16 %v2678
    %v3994 = vunpack.c.h.b16 %v2678
    %v3995 = vunpack.c.l.b16 %v2679
    %v3996 = vunpack.c.h.b16 %v2679
    %v3997 = vunpack.c.l.b16 %v2680
    %v3998 = vunpack.c.h.b16 %v2680
    %v3999 = vunpack.c.l.b16 %v2681
    %v4000 = vunpack.c.h.b16 %v2681
    %v4001 = vunpack.c.l.b16 %v2682
    %v4002 = vunpack.c.h.b16 %v2682
    %v4003 = vunpack.c.l.b16 %v2683
    %v4004 = vunpack.c.h.b16 %v2683
    %v4005 = vunpack.c.l.b16 %v2684
    %v4006 = vunpack.c.h.b16 %v2684
    %v4007 = vunpack.c.l.b16 %v2685
    %v4008 = vunpack.c.h.b16 %v2685
    %v4009 = vunpack.c.l.b16 %v2686
    %v4010 = vunpack.c.h.b16 %v2686
    %v4011 = vunpack.c.l.b16 %v2687
    %v4012 = vunpack.c.h.b16 %v2687
    %v4013 = vunpack.c.l.b16 %v2688
    %v4014 = vunpack.c.h.b16 %v2688
    %v4015 = vunpack.c.l.b16 %v2689
    %v4016 = vunpack.c.h.b16 %v2689
    %v4017 = vunpack.c.l.b16 %v2690
    %v4018 = vunpack.c.h.b16 %v2690
    %v4019 = vunpack.c.l.b16 %v2691
    %v4020 = vunpack.c.h.b16 %v2691
    %v4021 = vunpack.c.l.b16 %v2692
    %v4022 = vunpack.c.h.b16 %v2692
    %v4023 = vunpack.c.l.b16 %v2693
    %v4024 = vunpack.c.h.b16 %v2693
    %v4025 = vunpack.c.l.b16 %v2694
    %v4026 = vunpack.c.h.b16 %v2694
    %v4027 = vunpack.c.l.b16 %v2695
    %v4028 = vunpack.c.h.b16 %v2695
    %v4029 = vunpack.c.l.b16 %v2696
    %v4030 = vunpack.c.h.b16 %v2696
    %v4031 = vunpack.c.l.b16 %v2697
    %v4032 = vunpack.c.h.b16 %v2697
    %v4033 = vunpack.c.l.b16 %v2698
    %v4034 = vunpack.c.h.b16 %v2698
    %v4035 = vunpack.c.l.b16 %v2699
    %v4036 = vunpack.c.h.b16 %v2699
    %v4037 = vunpack.c.l.b16 %v2700
    %v4038 = vunpack.c.h.b16 %v2700
    %v4039 = vunpack.c.l.b16 %v2701
    %v4040 = vunpack.c.h.b16 %v2701
    %v4041 = vunpack.c.l.b16 %v2702
    %v4042 = vunpack.c.h.b16 %v2702
    %v4043 = vunpack.c.l.b16 %v2703
    %v4044 = vunpack.c.h.b16 %v2703
    %v4045 = vunpack.c.l.b16 %v2704
    %v4046 = vunpack.c.h.b16 %v2704
    %v4047 = vunpack.c.l.b16 %v2705
    %v4048 = vunpack.c.h.b16 %v2705
    %v4049 = vunpack.c.l.b16 %v2706
    %v4050 = vunpack.c.h.b16 %v2706
    %v4051 = vunpack.c.l.b16 %v2707
    %v4052 = vunpack.c.h.b16 %v2707
    %v4053 = vunpack.c.l.b16 %v2708
    %v4054 = vunpack.c.h.b16 %v2708
    %v4055 = vunpack.c.l.b16 %v2709
    %v4056 = vunpack.c.h.b16 %v2709
    %v4057 = vunpack.c.l.b16 %v2710
    %v4058 = vunpack.c.h.b16 %v2710
    %v4059 = vunpack.c.l.b16 %v2711
    %v4060 = vunpack.c.h.b16 %v2711
    %v4061 = vunpack.c.l.b16 %v2712
    %v4062 = vunpack.c.h.b16 %v2712
    %v4063 = vunpack.c.l.b16 %v2713
    %v4064 = vunpack.c.h.b16 %v2713
    %v4065 = vunpack.c.l.b16 %v2714
    %v4066 = vunpack.c.h.b16 %v2714
    %v4067 = vunpack.c.l.b16 %v2715
    %v4068 = vunpack.c.h.b16 %v2715
    %v4069 = vunpack.c.l.b16 %v2716
    %v4070 = vunpack.c.h.b16 %v2716
    %v4071 = vunpack.c.l.b16 %v2717
    %v4072 = vunpack.c.h.b16 %v2717
    %v4073 = vunpack.c.l.b16 %v2718
    %v4074 = vunpack.c.h.b16 %v2718
    %v4075 = vunpack.c.l.b16 %v2719
    %v4076 = vunpack.c.h.b16 %v2719
    %v4077 = vunpack.c.l.b16 %v2720
    %v4078 = vunpack.c.h.b16 %v2720
    %v4079 = vunpack.c.l.b16 %v2721
    %v4080 = vunpack.c.h.b16 %v2721
    %v4081 = vunpack.c.l.b16 %v2722
    %v4082 = vunpack.c.h.b16 %v2722
    %v4083 = vunpack.c.l.b16 %v2723
    %v4084 = vunpack.c.h.b16 %v2723
    %v4085 = vunpack.c.l.b16 %v2724
    %v4086 = vunpack.c.h.b16 %v2724
    %v4087 = vunpack.c.l.b16 %v2725
    %v4088 = vunpack.c.h.b16 %v2725
    %v4089 = vpack.c.b16 %v3207, %v3189
    %v4090 = vpack.c.b16 %v3208, %v3190
    %v4091 = vpack.c.b16 %v3209, %v3191
    %v4092 = vpack.c.b16 %v3210, %v3192
    %v4093 = vpack.c.b16 %v3211, %v3193
    %v4094 = vpack.c.b16 %v3212, %v3194
    %v4095 = vpack.c.b16 %v3213, %v3195
    %v4096 = vpack.c.b16 %v3214, %v3196
    %v4097 = vpack.c.b16 %v3215, %v3197
    %v4098 = vpack.c.b16 %v3216, %v3198
    %v4099 = vpack.c.b16 %v3217, %v3199
    %v4100 = vpack.c.b16 %v3218, %v3200
    %v4101 = vpack.c.b16 %v3219, %v3201
    %v4102 = vpack.c.b16 %v3220, %v3202
    %v4103 = vpack.c.b16 %v3221, %v3203
    %v4104 = vpack.c.b16 %v3222, %v3204
    %v4105 = vpack.c.b16 %v3223, %v3205
    %v4106 = vpack.c.b16 %v3224, %v3206
    %v4107 = vpack.c.b16 %v3243, %v3225
    %v4108 = vpack.c.b16 %v3244, %v3226
    %v4109 = vpack.c.b16 %v3245, %v3227
    %v4110 = vpack.c.b16 %v3246, %v3228
    %v4111 = vpack.c.b16 %v3247, %v3229
    %v4112 = vpack.c.b16 %v3248, %v3230
    %v4113 = vpack.c.b16 %v3249, %v3231
    %v4114 = vpack.c.b16 %v3250, %v3232
    %v4115 = vpack.c.b16 %v3251, %v3233
    %v4116 = vpack.c.b16 %v3252, %v3234
    %v4117 = vpack.c.b16 %v3253, %v3235
    %v4118 = vpack.c.b16 %v3254, %v3236
    %v4119 = vpack.c.b16 %v3255, %v3237
    %v4120 = vpack.c.b16 %v3256, %v3238
    %v4121 = vpack.c.b16 %v3257, %v3239
    %v4122 = vpack.c.b16 %v3258, %v3240
    %v4123 = vpack.c.b16 %v3259, %v3241
    %v4124 = vpack.c.b16 %v3260, %v3242
    %v4125 = vpack.c.b16 %v3279, %v3261
    %v4126 = vpack.c.b16 %v3280, %v3262
    %v4127 = vpack.c.b16 %v3281, %v3263
    %v4128 = vpack.c.b16 %v3282, %v3264
    %v4129 = vpack.c.b16 %v3283, %v3265
    %v4130 = vpack.c.b16 %v3284, %v3266
    %v4131 = vpack.c.b16 %v3285, %v3267
    %v4132 = vpack.c.b16 %v3286, %v3268
    %v4133 = vpack.c.b16 %v3287, %v3269
    %v4134 = vpack.c.b16 %v3288, %v3270
    %v4135 = vpack.c.b16 %v3289, %v3271
    %v4136 = vpack.c.b16 %v3290, %v3272
    %v4137 = vpack.c.b16 %v3291, %v3273
    %v4138 = vpack.c.b16 %v3292, %v3274
    %v4139 = vpack.c.b16 %v3293, %v3275
    %v4140 = vpack.c.b16 %v3294, %v3276
    %v4141 = vpack.c.b16 %v3295, %v3277
    %v4142 = vpack.c.b16 %v3296, %v3278
    %v4143 = vpack.c.b16 %v3315, %v3297
    %v4144 = vpack.c.b16 %v3316, %v3298
    %v4145 = vpack.c.b16 %v3317, %v3299
    %v4146 = vpack.c.b16 %v3318, %v3300
    %v4147 = vpack.c.b16 %v3319, %v3301
    %v4148 = vpack.c.b16 %v3320, %v3302
    %v4149 = vpack.c.b16 %v3321, %v3303
    %v4150 = vpack.c.b16 %v3322, %v3304
    %v4151 = vpack.c.b16 %v3323, %v3305
    %v4152 = vpack.c.b16 %v3324, %v3306
    %v4153 = vpack.c.b16 %v3325, %v3307
    %v4154 = vpack.c.b16 %v3326, %v3308
    %v4155 = vpack.c.b16 %v3327, %v3309
    %v4156 = vpack.c.b16 %v3328, %v3310
    %v4157 = vpack.c.b16 %v3329, %v3311
    %v4158 = vpack.c.b16 %v3330, %v3312
    %v4159 = vpack.c.b16 %v3331, %v3313
    %v4160 = vpack.c.b16 %v3332, %v3314
    %v4161 = vpack.c.b16 %v3351, %v3333
    %v4162 = vpack.c.b16 %v3352, %v3334
    %v4163 = vpack.c.b16 %v3353, %v3335
    %v4164 = vpack.c.b16 %v3354, %v3336
    %v4165 = vpack.c.b16 %v3355, %v3337
    %v4166 = vpack.c.b16 %v3356, %v3338
    %v4167 = vpack.c.b16 %v3357, %v3339
    %v4168 = vpack.c.b16 %v3358, %v3340
    %v4169 = vpack.c.b16 %v3359, %v3341
    %v4170 = vpack.c.b16 %v3360, %v3342
    %v4171 = vpack.c.b16 %v3361, %v3343
    %v4172 = vpack.c.b16 %v3362, %v3344
    %v4173 = vpack.c.b16 %v3363, %v3345
    %v4174 = vpack.c.b16 %v3364, %v3346
    %v4175 = vpack.c.b16 %v3365, %v3347
    %v4176 = vpack.c.b16 %v3366, %v3348
    %v4177 = vpack.c.b16 %v3367, %v3349
    %v4178 = vpack.c.b16 %v3368, %v3350
    %v4179 = vpack.c.b16 %v3387, %v3369
    %v4180 = vpack.c.b16 %v3388, %v3370
    %v4181 = vpack.c.b16 %v3389, %v3371
    %v4182 = vpack.c.b16 %v3390, %v3372
    %v4183 = vpack.c.b16 %v3391, %v3373
    %v4184 = vpack.c.b16 %v3392, %v3374
    %v4185 = vpack.c.b16 %v3393, %v3375
    %v4186 = vpack.c.b16 %v3394, %v3376
    %v4187 = vpack.c.b16 %v3395, %v3377
    %v4188 = vpack.c.b16 %v3396, %v3378
    %v4189 = vpack.c.b16 %v3397, %v3379
    %v4190 = vpack.c.b16 %v3398, %v3380
    %v4191 = vpack.c.b16 %v3399, %v3381
    %v4192 = vpack.c.b16 %v3400, %v3382
    %v4193 = vpack.c.b16 %v3401, %v3383
    %v4194 = vpack.c.b16 %v3402, %v3384
    %v4195 = vpack.c.b16 %v3403, %v3385
    %v4196 = vpack.c.b16 %v3404, %v3386
    %v4197 = vpack.c.b16 %v3423, %v3405
    %v4198 = vpack.c.b16 %v3424, %v3406
    %v4199 = vpack.c.b16 %v3425, %v3407
    %v4200 = vpack.c.b16 %v3426, %v3408
    %v4201 = vpack.c.b16 %v3427, %v3409
    %v4202 = vpack.c.b16 %v3428, %v3410
    %v4203 = vpack.c.b16 %v3429, %v3411
    %v4204 = vpack.c.b16 %v3430, %v3412
    %v4205 = vpack.c.b16 %v3431, %v3413
    %v4206 = vpack.c.b16 %v3432, %v3414
    %v4207 = vpack.c.b16 %v3433, %v3415
    %v4208 = vpack.c.b16 %v3434, %v3416
    %v4209 = vpack.c.b16 %v3435, %v3417
    %v4210 = vpack.c.b16 %v3436, %v3418
    %v4211 = vpack.c.b16 %v3437, %v3419
    %v4212 = vpack.c.b16 %v3438, %v3420
    %v4213 = vpack.c.b16 %v3439, %v3421
    %v4214 = vpack.c.b16 %v3440, %v3422
    %v4215 = vpack.c.b16 %v3459, %v3441
    %v4216 = vpack.c.b16 %v3460, %v3442
    %v4217 = vpack.c.b16 %v3461, %v3443
    %v4218 = vpack.c.b16 %v3462, %v3444
    %v4219 = vpack.c.b16 %v3463, %v3445
    %v4220 = vpack.c.b16 %v3464, %v3446
    %v4221 = vpack.c.b16 %v3465, %v3447
    %v4222 = vpack.c.b16 %v3466, %v3448
    %v4223 = vpack.c.b16 %v3467, %v3449
    %v4224 = vpack.c.b16 %v3468, %v3450
    %v4225 = vpack.c.b16 %v3469, %v3451
    %v4226 = vpack.c.b16 %v3470, %v3452
    %v4227 = vpack.c.b16 %v3471, %v3453
    %v4228 = vpack.c.b16 %v3472, %v3454
    %v4229 = vpack.c.b16 %v3473, %v3455
    %v4230 = vpack.c.b16 %v3474, %v3456
    %v4231 = vpack.c.b16 %v3475, %v3457
    %v4232 = vpack.c.b16 %v3476, %v3458
    %v4233 = vpack.c.b16 %v3495, %v3477
    %v4234 = vpack.c.b16 %v3496, %v3478
    %v4235 = vpack.c.b16 %v3497, %v3479
    %v4236 = vpack.c.b16 %v3498, %v3480
    %v4237 = vpack.c.b16 %v3499, %v3481
    %v4238 = vpack.c.b16 %v3500, %v3482
    %v4239 = vpack.c.b16 %v3501, %v3483
    %v4240 = vpack.c.b16 %v3502, %v3484
    %v4241 = vpack.c.b16 %v3503, %v3485
    %v4242 = vpack.c.b16 %v3504, %v3486
    %v4243 = vpack.c.b16 %v3505, %v3487
    %v4244 = vpack.c.b16 %v3506, %v3488
    %v4245 = vpack.c.b16 %v3507, %v3489
    %v4246 = vpack.c.b16 %v3508, %v3490
    %v4247 = vpack.c.b16 %v3509, %v3491
    %v4248 = vpack.c.b16 %v3510, %v3492
    %v4249 = vpack.c.b16 %v3511, %v3493
    %v4250 = vpack.c.b16 %v3512, %v3494
    %v4251 = vpack.c.b16 %v3531, %v3513
    %v4252 = vpack.c.b16 %v3532, %v3514
    %v4253 = vpack.c.b16 %v3533, %v3515
    %v4254 = vpack.c.b16 %v3534, %v3516
    %v4255 = vpack.c.b16 %v3535, %v3517
    %v4256 = vpack.c.b16 %v3536, %v3518
    %v4257 = vpack.c.b16 %v3537, %v3519
    %v4258 = vpack.c.b16 %v3538, %v3520
    %v4259 = vpack.c.b16 %v3539, %v3521
    %v4260 = vpack.c.b16 %v3540, %v3522
    %v4261 = vpack.c.b16 %v3541, %v3523
    %v4262 = vpack.c.b16 %v3542, %v3524
    %v4263 = vpack.c.b16 %v3543, %v3525
    %v4264 = vpack.c.b16 %v3544, %v3526
    %v4265 = vpack.c.b16 %v3545, %v3527
    %v4266 = vpack.c.b16 %v3546, %v3528
    %v4267 = vpack.c.b16 %v3547, %v3529
    %v4268 = vpack.c.b16 %v3548, %v3530
    %v4269 = vpack.c.b16 %v3567, %v3549
    %v4270 = vpack.c.b16 %v3568, %v3550
    %v4271 = vpack.c.b16 %v3569, %v3551
    %v4272 = vpack.c.b16 %v3570, %v3552
    %v4273 = vpack.c.b16 %v3571, %v3553
    %v4274 = vpack.c.b16 %v3572, %v3554
    %v4275 = vpack.c.b16 %v3573, %v3555
    %v4276 = vpack.c.b16 %v3574, %v3556
    %v4277 = vpack.c.b16 %v3575, %v3557
    %v4278 = vpack.c.b16 %v3576, %v3558
    %v4279 = vpack.c.b16 %v3577, %v3559
    %v4280 = vpack.c.b16 %v3578, %v3560
    %v4281 = vpack.c.b16 %v3579, %v3561
    %v4282 = vpack.c.b16 %v3580, %v3562
    %v4283 = vpack.c.b16 %v3581, %v3563
    %v4284 = vpack.c.b16 %v3582, %v3564
    %v4285 = vpack.c.b16 %v3583, %v3565
    %v4286 = vpack.c.b16 %v3584, %v3566
    %v4287 = vpack.c.b16 %v3603, %v3585
    %v4288 = vpack.c.b16 %v3604, %v3586
    %v4289 = vpack.c.b16 %v3605, %v3587
    %v4290 = vpack.c.b16 %v3606, %v3588
    %v4291 = vpack.c.b16 %v3607, %v3589
    %v4292 = vpack.c.b16 %v3608, %v3590
    %v4293 = vpack.c.b16 %v3609, %v3591
    %v4294 = vpack.c.b16 %v3610, %v3592
    %v4295 = vpack.c.b16 %v3611, %v3593
    %v4296 = vpack.c.b16 %v3612, %v3594
    %v4297 = vpack.c.b16 %v3613, %v3595
    %v4298 = vpack.c.b16 %v3614, %v3596
    %v4299 = vpack.c.b16 %v3615, %v3597
    %v4300 = vpack.c.b16 %v3616, %v3598
    %v4301 = vpack.c.b16 %v3617, %v3599
    %v4302 = vpack.c.b16 %v3618, %v3600
    %v4303 = vpack.c.b16 %v3619, %v3601
    %v4304 = vpack.c.b16 %v3620, %v3602
    %v4305 = vpack.c.b16 %v3639, %v3621
    %v4306 = vpack.c.b16 %v3640, %v3622
    %v4307 = vpack.c.b16 %v3641, %v3623
    %v4308 = vpack.c.b16 %v3642, %v3624
    %v4309 = vpack.c.b16 %v3643, %v3625
    %v4310 = vpack.c.b16 %v3644, %v3626
    %v4311 = vpack.c.b16 %v3645, %v3627
    %v4312 = vpack.c.b16 %v3646, %v3628
    %v4313 = vpack.c.b16 %v3647, %v3629
    %v4314 = vpack.c.b16 %v3648, %v3630
    %v4315 = vpack.c.b16 %v3649, %v3631
    %v4316 = vpack.c.b16 %v3650, %v3632
    %v4317 = vpack.c.b16 %v3651, %v3633
    %v4318 = vpack.c.b16 %v3652, %v3634
    %v4319 = vpack.c.b16 %v3653, %v3635
    %v4320 = vpack.c.b16 %v3654, %v3636
    %v4321 = vpack.c.b16 %v3655, %v3637
    %v4322 = vpack.c.b16 %v3656, %v3638
    %v4323 = vpack.c.b16 %v3675, %v3657
    %v4324 = vpack.c.b16 %v3676, %v3658
    %v4325 = vpack.c.b16 %v3677, %v3659
    %v4326 = vpack.c.b16 %v3678, %v3660
    %v4327 = vpack.c.b16 %v3679, %v3661
    %v4328 = vpack.c.b16 %v3680, %v3662
    %v4329 = vpack.c.b16 %v3681, %v3663
    %v4330 = vpack.c.b16 %v3682, %v3664
    %v4331 = vpack.c.b16 %v3683, %v3665
    %v4332 = vpack.c.b16 %v3684, %v3666
    %v4333 = vpack.c.b16 %v3685, %v3667
    %v4334 = vpack.c.b16 %v3686, %v3668
    %v4335 = vpack.c.b16 %v3687, %v3669
    %v4336 = vpack.c.b16 %v3688, %v3670
    %v4337 = vpack.c.b16 %v3689, %v3671
    %v4338 = vpack.c.b16 %v3690, %v3672
    %v4339 = vpack.c.b16 %v3691, %v3673
    %v4340 = vpack.c.b16 %v3692, %v3674
    %v4341 = vpack.c.b16 %v3711, %v3693
    %v4342 = vpack.c.b16 %v3712, %v3694
    %v4343 = vpack.c.b16 %v3713, %v3695
    %v4344 = vpack.c.b16 %v3714, %v3696
    %v4345 = vpack.c.b16 %v3715, %v3697
    %v4346 = vpack.c.b16 %v3716, %v3698
    %v4347 = vpack.c.b16 %v3717, %v3699
    %v4348 = vpack.c.b16 %v3718, %v3700
    %v4349 = vpack.c.b16 %v3719, %v3701
    %v4350 = vpack.c.b16 %v3720, %v3702
    %v4351 = vpack.c.b16 %v3721, %v3703
    %v4352 = vpack.c.b16 %v3722, %v3704
    %v4353 = vpack.c.b16 %v3723, %v3705
    %v4354 = vpack.c.b16 %v3724, %v3706
    %v4355 = vpack.c.b16 %v3725, %v3707
    %v4356 = vpack.c.b16 %v3726, %v3708
    %v4357 = vpack.c.b16 %v3727, %v3709
    %v4358 = vpack.c.b16 %v3728, %v3710
    %v4359 = vpack.c.b16 %v3747, %v3729
    %v4360 = vpack.c.b16 %v3748, %v3730
    %v4361 = vpack.c.b16 %v3749, %v3731
    %v4362 = vpack.c.b16 %v3750, %v3732
    %v4363 = vpack.c.b16 %v3751, %v3733
    %v4364 = vpack.c.b16 %v3752, %v3734
    %v4365 = vpack.c.b16 %v3753, %v3735
    %v4366 = vpack.c.b16 %v3754, %v3736
    %v4367 = vpack.c.b16 %v3755, %v3737
    %v4368 = vpack.c.b16 %v3756, %v3738
    %v4369 = vpack.c.b16 %v3757, %v3739
    %v4370 = vpack.c.b16 %v3758, %v3740
    %v4371 = vpack.c.b16 %v3759, %v3741
    %v4372 = vpack.c.b16 %v3760, %v3742
    %v4373 = vpack.c.b16 %v3761, %v3743
    %v4374 = vpack.c.b16 %v3762, %v3744
    %v4375 = vpack.c.b16 %v3763, %v3745
    %v4376 = vpack.c.b16 %v3764, %v3746
    %v4377 = vpack.c.b16 %v3783, %v3765
    %v4378 = vpack.c.b16 %v3784, %v3766
    %v4379 = vpack.c.b16 %v3785, %v3767
    %v4380 = vpack.c.b16 %v3786, %v3768
    %v4381 = vpack.c.b16 %v3787, %v3769
    %v4382 = vpack.c.b16 %v3788, %v3770
    %v4383 = vpack.c.b16 %v3789, %v3771
    %v4384 = vpack.c.b16 %v3790, %v3772
    %v4385 = vpack.c.b16 %v3791, %v3773
    %v4386 = vpack.c.b16 %v3792, %v3774
    %v4387 = vpack.c.b16 %v3793, %v3775
    %v4388 = vpack.c.b16 %v3794, %v3776
    %v4389 = vpack.c.b16 %v3795, %v3777
    %v4390 = vpack.c.b16 %v3796, %v3778
    %v4391 = vpack.c.b16 %v3797, %v3779
    %v4392 = vpack.c.b16 %v3798, %v3780
    %v4393 = vpack.c.b16 %v3799, %v3781
    %v4394 = vpack.c.b16 %v3800, %v3782
    %v4395 = vpack.c.b16 %v3819, %v3801
    %v4396 = vpack.c.b16 %v3820, %v3802
    %v4397 = vpack.c.b16 %v3821, %v3803
    %v4398 = vpack.c.b16 %v3822, %v3804
    %v4399 = vpack.c.b16 %v3823, %v3805
    %v4400 = vpack.c.b16 %v3824, %v3806
    %v4401 = vpack.c.b16 %v3825, %v3807
    %v4402 = vpack.c.b16 %v3826, %v3808
    %v4403 = vpack.c.b16 %v3827, %v3809
    %v4404 = vpack.c.b16 %v3828, %v3810
    %v4405 = vpack.c.b16 %v3829, %v3811
    %v4406 = vpack.c.b16 %v3830, %v3812
    %v4407 = vpack.c.b16 %v3831, %v3813
    %v4408 = vpack.c.b16 %v3832, %v3814
    %v4409 = vpack.c.b16 %v3833, %v3815
    %v4410 = vpack.c.b16 %v3834, %v3816
    %v4411 = vpack.c.b16 %v3835, %v3817
    %v4412 = vpack.c.b16 %v3836, %v3818
    %v4413 = vpack.c.b16 %v3855, %v3837
    %v4414 = vpack.c.b16 %v3856, %v3838
    %v4415 = vpack.c.b16 %v3857, %v3839
    %v4416 = vpack.c.b16 %v3858, %v3840
    %v4417 = vpack.c.b16 %v3859, %v3841
    %v4418 = vpack.c.b16 %v3860, %v3842
    %v4419 = vpack.c.b16 %v3861, %v3843
    %v4420 = vpack.c.b16 %v3862, %v3844
    %v4421 = vpack.c.b16 %v3863, %v3845
    %v4422 = vpack.c.b16 %v3864, %v3846
    %v4423 = vpack.c.b16 %v3865, %v3847
    %v4424 = vpack.c.b16 %v3866, %v3848
    %v4425 = vpack.c.b16 %v3867, %v3849
    %v4426 = vpack.c.b16 %v3868, %v3850
    %v4427 = vpack.c.b16 %v3869, %v3851
    %v4428 = vpack.c.b16 %v3870, %v3852
    %v4429 = vpack.c.b16 %v3871, %v3853
    %v4430 = vpack.c.b16 %v3872, %v3854
    %v4431 = vpack.c.b16 %v3891, %v3873
    %v4432 = vpack.c.b16 %v3892, %v3874
    %v4433 = vpack.c.b16 %v3893, %v3875
    %v4434 = vpack.c.b16 %v3894, %v3876
    %v4435 = vpack.c.b16 %v3895, %v3877
    %v4436 = vpack.c.b16 %v3896, %v3878
    %v4437 = vpack.c.b16 %v3897, %v3879
    %v4438 = vpack.c.b16 %v3898, %v3880
    %v4439 = vpack.c.b16 %v3899, %v3881
    %v4440 = vpack.c.b16 %v3900, %v3882
    %v4441 = vpack.c.b16 %v3901, %v3883
    %v4442 = vpack.c.b16 %v3902, %v3884
    %v4443 = vpack.c.b16 %v3903, %v3885
    %v4444 = vpack.c.b16 %v3904, %v3886
    %v4445 = vpack.c.b16 %v3905, %v3887
    %v4446 = vpack.c.b16 %v3906, %v3888
    %v4447 = vpack.c.b16 %v3907, %v3889
    %v4448 = vpack.c.b16 %v3908, %v3890
    %v4449 = vpack.c.b16 %v3927, %v3909
    %v4450 = vpack.c.b16 %v3928, %v3910
    %v4451 = vpack.c.b16 %v3929, %v3911
    %v4452 = vpack.c.b16 %v3930, %v3912
    %v4453 = vpack.c.b16 %v3931, %v3913
    %v4454 = vpack.c.b16 %v3932, %v3914
    %v4455 = vpack.c.b16 %v3933, %v3915
    %v4456 = vpack.c.b16 %v3934, %v3916
    %v4457 = vpack.c.b16 %v3935, %v3917
    %v4458 = vpack.c.b16 %v3936, %v3918
    %v4459 = vpack.c.b16 %v3937, %v3919
    %v4460 = vpack.c.b16 %v3938, %v3920
    %v4461 = vpack.c.b16 %v3939, %v3921
    %v4462 = vpack.c.b16 %v3940, %v3922
    %v4463 = vpack.c.b16 %v3941, %v3923
    %v4464 = vpack.c.b16 %v3942, %v3924
    %v4465 = vpack.c.b16 %v3943, %v3925
    %v4466 = vpack.c.b16 %v3944, %v3926
    %v4467 = vpack.c.b16 %v3963, %v3945
    %v4468 = vpack.c.b16 %v3964, %v3946
    %v4469 = vpack.c.b16 %v3965, %v3947
    %v4470 = vpack.c.b16 %v3966, %v3948
    %v4471 = vpack.c.b16 %v3967, %v3949
    %v4472 = vpack.c.b16 %v3968, %v3950
    %v4473 = vpack.c.b16 %v3969, %v3951
    %v4474 = vpack.c.b16 %v3970, %v3952
    %v4475 = vpack.c.b16 %v3971, %v3953
    %v4476 = vpack.c.b16 %v3972, %v3954
    %v4477 = vpack.c.b16 %v3973, %v3955
    %v4478 = vpack.c.b16 %v3974, %v3956
    %v4479 = vpack.c.b16 %v3975, %v3957
    %v4480 = vpack.c.b16 %v3976, %v3958
    %v4481 = vpack.c.b16 %v3977, %v3959
    %v4482 = vpack.c.b16 %v3978, %v3960
    %v4483 = vpack.c.b16 %v3979, %v3961
    %v4484 = vpack.c.b16 %v3980, %v3962
    %v4485 = vpack.c.b16 %v3999, %v3981
    %v4486 = vpack.c.b16 %v4000, %v3982
    %v4487 = vpack.c.b16 %v4001, %v3983
    %v4488 = vpack.c.b16 %v4002, %v3984
    %v4489 = vpack.c.b16 %v4003, %v3985
    %v4490 = vpack.c.b16 %v4004, %v3986
    %v4491 = vpack.c.b16 %v4005, %v3987
    %v4492 = vpack.c.b16 %v4006, %v3988
    %v4493 = vpack.c.b16 %v4007, %v3989
    %v4494 = vpack.c.b16 %v4008, %v3990
    %v4495 = vpack.c.b16 %v4009, %v3991
    %v4496 = vpack.c.b16 %v4010, %v3992
    %v4497 = vpack.c.b16 %v4011, %v3993
    %v4498 = vpack.c.b16 %v4012, %v3994
    %v4499 = vpack.c.b16 %v4013, %v3995
    %v4500 = vpack.c.b16 %v4014, %v3996
    %v4501 = vpack.c.b16 %v4015, %v3997
    %v4502 = vpack.c.b16 %v4016, %v3998
    %v4503 = vpack.c.b16 %v4035, %v4017
    %v4504 = vpack.c.b16 %v4036, %v4018
    %v4505 = vpack.c.b16 %v4037, %v4019
    %v4506 = vpack.c.b16 %v4038, %v4020
    %v4507 = vpack.c.b16 %v4039, %v4021
    %v4508 = vpack.c.b16 %v4040, %v4022
    %v4509 = vpack.c.b16 %v4041, %v4023
    %v4510 = vpack.c.b16 %v4042, %v4024
    %v4511 = vpack.c.b16 %v4043, %v4025
    %v4512 = vpack.c.b16 %v4044, %v4026
    %v4513 = vpack.c.b16 %v4045, %v4027
    %v4514 = vpack.c.b16 %v4046, %v4028
    %v4515 = vpack.c.b16 %v4047, %v4029
    %v4516 = vpack.c.b16 %v4048, %v4030
    %v4517 = vpack.c.b16 %v4049, %v4031
    %v4518 = vpack.c.b16 %v4050, %v4032
    %v4519 = vpack.c.b16 %v4051, %v4033
    %v4520 = vpack.c.b16 %v4052, %v4034
    %v4521 = vpack.c.b16 %v4071, %v4053
    %v4522 = vpack.c.b16 %v4072, %v4054
    %v4523 = vpack.c.b16 %v4073, %v4055
    %v4524 = vpack.c.b16 %v4074, %v4056
    %v4525 = vpack.c.b16 %v4075, %v4057
    %v4526 = vpack.c.b16 %v4076, %v4058
    %v4527 = vpack.c.b16 %v4077, %v4059
    %v4528 = vpack.c.b16 %v4078, %v4060
    %v4529 = vpack.c.b16 %v4079, %v4061
    %v4530 = vpack.c.b16 %v4080, %v4062
    %v4531 = vpack.c.b16 %v4081, %v4063
    %v4532 = vpack.c.b16 %v4082, %v4064
    %v4533 = vpack.c.b16 %v4083, %v4065
    %v4534 = vpack.c.b16 %v4084, %v4066
    %v4535 = vpack.c.b16 %v4085, %v4067
    %v4536 = vpack.c.b16 %v4086, %v4068
    %v4537 = vpack.c.b16 %v4087, %v4069
    %v4538 = vpack.c.b16 %v4088, %v4070
    %vm4989 = vcmask 130048
    %v4991 = vsel %vm4989, %v2735, 0
    %4993 = vmatprep.subr.bf16.mxu0 %v4090
    %4994 = vmatpush1.bf16.msra.mxu0 %v4089
    %4995 = vmatprep.subr.bf16.mxu0 %v4108
    %4996 = vmatpush1.bf16.msra.mxu0 %v4107
    %4997 = vmatprep.subr.bf16.mxu0 %v4126
    %4998 = vmatpush1.bf16.msra.mxu0 %v4125
    %4999 = vmatprep.subr.bf16.mxu0 %v4144
    %5000 = vmatpush1.bf16.msra.mxu0 %v4143
    %5001 = vmatprep.subr.bf16.mxu0 %v4162
    %5002 = vmatpush1.bf16.msra.mxu0 %v4161
    %5003 = vmatprep.subr.bf16.mxu0 %v4180
    %5004 = vmatpush1.bf16.msra.mxu0 %v4179
    %5005 = vmatprep.subr.bf16.mxu0 %v4198
    %5006 = vmatpush1.bf16.msra.mxu0 %v4197
    %5007 = vmatprep.subr.bf16.mxu0 %v4216
    %5008 = vmatpush1.bf16.msra.mxu0 %v4215
    %5009 = vmatprep.subr.bf16.mxu0 %v4234
    %5010 = vmatpush1.bf16.msra.mxu0 %v4233
    %5011 = vmatprep.subr.bf16.mxu0 %v4252
    %5012 = vmatpush1.bf16.msra.mxu0 %v4251
    %5013 = vmatprep.subr.bf16.mxu0 %v4270
    %5014 = vmatpush1.bf16.msra.mxu0 %v4269
    %5015 = vmatprep.subr.bf16.mxu0 %v4288
    %5016 = vmatpush1.bf16.msra.mxu0 %v4287
    %5017 = vmatprep.subr.bf16.mxu0 %v4306
    %5018 = vmatpush1.bf16.msra.mxu0 %v4305
    %5019 = vmatprep.subr.bf16.mxu0 %v4324
    %5020 = vmatpush1.bf16.msra.mxu0 %v4323
    %5021 = vmatprep.subr.bf16.mxu0 %v4342
    %5022 = vmatpush1.bf16.msra.mxu0 %v4341
    %5023 = vmatprep.subr.bf16.mxu0 %v4360
    %5024 = vmatpush1.bf16.msra.mxu0 %v4359
    %5025 = vmatprep.mubr.bf16.mxu0 %v2733
    %5026 = vmatmul.mubr.bf16.gmra.mrb[0].mxu0 %v2732
    %v5027 = vpop.f32.mrb[0].mxu0
    %v5028 = vadd.f32 0.0, %v5027
    %v5029 = vpop.f32.mrb[0].mxu0
    %v5030 = vadd.f32 0.0, %v5029
    %v5031 = vpop.f32.mrb[0].mxu0
    %v5032 = vpop.f32.mrb[0].mxu0
    %5033 = vdwg.mxu0
    %5034 = vmatprep.subr.bf16.mxu0 %v4378
    %5035 = vmatpush1.bf16.msra.mxu0 %v4377
    %5036 = vmatprep.subr.bf16.mxu0 %v4396
    %5037 = vmatpush1.bf16.msra.mxu0 %v4395
    %5038 = vmatprep.subr.bf16.mxu0 %v4414
    %5039 = vmatpush1.bf16.msra.mxu0 %v4413
    %5040 = vmatprep.subr.bf16.mxu0 %v4432
    %5041 = vmatpush1.bf16.msra.mxu0 %v4431
    %5042 = vmatprep.subr.bf16.mxu0 %v4450
    %5043 = vmatpush1.bf16.msra.mxu0 %v4449
    %5044 = vmatprep.subr.bf16.mxu0 %v4468
    %5045 = vmatpush1.bf16.msra.mxu0 %v4467
    %5046 = vmatprep.subr.bf16.mxu0 %v4486
    %5047 = vmatpush1.bf16.msra.mxu0 %v4485
    %5048 = vmatprep.subr.bf16.mxu0 %v4504
    %5049 = vmatpush1.bf16.msra.mxu0 %v4503
    %5050 = vmatprep.subr.bf16.mxu0 %v4522
    %5051 = vmatpush1.bf16.msra.mxu0 %v4521
    %5052 = vmatprep.subr.bf16.mxu0 0
    %5053 = vmatpush1.bf16.msra.mxu0 0
    %5054 = vmatprep.subr.bf16.mxu0 0
    %5055 = vmatpush1.bf16.msra.mxu0 0
    %5056 = vmatprep.subr.bf16.mxu0 0
    %5057 = vmatpush1.bf16.msra.mxu0 0
    %5058 = vmatprep.subr.bf16.mxu0 0
    %5059 = vmatpush1.bf16.msra.mxu0 0
    %5060 = vmatprep.subr.bf16.mxu0 0
    %5061 = vmatpush1.bf16.msra.mxu0 0
    %5062 = vmatprep.subr.bf16.mxu0 0
    %5063 = vmatpush1.bf16.msra.mxu0 0
    %5064 = vmatprep.subr.bf16.mxu0 0
    %5065 = vmatpush1.bf16.msra.mxu0 0
    %5066 = vmatprep.mubr.bf16.mxu0 %v4991
    %5067 = vmatmul.mubr.bf16.gmra.mrb[0].mxu0 %v2734
    %v5068 = vpop.f32.mrb[0].mxu0
    %v5069 = vadd.f32 %v5028, %v5068
    %v5070 = vpop.f32.mrb[0].mxu0
    %v5071 = vadd.f32 %v5030, %v5070
    %v5072 = vpop.f32.mrb[0].mxu0
    %v5073 = vpop.f32.mrb[0].mxu0
    %5074 = vdwg.mxu0
    %5075 = vmatprep.subr.bf16.mxu0 %v4092
    %5076 = vmatpush1.bf16.msra.mxu0 %v4091
    %5077 = vmatprep.subr.bf16.mxu0 %v4110
    %5078 = vmatpush1.bf16.msra.mxu0 %v4109
    %5079 = vmatprep.subr.bf16.mxu0 %v4128
    %5080 = vmatpush1.bf16.msra.mxu0 %v4127
    %5081 = vmatprep.subr.bf16.mxu0 %v4146
    %5082 = vmatpush1.bf16.msra.mxu0 %v4145
    %5083 = vmatprep.subr.bf16.mxu0 %v4164
    %5084 = vmatpush1.bf16.msra.mxu0 %v4163
    %5085 = vmatprep.subr.bf16.mxu0 %v4182
    %5086 = vmatpush1.bf16.msra.mxu0 %v4181
    %5087 = vmatprep.subr.bf16.mxu0 %v4200
    %5088 = vmatpush1.bf16.msra.mxu0 %v4199
    %5089 = vmatprep.subr.bf16.mxu0 %v4218
    %5090 = vmatpush1.bf16.msra.mxu0 %v4217
    %5091 = vmatprep.subr.bf16.mxu0 %v4236
    %5092 = vmatpush1.bf16.msra.mxu0 %v4235
    %5093 = vmatprep.subr.bf16.mxu0 %v4254
    %5094 = vmatpush1.bf16.msra.mxu0 %v4253
    %5095 = vmatprep.subr.bf16.mxu0 %v4272
    %5096 = vmatpush1.bf16.msra.mxu0 %v4271
    %5097 = vmatprep.subr.bf16.mxu0 %v4290
    %5098 = vmatpush1.bf16.msra.mxu0 %v4289
    %5099 = vmatprep.subr.bf16.mxu0 %v4308
    %5100 = vmatpush1.bf16.msra.mxu0 %v4307
    %5101 = vmatprep.subr.bf16.mxu0 %v4326
    %5102 = vmatpush1.bf16.msra.mxu0 %v4325
    %5103 = vmatprep.subr.bf16.mxu0 %v4344
    %5104 = vmatpush1.bf16.msra.mxu0 %v4343
    %5105 = vmatprep.subr.bf16.mxu0 %v4362
    %5106 = vmatpush1.bf16.msra.mxu0 %v4361
    %5107 = vmatprep.mubr.bf16.mxu0 %v2733
    %5108 = vmatmul.mubr.bf16.gmra.mrb[0].mxu0 %v2732
    %v5109 = vpop.f32.mrb[0].mxu0
    %v5110 = vadd.f32 0.0, %v5109
    %v5111 = vpop.f32.mrb[0].mxu0
    %v5112 = vadd.f32 0.0, %v5111
    %v5113 = vpop.f32.mrb[0].mxu0
    %v5114 = vpop.f32.mrb[0].mxu0
    %5115 = vdwg.mxu0
    %5116 = vmatprep.subr.bf16.mxu0 %v4380
    %5117 = vmatpush1.bf16.msra.mxu0 %v4379
    %5118 = vmatprep.subr.bf16.mxu0 %v4398
    %5119 = vmatpush1.bf16.msra.mxu0 %v4397
    %5120 = vmatprep.subr.bf16.mxu0 %v4416
    %5121 = vmatpush1.bf16.msra.mxu0 %v4415
    %5122 = vmatprep.subr.bf16.mxu0 %v4434
    %5123 = vmatpush1.bf16.msra.mxu0 %v4433
    %5124 = vmatprep.subr.bf16.mxu0 %v4452
    %5125 = vmatpush1.bf16.msra.mxu0 %v4451
    %5126 = vmatprep.subr.bf16.mxu0 %v4470
    %5127 = vmatpush1.bf16.msra.mxu0 %v4469
    %5128 = vmatprep.subr.bf16.mxu0 %v4488
    %5129 = vmatpush1.bf16.msra.mxu0 %v4487
    %5130 = vmatprep.subr.bf16.mxu0 %v4506
    %5131 = vmatpush1.bf16.msra.mxu0 %v4505
    %5132 = vmatprep.subr.bf16.mxu0 %v4524
    %5133 = vmatpush1.bf16.msra.mxu0 %v4523
    %5134 = vmatprep.subr.bf16.mxu0 0
    %5135 = vmatpush1.bf16.msra.mxu0 0
    %5136 = vmatprep.subr.bf16.mxu0 0
    %5137 = vmatpush1.bf16.msra.mxu0 0
    %5138 = vmatprep.subr.bf16.mxu0 0
    %5139 = vmatpush1.bf16.msra.mxu0 0
    %5140 = vmatprep.subr.bf16.mxu0 0
    %5141 = vmatpush1.bf16.msra.mxu0 0
    %5142 = vmatprep.subr.bf16.mxu0 0
    %5143 = vmatpush1.bf16.msra.mxu0 0
    %5144 = vmatprep.subr.bf16.mxu0 0
    %5145 = vmatpush1.bf16.msra.mxu0 0
    %5146 = vmatprep.subr.bf16.mxu0 0
    %5147 = vmatpush1.bf16.msra.mxu0 0
    %5148 = vmatprep.mubr.bf16.mxu0 %v4991
    %5149 = vmatmul.mubr.bf16.gmra.mrb[0].mxu0 %v2734
    %v5150 = vpop.f32.mrb[0].mxu0
    %v5151 = vadd.f32 %v5110, %v5150
    %v5152 = vpop.f32.mrb[0].mxu0
    %v5153 = vadd.f32 %v5112, %v5152
    %v5154 = vpop.f32.mrb[0].mxu0
    %v5155 = vpop.f32.mrb[0].mxu0
    %5156 = vdwg.mxu0
    %5157 = vmatprep.subr.bf16.mxu0 %v4094
    %5158 = vmatpush1.bf16.msra.mxu0 %v4093
    %5159 = vmatprep.subr.bf16.mxu0 %v4112
    %5160 = vmatpush1.bf16.msra.mxu0 %v4111
    %5161 = vmatprep.subr.bf16.mxu0 %v4130
    %5162 = vmatpush1.bf16.msra.mxu0 %v4129
    %5163 = vmatprep.subr.bf16.mxu0 %v4148
    %5164 = vmatpush1.bf16.msra.mxu0 %v4147
    %5165 = vmatprep.subr.bf16.mxu0 %v4166
    %5166 = vmatpush1.bf16.msra.mxu0 %v4165
    %5167 = vmatprep.subr.bf16.mxu0 %v4184
    %5168 = vmatpush1.bf16.msra.mxu0 %v4183
    %5169 = vmatprep.subr.bf16.mxu0 %v4202
    %5170 = vmatpush1.bf16.msra.mxu0 %v4201
    %5171 = vmatprep.subr.bf16.mxu0 %v4220
    %5172 = vmatpush1.bf16.msra.mxu0 %v4219
    %5173 = vmatprep.subr.bf16.mxu0 %v4238
    %5174 = vmatpush1.bf16.msra.mxu0 %v4237
    %5175 = vmatprep.subr.bf16.mxu0 %v4256
    %5176 = vmatpush1.bf16.msra.mxu0 %v4255
    %5177 = vmatprep.subr.bf16.mxu0 %v4274
    %5178 = vmatpush1.bf16.msra.mxu0 %v4273
    %5179 = vmatprep.subr.bf16.mxu0 %v4292
    %5180 = vmatpush1.bf16.msra.mxu0 %v4291
    %5181 = vmatprep.subr.bf16.mxu0 %v4310
    %5182 = vmatpush1.bf16.msra.mxu0 %v4309
    %5183 = vmatprep.subr.bf16.mxu0 %v4328
    %5184 = vmatpush1.bf16.msra.mxu0 %v4327
    %5185 = vmatprep.subr.bf16.mxu0 %v4346
    %5186 = vmatpush1.bf16.msra.mxu0 %v4345
    %5187 = vmatprep.subr.bf16.mxu0 %v4364
    %5188 = vmatpush1.bf16.msra.mxu0 %v4363
    %5189 = vmatprep.mubr.bf16.mxu0 %v2733
    %5190 = vmatmul.mubr.bf16.gmra.mrb[0].mxu0 %v2732
    %v5191 = vpop.f32.mrb[0].mxu0
    %v5192 = vadd.f32 0.0, %v5191
    %v5193 = vpop.f32.mrb[0].mxu0
    %v5194 = vadd.f32 0.0, %v5193
    %v5195 = vpop.f32.mrb[0].mxu0
    %v5196 = vpop.f32.mrb[0].mxu0
    %5197 = vdwg.mxu0
    %5198 = vmatprep.subr.bf16.mxu0 %v4382
    %5199 = vmatpush1.bf16.msra.mxu0 %v4381
    %5200 = vmatprep.subr.bf16.mxu0 %v4400
    %5201 = vmatpush1.bf16.msra.mxu0 %v4399
    %5202 = vmatprep.subr.bf16.mxu0 %v4418
    %5203 = vmatpush1.bf16.msra.mxu0 %v4417
    %5204 = vmatprep.subr.bf16.mxu0 %v4436
    %5205 = vmatpush1.bf16.msra.mxu0 %v4435
    %5206 = vmatprep.subr.bf16.mxu0 %v4454
    %5207 = vmatpush1.bf16.msra.mxu0 %v4453
    %5208 = vmatprep.subr.bf16.mxu0 %v4472
    %5209 = vmatpush1.bf16.msra.mxu0 %v4471
    %5210 = vmatprep.subr.bf16.mxu0 %v4490
    %5211 = vmatpush1.bf16.msra.mxu0 %v4489
    %5212 = vmatprep.subr.bf16.mxu0 %v4508
    %5213 = vmatpush1.bf16.msra.mxu0 %v4507
    %5214 = vmatprep.subr.bf16.mxu0 %v4526
    %5215 = vmatpush1.bf16.msra.mxu0 %v4525
    %5216 = vmatprep.subr.bf16.mxu0 0
    %5217 = vmatpush1.bf16.msra.mxu0 0
    %5218 = vmatprep.subr.bf16.mxu0 0
    %5219 = vmatpush1.bf16.msra.mxu0 0
    %5220 = vmatprep.subr.bf16.mxu0 0
    %5221 = vmatpush1.bf16.msra.mxu0 0
    %5222 = vmatprep.subr.bf16.mxu0 0
    %5223 = vmatpush1.bf16.msra.mxu0 0
    %5224 = vmatprep.subr.bf16.mxu0 0
    %5225 = vmatpush1.bf16.msra.mxu0 0
    %5226 = vmatprep.subr.bf16.mxu0 0
    %5227 = vmatpush1.bf16.msra.mxu0 0
    %5228 = vmatprep.subr.bf16.mxu0 0
    %5229 = vmatpush1.bf16.msra.mxu0 0
    %5230 = vmatprep.mubr.bf16.mxu0 %v4991
    %5231 = vmatmul.mubr.bf16.gmra.mrb[0].mxu0 %v2734
    %v5232 = vpop.f32.mrb[0].mxu0
    %v5233 = vadd.f32 %v5192, %v5232
    %v5234 = vpop.f32.mrb[0].mxu0
    %v5235 = vadd.f32 %v5194, %v5234
    %v5236 = vpop.f32.mrb[0].mxu0
    %v5237 = vpop.f32.mrb[0].mxu0
    %5238 = vdwg.mxu0
    %5239 = vmatprep.subr.bf16.mxu0 %v4096
    %5240 = vmatpush1.bf16.msra.mxu0 %v4095
    %5241 = vmatprep.subr.bf16.mxu0 %v4114
    %5242 = vmatpush1.bf16.msra.mxu0 %v4113
    %5243 = vmatprep.subr.bf16.mxu0 %v4132
    %5244 = vmatpush1.bf16.msra.mxu0 %v4131
    %5245 = vmatprep.subr.bf16.mxu0 %v4150
    %5246 = vmatpush1.bf16.msra.mxu0 %v4149
    %5247 = vmatprep.subr.bf16.mxu0 %v4168
    %5248 = vmatpush1.bf16.msra.mxu0 %v4167
    %5249 = vmatprep.subr.bf16.mxu0 %v4186
    %5250 = vmatpush1.bf16.msra.mxu0 %v4185
    %5251 = vmatprep.subr.bf16.mxu0 %v4204
    %5252 = vmatpush1.bf16.msra.mxu0 %v4203
    %5253 = vmatprep.subr.bf16.mxu0 %v4222
    %5254 = vmatpush1.bf16.msra.mxu0 %v4221
    %5255 = vmatprep.subr.bf16.mxu0 %v4240
    %5256 = vmatpush1.bf16.msra.mxu0 %v4239
    %5257 = vmatprep.subr.bf16.mxu0 %v4258
    %5258 = vmatpush1.bf16.msra.mxu0 %v4257
    %5259 = vmatprep.subr.bf16.mxu0 %v4276
    %5260 = vmatpush1.bf16.msra.mxu0 %v4275
    %5261 = vmatprep.subr.bf16.mxu0 %v4294
    %5262 = vmatpush1.bf16.msra.mxu0 %v4293
    %5263 = vmatprep.subr.bf16.mxu0 %v4312
    %5264 = vmatpush1.bf16.msra.mxu0 %v4311
    %5265 = vmatprep.subr.bf16.mxu0 %v4330
    %5266 = vmatpush1.bf16.msra.mxu0 %v4329
    %5267 = vmatprep.subr.bf16.mxu0 %v4348
    %5268 = vmatpush1.bf16.msra.mxu0 %v4347
    %5269 = vmatprep.subr.bf16.mxu0 %v4366
    %5270 = vmatpush1.bf16.msra.mxu0 %v4365
    %5271 = vmatprep.mubr.bf16.mxu0 %v2733
    %5272 = vmatmul.mubr.bf16.gmra.mrb[0].mxu0 %v2732
    %v5273 = vpop.f32.mrb[0].mxu0
    %v5274 = vadd.f32 0.0, %v5273
    %v5275 = vpop.f32.mrb[0].mxu0
    %v5276 = vadd.f32 0.0, %v5275
    %v5277 = vpop.f32.mrb[0].mxu0
    %v5278 = vpop.f32.mrb[0].mxu0
    %5279 = vdwg.mxu0
    %5280 = vmatprep.subr.bf16.mxu0 %v4384
    %5281 = vmatpush1.bf16.msra.mxu0 %v4383
    %5282 = vmatprep.subr.bf16.mxu0 %v4402
    %5283 = vmatpush1.bf16.msra.mxu0 %v4401
    %5284 = vmatprep.subr.bf16.mxu0 %v4420
    %5285 = vmatpush1.bf16.msra.mxu0 %v4419
    %5286 = vmatprep.subr.bf16.mxu0 %v4438
    %5287 = vmatpush1.bf16.msra.mxu0 %v4437
    %5288 = vmatprep.subr.bf16.mxu0 %v4456
    %5289 = vmatpush1.bf16.msra.mxu0 %v4455
    %5290 = vmatprep.subr.bf16.mxu0 %v4474
    %5291 = vmatpush1.bf16.msra.mxu0 %v4473
    %5292 = vmatprep.subr.bf16.mxu0 %v4492
    %5293 = vmatpush1.bf16.msra.mxu0 %v4491
    %5294 = vmatprep.subr.bf16.mxu0 %v4510
    %5295 = vmatpush1.bf16.msra.mxu0 %v4509
    %5296 = vmatprep.subr.bf16.mxu0 %v4528
    %5297 = vmatpush1.bf16.msra.mxu0 %v4527
    %5298 = vmatprep.subr.bf16.mxu0 0
    %5299 = vmatpush1.bf16.msra.mxu0 0
    %5300 = vmatprep.subr.bf16.mxu0 0
    %5301 = vmatpush1.bf16.msra.mxu0 0
    %5302 = vmatprep.subr.bf16.mxu0 0
    %5303 = vmatpush1.bf16.msra.mxu0 0
    %5304 = vmatprep.subr.bf16.mxu0 0
    %5305 = vmatpush1.bf16.msra.mxu0 0
    %5306 = vmatprep.subr.bf16.mxu0 0
    %5307 = vmatpush1.bf16.msra.mxu0 0
    %5308 = vmatprep.subr.bf16.mxu0 0
    %5309 = vmatpush1.bf16.msra.mxu0 0
    %5310 = vmatprep.subr.bf16.mxu0 0
    %5311 = vmatpush1.bf16.msra.mxu0 0
    %5312 = vmatprep.mubr.bf16.mxu0 %v4991
    %5313 = vmatmul.mubr.bf16.gmra.mrb[0].mxu0 %v2734
    %v5314 = vpop.f32.mrb[0].mxu0
    %v5315 = vadd.f32 %v5274, %v5314
    %v5316 = vpop.f32.mrb[0].mxu0
    %v5317 = vadd.f32 %v5276, %v5316
    %v5318 = vpop.f32.mrb[0].mxu0
    %v5319 = vpop.f32.mrb[0].mxu0
    %5320 = vdwg.mxu0
    %5321 = vmatprep.subr.bf16.mxu0 %v4098
    %5322 = vmatpush1.bf16.msra.mxu0 %v4097
    %5323 = vmatprep.subr.bf16.mxu0 %v4116
    %5324 = vmatpush1.bf16.msra.mxu0 %v4115
    %5325 = vmatprep.subr.bf16.mxu0 %v4134
    %5326 = vmatpush1.bf16.msra.mxu0 %v4133
    %5327 = vmatprep.subr.bf16.mxu0 %v4152
    %5328 = vmatpush1.bf16.msra.mxu0 %v4151
    %5329 = vmatprep.subr.bf16.mxu0 %v4170
    %5330 = vmatpush1.bf16.msra.mxu0 %v4169
    %5331 = vmatprep.subr.bf16.mxu0 %v4188
    %5332 = vmatpush1.bf16.msra.mxu0 %v4187
    %5333 = vmatprep.subr.bf16.mxu0 %v4206
    %5334 = vmatpush1.bf16.msra.mxu0 %v4205
    %5335 = vmatprep.subr.bf16.mxu0 %v4224
    %5336 = vmatpush1.bf16.msra.mxu0 %v4223
    %5337 = vmatprep.subr.bf16.mxu0 %v4242
    %5338 = vmatpush1.bf16.msra.mxu0 %v4241
    %5339 = vmatprep.subr.bf16.mxu0 %v4260
    %5340 = vmatpush1.bf16.msra.mxu0 %v4259
    %5341 = vmatprep.subr.bf16.mxu0 %v4278
    %5342 = vmatpush1.bf16.msra.mxu0 %v4277
    %5343 = vmatprep.subr.bf16.mxu0 %v4296
    %5344 = vmatpush1.bf16.msra.mxu0 %v4295
    %5345 = vmatprep.subr.bf16.mxu0 %v4314
    %5346 = vmatpush1.bf16.msra.mxu0 %v4313
    %5347 = vmatprep.subr.bf16.mxu0 %v4332
    %5348 = vmatpush1.bf16.msra.mxu0 %v4331
    %5349 = vmatprep.subr.bf16.mxu0 %v4350
    %5350 = vmatpush1.bf16.msra.mxu0 %v4349
    %5351 = vmatprep.subr.bf16.mxu0 %v4368
    %5352 = vmatpush1.bf16.msra.mxu0 %v4367
    %5353 = vmatprep.mubr.bf16.mxu0 %v2733
    %5354 = vmatmul.mubr.bf16.gmra.mrb[0].mxu0 %v2732
    %v5355 = vpop.f32.mrb[0].mxu0
    %v5356 = vadd.f32 0.0, %v5355
    %v5357 = vpop.f32.mrb[0].mxu0
    %v5358 = vadd.f32 0.0, %v5357
    %v5359 = vpop.f32.mrb[0].mxu0
    %v5360 = vpop.f32.mrb[0].mxu0
    %5361 = vdwg.mxu0
    %5362 = vmatprep.subr.bf16.mxu0 %v4386
    %5363 = vmatpush1.bf16.msra.mxu0 %v4385
    %5364 = vmatprep.subr.bf16.mxu0 %v4404
    %5365 = vmatpush1.bf16.msra.mxu0 %v4403
    %5366 = vmatprep.subr.bf16.mxu0 %v4422
    %5367 = vmatpush1.bf16.msra.mxu0 %v4421
    %5368 = vmatprep.subr.bf16.mxu0 %v4440
    %5369 = vmatpush1.bf16.msra.mxu0 %v4439
    %5370 = vmatprep.subr.bf16.mxu0 %v4458
    %5371 = vmatpush1.bf16.msra.mxu0 %v4457
    %5372 = vmatprep.subr.bf16.mxu0 %v4476
    %5373 = vmatpush1.bf16.msra.mxu0 %v4475
    %5374 = vmatprep.subr.bf16.mxu0 %v4494
    %5375 = vmatpush1.bf16.msra.mxu0 %v4493
    %5376 = vmatprep.subr.bf16.mxu0 %v4512
    %5377 = vmatpush1.bf16.msra.mxu0 %v4511
    %5378 = vmatprep.subr.bf16.mxu0 %v4530
    %5379 = vmatpush1.bf16.msra.mxu0 %v4529
    %5380 = vmatprep.subr.bf16.mxu0 0
    %5381 = vmatpush1.bf16.msra.mxu0 0
    %5382 = vmatprep.subr.bf16.mxu0 0
    %5383 = vmatpush1.bf16.msra.mxu0 0
    %5384 = vmatprep.subr.bf16.mxu0 0
    %5385 = vmatpush1.bf16.msra.mxu0 0
    %5386 = vmatprep.subr.bf16.mxu0 0
    %5387 = vmatpush1.bf16.msra.mxu0 0
    %5388 = vmatprep.subr.bf16.mxu0 0
    %5389 = vmatpush1.bf16.msra.mxu0 0
    %5390 = vmatprep.subr.bf16.mxu0 0
    %5391 = vmatpush1.bf16.msra.mxu0 0
    %5392 = vmatprep.subr.bf16.mxu0 0
    %5393 = vmatpush1.bf16.msra.mxu0 0
    %5394 = vmatprep.mubr.bf16.mxu0 %v4991
    %5395 = vmatmul.mubr.bf16.gmra.mrb[0].mxu0 %v2734
    %v5396 = vpop.f32.mrb[0].mxu0
    %v5397 = vadd.f32 %v5356, %v5396
    %v5398 = vpop.f32.mrb[0].mxu0
    %v5399 = vadd.f32 %v5358, %v5398
    %v5400 = vpop.f32.mrb[0].mxu0
    %v5401 = vpop.f32.mrb[0].mxu0
    %5402 = vdwg.mxu0
    %5403 = vmatprep.subr.bf16.mxu0 %v4100
    %5404 = vmatpush1.bf16.msra.mxu0 %v4099
    %5405 = vmatprep.subr.bf16.mxu0 %v4118
    %5406 = vmatpush1.bf16.msra.mxu0 %v4117
    %5407 = vmatprep.subr.bf16.mxu0 %v4136
    %5408 = vmatpush1.bf16.msra.mxu0 %v4135
    %5409 = vmatprep.subr.bf16.mxu0 %v4154
    %5410 = vmatpush1.bf16.msra.mxu0 %v4153
    %5411 = vmatprep.subr.bf16.mxu0 %v4172
    %5412 = vmatpush1.bf16.msra.mxu0 %v4171
    %5413 = vmatprep.subr.bf16.mxu0 %v4190
    %5414 = vmatpush1.bf16.msra.mxu0 %v4189
    %5415 = vmatprep.subr.bf16.mxu0 %v4208
    %5416 = vmatpush1.bf16.msra.mxu0 %v4207
    %5417 = vmatprep.subr.bf16.mxu0 %v4226
    %5418 = vmatpush1.bf16.msra.mxu0 %v4225
    %5419 = vmatprep.subr.bf16.mxu0 %v4244
    %5420 = vmatpush1.bf16.msra.mxu0 %v4243
    %5421 = vmatprep.subr.bf16.mxu0 %v4262
    %5422 = vmatpush1.bf16.msra.mxu0 %v4261
    %5423 = vmatprep.subr.bf16.mxu0 %v4280
    %5424 = vmatpush1.bf16.msra.mxu0 %v4279
    %5425 = vmatprep.subr.bf16.mxu0 %v4298
    %5426 = vmatpush1.bf16.msra.mxu0 %v4297
    %5427 = vmatprep.subr.bf16.mxu0 %v4316
    %5428 = vmatpush1.bf16.msra.mxu0 %v4315
    %5429 = vmatprep.subr.bf16.mxu0 %v4334
    %5430 = vmatpush1.bf16.msra.mxu0 %v4333
    %5431 = vmatprep.subr.bf16.mxu0 %v4352
    %5432 = vmatpush1.bf16.msra.mxu0 %v4351
    %5433 = vmatprep.subr.bf16.mxu0 %v4370
    %5434 = vmatpush1.bf16.msra.mxu0 %v4369
    %5435 = vmatprep.mubr.bf16.mxu0 %v2733
    %5436 = vmatmul.mubr.bf16.gmra.mrb[0].mxu0 %v2732
    %v5437 = vpop.f32.mrb[0].mxu0
    %v5438 = vadd.f32 0.0, %v5437
    %v5439 = vpop.f32.mrb[0].mxu0
    %v5440 = vadd.f32 0.0, %v5439
    %v5441 = vpop.f32.mrb[0].mxu0
    %v5442 = vpop.f32.mrb[0].mxu0
    %5443 = vdwg.mxu0
    %5444 = vmatprep.subr.bf16.mxu0 %v4388
    %5445 = vmatpush1.bf16.msra.mxu0 %v4387
    %5446 = vmatprep.subr.bf16.mxu0 %v4406
    %5447 = vmatpush1.bf16.msra.mxu0 %v4405
    %5448 = vmatprep.subr.bf16.mxu0 %v4424
    %5449 = vmatpush1.bf16.msra.mxu0 %v4423
    %5450 = vmatprep.subr.bf16.mxu0 %v4442
    %5451 = vmatpush1.bf16.msra.mxu0 %v4441
    %5452 = vmatprep.subr.bf16.mxu0 %v4460
    %5453 = vmatpush1.bf16.msra.mxu0 %v4459
    %5454 = vmatprep.subr.bf16.mxu0 %v4478
    %5455 = vmatpush1.bf16.msra.mxu0 %v4477
    %5456 = vmatprep.subr.bf16.mxu0 %v4496
    %5457 = vmatpush1.bf16.msra.mxu0 %v4495
    %5458 = vmatprep.subr.bf16.mxu0 %v4514
    %5459 = vmatpush1.bf16.msra.mxu0 %v4513
    %5460 = vmatprep.subr.bf16.mxu0 %v4532
    %5461 = vmatpush1.bf16.msra.mxu0 %v4531
    %5462 = vmatprep.subr.bf16.mxu0 0
    %5463 = vmatpush1.bf16.msra.mxu0 0
    %5464 = vmatprep.subr.bf16.mxu0 0
    %5465 = vmatpush1.bf16.msra.mxu0 0
    %5466 = vmatprep.subr.bf16.mxu0 0
    %5467 = vmatpush1.bf16.msra.mxu0 0
    %5468 = vmatprep.subr.bf16.mxu0 0
    %5469 = vmatpush1.bf16.msra.mxu0 0
    %5470 = vmatprep.subr.bf16.mxu0 0
    %5471 = vmatpush1.bf16.msra.mxu0 0
    %5472 = vmatprep.subr.bf16.mxu0 0
    %5473 = vmatpush1.bf16.msra.mxu0 0
    %5474 = vmatprep.subr.bf16.mxu0 0
    %5475 = vmatpush1.bf16.msra.mxu0 0
    %5476 = vmatprep.mubr.bf16.mxu0 %v4991
    %5477 = vmatmul.mubr.bf16.gmra.mrb[0].mxu0 %v2734
    %v5478 = vpop.f32.mrb[0].mxu0
    %v5479 = vadd.f32 %v5438, %v5478
    %v5480 = vpop.f32.mrb[0].mxu0
    %v5481 = vadd.f32 %v5440, %v5480
    %v5482 = vpop.f32.mrb[0].mxu0
    %v5483 = vpop.f32.mrb[0].mxu0
    %5484 = vdwg.mxu0
    %5485 = vmatprep.subr.bf16.mxu0 %v4102
    %5486 = vmatpush1.bf16.msra.mxu0 %v4101
    %5487 = vmatprep.subr.bf16.mxu0 %v4120
    %5488 = vmatpush1.bf16.msra.mxu0 %v4119
    %5489 = vmatprep.subr.bf16.mxu0 %v4138
    %5490 = vmatpush1.bf16.msra.mxu0 %v4137
    %5491 = vmatprep.subr.bf16.mxu0 %v4156
    %5492 = vmatpush1.bf16.msra.mxu0 %v4155
    %5493 = vmatprep.subr.bf16.mxu0 %v4174
    %5494 = vmatpush1.bf16.msra.mxu0 %v4173
    %5495 = vmatprep.subr.bf16.mxu0 %v4192
    %5496 = vmatpush1.bf16.msra.mxu0 %v4191
    %5497 = vmatprep.subr.bf16.mxu0 %v4210
    %5498 = vmatpush1.bf16.msra.mxu0 %v4209
    %5499 = vmatprep.subr.bf16.mxu0 %v4228
    %5500 = vmatpush1.bf16.msra.mxu0 %v4227
    %5501 = vmatprep.subr.bf16.mxu0 %v4246
    %5502 = vmatpush1.bf16.msra.mxu0 %v4245
    %5503 = vmatprep.subr.bf16.mxu0 %v4264
    %5504 = vmatpush1.bf16.msra.mxu0 %v4263
    %5505 = vmatprep.subr.bf16.mxu0 %v4282
    %5506 = vmatpush1.bf16.msra.mxu0 %v4281
    %5507 = vmatprep.subr.bf16.mxu0 %v4300
    %5508 = vmatpush1.bf16.msra.mxu0 %v4299
    %5509 = vmatprep.subr.bf16.mxu0 %v4318
    %5510 = vmatpush1.bf16.msra.mxu0 %v4317
    %5511 = vmatprep.subr.bf16.mxu0 %v4336
    %5512 = vmatpush1.bf16.msra.mxu0 %v4335
    %5513 = vmatprep.subr.bf16.mxu0 %v4354
    %5514 = vmatpush1.bf16.msra.mxu0 %v4353
    %5515 = vmatprep.subr.bf16.mxu0 %v4372
    %5516 = vmatpush1.bf16.msra.mxu0 %v4371
    %5517 = vmatprep.mubr.bf16.mxu0 %v2733
    %5518 = vmatmul.mubr.bf16.gmra.mrb[0].mxu0 %v2732
    %v5519 = vpop.f32.mrb[0].mxu0
    %v5520 = vadd.f32 0.0, %v5519
    %v5521 = vpop.f32.mrb[0].mxu0
    %v5522 = vadd.f32 0.0, %v5521
    %v5523 = vpop.f32.mrb[0].mxu0
    %v5524 = vpop.f32.mrb[0].mxu0
    %5525 = vdwg.mxu0
    %5526 = vmatprep.subr.bf16.mxu0 %v4390
    %5527 = vmatpush1.bf16.msra.mxu0 %v4389
    %5528 = vmatprep.subr.bf16.mxu0 %v4408
    %5529 = vmatpush1.bf16.msra.mxu0 %v4407
    %5530 = vmatprep.subr.bf16.mxu0 %v4426
    %5531 = vmatpush1.bf16.msra.mxu0 %v4425
    %5532 = vmatprep.subr.bf16.mxu0 %v4444
    %5533 = vmatpush1.bf16.msra.mxu0 %v4443
    %5534 = vmatprep.subr.bf16.mxu0 %v4462
    %5535 = vmatpush1.bf16.msra.mxu0 %v4461
    %5536 = vmatprep.subr.bf16.mxu0 %v4480
    %5537 = vmatpush1.bf16.msra.mxu0 %v4479
    %5538 = vmatprep.subr.bf16.mxu0 %v4498
    %5539 = vmatpush1.bf16.msra.mxu0 %v4497
    %5540 = vmatprep.subr.bf16.mxu0 %v4516
    %5541 = vmatpush1.bf16.msra.mxu0 %v4515
    %5542 = vmatprep.subr.bf16.mxu0 %v4534
    %5543 = vmatpush1.bf16.msra.mxu0 %v4533
    %5544 = vmatprep.subr.bf16.mxu0 0
    %5545 = vmatpush1.bf16.msra.mxu0 0
    %5546 = vmatprep.subr.bf16.mxu0 0
    %5547 = vmatpush1.bf16.msra.mxu0 0
    %5548 = vmatprep.subr.bf16.mxu0 0
    %5549 = vmatpush1.bf16.msra.mxu0 0
    %5550 = vmatprep.subr.bf16.mxu0 0
    %5551 = vmatpush1.bf16.msra.mxu0 0
    %5552 = vmatprep.subr.bf16.mxu0 0
    %5553 = vmatpush1.bf16.msra.mxu0 0
    %5554 = vmatprep.subr.bf16.mxu0 0
    %5555 = vmatpush1.bf16.msra.mxu0 0
    %5556 = vmatprep.subr.bf16.mxu0 0
    %5557 = vmatpush1.bf16.msra.mxu0 0
    %5558 = vmatprep.mubr.bf16.mxu0 %v4991
    %5559 = vmatmul.mubr.bf16.gmra.mrb[0].mxu0 %v2734
    %v5560 = vpop.f32.mrb[0].mxu0
    %v5561 = vadd.f32 %v5520, %v5560
    %v5562 = vpop.f32.mrb[0].mxu0
    %v5563 = vadd.f32 %v5522, %v5562
    %v5564 = vpop.f32.mrb[0].mxu0
    %v5565 = vpop.f32.mrb[0].mxu0
    %5566 = vdwg.mxu0
    %5567 = vmatprep.subr.bf16.mxu0 %v4104
    %5568 = vmatpush1.bf16.msra.mxu0 %v4103
    %5569 = vmatprep.subr.bf16.mxu0 %v4122
    %5570 = vmatpush1.bf16.msra.mxu0 %v4121
    %5571 = vmatprep.subr.bf16.mxu0 %v4140
    %5572 = vmatpush1.bf16.msra.mxu0 %v4139
    %5573 = vmatprep.subr.bf16.mxu0 %v4158
    %5574 = vmatpush1.bf16.msra.mxu0 %v4157
    %5575 = vmatprep.subr.bf16.mxu0 %v4176
    %5576 = vmatpush1.bf16.msra.mxu0 %v4175
    %5577 = vmatprep.subr.bf16.mxu0 %v4194
    %5578 = vmatpush1.bf16.msra.mxu0 %v4193
    %5579 = vmatprep.subr.bf16.mxu0 %v4212
    %5580 = vmatpush1.bf16.msra.mxu0 %v4211
    %5581 = vmatprep.subr.bf16.mxu0 %v4230
    %5582 = vmatpush1.bf16.msra.mxu0 %v4229
    %5583 = vmatprep.subr.bf16.mxu0 %v4248
    %5584 = vmatpush1.bf16.msra.mxu0 %v4247
    %5585 = vmatprep.subr.bf16.mxu0 %v4266
    %5586 = vmatpush1.bf16.msra.mxu0 %v4265
    %5587 = vmatprep.subr.bf16.mxu0 %v4284
    %5588 = vmatpush1.bf16.msra.mxu0 %v4283
    %5589 = vmatprep.subr.bf16.mxu0 %v4302
    %5590 = vmatpush1.bf16.msra.mxu0 %v4301
    %5591 = vmatprep.subr.bf16.mxu0 %v4320
    %5592 = vmatpush1.bf16.msra.mxu0 %v4319
    %5593 = vmatprep.subr.bf16.mxu0 %v4338
    %5594 = vmatpush1.bf16.msra.mxu0 %v4337
    %5595 = vmatprep.subr.bf16.mxu0 %v4356
    %5596 = vmatpush1.bf16.msra.mxu0 %v4355
    %5597 = vmatprep.subr.bf16.mxu0 %v4374
    %5598 = vmatpush1.bf16.msra.mxu0 %v4373
    %5599 = vmatprep.mubr.bf16.mxu0 %v2733
    %5600 = vmatmul.mubr.bf16.gmra.mrb[0].mxu0 %v2732
    %v5601 = vpop.f32.mrb[0].mxu0
    %v5602 = vadd.f32 0.0, %v5601
    %v5603 = vpop.f32.mrb[0].mxu0
    %v5604 = vadd.f32 0.0, %v5603
    %v5605 = vpop.f32.mrb[0].mxu0
    %v5606 = vpop.f32.mrb[0].mxu0
    %5607 = vdwg.mxu0
    %5608 = vmatprep.subr.bf16.mxu0 %v4392
    %5609 = vmatpush1.bf16.msra.mxu0 %v4391
    %5610 = vmatprep.subr.bf16.mxu0 %v4410
    %5611 = vmatpush1.bf16.msra.mxu0 %v4409
    %5612 = vmatprep.subr.bf16.mxu0 %v4428
    %5613 = vmatpush1.bf16.msra.mxu0 %v4427
    %5614 = vmatprep.subr.bf16.mxu0 %v4446
    %5615 = vmatpush1.bf16.msra.mxu0 %v4445
    %5616 = vmatprep.subr.bf16.mxu0 %v4464
    %5617 = vmatpush1.bf16.msra.mxu0 %v4463
    %5618 = vmatprep.subr.bf16.mxu0 %v4482
    %5619 = vmatpush1.bf16.msra.mxu0 %v4481
    %5620 = vmatprep.subr.bf16.mxu0 %v4500
    %5621 = vmatpush1.bf16.msra.mxu0 %v4499
    %5622 = vmatprep.subr.bf16.mxu0 %v4518
    %5623 = vmatpush1.bf16.msra.mxu0 %v4517
    %5624 = vmatprep.subr.bf16.mxu0 %v4536
    %5625 = vmatpush1.bf16.msra.mxu0 %v4535
    %5626 = vmatprep.subr.bf16.mxu0 0
    %5627 = vmatpush1.bf16.msra.mxu0 0
    %5628 = vmatprep.subr.bf16.mxu0 0
    %5629 = vmatpush1.bf16.msra.mxu0 0
    %5630 = vmatprep.subr.bf16.mxu0 0
    %5631 = vmatpush1.bf16.msra.mxu0 0
    %5632 = vmatprep.subr.bf16.mxu0 0
    %5633 = vmatpush1.bf16.msra.mxu0 0
    %5634 = vmatprep.subr.bf16.mxu0 0
    %5635 = vmatpush1.bf16.msra.mxu0 0
    %5636 = vmatprep.subr.bf16.mxu0 0
    %5637 = vmatpush1.bf16.msra.mxu0 0
    %5638 = vmatprep.subr.bf16.mxu0 0
    %5639 = vmatpush1.bf16.msra.mxu0 0
    %5640 = vmatprep.mubr.bf16.mxu0 %v4991
    %5641 = vmatmul.mubr.bf16.gmra.mrb[0].mxu0 %v2734
    %v5642 = vpop.f32.mrb[0].mxu0
    %v5643 = vadd.f32 %v5602, %v5642
    %v5644 = vpop.f32.mrb[0].mxu0
    %v5645 = vadd.f32 %v5604, %v5644
    %v5646 = vpop.f32.mrb[0].mxu0
    %v5647 = vpop.f32.mrb[0].mxu0
    %5648 = vdwg.mxu0
    %5649 = vmatprep.subr.bf16.mxu0 %v4106
    %5650 = vmatpush1.bf16.msra.mxu0 %v4105
    %5651 = vmatprep.subr.bf16.mxu0 %v4124
    %5652 = vmatpush1.bf16.msra.mxu0 %v4123
    %5653 = vmatprep.subr.bf16.mxu0 %v4142
    %5654 = vmatpush1.bf16.msra.mxu0 %v4141
    %5655 = vmatprep.subr.bf16.mxu0 %v4160
    %5656 = vmatpush1.bf16.msra.mxu0 %v4159
    %5657 = vmatprep.subr.bf16.mxu0 %v4178
    %5658 = vmatpush1.bf16.msra.mxu0 %v4177
    %5659 = vmatprep.subr.bf16.mxu0 %v4196
    %5660 = vmatpush1.bf16.msra.mxu0 %v4195
    %5661 = vmatprep.subr.bf16.mxu0 %v4214
    %5662 = vmatpush1.bf16.msra.mxu0 %v4213
    %5663 = vmatprep.subr.bf16.mxu0 %v4232
    %5664 = vmatpush1.bf16.msra.mxu0 %v4231
    %5665 = vmatprep.subr.bf16.mxu0 %v4250
    %5666 = vmatpush1.bf16.msra.mxu0 %v4249
    %5667 = vmatprep.subr.bf16.mxu0 %v4268
    %5668 = vmatpush1.bf16.msra.mxu0 %v4267
    %5669 = vmatprep.subr.bf16.mxu0 %v4286
    %5670 = vmatpush1.bf16.msra.mxu0 %v4285
    %5671 = vmatprep.subr.bf16.mxu0 %v4304
    %5672 = vmatpush1.bf16.msra.mxu0 %v4303
    %5673 = vmatprep.subr.bf16.mxu0 %v4322
    %5674 = vmatpush1.bf16.msra.mxu0 %v4321
    %5675 = vmatprep.subr.bf16.mxu0 %v4340
    %5676 = vmatpush1.bf16.msra.mxu0 %v4339
    %5677 = vmatprep.subr.bf16.mxu0 %v4358
    %5678 = vmatpush1.bf16.msra.mxu0 %v4357
    %5679 = vmatprep.subr.bf16.mxu0 %v4376
    %5680 = vmatpush1.bf16.msra.mxu0 %v4375
    %5681 = vmatprep.mubr.bf16.mxu0 %v2733
    %5682 = vmatmul.mubr.bf16.gmra.mrb[0].mxu0 %v2732
    %v5683 = vpop.f32.mrb[0].mxu0
    %v5684 = vadd.f32 0.0, %v5683
    %v5685 = vpop.f32.mrb[0].mxu0
    %v5686 = vadd.f32 0.0, %v5685
    %v5687 = vpop.f32.mrb[0].mxu0
    %v5688 = vpop.f32.mrb[0].mxu0
    %5689 = vdwg.mxu0
    %5690 = vmatprep.subr.bf16.mxu0 %v4394
    %5691 = vmatpush1.bf16.msra.mxu0 %v4393
    %5692 = vmatprep.subr.bf16.mxu0 %v4412
    %5693 = vmatpush1.bf16.msra.mxu0 %v4411
    %5694 = vmatprep.subr.bf16.mxu0 %v4430
    %5695 = vmatpush1.bf16.msra.mxu0 %v4429
    %5696 = vmatprep.subr.bf16.mxu0 %v4448
    %5697 = vmatpush1.bf16.msra.mxu0 %v4447
    %5698 = vmatprep.subr.bf16.mxu0 %v4466
    %5699 = vmatpush1.bf16.msra.mxu0 %v4465
    %5700 = vmatprep.subr.bf16.mxu0 %v4484
    %5701 = vmatpush1.bf16.msra.mxu0 %v4483
    %5702 = vmatprep.subr.bf16.mxu0 %v4502
    %5703 = vmatpush1.bf16.msra.mxu0 %v4501
    %5704 = vmatprep.subr.bf16.mxu0 %v4520
    %5705 = vmatpush1.bf16.msra.mxu0 %v4519
    %5706 = vmatprep.subr.bf16.mxu0 %v4538
    %5707 = vmatpush1.bf16.msra.mxu0 %v4537
    %5708 = vmatprep.subr.bf16.mxu0 0
    %5709 = vmatpush1.bf16.msra.mxu0 0
    %5710 = vmatprep.subr.bf16.mxu0 0
    %5711 = vmatpush1.bf16.msra.mxu0 0
    %5712 = vmatprep.subr.bf16.mxu0 0
    %5713 = vmatpush1.bf16.msra.mxu0 0
    %5714 = vmatprep.subr.bf16.mxu0 0
    %5715 = vmatpush1.bf16.msra.mxu0 0
    %5716 = vmatprep.subr.bf16.mxu0 0
    %5717 = vmatpush1.bf16.msra.mxu0 0
    %5718 = vmatprep.subr.bf16.mxu0 0
    %5719 = vmatpush1.bf16.msra.mxu0 0
    %5720 = vmatprep.subr.bf16.mxu0 0
    %5721 = vmatpush1.bf16.msra.mxu0 0
    %5722 = vmatprep.mubr.bf16.mxu0 %v4991
    %5723 = vmatmul.mubr.bf16.gmra.mrb[0].mxu0 %v2734
    %v5724 = vpop.f32.mrb[0].mxu0
    %v5725 = vadd.f32 %v5684, %v5724
    %v5726 = vpop.f32.mrb[0].mxu0
    %v5727 = vadd.f32 %v5686, %v5726
    %v5728 = vpop.f32.mrb[0].mxu0
    %v5729 = vpop.f32.mrb[0].mxu0
    %5730 = vdwg.mxu0
    %v5731 = vpack.c.bf16 %v5069, %v5069
    %v5732 = vpack.c.bf16 %v5071, %v5071
    %v5733 = vpack.c.bf16 %v5151, %v5151
    %v5734 = vpack.c.bf16 %v5153, %v5153
    %v5735 = vpack.c.bf16 %v5233, %v5233
    %v5736 = vpack.c.bf16 %v5235, %v5235
    %v5737 = vpack.c.bf16 %v5315, %v5315
    %v5738 = vpack.c.bf16 %v5317, %v5317
    %v5739 = vpack.c.bf16 %v5397, %v5397
    %v5740 = vpack.c.bf16 %v5399, %v5399
    %v5741 = vpack.c.bf16 %v5479, %v5479
    %v5742 = vpack.c.bf16 %v5481, %v5481
    %v5743 = vpack.c.bf16 %v5561, %v5561
    %v5744 = vpack.c.bf16 %v5563, %v5563
    %v5745 = vpack.c.bf16 %v5643, %v5643
    %v5746 = vpack.c.bf16 %v5645, %v5645
    %v5747 = vpack.c.bf16 %v5725, %v5725
    %v5748 = vpack.c.bf16 %v5727, %v5727
    %v5749 = vld [vmem:[%s4] sm:$0xf]
    %v5750 = vld [vmem:[%s4 + $0x4] sm:$0xf]
    %s5751 = scalar_lea.vmem %s4, 8
    %v5752 = vld [vmem:[%s5751] sm:$0xf]
    %v5753 = vld [vmem:[%s5751 + $0x4] sm:$0xf]
    %v5756 = vunpack.c.l.b16 %v5752
    %v5757 = vunpack.c.l.b16 %v5753
    %v5758 = vpack.c.b16 %v5757, %v5756
    %5760 = vrot.lane.b32.xlu0 %v5731, 64
    %v5761 = vpop.permute.xlu0 %5760
    %vm5762 = vcmask 64512
    %v5764 = vsel %vm5762, %v5758, 0
    %v5767 = vsel %vm46, %v5761, 0
    %5769 = vmatprep.subr.bf16.mxu0 0
    %5770 = vmatpush1.bf16.msra.mxu0 %v5767
    %5771 = vmatprep.subr.bf16.mxu0 0
    %5772 = vmatpush1.bf16.msra.mxu0 0
    %5773 = vmatprep.subr.bf16.mxu0 0
    %5774 = vmatpush1.bf16.msra.mxu0 0
    %5775 = vmatprep.subr.bf16.mxu0 0
    %5776 = vmatpush1.bf16.msra.mxu0 0
    %5777 = vmatprep.subr.bf16.mxu0 0
    %5778 = vmatpush1.bf16.msra.mxu0 0
    %5779 = vmatprep.subr.bf16.mxu0 0
    %5780 = vmatpush1.bf16.msra.mxu0 0
    %5781 = vmatprep.subr.bf16.mxu0 0
    %5782 = vmatpush1.bf16.msra.mxu0 0
    %5783 = vmatprep.subr.bf16.mxu0 0
    %5784 = vmatpush1.bf16.msra.mxu0 0
    %5785 = vmatprep.subr.bf16.mxu0 0
    %5786 = vmatpush1.bf16.msra.mxu0 0
    %5787 = vmatprep.subr.bf16.mxu0 0
    %5788 = vmatpush1.bf16.msra.mxu0 0
    %5789 = vmatprep.subr.bf16.mxu0 0
    %5790 = vmatpush1.bf16.msra.mxu0 0
    %5791 = vmatprep.subr.bf16.mxu0 0
    %5792 = vmatpush1.bf16.msra.mxu0 0
    %5793 = vmatprep.subr.bf16.mxu0 0
    %5794 = vmatpush1.bf16.msra.mxu0 0
    %5795 = vmatprep.subr.bf16.mxu0 0
    %5796 = vmatpush1.bf16.msra.mxu0 0
    %5797 = vmatprep.subr.bf16.mxu0 0
    %5798 = vmatpush1.bf16.msra.mxu0 0
    %5799 = vmatprep.subr.bf16.mxu0 0
    %5800 = vmatpush1.bf16.msra.mxu0 0
    %5801 = vmatprep.mubr.bf16.mxu0 0
    %5802 = vmatmul.mubr.bf16.gmra.mrb[0].mxu0 %v5764
    %v5803 = vpop.f32.mrb[0].mxu0
    %v5804 = vadd.f32 0.0, %v5803
    %v5805 = vpop.f32.mrb[0].mxu0
    %v5806 = vpop.f32.mrb[0].mxu0
    %v5807 = vadd.f32 0.0, %v5806
    %v5808 = vpop.f32.mrb[0].mxu0
    %5809 = vdwg.mxu0
    %v5812 = vunpack.c.l.b16 %v5749
    %v5813 = vunpack.c.l.b16 %v5750
    %v5814 = vpack.c.b16 %v5813, %v5812
    %v5816 = vsel %vm5762, %v5814, 0
    %v5819 = vsel %vm46, %v5731, 0
    %5821 = vmatprep.subr.bf16.mxu0 0
    %5822 = vmatpush1.bf16.msra.mxu0 %v5819
    %5823 = vmatprep.subr.bf16.mxu0 0
    %5824 = vmatpush1.bf16.msra.mxu0 0
    %5825 = vmatprep.subr.bf16.mxu0 0
    %5826 = vmatpush1.bf16.msra.mxu0 0
    %5827 = vmatprep.subr.bf16.mxu0 0
    %5828 = vmatpush1.bf16.msra.mxu0 0
    %5829 = vmatprep.subr.bf16.mxu0 0
    %5830 = vmatpush1.bf16.msra.mxu0 0
    %5831 = vmatprep.subr.bf16.mxu0 0
    %5832 = vmatpush1.bf16.msra.mxu0 0
    %5833 = vmatprep.subr.bf16.mxu0 0
    %5834 = vmatpush1.bf16.msra.mxu0 0
    %5835 = vmatprep.subr.bf16.mxu0 0
    %5836 = vmatpush1.bf16.msra.mxu0 0
    %5837 = vmatprep.subr.bf16.mxu0 0
    %5838 = vmatpush1.bf16.msra.mxu0 0
    %5839 = vmatprep.subr.bf16.mxu0 0
    %5840 = vmatpush1.bf16.msra.mxu0 0
    %5841 = vmatprep.subr.bf16.mxu0 0
    %5842 = vmatpush1.bf16.msra.mxu0 0
    %5843 = vmatprep.subr.bf16.mxu0 0
    %5844 = vmatpush1.bf16.msra.mxu0 0
    %5845 = vmatprep.subr.bf16.mxu0 0
    %5846 = vmatpush1.bf16.msra.mxu0 0
    %5847 = vmatprep.subr.bf16.mxu0 0
    %5848 = vmatpush1.bf16.msra.mxu0 0
    %5849 = vmatprep.subr.bf16.mxu0 0
    %5850 = vmatpush1.bf16.msra.mxu0 0
    %5851 = vmatprep.subr.bf16.mxu0 0
    %5852 = vmatpush1.bf16.msra.mxu0 0
    %5853 = vmatprep.mubr.bf16.mxu0 0
    %5854 = vmatmul.mubr.bf16.gmra.mrb[0].mxu0 %v5816
    %v5855 = vpop.f32.mrb[0].mxu0
    %v5856 = vadd.f32 %v5804, %v5855
    %v5857 = vpop.f32.mrb[0].mxu0
    %v5858 = vpop.f32.mrb[0].mxu0
    %v5859 = vadd.f32 %v5807, %v5858
    %v5860 = vpop.f32.mrb[0].mxu0
    %5861 = vdwg.mxu0
    %s5862 = scalar_lea.vmem %s4, 16
    %v5863 = vld [vmem:[%s5862] sm:$0xf]
    %v5864 = vld [vmem:[%s5862 + $0x4] sm:$0xf]
    %v5867 = vunpack.c.l.b16 %v5863
    %v5868 = vunpack.c.l.b16 %v5864
    %v5869 = vpack.c.b16 %v5868, %v5867
    %v5871 = vsel %vm5762, %v5869, 0
    %v5874 = vsel %vm46, %v5732, 0
    %5876 = vmatprep.subr.bf16.mxu0 0
    %5877 = vmatpush1.bf16.msra.mxu0 %v5874
    %5878 = vmatprep.subr.bf16.mxu0 0
    %5879 = vmatpush1.bf16.msra.mxu0 0
    %5880 = vmatprep.subr.bf16.mxu0 0
    %5881 = vmatpush1.bf16.msra.mxu0 0
    %5882 = vmatprep.subr.bf16.mxu0 0
    %5883 = vmatpush1.bf16.msra.mxu0 0
    %5884 = vmatprep.subr.bf16.mxu0 0
    %5885 = vmatpush1.bf16.msra.mxu0 0
    %5886 = vmatprep.subr.bf16.mxu0 0
    %5887 = vmatpush1.bf16.msra.mxu0 0
    %5888 = vmatprep.subr.bf16.mxu0 0
    %5889 = vmatpush1.bf16.msra.mxu0 0
    %5890 = vmatprep.subr.bf16.mxu0 0
    %5891 = vmatpush1.bf16.msra.mxu0 0
    %5892 = vmatprep.subr.bf16.mxu0 0
    %5893 = vmatpush1.bf16.msra.mxu0 0
    %5894 = vmatprep.subr.bf16.mxu0 0
    %5895 = vmatpush1.bf16.msra.mxu0 0
    %5896 = vmatprep.subr.bf16.mxu0 0
    %5897 = vmatpush1.bf16.msra.mxu0 0
    %5898 = vmatprep.subr.bf16.mxu0 0
    %5899 = vmatpush1.bf16.msra.mxu0 0
    %5900 = vmatprep.subr.bf16.mxu0 0
    %5901 = vmatpush1.bf16.msra.mxu0 0
    %5902 = vmatprep.subr.bf16.mxu0 0
    %5903 = vmatpush1.bf16.msra.mxu0 0
    %5904 = vmatprep.subr.bf16.mxu0 0
    %5905 = vmatpush1.bf16.msra.mxu0 0
    %5906 = vmatprep.subr.bf16.mxu0 0
    %5907 = vmatpush1.bf16.msra.mxu0 0
    %5908 = vmatprep.mubr.bf16.mxu0 0
    %5909 = vmatmul.mubr.bf16.gmra.mrb[0].mxu0 %v5871
    %v5910 = vpop.f32.mrb[0].mxu0
    %v5911 = vadd.f32 0.0, %v5910
    %v5912 = vpop.f32.mrb[0].mxu0
    %v5913 = vpop.f32.mrb[0].mxu0
    %v5914 = vadd.f32 0.0, %v5913
    %v5915 = vpop.f32.mrb[0].mxu0
    %5916 = vdwg.mxu0
    %v5917 = vadd.f32 %v5856, %v5911
    %v5918 = vadd.f32 %v5859, %v5914
    %s5919 = scalar_lea.vmem %s4, 24
    %v5920 = vld [vmem:[%s5919] sm:$0xf]
    %v5921 = vld [vmem:[%s5919 + $0x4] sm:$0xf]
    %v5924 = vunpack.c.l.b16 %v5920
    %v5925 = vunpack.c.l.b16 %v5921
    %v5926 = vpack.c.b16 %v5925, %v5924
    %5928 = vrot.lane.b32.xlu0 %v5732, 64
    %v5929 = vpop.permute.xlu0 %5928
    %v5931 = vsel %vm5762, %v5926, 0
    %v5934 = vsel %vm46, %v5929, 0
    %5936 = vmatprep.subr.bf16.mxu0 0
    %5937 = vmatpush1.bf16.msra.mxu0 %v5934
    %5938 = vmatprep.subr.bf16.mxu0 0
    %5939 = vmatpush1.bf16.msra.mxu0 0
    %5940 = vmatprep.subr.bf16.mxu0 0
    %5941 = vmatpush1.bf16.msra.mxu0 0
    %5942 = vmatprep.subr.bf16.mxu0 0
    %5943 = vmatpush1.bf16.msra.mxu0 0
    %5944 = vmatprep.subr.bf16.mxu0 0
    %5945 = vmatpush1.bf16.msra.mxu0 0
    %5946 = vmatprep.subr.bf16.mxu0 0
    %5947 = vmatpush1.bf16.msra.mxu0 0
    %5948 = vmatprep.subr.bf16.mxu0 0
    %5949 = vmatpush1.bf16.msra.mxu0 0
    %5950 = vmatprep.subr.bf16.mxu0 0
    %5951 = vmatpush1.bf16.msra.mxu0 0
    %5952 = vmatprep.subr.bf16.mxu0 0
    %5953 = vmatpush1.bf16.msra.mxu0 0
    %5954 = vmatprep.subr.bf16.mxu0 0
    %5955 = vmatpush1.bf16.msra.mxu0 0
    %5956 = vmatprep.subr.bf16.mxu0 0
    %5957 = vmatpush1.bf16.msra.mxu0 0
    %5958 = vmatprep.subr.bf16.mxu0 0
    %5959 = vmatpush1.bf16.msra.mxu0 0
    %5960 = vmatprep.subr.bf16.mxu0 0
    %5961 = vmatpush1.bf16.msra.mxu0 0
    %5962 = vmatprep.subr.bf16.mxu0 0
    %5963 = vmatpush1.bf16.msra.mxu0 0
    %5964 = vmatprep.subr.bf16.mxu0 0
    %5965 = vmatpush1.bf16.msra.mxu0 0
    %5966 = vmatprep.subr.bf16.mxu0 0
    %5967 = vmatpush1.bf16.msra.mxu0 0
    %5968 = vmatprep.mubr.bf16.mxu0 0
    %5969 = vmatmul.mubr.bf16.gmra.mrb[0].mxu0 %v5931
    %v5970 = vpop.f32.mrb[0].mxu0
    %v5971 = vadd.f32 0.0, %v5970
    %v5972 = vpop.f32.mrb[0].mxu0
    %v5973 = vpop.f32.mrb[0].mxu0
    %v5974 = vadd.f32 0.0, %v5973
    %v5975 = vpop.f32.mrb[0].mxu0
    %5976 = vdwg.mxu0
    %v5977 = vadd.f32 %v5917, %v5971
    %v5978 = vadd.f32 %v5918, %v5974
    %s5979 = scalar_lea.vmem %s4, 32
    %v5980 = vld [vmem:[%s5979] sm:$0xf]
    %v5981 = vld [vmem:[%s5979 + $0x4] sm:$0xf]
    %v5984 = vunpack.c.l.b16 %v5980
    %v5985 = vunpack.c.l.b16 %v5981
    %v5986 = vpack.c.b16 %v5985, %v5984
    %v5988 = vsel %vm5762, %v5986, 0
    %v5991 = vsel %vm46, %v5733, 0
    %5993 = vmatprep.subr.bf16.mxu0 0
    %5994 = vmatpush1.bf16.msra.mxu0 %v5991
    %5995 = vmatprep.subr.bf16.mxu0 0
    %5996 = vmatpush1.bf16.msra.mxu0 0
    %5997 = vmatprep.subr.bf16.mxu0 0
    %5998 = vmatpush1.bf16.msra.mxu0 0
    %5999 = vmatprep.subr.bf16.mxu0 0
    %6000 = vmatpush1.bf16.msra.mxu0 0
    %6001 = vmatprep.subr.bf16.mxu0 0
    %6002 = vmatpush1.bf16.msra.mxu0 0
    %6003 = vmatprep.subr.bf16.mxu0 0
    %6004 = vmatpush1.bf16.msra.mxu0 0
    %6005 = vmatprep.subr.bf16.mxu0 0
    %6006 = vmatpush1.bf16.msra.mxu0 0
    %6007 = vmatprep.subr.bf16.mxu0 0
    %6008 = vmatpush1.bf16.msra.mxu0 0
    %6009 = vmatprep.subr.bf16.mxu0 0
    %6010 = vmatpush1.bf16.msra.mxu0 0
    %6011 = vmatprep.subr.bf16.mxu0 0
    %6012 = vmatpush1.bf16.msra.mxu0 0
    %6013 = vmatprep.subr.bf16.mxu0 0
    %6014 = vmatpush1.bf16.msra.mxu0 0
    %6015 = vmatprep.subr.bf16.mxu0 0
    %6016 = vmatpush1.bf16.msra.mxu0 0
    %6017 = vmatprep.subr.bf16.mxu0 0
    %6018 = vmatpush1.bf16.msra.mxu0 0
    %6019 = vmatprep.subr.bf16.mxu0 0
    %6020 = vmatpush1.bf16.msra.mxu0 0
    %6021 = vmatprep.subr.bf16.mxu0 0
    %6022 = vmatpush1.bf16.msra.mxu0 0
    %6023 = vmatprep.subr.bf16.mxu0 0
    %6024 = vmatpush1.bf16.msra.mxu0 0
    %6025 = vmatprep.mubr.bf16.mxu0 0
    %6026 = vmatmul.mubr.bf16.gmra.mrb[0].mxu0 %v5988
    %v6027 = vpop.f32.mrb[0].mxu0
    %v6028 = vadd.f32 0.0, %v6027
    %v6029 = vpop.f32.mrb[0].mxu0
    %v6030 = vpop.f32.mrb[0].mxu0
    %v6031 = vadd.f32 0.0, %v6030
    %v6032 = vpop.f32.mrb[0].mxu0
    %6033 = vdwg.mxu0
    %v6034 = vadd.f32 %v5977, %v6028
    %v6035 = vadd.f32 %v5978, %v6031
    %s6036 = scalar_lea.vmem %s4, 40
    %v6037 = vld [vmem:[%s6036] sm:$0xf]
    %v6038 = vld [vmem:[%s6036 + $0x4] sm:$0xf]
    %v6041 = vunpack.c.l.b16 %v6037
    %v6042 = vunpack.c.l.b16 %v6038
    %v6043 = vpack.c.b16 %v6042, %v6041
    %6045 = vrot.lane.b32.xlu0 %v5733, 64
    %v6046 = vpop.permute.xlu0 %6045
    %v6048 = vsel %vm5762, %v6043, 0
    %v6051 = vsel %vm46, %v6046, 0
    %6053 = vmatprep.subr.bf16.mxu0 0
    %6054 = vmatpush1.bf16.msra.mxu0 %v6051
    %6055 = vmatprep.subr.bf16.mxu0 0
    %6056 = vmatpush1.bf16.msra.mxu0 0
    %6057 = vmatprep.subr.bf16.mxu0 0
    %6058 = vmatpush1.bf16.msra.mxu0 0
    %6059 = vmatprep.subr.bf16.mxu0 0
    %6060 = vmatpush1.bf16.msra.mxu0 0
    %6061 = vmatprep.subr.bf16.mxu0 0
    %6062 = vmatpush1.bf16.msra.mxu0 0
    %6063 = vmatprep.subr.bf16.mxu0 0
    %6064 = vmatpush1.bf16.msra.mxu0 0
    %6065 = vmatprep.subr.bf16.mxu0 0
    %6066 = vmatpush1.bf16.msra.mxu0 0
    %6067 = vmatprep.subr.bf16.mxu0 0
    %6068 = vmatpush1.bf16.msra.mxu0 0
    %6069 = vmatprep.subr.bf16.mxu0 0
    %6070 = vmatpush1.bf16.msra.mxu0 0
    %6071 = vmatprep.subr.bf16.mxu0 0
    %6072 = vmatpush1.bf16.msra.mxu0 0
    %6073 = vmatprep.subr.bf16.mxu0 0
    %6074 = vmatpush1.bf16.msra.mxu0 0
    %6075 = vmatprep.subr.bf16.mxu0 0
    %6076 = vmatpush1.bf16.msra.mxu0 0
    %6077 = vmatprep.subr.bf16.mxu0 0
    %6078 = vmatpush1.bf16.msra.mxu0 0
    %6079 = vmatprep.subr.bf16.mxu0 0
    %6080 = vmatpush1.bf16.msra.mxu0 0
    %6081 = vmatprep.subr.bf16.mxu0 0
    %6082 = vmatpush1.bf16.msra.mxu0 0
    %6083 = vmatprep.subr.bf16.mxu0 0
    %6084 = vmatpush1.bf16.msra.mxu0 0
    %6085 = vmatprep.mubr.bf16.mxu0 0
    %6086 = vmatmul.mubr.bf16.gmra.mrb[0].mxu0 %v6048
    %v6087 = vpop.f32.mrb[0].mxu0
    %v6088 = vadd.f32 0.0, %v6087
    %v6089 = vpop.f32.mrb[0].mxu0
    %v6090 = vpop.f32.mrb[0].mxu0
    %v6091 = vadd.f32 0.0, %v6090
    %v6092 = vpop.f32.mrb[0].mxu0
    %6093 = vdwg.mxu0
    %v6094 = vadd.f32 %v6034, %v6088
    %v6095 = vadd.f32 %v6035, %v6091
    %s6096 = scalar_lea.vmem %s4, 48
    %v6097 = vld [vmem:[%s6096] sm:$0xf]
    %v6098 = vld [vmem:[%s6096 + $0x4] sm:$0xf]
    %v6101 = vunpack.c.l.b16 %v6097
    %v6102 = vunpack.c.l.b16 %v6098
    %v6103 = vpack.c.b16 %v6102, %v6101
    %v6105 = vsel %vm5762, %v6103, 0
    %v6108 = vsel %vm46, %v5734, 0
    %6110 = vmatprep.subr.bf16.mxu0 0
    %6111 = vmatpush1.bf16.msra.mxu0 %v6108
    %6112 = vmatprep.subr.bf16.mxu0 0
    %6113 = vmatpush1.bf16.msra.mxu0 0
    %6114 = vmatprep.subr.bf16.mxu0 0
    %6115 = vmatpush1.bf16.msra.mxu0 0
    %6116 = vmatprep.subr.bf16.mxu0 0
    %6117 = vmatpush1.bf16.msra.mxu0 0
    %6118 = vmatprep.subr.bf16.mxu0 0
    %6119 = vmatpush1.bf16.msra.mxu0 0
    %6120 = vmatprep.subr.bf16.mxu0 0
    %6121 = vmatpush1.bf16.msra.mxu0 0
    %6122 = vmatprep.subr.bf16.mxu0 0
    %6123 = vmatpush1.bf16.msra.mxu0 0
    %6124 = vmatprep.subr.bf16.mxu0 0
    %6125 = vmatpush1.bf16.msra.mxu0 0
    %6126 = vmatprep.subr.bf16.mxu0 0
    %6127 = vmatpush1.bf16.msra.mxu0 0
    %6128 = vmatprep.subr.bf16.mxu0 0
    %6129 = vmatpush1.bf16.msra.mxu0 0
    %6130 = vmatprep.subr.bf16.mxu0 0
    %6131 = vmatpush1.bf16.msra.mxu0 0
    %6132 = vmatprep.subr.bf16.mxu0 0
    %6133 = vmatpush1.bf16.msra.mxu0 0
    %6134 = vmatprep.subr.bf16.mxu0 0
    %6135 = vmatpush1.bf16.msra.mxu0 0
    %6136 = vmatprep.subr.bf16.mxu0 0
    %6137 = vmatpush1.bf16.msra.mxu0 0
    %6138 = vmatprep.subr.bf16.mxu0 0
    %6139 = vmatpush1.bf16.msra.mxu0 0
    %6140 = vmatprep.subr.bf16.mxu0 0
    %6141 = vmatpush1.bf16.msra.mxu0 0
    %6142 = vmatprep.mubr.bf16.mxu0 0
    %6143 = vmatmul.mubr.bf16.gmra.mrb[0].mxu0 %v6105
    %v6144 = vpop.f32.mrb[0].mxu0
    %v6145 = vadd.f32 0.0, %v6144
    %v6146 = vpop.f32.mrb[0].mxu0
    %v6147 = vpop.f32.mrb[0].mxu0
    %v6148 = vadd.f32 0.0, %v6147
    %v6149 = vpop.f32.mrb[0].mxu0
    %6150 = vdwg.mxu0
    %v6151 = vadd.f32 %v6094, %v6145
    %v6152 = vadd.f32 %v6095, %v6148
    %s6153 = scalar_lea.vmem %s4, 56
    %v6154 = vld [vmem:[%s6153] sm:$0xf]
    %v6155 = vld [vmem:[%s6153 + $0x4] sm:$0xf]
    %v6158 = vunpack.c.l.b16 %v6154
    %v6159 = vunpack.c.l.b16 %v6155
    %v6160 = vpack.c.b16 %v6159, %v6158
    %6162 = vrot.lane.b32.xlu0 %v5734, 64
    %v6163 = vpop.permute.xlu0 %6162
    %v6165 = vsel %vm5762, %v6160, 0
    %v6168 = vsel %vm46, %v6163, 0
    %6170 = vmatprep.subr.bf16.mxu0 0
    %6171 = vmatpush1.bf16.msra.mxu0 %v6168
    %6172 = vmatprep.subr.bf16.mxu0 0
    %6173 = vmatpush1.bf16.msra.mxu0 0
    %6174 = vmatprep.subr.bf16.mxu0 0
    %6175 = vmatpush1.bf16.msra.mxu0 0
    %6176 = vmatprep.subr.bf16.mxu0 0
    %6177 = vmatpush1.bf16.msra.mxu0 0
    %6178 = vmatprep.subr.bf16.mxu0 0
    %6179 = vmatpush1.bf16.msra.mxu0 0
    %6180 = vmatprep.subr.bf16.mxu0 0
    %6181 = vmatpush1.bf16.msra.mxu0 0
    %6182 = vmatprep.subr.bf16.mxu0 0
    %6183 = vmatpush1.bf16.msra.mxu0 0
    %6184 = vmatprep.subr.bf16.mxu0 0
    %6185 = vmatpush1.bf16.msra.mxu0 0
    %6186 = vmatprep.subr.bf16.mxu0 0
    %6187 = vmatpush1.bf16.msra.mxu0 0
    %6188 = vmatprep.subr.bf16.mxu0 0
    %6189 = vmatpush1.bf16.msra.mxu0 0
    %6190 = vmatprep.subr.bf16.mxu0 0
    %6191 = vmatpush1.bf16.msra.mxu0 0
    %6192 = vmatprep.subr.bf16.mxu0 0
    %6193 = vmatpush1.bf16.msra.mxu0 0
    %6194 = vmatprep.subr.bf16.mxu0 0
    %6195 = vmatpush1.bf16.msra.mxu0 0
    %6196 = vmatprep.subr.bf16.mxu0 0
    %6197 = vmatpush1.bf16.msra.mxu0 0
    %6198 = vmatprep.subr.bf16.mxu0 0
    %6199 = vmatpush1.bf16.msra.mxu0 0
    %6200 = vmatprep.subr.bf16.mxu0 0
    %6201 = vmatpush1.bf16.msra.mxu0 0
    %6202 = vmatprep.mubr.bf16.mxu0 0
    %6203 = vmatmul.mubr.bf16.gmra.mrb[0].mxu0 %v6165
    %v6204 = vpop.f32.mrb[0].mxu0
    %v6205 = vadd.f32 0.0, %v6204
    %v6206 = vpop.f32.mrb[0].mxu0
    %v6207 = vpop.f32.mrb[0].mxu0
    %v6208 = vadd.f32 0.0, %v6207
    %v6209 = vpop.f32.mrb[0].mxu0
    %6210 = vdwg.mxu0
    %v6211 = vadd.f32 %v6151, %v6205
    %v6212 = vadd.f32 %v6152, %v6208
    %s6213 = scalar_lea.vmem %s4, 64
    %v6214 = vld [vmem:[%s6213] sm:$0xf]
    %v6215 = vld [vmem:[%s6213 + $0x4] sm:$0xf]
    %v6218 = vunpack.c.l.b16 %v6214
    %v6219 = vunpack.c.l.b16 %v6215
    %v6220 = vpack.c.b16 %v6219, %v6218
    %v6222 = vsel %vm5762, %v6220, 0
    %v6225 = vsel %vm46, %v5735, 0
    %6227 = vmatprep.subr.bf16.mxu0 0
    %6228 = vmatpush1.bf16.msra.mxu0 %v6225
    %6229 = vmatprep.subr.bf16.mxu0 0
    %6230 = vmatpush1.bf16.msra.mxu0 0
    %6231 = vmatprep.subr.bf16.mxu0 0
    %6232 = vmatpush1.bf16.msra.mxu0 0
    %6233 = vmatprep.subr.bf16.mxu0 0
    %6234 = vmatpush1.bf16.msra.mxu0 0
    %6235 = vmatprep.subr.bf16.mxu0 0
    %6236 = vmatpush1.bf16.msra.mxu0 0
    %6237 = vmatprep.subr.bf16.mxu0 0
    %6238 = vmatpush1.bf16.msra.mxu0 0
    %6239 = vmatprep.subr.bf16.mxu0 0
    %6240 = vmatpush1.bf16.msra.mxu0 0
    %6241 = vmatprep.subr.bf16.mxu0 0
    %6242 = vmatpush1.bf16.msra.mxu0 0
    %6243 = vmatprep.subr.bf16.mxu0 0
    %6244 = vmatpush1.bf16.msra.mxu0 0
    %6245 = vmatprep.subr.bf16.mxu0 0
    %6246 = vmatpush1.bf16.msra.mxu0 0
    %6247 = vmatprep.subr.bf16.mxu0 0
    %6248 = vmatpush1.bf16.msra.mxu0 0
    %6249 = vmatprep.subr.bf16.mxu0 0
    %6250 = vmatpush1.bf16.msra.mxu0 0
    %6251 = vmatprep.subr.bf16.mxu0 0
    %6252 = vmatpush1.bf16.msra.mxu0 0
    %6253 = vmatprep.subr.bf16.mxu0 0
    %6254 = vmatpush1.bf16.msra.mxu0 0
    %6255 = vmatprep.subr.bf16.mxu0 0
    %6256 = vmatpush1.bf16.msra.mxu0 0
    %6257 = vmatprep.subr.bf16.mxu0 0
    %6258 = vmatpush1.bf16.msra.mxu0 0
    %6259 = vmatprep.mubr.bf16.mxu0 0
    %6260 = vmatmul.mubr.bf16.gmra.mrb[0].mxu0 %v6222
    %v6261 = vpop.f32.mrb[0].mxu0
    %v6262 = vadd.f32 0.0, %v6261
    %v6263 = vpop.f32.mrb[0].mxu0
    %v6264 = vpop.f32.mrb[0].mxu0
    %v6265 = vadd.f32 0.0, %v6264
    %v6266 = vpop.f32.mrb[0].mxu0
    %6267 = vdwg.mxu0
    %v6268 = vadd.f32 %v6211, %v6262
    %v6269 = vadd.f32 %v6212, %v6265
    %s6270 = scalar_lea.vmem %s4, 72
    %v6271 = vld [vmem:[%s6270] sm:$0xf]
    %v6272 = vld [vmem:[%s6270 + $0x4] sm:$0xf]
    %v6275 = vunpack.c.l.b16 %v6271
    %v6276 = vunpack.c.l.b16 %v6272
    %v6277 = vpack.c.b16 %v6276, %v6275
    %6279 = vrot.lane.b32.xlu0 %v5735, 64
    %v6280 = vpop.permute.xlu0 %6279
    %v6282 = vsel %vm5762, %v6277, 0
    %v6285 = vsel %vm46, %v6280, 0
    %6287 = vmatprep.subr.bf16.mxu0 0
    %6288 = vmatpush1.bf16.msra.mxu0 %v6285
    %6289 = vmatprep.subr.bf16.mxu0 0
    %6290 = vmatpush1.bf16.msra.mxu0 0
    %6291 = vmatprep.subr.bf16.mxu0 0
    %6292 = vmatpush1.bf16.msra.mxu0 0
    %6293 = vmatprep.subr.bf16.mxu0 0
    %6294 = vmatpush1.bf16.msra.mxu0 0
    %6295 = vmatprep.subr.bf16.mxu0 0
    %6296 = vmatpush1.bf16.msra.mxu0 0
    %6297 = vmatprep.subr.bf16.mxu0 0
    %6298 = vmatpush1.bf16.msra.mxu0 0
    %6299 = vmatprep.subr.bf16.mxu0 0
    %6300 = vmatpush1.bf16.msra.mxu0 0
    %6301 = vmatprep.subr.bf16.mxu0 0
    %6302 = vmatpush1.bf16.msra.mxu0 0
    %6303 = vmatprep.subr.bf16.mxu0 0
    %6304 = vmatpush1.bf16.msra.mxu0 0
    %6305 = vmatprep.subr.bf16.mxu0 0
    %6306 = vmatpush1.bf16.msra.mxu0 0
    %6307 = vmatprep.subr.bf16.mxu0 0
    %6308 = vmatpush1.bf16.msra.mxu0 0
    %6309 = vmatprep.subr.bf16.mxu0 0
    %6310 = vmatpush1.bf16.msra.mxu0 0
    %6311 = vmatprep.subr.bf16.mxu0 0
    %6312 = vmatpush1.bf16.msra.mxu0 0
    %6313 = vmatprep.subr.bf16.mxu0 0
    %6314 = vmatpush1.bf16.msra.mxu0 0
    %6315 = vmatprep.subr.bf16.mxu0 0
    %6316 = vmatpush1.bf16.msra.mxu0 0
    %6317 = vmatprep.subr.bf16.mxu0 0
    %6318 = vmatpush1.bf16.msra.mxu0 0
    %6319 = vmatprep.mubr.bf16.mxu0 0
    %6320 = vmatmul.mubr.bf16.gmra.mrb[0].mxu0 %v6282
    %v6321 = vpop.f32.mrb[0].mxu0
    %v6322 = vadd.f32 0.0, %v6321
    %v6323 = vpop.f32.mrb[0].mxu0
    %v6324 = vpop.f32.mrb[0].mxu0
    %v6325 = vadd.f32 0.0, %v6324
    %v6326 = vpop.f32.mrb[0].mxu0
    %6327 = vdwg.mxu0
    %v6328 = vadd.f32 %v6268, %v6322
    %v6329 = vadd.f32 %v6269, %v6325
    %s6330 = scalar_lea.vmem %s4, 80
    %v6331 = vld [vmem:[%s6330] sm:$0xf]
    %v6332 = vld [vmem:[%s6330 + $0x4] sm:$0xf]
    %v6335 = vunpack.c.l.b16 %v6331
    %v6336 = vunpack.c.l.b16 %v6332
    %v6337 = vpack.c.b16 %v6336, %v6335
    %v6339 = vsel %vm5762, %v6337, 0
    %v6342 = vsel %vm46, %v5736, 0
    %6344 = vmatprep.subr.bf16.mxu0 0
    %6345 = vmatpush1.bf16.msra.mxu0 %v6342
    %6346 = vmatprep.subr.bf16.mxu0 0
    %6347 = vmatpush1.bf16.msra.mxu0 0
    %6348 = vmatprep.subr.bf16.mxu0 0
    %6349 = vmatpush1.bf16.msra.mxu0 0
    %6350 = vmatprep.subr.bf16.mxu0 0
    %6351 = vmatpush1.bf16.msra.mxu0 0
    %6352 = vmatprep.subr.bf16.mxu0 0
    %6353 = vmatpush1.bf16.msra.mxu0 0
    %6354 = vmatprep.subr.bf16.mxu0 0
    %6355 = vmatpush1.bf16.msra.mxu0 0
    %6356 = vmatprep.subr.bf16.mxu0 0
    %6357 = vmatpush1.bf16.msra.mxu0 0
    %6358 = vmatprep.subr.bf16.mxu0 0
    %6359 = vmatpush1.bf16.msra.mxu0 0
    %6360 = vmatprep.subr.bf16.mxu0 0
    %6361 = vmatpush1.bf16.msra.mxu0 0
    %6362 = vmatprep.subr.bf16.mxu0 0
    %6363 = vmatpush1.bf16.msra.mxu0 0
    %6364 = vmatprep.subr.bf16.mxu0 0
    %6365 = vmatpush1.bf16.msra.mxu0 0
    %6366 = vmatprep.subr.bf16.mxu0 0
    %6367 = vmatpush1.bf16.msra.mxu0 0
    %6368 = vmatprep.subr.bf16.mxu0 0
    %6369 = vmatpush1.bf16.msra.mxu0 0
    %6370 = vmatprep.subr.bf16.mxu0 0
    %6371 = vmatpush1.bf16.msra.mxu0 0
    %6372 = vmatprep.subr.bf16.mxu0 0
    %6373 = vmatpush1.bf16.msra.mxu0 0
    %6374 = vmatprep.subr.bf16.mxu0 0
    %6375 = vmatpush1.bf16.msra.mxu0 0
    %6376 = vmatprep.mubr.bf16.mxu0 0
    %6377 = vmatmul.mubr.bf16.gmra.mrb[0].mxu0 %v6339
    %v6378 = vpop.f32.mrb[0].mxu0
    %v6379 = vadd.f32 0.0, %v6378
    %v6380 = vpop.f32.mrb[0].mxu0
    %v6381 = vpop.f32.mrb[0].mxu0
    %v6382 = vadd.f32 0.0, %v6381
    %v6383 = vpop.f32.mrb[0].mxu0
    %6384 = vdwg.mxu0
    %v6385 = vadd.f32 %v6328, %v6379
    %v6386 = vadd.f32 %v6329, %v6382
    %s6387 = scalar_lea.vmem %s4, 88
    %v6388 = vld [vmem:[%s6387] sm:$0xf]
    %v6389 = vld [vmem:[%s6387 + $0x4] sm:$0xf]
    %v6392 = vunpack.c.l.b16 %v6388
    %v6393 = vunpack.c.l.b16 %v6389
    %v6394 = vpack.c.b16 %v6393, %v6392
    %6396 = vrot.lane.b32.xlu0 %v5736, 64
    %v6397 = vpop.permute.xlu0 %6396
    %v6399 = vsel %vm5762, %v6394, 0
    %v6402 = vsel %vm46, %v6397, 0
    %6404 = vmatprep.subr.bf16.mxu0 0
    %6405 = vmatpush1.bf16.msra.mxu0 %v6402
    %6406 = vmatprep.subr.bf16.mxu0 0
    %6407 = vmatpush1.bf16.msra.mxu0 0
    %6408 = vmatprep.subr.bf16.mxu0 0
    %6409 = vmatpush1.bf16.msra.mxu0 0
    %6410 = vmatprep.subr.bf16.mxu0 0
    %6411 = vmatpush1.bf16.msra.mxu0 0
    %6412 = vmatprep.subr.bf16.mxu0 0
    %6413 = vmatpush1.bf16.msra.mxu0 0
    %6414 = vmatprep.subr.bf16.mxu0 0
    %6415 = vmatpush1.bf16.msra.mxu0 0
    %6416 = vmatprep.subr.bf16.mxu0 0
    %6417 = vmatpush1.bf16.msra.mxu0 0
    %6418 = vmatprep.subr.bf16.mxu0 0
    %6419 = vmatpush1.bf16.msra.mxu0 0
    %6420 = vmatprep.subr.bf16.mxu0 0
    %6421 = vmatpush1.bf16.msra.mxu0 0
    %6422 = vmatprep.subr.bf16.mxu0 0
    %6423 = vmatpush1.bf16.msra.mxu0 0
    %6424 = vmatprep.subr.bf16.mxu0 0
    %6425 = vmatpush1.bf16.msra.mxu0 0
    %6426 = vmatprep.subr.bf16.mxu0 0
    %6427 = vmatpush1.bf16.msra.mxu0 0
    %6428 = vmatprep.subr.bf16.mxu0 0
    %6429 = vmatpush1.bf16.msra.mxu0 0
    %6430 = vmatprep.subr.bf16.mxu0 0
    %6431 = vmatpush1.bf16.msra.mxu0 0
    %6432 = vmatprep.subr.bf16.mxu0 0
    %6433 = vmatpush1.bf16.msra.mxu0 0
    %6434 = vmatprep.subr.bf16.mxu0 0
    %6435 = vmatpush1.bf16.msra.mxu0 0
    %6436 = vmatprep.mubr.bf16.mxu0 0
    %6437 = vmatmul.mubr.bf16.gmra.mrb[0].mxu0 %v6399
    %v6438 = vpop.f32.mrb[0].mxu0
    %v6439 = vadd.f32 0.0, %v6438
    %v6440 = vpop.f32.mrb[0].mxu0
    %v6441 = vpop.f32.mrb[0].mxu0
    %v6442 = vadd.f32 0.0, %v6441
    %v6443 = vpop.f32.mrb[0].mxu0
    %6444 = vdwg.mxu0
    %v6445 = vadd.f32 %v6385, %v6439
    %v6446 = vadd.f32 %v6386, %v6442
    %s6447 = scalar_lea.vmem %s4, 96
    %v6448 = vld [vmem:[%s6447] sm:$0xf]
    %v6449 = vld [vmem:[%s6447 + $0x4] sm:$0xf]
    %v6452 = vunpack.c.l.b16 %v6448
    %v6453 = vunpack.c.l.b16 %v6449
    %v6454 = vpack.c.b16 %v6453, %v6452
    %v6456 = vsel %vm5762, %v6454, 0
    %v6459 = vsel %vm46, %v5737, 0
    %6461 = vmatprep.subr.bf16.mxu0 0
    %6462 = vmatpush1.bf16.msra.mxu0 %v6459
    %6463 = vmatprep.subr.bf16.mxu0 0
    %6464 = vmatpush1.bf16.msra.mxu0 0
    %6465 = vmatprep.subr.bf16.mxu0 0
    %6466 = vmatpush1.bf16.msra.mxu0 0
    %6467 = vmatprep.subr.bf16.mxu0 0
    %6468 = vmatpush1.bf16.msra.mxu0 0
    %6469 = vmatprep.subr.bf16.mxu0 0
    %6470 = vmatpush1.bf16.msra.mxu0 0
    %6471 = vmatprep.subr.bf16.mxu0 0
    %6472 = vmatpush1.bf16.msra.mxu0 0
    %6473 = vmatprep.subr.bf16.mxu0 0
    %6474 = vmatpush1.bf16.msra.mxu0 0
    %6475 = vmatprep.subr.bf16.mxu0 0
    %6476 = vmatpush1.bf16.msra.mxu0 0
    %6477 = vmatprep.subr.bf16.mxu0 0
    %6478 = vmatpush1.bf16.msra.mxu0 0
    %6479 = vmatprep.subr.bf16.mxu0 0
    %6480 = vmatpush1.bf16.msra.mxu0 0
    %6481 = vmatprep.subr.bf16.mxu0 0
    %6482 = vmatpush1.bf16.msra.mxu0 0
    %6483 = vmatprep.subr.bf16.mxu0 0
    %6484 = vmatpush1.bf16.msra.mxu0 0
    %6485 = vmatprep.subr.bf16.mxu0 0
    %6486 = vmatpush1.bf16.msra.mxu0 0
    %6487 = vmatprep.subr.bf16.mxu0 0
    %6488 = vmatpush1.bf16.msra.mxu0 0
    %6489 = vmatprep.subr.bf16.mxu0 0
    %6490 = vmatpush1.bf16.msra.mxu0 0
    %6491 = vmatprep.subr.bf16.mxu0 0
    %6492 = vmatpush1.bf16.msra.mxu0 0
    %6493 = vmatprep.mubr.bf16.mxu0 0
    %6494 = vmatmul.mubr.bf16.gmra.mrb[0].mxu0 %v6456
    %v6495 = vpop.f32.mrb[0].mxu0
    %v6496 = vadd.f32 0.0, %v6495
    %v6497 = vpop.f32.mrb[0].mxu0
    %v6498 = vpop.f32.mrb[0].mxu0
    %v6499 = vadd.f32 0.0, %v6498
    %v6500 = vpop.f32.mrb[0].mxu0
    %6501 = vdwg.mxu0
    %v6502 = vadd.f32 %v6445, %v6496
    %v6503 = vadd.f32 %v6446, %v6499
    %s6504 = scalar_lea.vmem %s4, 104
    %v6505 = vld [vmem:[%s6504] sm:$0xf]
    %v6506 = vld [vmem:[%s6504 + $0x4] sm:$0xf]
    %v6509 = vunpack.c.l.b16 %v6505
    %v6510 = vunpack.c.l.b16 %v6506
    %v6511 = vpack.c.b16 %v6510, %v6509
    %6513 = vrot.lane.b32.xlu0 %v5737, 64
    %v6514 = vpop.permute.xlu0 %6513
    %v6516 = vsel %vm5762, %v6511, 0
    %v6519 = vsel %vm46, %v6514, 0
    %6521 = vmatprep.subr.bf16.mxu0 0
    %6522 = vmatpush1.bf16.msra.mxu0 %v6519
    %6523 = vmatprep.subr.bf16.mxu0 0
    %6524 = vmatpush1.bf16.msra.mxu0 0
    %6525 = vmatprep.subr.bf16.mxu0 0
    %6526 = vmatpush1.bf16.msra.mxu0 0
    %6527 = vmatprep.subr.bf16.mxu0 0
    %6528 = vmatpush1.bf16.msra.mxu0 0
    %6529 = vmatprep.subr.bf16.mxu0 0
    %6530 = vmatpush1.bf16.msra.mxu0 0
    %6531 = vmatprep.subr.bf16.mxu0 0
    %6532 = vmatpush1.bf16.msra.mxu0 0
    %6533 = vmatprep.subr.bf16.mxu0 0
    %6534 = vmatpush1.bf16.msra.mxu0 0
    %6535 = vmatprep.subr.bf16.mxu0 0
    %6536 = vmatpush1.bf16.msra.mxu0 0
    %6537 = vmatprep.subr.bf16.mxu0 0
    %6538 = vmatpush1.bf16.msra.mxu0 0
    %6539 = vmatprep.subr.bf16.mxu0 0
    %6540 = vmatpush1.bf16.msra.mxu0 0
    %6541 = vmatprep.subr.bf16.mxu0 0
    %6542 = vmatpush1.bf16.msra.mxu0 0
    %6543 = vmatprep.subr.bf16.mxu0 0
    %6544 = vmatpush1.bf16.msra.mxu0 0
    %6545 = vmatprep.subr.bf16.mxu0 0
    %6546 = vmatpush1.bf16.msra.mxu0 0
    %6547 = vmatprep.subr.bf16.mxu0 0
    %6548 = vmatpush1.bf16.msra.mxu0 0
    %6549 = vmatprep.subr.bf16.mxu0 0
    %6550 = vmatpush1.bf16.msra.mxu0 0
    %6551 = vmatprep.subr.bf16.mxu0 0
    %6552 = vmatpush1.bf16.msra.mxu0 0
    %6553 = vmatprep.mubr.bf16.mxu0 0
    %6554 = vmatmul.mubr.bf16.gmra.mrb[0].mxu0 %v6516
    %v6555 = vpop.f32.mrb[0].mxu0
    %v6556 = vadd.f32 0.0, %v6555
    %v6557 = vpop.f32.mrb[0].mxu0
    %v6558 = vpop.f32.mrb[0].mxu0
    %v6559 = vadd.f32 0.0, %v6558
    %v6560 = vpop.f32.mrb[0].mxu0
    %6561 = vdwg.mxu0
    %v6562 = vadd.f32 %v6502, %v6556
    %v6563 = vadd.f32 %v6503, %v6559
    %s6564 = scalar_lea.vmem %s4, 112
    %v6565 = vld [vmem:[%s6564] sm:$0xf]
    %v6566 = vld [vmem:[%s6564 + $0x4] sm:$0xf]
    %v6569 = vunpack.c.l.b16 %v6565
    %v6570 = vunpack.c.l.b16 %v6566
    %v6571 = vpack.c.b16 %v6570, %v6569
    %v6573 = vsel %vm5762, %v6571, 0
    %v6576 = vsel %vm46, %v5738, 0
    %6578 = vmatprep.subr.bf16.mxu0 0
    %6579 = vmatpush1.bf16.msra.mxu0 %v6576
    %6580 = vmatprep.subr.bf16.mxu0 0
    %6581 = vmatpush1.bf16.msra.mxu0 0
    %6582 = vmatprep.subr.bf16.mxu0 0
    %6583 = vmatpush1.bf16.msra.mxu0 0
    %6584 = vmatprep.subr.bf16.mxu0 0
    %6585 = vmatpush1.bf16.msra.mxu0 0
    %6586 = vmatprep.subr.bf16.mxu0 0
    %6587 = vmatpush1.bf16.msra.mxu0 0
    %6588 = vmatprep.subr.bf16.mxu0 0
    %6589 = vmatpush1.bf16.msra.mxu0 0
    %6590 = vmatprep.subr.bf16.mxu0 0
    %6591 = vmatpush1.bf16.msra.mxu0 0
    %6592 = vmatprep.subr.bf16.mxu0 0
    %6593 = vmatpush1.bf16.msra.mxu0 0
    %6594 = vmatprep.subr.bf16.mxu0 0
    %6595 = vmatpush1.bf16.msra.mxu0 0
    %6596 = vmatprep.subr.bf16.mxu0 0
    %6597 = vmatpush1.bf16.msra.mxu0 0
    %6598 = vmatprep.subr.bf16.mxu0 0
    %6599 = vmatpush1.bf16.msra.mxu0 0
    %6600 = vmatprep.subr.bf16.mxu0 0
    %6601 = vmatpush1.bf16.msra.mxu0 0
    %6602 = vmatprep.subr.bf16.mxu0 0
    %6603 = vmatpush1.bf16.msra.mxu0 0
    %6604 = vmatprep.subr.bf16.mxu0 0
    %6605 = vmatpush1.bf16.msra.mxu0 0
    %6606 = vmatprep.subr.bf16.mxu0 0
    %6607 = vmatpush1.bf16.msra.mxu0 0
    %6608 = vmatprep.subr.bf16.mxu0 0
    %6609 = vmatpush1.bf16.msra.mxu0 0
    %6610 = vmatprep.mubr.bf16.mxu0 0
    %6611 = vmatmul.mubr.bf16.gmra.mrb[0].mxu0 %v6573
    %v6612 = vpop.f32.mrb[0].mxu0
    %v6613 = vadd.f32 0.0, %v6612
    %v6614 = vpop.f32.mrb[0].mxu0
    %v6615 = vpop.f32.mrb[0].mxu0
    %v6616 = vadd.f32 0.0, %v6615
    %v6617 = vpop.f32.mrb[0].mxu0
    %6618 = vdwg.mxu0
    %v6619 = vadd.f32 %v6562, %v6613
    %v6620 = vadd.f32 %v6563, %v6616
    %s6621 = scalar_lea.vmem %s4, 120
    %v6622 = vld [vmem:[%s6621] sm:$0xf]
    %v6623 = vld [vmem:[%s6621 + $0x4] sm:$0xf]
    %v6626 = vunpack.c.l.b16 %v6622
    %v6627 = vunpack.c.l.b16 %v6623
    %v6628 = vpack.c.b16 %v6627, %v6626
    %6630 = vrot.lane.b32.xlu0 %v5738, 64
    %v6631 = vpop.permute.xlu0 %6630
    %v6633 = vsel %vm5762, %v6628, 0
    %v6636 = vsel %vm46, %v6631, 0
    %6638 = vmatprep.subr.bf16.mxu0 0
    %6639 = vmatpush1.bf16.msra.mxu0 %v6636
    %6640 = vmatprep.subr.bf16.mxu0 0
    %6641 = vmatpush1.bf16.msra.mxu0 0
    %6642 = vmatprep.subr.bf16.mxu0 0
    %6643 = vmatpush1.bf16.msra.mxu0 0
    %6644 = vmatprep.subr.bf16.mxu0 0
    %6645 = vmatpush1.bf16.msra.mxu0 0
    %6646 = vmatprep.subr.bf16.mxu0 0
    %6647 = vmatpush1.bf16.msra.mxu0 0
    %6648 = vmatprep.subr.bf16.mxu0 0
    %6649 = vmatpush1.bf16.msra.mxu0 0
    %6650 = vmatprep.subr.bf16.mxu0 0
    %6651 = vmatpush1.bf16.msra.mxu0 0
    %6652 = vmatprep.subr.bf16.mxu0 0
    %6653 = vmatpush1.bf16.msra.mxu0 0
    %6654 = vmatprep.subr.bf16.mxu0 0
    %6655 = vmatpush1.bf16.msra.mxu0 0
    %6656 = vmatprep.subr.bf16.mxu0 0
    %6657 = vmatpush1.bf16.msra.mxu0 0
    %6658 = vmatprep.subr.bf16.mxu0 0
    %6659 = vmatpush1.bf16.msra.mxu0 0
    %6660 = vmatprep.subr.bf16.mxu0 0
    %6661 = vmatpush1.bf16.msra.mxu0 0
    %6662 = vmatprep.subr.bf16.mxu0 0
    %6663 = vmatpush1.bf16.msra.mxu0 0
    %6664 = vmatprep.subr.bf16.mxu0 0
    %6665 = vmatpush1.bf16.msra.mxu0 0
    %6666 = vmatprep.subr.bf16.mxu0 0
    %6667 = vmatpush1.bf16.msra.mxu0 0
    %6668 = vmatprep.subr.bf16.mxu0 0
    %6669 = vmatpush1.bf16.msra.mxu0 0
    %6670 = vmatprep.mubr.bf16.mxu0 0
    %6671 = vmatmul.mubr.bf16.gmra.mrb[0].mxu0 %v6633
    %v6672 = vpop.f32.mrb[0].mxu0
    %v6673 = vadd.f32 0.0, %v6672
    %v6674 = vpop.f32.mrb[0].mxu0
    %v6675 = vpop.f32.mrb[0].mxu0
    %v6676 = vadd.f32 0.0, %v6675
    %v6677 = vpop.f32.mrb[0].mxu0
    %6678 = vdwg.mxu0
    %v6679 = vadd.f32 %v6619, %v6673
    %v6680 = vadd.f32 %v6620, %v6676
    %s6681 = scalar_lea.vmem %s4, 128
    %v6682 = vld [vmem:[%s6681] sm:$0xf]
    %v6683 = vld [vmem:[%s6681 + $0x4] sm:$0xf]
    %v6686 = vunpack.c.l.b16 %v6682
    %v6687 = vunpack.c.l.b16 %v6683
    %v6688 = vpack.c.b16 %v6687, %v6686
    %v6690 = vsel %vm5762, %v6688, 0
    %v6693 = vsel %vm46, %v5739, 0
    %6695 = vmatprep.subr.bf16.mxu0 0
    %6696 = vmatpush1.bf16.msra.mxu0 %v6693
    %6697 = vmatprep.subr.bf16.mxu0 0
    %6698 = vmatpush1.bf16.msra.mxu0 0
    %6699 = vmatprep.subr.bf16.mxu0 0
    %6700 = vmatpush1.bf16.msra.mxu0 0
    %6701 = vmatprep.subr.bf16.mxu0 0
    %6702 = vmatpush1.bf16.msra.mxu0 0
    %6703 = vmatprep.subr.bf16.mxu0 0
    %6704 = vmatpush1.bf16.msra.mxu0 0
    %6705 = vmatprep.subr.bf16.mxu0 0
    %6706 = vmatpush1.bf16.msra.mxu0 0
    %6707 = vmatprep.subr.bf16.mxu0 0
    %6708 = vmatpush1.bf16.msra.mxu0 0
    %6709 = vmatprep.subr.bf16.mxu0 0
    %6710 = vmatpush1.bf16.msra.mxu0 0
    %6711 = vmatprep.subr.bf16.mxu0 0
    %6712 = vmatpush1.bf16.msra.mxu0 0
    %6713 = vmatprep.subr.bf16.mxu0 0
    %6714 = vmatpush1.bf16.msra.mxu0 0
    %6715 = vmatprep.subr.bf16.mxu0 0
    %6716 = vmatpush1.bf16.msra.mxu0 0
    %6717 = vmatprep.subr.bf16.mxu0 0
    %6718 = vmatpush1.bf16.msra.mxu0 0
    %6719 = vmatprep.subr.bf16.mxu0 0
    %6720 = vmatpush1.bf16.msra.mxu0 0
    %6721 = vmatprep.subr.bf16.mxu0 0
    %6722 = vmatpush1.bf16.msra.mxu0 0
    %6723 = vmatprep.subr.bf16.mxu0 0
    %6724 = vmatpush1.bf16.msra.mxu0 0
    %6725 = vmatprep.subr.bf16.mxu0 0
    %6726 = vmatpush1.bf16.msra.mxu0 0
    %6727 = vmatprep.mubr.bf16.mxu0 0
    %6728 = vmatmul.mubr.bf16.gmra.mrb[0].mxu0 %v6690
    %v6729 = vpop.f32.mrb[0].mxu0
    %v6730 = vadd.f32 0.0, %v6729
    %v6731 = vpop.f32.mrb[0].mxu0
    %v6732 = vpop.f32.mrb[0].mxu0
    %v6733 = vadd.f32 0.0, %v6732
    %v6734 = vpop.f32.mrb[0].mxu0
    %6735 = vdwg.mxu0
    %v6736 = vadd.f32 %v6679, %v6730
    %v6737 = vadd.f32 %v6680, %v6733
    %s6738 = scalar_lea.vmem %s4, 136
    %v6739 = vld [vmem:[%s6738] sm:$0xf]
    %v6740 = vld [vmem:[%s6738 + $0x4] sm:$0xf]
    %v6743 = vunpack.c.l.b16 %v6739
    %v6744 = vunpack.c.l.b16 %v6740
    %v6745 = vpack.c.b16 %v6744, %v6743
    %6747 = vrot.lane.b32.xlu0 %v5739, 64
    %v6748 = vpop.permute.xlu0 %6747
    %v6750 = vsel %vm5762, %v6745, 0
    %v6753 = vsel %vm46, %v6748, 0
    %6755 = vmatprep.subr.bf16.mxu0 0
    %6756 = vmatpush1.bf16.msra.mxu0 %v6753
    %6757 = vmatprep.subr.bf16.mxu0 0
    %6758 = vmatpush1.bf16.msra.mxu0 0
    %6759 = vmatprep.subr.bf16.mxu0 0
    %6760 = vmatpush1.bf16.msra.mxu0 0
    %6761 = vmatprep.subr.bf16.mxu0 0
    %6762 = vmatpush1.bf16.msra.mxu0 0
    %6763 = vmatprep.subr.bf16.mxu0 0
    %6764 = vmatpush1.bf16.msra.mxu0 0
    %6765 = vmatprep.subr.bf16.mxu0 0
    %6766 = vmatpush1.bf16.msra.mxu0 0
    %6767 = vmatprep.subr.bf16.mxu0 0
    %6768 = vmatpush1.bf16.msra.mxu0 0
    %6769 = vmatprep.subr.bf16.mxu0 0
    %6770 = vmatpush1.bf16.msra.mxu0 0
    %6771 = vmatprep.subr.bf16.mxu0 0
    %6772 = vmatpush1.bf16.msra.mxu0 0
    %6773 = vmatprep.subr.bf16.mxu0 0
    %6774 = vmatpush1.bf16.msra.mxu0 0
    %6775 = vmatprep.subr.bf16.mxu0 0
    %6776 = vmatpush1.bf16.msra.mxu0 0
    %6777 = vmatprep.subr.bf16.mxu0 0
    %6778 = vmatpush1.bf16.msra.mxu0 0
    %6779 = vmatprep.subr.bf16.mxu0 0
    %6780 = vmatpush1.bf16.msra.mxu0 0
    %6781 = vmatprep.subr.bf16.mxu0 0
    %6782 = vmatpush1.bf16.msra.mxu0 0
    %6783 = vmatprep.subr.bf16.mxu0 0
    %6784 = vmatpush1.bf16.msra.mxu0 0
    %6785 = vmatprep.subr.bf16.mxu0 0
    %6786 = vmatpush1.bf16.msra.mxu0 0
    %6787 = vmatprep.mubr.bf16.mxu0 0
    %6788 = vmatmul.mubr.bf16.gmra.mrb[0].mxu0 %v6750
    %v6789 = vpop.f32.mrb[0].mxu0
    %v6790 = vadd.f32 0.0, %v6789
    %v6791 = vpop.f32.mrb[0].mxu0
    %v6792 = vpop.f32.mrb[0].mxu0
    %v6793 = vadd.f32 0.0, %v6792
    %v6794 = vpop.f32.mrb[0].mxu0
    %6795 = vdwg.mxu0
    %v6796 = vadd.f32 %v6736, %v6790
    %v6797 = vadd.f32 %v6737, %v6793
    %s6798 = scalar_lea.vmem %s4, 144
    %v6799 = vld [vmem:[%s6798] sm:$0xf]
    %v6800 = vld [vmem:[%s6798 + $0x4] sm:$0xf]
    %v6803 = vunpack.c.l.b16 %v6799
    %v6804 = vunpack.c.l.b16 %v6800
    %v6805 = vpack.c.b16 %v6804, %v6803
    %v6807 = vsel %vm5762, %v6805, 0
    %v6810 = vsel %vm46, %v5740, 0
    %6812 = vmatprep.subr.bf16.mxu0 0
    %6813 = vmatpush1.bf16.msra.mxu0 %v6810
    %6814 = vmatprep.subr.bf16.mxu0 0
    %6815 = vmatpush1.bf16.msra.mxu0 0
    %6816 = vmatprep.subr.bf16.mxu0 0
    %6817 = vmatpush1.bf16.msra.mxu0 0
    %6818 = vmatprep.subr.bf16.mxu0 0
    %6819 = vmatpush1.bf16.msra.mxu0 0
    %6820 = vmatprep.subr.bf16.mxu0 0
    %6821 = vmatpush1.bf16.msra.mxu0 0
    %6822 = vmatprep.subr.bf16.mxu0 0
    %6823 = vmatpush1.bf16.msra.mxu0 0
    %6824 = vmatprep.subr.bf16.mxu0 0
    %6825 = vmatpush1.bf16.msra.mxu0 0
    %6826 = vmatprep.subr.bf16.mxu0 0
    %6827 = vmatpush1.bf16.msra.mxu0 0
    %6828 = vmatprep.subr.bf16.mxu0 0
    %6829 = vmatpush1.bf16.msra.mxu0 0
    %6830 = vmatprep.subr.bf16.mxu0 0
    %6831 = vmatpush1.bf16.msra.mxu0 0
    %6832 = vmatprep.subr.bf16.mxu0 0
    %6833 = vmatpush1.bf16.msra.mxu0 0
    %6834 = vmatprep.subr.bf16.mxu0 0
    %6835 = vmatpush1.bf16.msra.mxu0 0
    %6836 = vmatprep.subr.bf16.mxu0 0
    %6837 = vmatpush1.bf16.msra.mxu0 0
    %6838 = vmatprep.subr.bf16.mxu0 0
    %6839 = vmatpush1.bf16.msra.mxu0 0
    %6840 = vmatprep.subr.bf16.mxu0 0
    %6841 = vmatpush1.bf16.msra.mxu0 0
    %6842 = vmatprep.subr.bf16.mxu0 0
    %6843 = vmatpush1.bf16.msra.mxu0 0
    %6844 = vmatprep.mubr.bf16.mxu0 0
    %6845 = vmatmul.mubr.bf16.gmra.mrb[0].mxu0 %v6807
    %v6846 = vpop.f32.mrb[0].mxu0
    %v6847 = vadd.f32 0.0, %v6846
    %v6848 = vpop.f32.mrb[0].mxu0
    %v6849 = vpop.f32.mrb[0].mxu0
    %v6850 = vadd.f32 0.0, %v6849
    %v6851 = vpop.f32.mrb[0].mxu0
    %6852 = vdwg.mxu0
    %v6853 = vadd.f32 %v6796, %v6847
    %v6854 = vadd.f32 %v6797, %v6850
    %s6855 = scalar_lea.vmem %s4, 152
    %v6856 = vld [vmem:[%s6855] sm:$0xf]
    %v6857 = vld [vmem:[%s6855 + $0x4] sm:$0xf]
    %v6860 = vunpack.c.l.b16 %v6856
    %v6861 = vunpack.c.l.b16 %v6857
    %v6862 = vpack.c.b16 %v6861, %v6860
    %6864 = vrot.lane.b32.xlu0 %v5740, 64
    %v6865 = vpop.permute.xlu0 %6864
    %v6867 = vsel %vm5762, %v6862, 0
    %v6870 = vsel %vm46, %v6865, 0
    %6872 = vmatprep.subr.bf16.mxu0 0
    %6873 = vmatpush1.bf16.msra.mxu0 %v6870
    %6874 = vmatprep.subr.bf16.mxu0 0
    %6875 = vmatpush1.bf16.msra.mxu0 0
    %6876 = vmatprep.subr.bf16.mxu0 0
    %6877 = vmatpush1.bf16.msra.mxu0 0
    %6878 = vmatprep.subr.bf16.mxu0 0
    %6879 = vmatpush1.bf16.msra.mxu0 0
    %6880 = vmatprep.subr.bf16.mxu0 0
    %6881 = vmatpush1.bf16.msra.mxu0 0
    %6882 = vmatprep.subr.bf16.mxu0 0
    %6883 = vmatpush1.bf16.msra.mxu0 0
    %6884 = vmatprep.subr.bf16.mxu0 0
    %6885 = vmatpush1.bf16.msra.mxu0 0
    %6886 = vmatprep.subr.bf16.mxu0 0
    %6887 = vmatpush1.bf16.msra.mxu0 0
    %6888 = vmatprep.subr.bf16.mxu0 0
    %6889 = vmatpush1.bf16.msra.mxu0 0
    %6890 = vmatprep.subr.bf16.mxu0 0
    %6891 = vmatpush1.bf16.msra.mxu0 0
    %6892 = vmatprep.subr.bf16.mxu0 0
    %6893 = vmatpush1.bf16.msra.mxu0 0
    %6894 = vmatprep.subr.bf16.mxu0 0
    %6895 = vmatpush1.bf16.msra.mxu0 0
    %6896 = vmatprep.subr.bf16.mxu0 0
    %6897 = vmatpush1.bf16.msra.mxu0 0
    %6898 = vmatprep.subr.bf16.mxu0 0
    %6899 = vmatpush1.bf16.msra.mxu0 0
    %6900 = vmatprep.subr.bf16.mxu0 0
    %6901 = vmatpush1.bf16.msra.mxu0 0
    %6902 = vmatprep.subr.bf16.mxu0 0
    %6903 = vmatpush1.bf16.msra.mxu0 0
    %6904 = vmatprep.mubr.bf16.mxu0 0
    %6905 = vmatmul.mubr.bf16.gmra.mrb[0].mxu0 %v6867
    %v6906 = vpop.f32.mrb[0].mxu0
    %v6907 = vadd.f32 0.0, %v6906
    %v6908 = vpop.f32.mrb[0].mxu0
    %v6909 = vpop.f32.mrb[0].mxu0
    %v6910 = vadd.f32 0.0, %v6909
    %v6911 = vpop.f32.mrb[0].mxu0
    %6912 = vdwg.mxu0
    %v6913 = vadd.f32 %v6853, %v6907
    %v6914 = vadd.f32 %v6854, %v6910
    %s6915 = scalar_lea.vmem %s4, 160
    %v6916 = vld [vmem:[%s6915] sm:$0xf]
    %v6917 = vld [vmem:[%s6915 + $0x4] sm:$0xf]
    %v6920 = vunpack.c.l.b16 %v6916
    %v6921 = vunpack.c.l.b16 %v6917
    %v6922 = vpack.c.b16 %v6921, %v6920
    %v6924 = vsel %vm5762, %v6922, 0
    %v6927 = vsel %vm46, %v5741, 0
    %6929 = vmatprep.subr.bf16.mxu0 0
    %6930 = vmatpush1.bf16.msra.mxu0 %v6927
    %6931 = vmatprep.subr.bf16.mxu0 0
    %6932 = vmatpush1.bf16.msra.mxu0 0
    %6933 = vmatprep.subr.bf16.mxu0 0
    %6934 = vmatpush1.bf16.msra.mxu0 0
    %6935 = vmatprep.subr.bf16.mxu0 0
    %6936 = vmatpush1.bf16.msra.mxu0 0
    %6937 = vmatprep.subr.bf16.mxu0 0
    %6938 = vmatpush1.bf16.msra.mxu0 0
    %6939 = vmatprep.subr.bf16.mxu0 0
    %6940 = vmatpush1.bf16.msra.mxu0 0
    %6941 = vmatprep.subr.bf16.mxu0 0
    %6942 = vmatpush1.bf16.msra.mxu0 0
    %6943 = vmatprep.subr.bf16.mxu0 0
    %6944 = vmatpush1.bf16.msra.mxu0 0
    %6945 = vmatprep.subr.bf16.mxu0 0
    %6946 = vmatpush1.bf16.msra.mxu0 0
    %6947 = vmatprep.subr.bf16.mxu0 0
    %6948 = vmatpush1.bf16.msra.mxu0 0
    %6949 = vmatprep.subr.bf16.mxu0 0
    %6950 = vmatpush1.bf16.msra.mxu0 0
    %6951 = vmatprep.subr.bf16.mxu0 0
    %6952 = vmatpush1.bf16.msra.mxu0 0
    %6953 = vmatprep.subr.bf16.mxu0 0
    %6954 = vmatpush1.bf16.msra.mxu0 0
    %6955 = vmatprep.subr.bf16.mxu0 0
    %6956 = vmatpush1.bf16.msra.mxu0 0
    %6957 = vmatprep.subr.bf16.mxu0 0
    %6958 = vmatpush1.bf16.msra.mxu0 0
    %6959 = vmatprep.subr.bf16.mxu0 0
    %6960 = vmatpush1.bf16.msra.mxu0 0
    %6961 = vmatprep.mubr.bf16.mxu0 0
    %6962 = vmatmul.mubr.bf16.gmra.mrb[0].mxu0 %v6924
    %v6963 = vpop.f32.mrb[0].mxu0
    %v6964 = vadd.f32 0.0, %v6963
    %v6965 = vpop.f32.mrb[0].mxu0
    %v6966 = vpop.f32.mrb[0].mxu0
    %v6967 = vadd.f32 0.0, %v6966
    %v6968 = vpop.f32.mrb[0].mxu0
    %6969 = vdwg.mxu0
    %v6970 = vadd.f32 %v6913, %v6964
    %v6971 = vadd.f32 %v6914, %v6967
    %s6972 = scalar_lea.vmem %s4, 168
    %v6973 = vld [vmem:[%s6972] sm:$0xf]
    %v6974 = vld [vmem:[%s6972 + $0x4] sm:$0xf]
    %v6977 = vunpack.c.l.b16 %v6973
    %v6978 = vunpack.c.l.b16 %v6974
    %v6979 = vpack.c.b16 %v6978, %v6977
    %6981 = vrot.lane.b32.xlu0 %v5741, 64
    %v6982 = vpop.permute.xlu0 %6981
    %v6984 = vsel %vm5762, %v6979, 0
    %v6987 = vsel %vm46, %v6982, 0
    %6989 = vmatprep.subr.bf16.mxu0 0
    %6990 = vmatpush1.bf16.msra.mxu0 %v6987
    %6991 = vmatprep.subr.bf16.mxu0 0
    %6992 = vmatpush1.bf16.msra.mxu0 0
    %6993 = vmatprep.subr.bf16.mxu0 0
    %6994 = vmatpush1.bf16.msra.mxu0 0
    %6995 = vmatprep.subr.bf16.mxu0 0
    %6996 = vmatpush1.bf16.msra.mxu0 0
    %6997 = vmatprep.subr.bf16.mxu0 0
    %6998 = vmatpush1.bf16.msra.mxu0 0
    %6999 = vmatprep.subr.bf16.mxu0 0
    %7000 = vmatpush1.bf16.msra.mxu0 0
    %7001 = vmatprep.subr.bf16.mxu0 0
    %7002 = vmatpush1.bf16.msra.mxu0 0
    %7003 = vmatprep.subr.bf16.mxu0 0
    %7004 = vmatpush1.bf16.msra.mxu0 0
    %7005 = vmatprep.subr.bf16.mxu0 0
    %7006 = vmatpush1.bf16.msra.mxu0 0
    %7007 = vmatprep.subr.bf16.mxu0 0
    %7008 = vmatpush1.bf16.msra.mxu0 0
    %7009 = vmatprep.subr.bf16.mxu0 0
    %7010 = vmatpush1.bf16.msra.mxu0 0
    %7011 = vmatprep.subr.bf16.mxu0 0
    %7012 = vmatpush1.bf16.msra.mxu0 0
    %7013 = vmatprep.subr.bf16.mxu0 0
    %7014 = vmatpush1.bf16.msra.mxu0 0
    %7015 = vmatprep.subr.bf16.mxu0 0
    %7016 = vmatpush1.bf16.msra.mxu0 0
    %7017 = vmatprep.subr.bf16.mxu0 0
    %7018 = vmatpush1.bf16.msra.mxu0 0
    %7019 = vmatprep.subr.bf16.mxu0 0
    %7020 = vmatpush1.bf16.msra.mxu0 0
    %7021 = vmatprep.mubr.bf16.mxu0 0
    %7022 = vmatmul.mubr.bf16.gmra.mrb[0].mxu0 %v6984
    %v7023 = vpop.f32.mrb[0].mxu0
    %v7024 = vadd.f32 0.0, %v7023
    %v7025 = vpop.f32.mrb[0].mxu0
    %v7026 = vpop.f32.mrb[0].mxu0
    %v7027 = vadd.f32 0.0, %v7026
    %v7028 = vpop.f32.mrb[0].mxu0
    %7029 = vdwg.mxu0
    %v7030 = vadd.f32 %v6970, %v7024
    %v7031 = vadd.f32 %v6971, %v7027
    %s7032 = scalar_lea.vmem %s4, 176
    %v7033 = vld [vmem:[%s7032] sm:$0xf]
    %v7034 = vld [vmem:[%s7032 + $0x4] sm:$0xf]
    %v7037 = vunpack.c.l.b16 %v7033
    %v7038 = vunpack.c.l.b16 %v7034
    %v7039 = vpack.c.b16 %v7038, %v7037
    %v7041 = vsel %vm5762, %v7039, 0
    %v7044 = vsel %vm46, %v5742, 0
    %7046 = vmatprep.subr.bf16.mxu0 0
    %7047 = vmatpush1.bf16.msra.mxu0 %v7044
    %7048 = vmatprep.subr.bf16.mxu0 0
    %7049 = vmatpush1.bf16.msra.mxu0 0
    %7050 = vmatprep.subr.bf16.mxu0 0
    %7051 = vmatpush1.bf16.msra.mxu0 0
    %7052 = vmatprep.subr.bf16.mxu0 0
    %7053 = vmatpush1.bf16.msra.mxu0 0
    %7054 = vmatprep.subr.bf16.mxu0 0
    %7055 = vmatpush1.bf16.msra.mxu0 0
    %7056 = vmatprep.subr.bf16.mxu0 0
    %7057 = vmatpush1.bf16.msra.mxu0 0
    %7058 = vmatprep.subr.bf16.mxu0 0
    %7059 = vmatpush1.bf16.msra.mxu0 0
    %7060 = vmatprep.subr.bf16.mxu0 0
    %7061 = vmatpush1.bf16.msra.mxu0 0
    %7062 = vmatprep.subr.bf16.mxu0 0
    %7063 = vmatpush1.bf16.msra.mxu0 0
    %7064 = vmatprep.subr.bf16.mxu0 0
    %7065 = vmatpush1.bf16.msra.mxu0 0
    %7066 = vmatprep.subr.bf16.mxu0 0
    %7067 = vmatpush1.bf16.msra.mxu0 0
    %7068 = vmatprep.subr.bf16.mxu0 0
    %7069 = vmatpush1.bf16.msra.mxu0 0
    %7070 = vmatprep.subr.bf16.mxu0 0
    %7071 = vmatpush1.bf16.msra.mxu0 0
    %7072 = vmatprep.subr.bf16.mxu0 0
    %7073 = vmatpush1.bf16.msra.mxu0 0
    %7074 = vmatprep.subr.bf16.mxu0 0
    %7075 = vmatpush1.bf16.msra.mxu0 0
    %7076 = vmatprep.subr.bf16.mxu0 0
    %7077 = vmatpush1.bf16.msra.mxu0 0
    %7078 = vmatprep.mubr.bf16.mxu0 0
    %7079 = vmatmul.mubr.bf16.gmra.mrb[0].mxu0 %v7041
    %v7080 = vpop.f32.mrb[0].mxu0
    %v7081 = vadd.f32 0.0, %v7080
    %v7082 = vpop.f32.mrb[0].mxu0
    %v7083 = vpop.f32.mrb[0].mxu0
    %v7084 = vadd.f32 0.0, %v7083
    %v7085 = vpop.f32.mrb[0].mxu0
    %7086 = vdwg.mxu0
    %v7087 = vadd.f32 %v7030, %v7081
    %v7088 = vadd.f32 %v7031, %v7084
    %s7089 = scalar_lea.vmem %s4, 184
    %v7090 = vld [vmem:[%s7089] sm:$0xf]
    %v7091 = vld [vmem:[%s7089 + $0x4] sm:$0xf]
    %v7094 = vunpack.c.l.b16 %v7090
    %v7095 = vunpack.c.l.b16 %v7091
    %v7096 = vpack.c.b16 %v7095, %v7094
    %7098 = vrot.lane.b32.xlu0 %v5742, 64
    %v7099 = vpop.permute.xlu0 %7098
    %v7101 = vsel %vm5762, %v7096, 0
    %v7104 = vsel %vm46, %v7099, 0
    %7106 = vmatprep.subr.bf16.mxu0 0
    %7107 = vmatpush1.bf16.msra.mxu0 %v7104
    %7108 = vmatprep.subr.bf16.mxu0 0
    %7109 = vmatpush1.bf16.msra.mxu0 0
    %7110 = vmatprep.subr.bf16.mxu0 0
    %7111 = vmatpush1.bf16.msra.mxu0 0
    %7112 = vmatprep.subr.bf16.mxu0 0
    %7113 = vmatpush1.bf16.msra.mxu0 0
    %7114 = vmatprep.subr.bf16.mxu0 0
    %7115 = vmatpush1.bf16.msra.mxu0 0
    %7116 = vmatprep.subr.bf16.mxu0 0
    %7117 = vmatpush1.bf16.msra.mxu0 0
    %7118 = vmatprep.subr.bf16.mxu0 0
    %7119 = vmatpush1.bf16.msra.mxu0 0
    %7120 = vmatprep.subr.bf16.mxu0 0
    %7121 = vmatpush1.bf16.msra.mxu0 0
    %7122 = vmatprep.subr.bf16.mxu0 0
    %7123 = vmatpush1.bf16.msra.mxu0 0
    %7124 = vmatprep.subr.bf16.mxu0 0
    %7125 = vmatpush1.bf16.msra.mxu0 0
    %7126 = vmatprep.subr.bf16.mxu0 0
    %7127 = vmatpush1.bf16.msra.mxu0 0
    %7128 = vmatprep.subr.bf16.mxu0 0
    %7129 = vmatpush1.bf16.msra.mxu0 0
    %7130 = vmatprep.subr.bf16.mxu0 0
    %7131 = vmatpush1.bf16.msra.mxu0 0
    %7132 = vmatprep.subr.bf16.mxu0 0
    %7133 = vmatpush1.bf16.msra.mxu0 0
    %7134 = vmatprep.subr.bf16.mxu0 0
    %7135 = vmatpush1.bf16.msra.mxu0 0
    %7136 = vmatprep.subr.bf16.mxu0 0
    %7137 = vmatpush1.bf16.msra.mxu0 0
    %7138 = vmatprep.mubr.bf16.mxu0 0
    %7139 = vmatmul.mubr.bf16.gmra.mrb[0].mxu0 %v7101
    %v7140 = vpop.f32.mrb[0].mxu0
    %v7141 = vadd.f32 0.0, %v7140
    %v7142 = vpop.f32.mrb[0].mxu0
    %v7143 = vpop.f32.mrb[0].mxu0
    %v7144 = vadd.f32 0.0, %v7143
    %v7145 = vpop.f32.mrb[0].mxu0
    %7146 = vdwg.mxu0
    %v7147 = vadd.f32 %v7087, %v7141
    %v7148 = vadd.f32 %v7088, %v7144
    %s7149 = scalar_lea.vmem %s4, 192
    %v7150 = vld [vmem:[%s7149] sm:$0xf]
    %v7151 = vld [vmem:[%s7149 + $0x4] sm:$0xf]
    %v7154 = vunpack.c.l.b16 %v7150
    %v7155 = vunpack.c.l.b16 %v7151
    %v7156 = vpack.c.b16 %v7155, %v7154
    %v7158 = vsel %vm5762, %v7156, 0
    %v7161 = vsel %vm46, %v5743, 0
    %7163 = vmatprep.subr.bf16.mxu0 0
    %7164 = vmatpush1.bf16.msra.mxu0 %v7161
    %7165 = vmatprep.subr.bf16.mxu0 0
    %7166 = vmatpush1.bf16.msra.mxu0 0
    %7167 = vmatprep.subr.bf16.mxu0 0
    %7168 = vmatpush1.bf16.msra.mxu0 0
    %7169 = vmatprep.subr.bf16.mxu0 0
    %7170 = vmatpush1.bf16.msra.mxu0 0
    %7171 = vmatprep.subr.bf16.mxu0 0
    %7172 = vmatpush1.bf16.msra.mxu0 0
    %7173 = vmatprep.subr.bf16.mxu0 0
    %7174 = vmatpush1.bf16.msra.mxu0 0
    %7175 = vmatprep.subr.bf16.mxu0 0
    %7176 = vmatpush1.bf16.msra.mxu0 0
    %7177 = vmatprep.subr.bf16.mxu0 0
    %7178 = vmatpush1.bf16.msra.mxu0 0
    %7179 = vmatprep.subr.bf16.mxu0 0
    %7180 = vmatpush1.bf16.msra.mxu0 0
    %7181 = vmatprep.subr.bf16.mxu0 0
    %7182 = vmatpush1.bf16.msra.mxu0 0
    %7183 = vmatprep.subr.bf16.mxu0 0
    %7184 = vmatpush1.bf16.msra.mxu0 0
    %7185 = vmatprep.subr.bf16.mxu0 0
    %7186 = vmatpush1.bf16.msra.mxu0 0
    %7187 = vmatprep.subr.bf16.mxu0 0
    %7188 = vmatpush1.bf16.msra.mxu0 0
    %7189 = vmatprep.subr.bf16.mxu0 0
    %7190 = vmatpush1.bf16.msra.mxu0 0
    %7191 = vmatprep.subr.bf16.mxu0 0
    %7192 = vmatpush1.bf16.msra.mxu0 0
    %7193 = vmatprep.subr.bf16.mxu0 0
    %7194 = vmatpush1.bf16.msra.mxu0 0
    %7195 = vmatprep.mubr.bf16.mxu0 0
    %7196 = vmatmul.mubr.bf16.gmra.mrb[0].mxu0 %v7158
    %v7197 = vpop.f32.mrb[0].mxu0
    %v7198 = vadd.f32 0.0, %v7197
    %v7199 = vpop.f32.mrb[0].mxu0
    %v7200 = vpop.f32.mrb[0].mxu0
    %v7201 = vadd.f32 0.0, %v7200
    %v7202 = vpop.f32.mrb[0].mxu0
    %7203 = vdwg.mxu0
    %v7204 = vadd.f32 %v7147, %v7198
    %v7205 = vadd.f32 %v7148, %v7201
    %s7206 = scalar_lea.vmem %s4, 200
    %v7207 = vld [vmem:[%s7206] sm:$0xf]
    %v7208 = vld [vmem:[%s7206 + $0x4] sm:$0xf]
    %v7211 = vunpack.c.l.b16 %v7207
    %v7212 = vunpack.c.l.b16 %v7208
    %v7213 = vpack.c.b16 %v7212, %v7211
    %7215 = vrot.lane.b32.xlu0 %v5743, 64
    %v7216 = vpop.permute.xlu0 %7215
    %v7218 = vsel %vm5762, %v7213, 0
    %v7221 = vsel %vm46, %v7216, 0
    %7223 = vmatprep.subr.bf16.mxu0 0
    %7224 = vmatpush1.bf16.msra.mxu0 %v7221
    %7225 = vmatprep.subr.bf16.mxu0 0
    %7226 = vmatpush1.bf16.msra.mxu0 0
    %7227 = vmatprep.subr.bf16.mxu0 0
    %7228 = vmatpush1.bf16.msra.mxu0 0
    %7229 = vmatprep.subr.bf16.mxu0 0
    %7230 = vmatpush1.bf16.msra.mxu0 0
    %7231 = vmatprep.subr.bf16.mxu0 0
    %7232 = vmatpush1.bf16.msra.mxu0 0
    %7233 = vmatprep.subr.bf16.mxu0 0
    %7234 = vmatpush1.bf16.msra.mxu0 0
    %7235 = vmatprep.subr.bf16.mxu0 0
    %7236 = vmatpush1.bf16.msra.mxu0 0
    %7237 = vmatprep.subr.bf16.mxu0 0
    %7238 = vmatpush1.bf16.msra.mxu0 0
    %7239 = vmatprep.subr.bf16.mxu0 0
    %7240 = vmatpush1.bf16.msra.mxu0 0
    %7241 = vmatprep.subr.bf16.mxu0 0
    %7242 = vmatpush1.bf16.msra.mxu0 0
    %7243 = vmatprep.subr.bf16.mxu0 0
    %7244 = vmatpush1.bf16.msra.mxu0 0
    %7245 = vmatprep.subr.bf16.mxu0 0
    %7246 = vmatpush1.bf16.msra.mxu0 0
    %7247 = vmatprep.subr.bf16.mxu0 0
    %7248 = vmatpush1.bf16.msra.mxu0 0
    %7249 = vmatprep.subr.bf16.mxu0 0
    %7250 = vmatpush1.bf16.msra.mxu0 0
    %7251 = vmatprep.subr.bf16.mxu0 0
    %7252 = vmatpush1.bf16.msra.mxu0 0
    %7253 = vmatprep.subr.bf16.mxu0 0
    %7254 = vmatpush1.bf16.msra.mxu0 0
    %7255 = vmatprep.mubr.bf16.mxu0 0
    %7256 = vmatmul.mubr.bf16.gmra.mrb[0].mxu0 %v7218
    %v7257 = vpop.f32.mrb[0].mxu0
    %v7258 = vadd.f32 0.0, %v7257
    %v7259 = vpop.f32.mrb[0].mxu0
    %v7260 = vpop.f32.mrb[0].mxu0
    %v7261 = vadd.f32 0.0, %v7260
    %v7262 = vpop.f32.mrb[0].mxu0
    %7263 = vdwg.mxu0
    %v7264 = vadd.f32 %v7204, %v7258
    %v7265 = vadd.f32 %v7205, %v7261
    %s7266 = scalar_lea.vmem %s4, 208
    %v7267 = vld [vmem:[%s7266] sm:$0xf]
    %v7268 = vld [vmem:[%s7266 + $0x4] sm:$0xf]
    %v7271 = vunpack.c.l.b16 %v7267
    %v7272 = vunpack.c.l.b16 %v7268
    %v7273 = vpack.c.b16 %v7272, %v7271
    %v7275 = vsel %vm5762, %v7273, 0
    %v7278 = vsel %vm46, %v5744, 0
    %7280 = vmatprep.subr.bf16.mxu0 0
    %7281 = vmatpush1.bf16.msra.mxu0 %v7278
    %7282 = vmatprep.subr.bf16.mxu0 0
    %7283 = vmatpush1.bf16.msra.mxu0 0
    %7284 = vmatprep.subr.bf16.mxu0 0
    %7285 = vmatpush1.bf16.msra.mxu0 0
    %7286 = vmatprep.subr.bf16.mxu0 0
    %7287 = vmatpush1.bf16.msra.mxu0 0
    %7288 = vmatprep.subr.bf16.mxu0 0
    %7289 = vmatpush1.bf16.msra.mxu0 0
    %7290 = vmatprep.subr.bf16.mxu0 0
    %7291 = vmatpush1.bf16.msra.mxu0 0
    %7292 = vmatprep.subr.bf16.mxu0 0
    %7293 = vmatpush1.bf16.msra.mxu0 0
    %7294 = vmatprep.subr.bf16.mxu0 0
    %7295 = vmatpush1.bf16.msra.mxu0 0
    %7296 = vmatprep.subr.bf16.mxu0 0
    %7297 = vmatpush1.bf16.msra.mxu0 0
    %7298 = vmatprep.subr.bf16.mxu0 0
    %7299 = vmatpush1.bf16.msra.mxu0 0
    %7300 = vmatprep.subr.bf16.mxu0 0
    %7301 = vmatpush1.bf16.msra.mxu0 0
    %7302 = vmatprep.subr.bf16.mxu0 0
    %7303 = vmatpush1.bf16.msra.mxu0 0
    %7304 = vmatprep.subr.bf16.mxu0 0
    %7305 = vmatpush1.bf16.msra.mxu0 0
    %7306 = vmatprep.subr.bf16.mxu0 0
    %7307 = vmatpush1.bf16.msra.mxu0 0
    %7308 = vmatprep.subr.bf16.mxu0 0
    %7309 = vmatpush1.bf16.msra.mxu0 0
    %7310 = vmatprep.subr.bf16.mxu0 0
    %7311 = vmatpush1.bf16.msra.mxu0 0
    %7312 = vmatprep.mubr.bf16.mxu0 0
    %7313 = vmatmul.mubr.bf16.gmra.mrb[0].mxu0 %v7275
    %v7314 = vpop.f32.mrb[0].mxu0
    %v7315 = vadd.f32 0.0, %v7314
    %v7316 = vpop.f32.mrb[0].mxu0
    %v7317 = vpop.f32.mrb[0].mxu0
    %v7318 = vadd.f32 0.0, %v7317
    %v7319 = vpop.f32.mrb[0].mxu0
    %7320 = vdwg.mxu0
    %v7321 = vadd.f32 %v7264, %v7315
    %v7322 = vadd.f32 %v7265, %v7318
    %s7323 = scalar_lea.vmem %s4, 216
    %v7324 = vld [vmem:[%s7323] sm:$0xf]
    %v7325 = vld [vmem:[%s7323 + $0x4] sm:$0xf]
    %v7328 = vunpack.c.l.b16 %v7324
    %v7329 = vunpack.c.l.b16 %v7325
    %v7330 = vpack.c.b16 %v7329, %v7328
    %7332 = vrot.lane.b32.xlu0 %v5744, 64
    %v7333 = vpop.permute.xlu0 %7332
    %v7335 = vsel %vm5762, %v7330, 0
    %v7338 = vsel %vm46, %v7333, 0
    %7340 = vmatprep.subr.bf16.mxu0 0
    %7341 = vmatpush1.bf16.msra.mxu0 %v7338
    %7342 = vmatprep.subr.bf16.mxu0 0
    %7343 = vmatpush1.bf16.msra.mxu0 0
    %7344 = vmatprep.subr.bf16.mxu0 0
    %7345 = vmatpush1.bf16.msra.mxu0 0
    %7346 = vmatprep.subr.bf16.mxu0 0
    %7347 = vmatpush1.bf16.msra.mxu0 0
    %7348 = vmatprep.subr.bf16.mxu0 0
    %7349 = vmatpush1.bf16.msra.mxu0 0
    %7350 = vmatprep.subr.bf16.mxu0 0
    %7351 = vmatpush1.bf16.msra.mxu0 0
    %7352 = vmatprep.subr.bf16.mxu0 0
    %7353 = vmatpush1.bf16.msra.mxu0 0
    %7354 = vmatprep.subr.bf16.mxu0 0
    %7355 = vmatpush1.bf16.msra.mxu0 0
    %7356 = vmatprep.subr.bf16.mxu0 0
    %7357 = vmatpush1.bf16.msra.mxu0 0
    %7358 = vmatprep.subr.bf16.mxu0 0
    %7359 = vmatpush1.bf16.msra.mxu0 0
    %7360 = vmatprep.subr.bf16.mxu0 0
    %7361 = vmatpush1.bf16.msra.mxu0 0
    %7362 = vmatprep.subr.bf16.mxu0 0
    %7363 = vmatpush1.bf16.msra.mxu0 0
    %7364 = vmatprep.subr.bf16.mxu0 0
    %7365 = vmatpush1.bf16.msra.mxu0 0
    %7366 = vmatprep.subr.bf16.mxu0 0
    %7367 = vmatpush1.bf16.msra.mxu0 0
    %7368 = vmatprep.subr.bf16.mxu0 0
    %7369 = vmatpush1.bf16.msra.mxu0 0
    %7370 = vmatprep.subr.bf16.mxu0 0
    %7371 = vmatpush1.bf16.msra.mxu0 0
    %7372 = vmatprep.mubr.bf16.mxu0 0
    %7373 = vmatmul.mubr.bf16.gmra.mrb[0].mxu0 %v7335
    %v7374 = vpop.f32.mrb[0].mxu0
    %v7375 = vadd.f32 0.0, %v7374
    %v7376 = vpop.f32.mrb[0].mxu0
    %v7377 = vpop.f32.mrb[0].mxu0
    %v7378 = vadd.f32 0.0, %v7377
    %v7379 = vpop.f32.mrb[0].mxu0
    %7380 = vdwg.mxu0
    %v7381 = vadd.f32 %v7321, %v7375
    %v7382 = vadd.f32 %v7322, %v7378
    %s7383 = scalar_lea.vmem %s4, 224
    %v7384 = vld [vmem:[%s7383] sm:$0xf]
    %v7385 = vld [vmem:[%s7383 + $0x4] sm:$0xf]
    %v7388 = vunpack.c.l.b16 %v7384
    %v7389 = vunpack.c.l.b16 %v7385
    %v7390 = vpack.c.b16 %v7389, %v7388
    %v7392 = vsel %vm5762, %v7390, 0
    %v7395 = vsel %vm46, %v5745, 0
    %7397 = vmatprep.subr.bf16.mxu0 0
    %7398 = vmatpush1.bf16.msra.mxu0 %v7395
    %7399 = vmatprep.subr.bf16.mxu0 0
    %7400 = vmatpush1.bf16.msra.mxu0 0
    %7401 = vmatprep.subr.bf16.mxu0 0
    %7402 = vmatpush1.bf16.msra.mxu0 0
    %7403 = vmatprep.subr.bf16.mxu0 0
    %7404 = vmatpush1.bf16.msra.mxu0 0
    %7405 = vmatprep.subr.bf16.mxu0 0
    %7406 = vmatpush1.bf16.msra.mxu0 0
    %7407 = vmatprep.subr.bf16.mxu0 0
    %7408 = vmatpush1.bf16.msra.mxu0 0
    %7409 = vmatprep.subr.bf16.mxu0 0
    %7410 = vmatpush1.bf16.msra.mxu0 0
    %7411 = vmatprep.subr.bf16.mxu0 0
    %7412 = vmatpush1.bf16.msra.mxu0 0
    %7413 = vmatprep.subr.bf16.mxu0 0
    %7414 = vmatpush1.bf16.msra.mxu0 0
    %7415 = vmatprep.subr.bf16.mxu0 0
    %7416 = vmatpush1.bf16.msra.mxu0 0
    %7417 = vmatprep.subr.bf16.mxu0 0
    %7418 = vmatpush1.bf16.msra.mxu0 0
    %7419 = vmatprep.subr.bf16.mxu0 0
    %7420 = vmatpush1.bf16.msra.mxu0 0
    %7421 = vmatprep.subr.bf16.mxu0 0
    %7422 = vmatpush1.bf16.msra.mxu0 0
    %7423 = vmatprep.subr.bf16.mxu0 0
    %7424 = vmatpush1.bf16.msra.mxu0 0
    %7425 = vmatprep.subr.bf16.mxu0 0
    %7426 = vmatpush1.bf16.msra.mxu0 0
    %7427 = vmatprep.subr.bf16.mxu0 0
    %7428 = vmatpush1.bf16.msra.mxu0 0
    %7429 = vmatprep.mubr.bf16.mxu0 0
    %7430 = vmatmul.mubr.bf16.gmra.mrb[0].mxu0 %v7392
    %v7431 = vpop.f32.mrb[0].mxu0
    %v7432 = vadd.f32 0.0, %v7431
    %v7433 = vpop.f32.mrb[0].mxu0
    %v7434 = vpop.f32.mrb[0].mxu0
    %v7435 = vadd.f32 0.0, %v7434
    %v7436 = vpop.f32.mrb[0].mxu0
    %7437 = vdwg.mxu0
    %v7438 = vadd.f32 %v7381, %v7432
    %v7439 = vadd.f32 %v7382, %v7435
    %s7440 = scalar_lea.vmem %s4, 232
    %v7441 = vld [vmem:[%s7440] sm:$0xf]
    %v7442 = vld [vmem:[%s7440 + $0x4] sm:$0xf]
    %v7445 = vunpack.c.l.b16 %v7441
    %v7446 = vunpack.c.l.b16 %v7442
    %v7447 = vpack.c.b16 %v7446, %v7445
    %7449 = vrot.lane.b32.xlu0 %v5745, 64
    %v7450 = vpop.permute.xlu0 %7449
    %v7452 = vsel %vm5762, %v7447, 0
    %v7455 = vsel %vm46, %v7450, 0
    %7457 = vmatprep.subr.bf16.mxu0 0
    %7458 = vmatpush1.bf16.msra.mxu0 %v7455
    %7459 = vmatprep.subr.bf16.mxu0 0
    %7460 = vmatpush1.bf16.msra.mxu0 0
    %7461 = vmatprep.subr.bf16.mxu0 0
    %7462 = vmatpush1.bf16.msra.mxu0 0
    %7463 = vmatprep.subr.bf16.mxu0 0
    %7464 = vmatpush1.bf16.msra.mxu0 0
    %7465 = vmatprep.subr.bf16.mxu0 0
    %7466 = vmatpush1.bf16.msra.mxu0 0
    %7467 = vmatprep.subr.bf16.mxu0 0
    %7468 = vmatpush1.bf16.msra.mxu0 0
    %7469 = vmatprep.subr.bf16.mxu0 0
    %7470 = vmatpush1.bf16.msra.mxu0 0
    %7471 = vmatprep.subr.bf16.mxu0 0
    %7472 = vmatpush1.bf16.msra.mxu0 0
    %7473 = vmatprep.subr.bf16.mxu0 0
    %7474 = vmatpush1.bf16.msra.mxu0 0
    %7475 = vmatprep.subr.bf16.mxu0 0
    %7476 = vmatpush1.bf16.msra.mxu0 0
    %7477 = vmatprep.subr.bf16.mxu0 0
    %7478 = vmatpush1.bf16.msra.mxu0 0
    %7479 = vmatprep.subr.bf16.mxu0 0
    %7480 = vmatpush1.bf16.msra.mxu0 0
    %7481 = vmatprep.subr.bf16.mxu0 0
    %7482 = vmatpush1.bf16.msra.mxu0 0
    %7483 = vmatprep.subr.bf16.mxu0 0
    %7484 = vmatpush1.bf16.msra.mxu0 0
    %7485 = vmatprep.subr.bf16.mxu0 0
    %7486 = vmatpush1.bf16.msra.mxu0 0
    %7487 = vmatprep.subr.bf16.mxu0 0
    %7488 = vmatpush1.bf16.msra.mxu0 0
    %7489 = vmatprep.mubr.bf16.mxu0 0
    %7490 = vmatmul.mubr.bf16.gmra.mrb[0].mxu0 %v7452
    %v7491 = vpop.f32.mrb[0].mxu0
    %v7492 = vadd.f32 0.0, %v7491
    %v7493 = vpop.f32.mrb[0].mxu0
    %v7494 = vpop.f32.mrb[0].mxu0
    %v7495 = vadd.f32 0.0, %v7494
    %v7496 = vpop.f32.mrb[0].mxu0
    %7497 = vdwg.mxu0
    %v7498 = vadd.f32 %v7438, %v7492
    %v7499 = vadd.f32 %v7439, %v7495
    %s7500 = scalar_lea.vmem %s4, 240
    %v7501 = vld [vmem:[%s7500] sm:$0xf]
    %v7502 = vld [vmem:[%s7500 + $0x4] sm:$0xf]
    %v7505 = vunpack.c.l.b16 %v7501
    %v7506 = vunpack.c.l.b16 %v7502
    %v7507 = vpack.c.b16 %v7506, %v7505
    %v7509 = vsel %vm5762, %v7507, 0
    %v7512 = vsel %vm46, %v5746, 0
    %7514 = vmatprep.subr.bf16.mxu0 0
    %7515 = vmatpush1.bf16.msra.mxu0 %v7512
    %7516 = vmatprep.subr.bf16.mxu0 0
    %7517 = vmatpush1.bf16.msra.mxu0 0
    %7518 = vmatprep.subr.bf16.mxu0 0
    %7519 = vmatpush1.bf16.msra.mxu0 0
    %7520 = vmatprep.subr.bf16.mxu0 0
    %7521 = vmatpush1.bf16.msra.mxu0 0
    %7522 = vmatprep.subr.bf16.mxu0 0
    %7523 = vmatpush1.bf16.msra.mxu0 0
    %7524 = vmatprep.subr.bf16.mxu0 0
    %7525 = vmatpush1.bf16.msra.mxu0 0
    %7526 = vmatprep.subr.bf16.mxu0 0
    %7527 = vmatpush1.bf16.msra.mxu0 0
    %7528 = vmatprep.subr.bf16.mxu0 0
    %7529 = vmatpush1.bf16.msra.mxu0 0
    %7530 = vmatprep.subr.bf16.mxu0 0
    %7531 = vmatpush1.bf16.msra.mxu0 0
    %7532 = vmatprep.subr.bf16.mxu0 0
    %7533 = vmatpush1.bf16.msra.mxu0 0
    %7534 = vmatprep.subr.bf16.mxu0 0
    %7535 = vmatpush1.bf16.msra.mxu0 0
    %7536 = vmatprep.subr.bf16.mxu0 0
    %7537 = vmatpush1.bf16.msra.mxu0 0
    %7538 = vmatprep.subr.bf16.mxu0 0
    %7539 = vmatpush1.bf16.msra.mxu0 0
    %7540 = vmatprep.subr.bf16.mxu0 0
    %7541 = vmatpush1.bf16.msra.mxu0 0
    %7542 = vmatprep.subr.bf16.mxu0 0
    %7543 = vmatpush1.bf16.msra.mxu0 0
    %7544 = vmatprep.subr.bf16.mxu0 0
    %7545 = vmatpush1.bf16.msra.mxu0 0
    %7546 = vmatprep.mubr.bf16.mxu0 0
    %7547 = vmatmul.mubr.bf16.gmra.mrb[0].mxu0 %v7509
    %v7548 = vpop.f32.mrb[0].mxu0
    %v7549 = vadd.f32 0.0, %v7548
    %v7550 = vpop.f32.mrb[0].mxu0
    %v7551 = vpop.f32.mrb[0].mxu0
    %v7552 = vadd.f32 0.0, %v7551
    %v7553 = vpop.f32.mrb[0].mxu0
    %7554 = vdwg.mxu0
    %v7555 = vadd.f32 %v7498, %v7549
    %v7556 = vadd.f32 %v7499, %v7552
    %s7557 = scalar_lea.vmem %s4, 248
    %v7558 = vld [vmem:[%s7557] sm:$0xf]
    %v7559 = vld [vmem:[%s7557 + $0x4] sm:$0xf]
    %v7562 = vunpack.c.l.b16 %v7558
    %v7563 = vunpack.c.l.b16 %v7559
    %v7564 = vpack.c.b16 %v7563, %v7562
    %7566 = vrot.lane.b32.xlu0 %v5746, 64
    %v7567 = vpop.permute.xlu0 %7566
    %v7569 = vsel %vm5762, %v7564, 0
    %v7572 = vsel %vm46, %v7567, 0
    %7574 = vmatprep.subr.bf16.mxu0 0
    %7575 = vmatpush1.bf16.msra.mxu0 %v7572
    %7576 = vmatprep.subr.bf16.mxu0 0
    %7577 = vmatpush1.bf16.msra.mxu0 0
    %7578 = vmatprep.subr.bf16.mxu0 0
    %7579 = vmatpush1.bf16.msra.mxu0 0
    %7580 = vmatprep.subr.bf16.mxu0 0
    %7581 = vmatpush1.bf16.msra.mxu0 0
    %7582 = vmatprep.subr.bf16.mxu0 0
    %7583 = vmatpush1.bf16.msra.mxu0 0
    %7584 = vmatprep.subr.bf16.mxu0 0
    %7585 = vmatpush1.bf16.msra.mxu0 0
    %7586 = vmatprep.subr.bf16.mxu0 0
    %7587 = vmatpush1.bf16.msra.mxu0 0
    %7588 = vmatprep.subr.bf16.mxu0 0
    %7589 = vmatpush1.bf16.msra.mxu0 0
    %7590 = vmatprep.subr.bf16.mxu0 0
    %7591 = vmatpush1.bf16.msra.mxu0 0
    %7592 = vmatprep.subr.bf16.mxu0 0
    %7593 = vmatpush1.bf16.msra.mxu0 0
    %7594 = vmatprep.subr.bf16.mxu0 0
    %7595 = vmatpush1.bf16.msra.mxu0 0
    %7596 = vmatprep.subr.bf16.mxu0 0
    %7597 = vmatpush1.bf16.msra.mxu0 0
    %7598 = vmatprep.subr.bf16.mxu0 0
    %7599 = vmatpush1.bf16.msra.mxu0 0
    %7600 = vmatprep.subr.bf16.mxu0 0
    %7601 = vmatpush1.bf16.msra.mxu0 0
    %7602 = vmatprep.subr.bf16.mxu0 0
    %7603 = vmatpush1.bf16.msra.mxu0 0
    %7604 = vmatprep.subr.bf16.mxu0 0
    %7605 = vmatpush1.bf16.msra.mxu0 0
    %7606 = vmatprep.mubr.bf16.mxu0 0
    %7607 = vmatmul.mubr.bf16.gmra.mrb[0].mxu0 %v7569
    %v7608 = vpop.f32.mrb[0].mxu0
    %v7609 = vadd.f32 0.0, %v7608
    %v7610 = vpop.f32.mrb[0].mxu0
    %v7611 = vpop.f32.mrb[0].mxu0
    %v7612 = vadd.f32 0.0, %v7611
    %v7613 = vpop.f32.mrb[0].mxu0
    %7614 = vdwg.mxu0
    %v7615 = vadd.f32 %v7555, %v7609
    %v7616 = vadd.f32 %v7556, %v7612
    %s7617 = scalar_lea.vmem %s4, 256
    %v7618 = vld [vmem:[%s7617] sm:$0xf]
    %v7619 = vld [vmem:[%s7617 + $0x4] sm:$0xf]
    %v7622 = vunpack.c.l.b16 %v7618
    %v7623 = vunpack.c.l.b16 %v7619
    %v7624 = vpack.c.b16 %v7623, %v7622
    %v7626 = vsel %vm5762, %v7624, 0
    %v7629 = vsel %vm46, %v5747, 0
    %7631 = vmatprep.subr.bf16.mxu0 0
    %7632 = vmatpush1.bf16.msra.mxu0 %v7629
    %7633 = vmatprep.subr.bf16.mxu0 0
    %7634 = vmatpush1.bf16.msra.mxu0 0
    %7635 = vmatprep.subr.bf16.mxu0 0
    %7636 = vmatpush1.bf16.msra.mxu0 0
    %7637 = vmatprep.subr.bf16.mxu0 0
    %7638 = vmatpush1.bf16.msra.mxu0 0
    %7639 = vmatprep.subr.bf16.mxu0 0
    %7640 = vmatpush1.bf16.msra.mxu0 0
    %7641 = vmatprep.subr.bf16.mxu0 0
    %7642 = vmatpush1.bf16.msra.mxu0 0
    %7643 = vmatprep.subr.bf16.mxu0 0
    %7644 = vmatpush1.bf16.msra.mxu0 0
    %7645 = vmatprep.subr.bf16.mxu0 0
    %7646 = vmatpush1.bf16.msra.mxu0 0
    %7647 = vmatprep.subr.bf16.mxu0 0
    %7648 = vmatpush1.bf16.msra.mxu0 0
    %7649 = vmatprep.subr.bf16.mxu0 0
    %7650 = vmatpush1.bf16.msra.mxu0 0
    %7651 = vmatprep.subr.bf16.mxu0 0
    %7652 = vmatpush1.bf16.msra.mxu0 0
    %7653 = vmatprep.subr.bf16.mxu0 0
    %7654 = vmatpush1.bf16.msra.mxu0 0
    %7655 = vmatprep.subr.bf16.mxu0 0
    %7656 = vmatpush1.bf16.msra.mxu0 0
    %7657 = vmatprep.subr.bf16.mxu0 0
    %7658 = vmatpush1.bf16.msra.mxu0 0
    %7659 = vmatprep.subr.bf16.mxu0 0
    %7660 = vmatpush1.bf16.msra.mxu0 0
    %7661 = vmatprep.subr.bf16.mxu0 0
    %7662 = vmatpush1.bf16.msra.mxu0 0
    %7663 = vmatprep.mubr.bf16.mxu0 0
    %7664 = vmatmul.mubr.bf16.gmra.mrb[0].mxu0 %v7626
    %v7665 = vpop.f32.mrb[0].mxu0
    %v7666 = vadd.f32 0.0, %v7665
    %v7667 = vpop.f32.mrb[0].mxu0
    %v7668 = vpop.f32.mrb[0].mxu0
    %v7669 = vadd.f32 0.0, %v7668
    %v7670 = vpop.f32.mrb[0].mxu0
    %7671 = vdwg.mxu0
    %v7672 = vadd.f32 %v7615, %v7666
    %v7673 = vadd.f32 %v7616, %v7669
    %s7674 = scalar_lea.vmem %s4, 264
    %v7675 = vld [vmem:[%s7674] sm:$0xf]
    %v7676 = vld [vmem:[%s7674 + $0x4] sm:$0xf]
    %v7679 = vunpack.c.l.b16 %v7675
    %v7680 = vunpack.c.l.b16 %v7676
    %v7681 = vpack.c.b16 %v7680, %v7679
    %7683 = vrot.lane.b32.xlu0 %v5747, 64
    %v7684 = vpop.permute.xlu0 %7683
    %v7686 = vsel %vm5762, %v7681, 0
    %v7689 = vsel %vm46, %v7684, 0
    %7691 = vmatprep.subr.bf16.mxu0 0
    %7692 = vmatpush1.bf16.msra.mxu0 %v7689
    %7693 = vmatprep.subr.bf16.mxu0 0
    %7694 = vmatpush1.bf16.msra.mxu0 0
    %7695 = vmatprep.subr.bf16.mxu0 0
    %7696 = vmatpush1.bf16.msra.mxu0 0
    %7697 = vmatprep.subr.bf16.mxu0 0
    %7698 = vmatpush1.bf16.msra.mxu0 0
    %7699 = vmatprep.subr.bf16.mxu0 0
    %7700 = vmatpush1.bf16.msra.mxu0 0
    %7701 = vmatprep.subr.bf16.mxu0 0
    %7702 = vmatpush1.bf16.msra.mxu0 0
    %7703 = vmatprep.subr.bf16.mxu0 0
    %7704 = vmatpush1.bf16.msra.mxu0 0
    %7705 = vmatprep.subr.bf16.mxu0 0
    %7706 = vmatpush1.bf16.msra.mxu0 0
    %7707 = vmatprep.subr.bf16.mxu0 0
    %7708 = vmatpush1.bf16.msra.mxu0 0
    %7709 = vmatprep.subr.bf16.mxu0 0
    %7710 = vmatpush1.bf16.msra.mxu0 0
    %7711 = vmatprep.subr.bf16.mxu0 0
    %7712 = vmatpush1.bf16.msra.mxu0 0
    %7713 = vmatprep.subr.bf16.mxu0 0
    %7714 = vmatpush1.bf16.msra.mxu0 0
    %7715 = vmatprep.subr.bf16.mxu0 0
    %7716 = vmatpush1.bf16.msra.mxu0 0
    %7717 = vmatprep.subr.bf16.mxu0 0
    %7718 = vmatpush1.bf16.msra.mxu0 0
    %7719 = vmatprep.subr.bf16.mxu0 0
    %7720 = vmatpush1.bf16.msra.mxu0 0
    %7721 = vmatprep.subr.bf16.mxu0 0
    %7722 = vmatpush1.bf16.msra.mxu0 0
    %7723 = vmatprep.mubr.bf16.mxu0 0
    %7724 = vmatmul.mubr.bf16.gmra.mrb[0].mxu0 %v7686
    %v7725 = vpop.f32.mrb[0].mxu0
    %v7726 = vadd.f32 0.0, %v7725
    %v7727 = vpop.f32.mrb[0].mxu0
    %v7728 = vpop.f32.mrb[0].mxu0
    %v7729 = vadd.f32 0.0, %v7728
    %v7730 = vpop.f32.mrb[0].mxu0
    %7731 = vdwg.mxu0
    %v7732 = vadd.f32 %v7672, %v7726
    %v7733 = vadd.f32 %v7673, %v7729
    %s7734 = scalar_lea.vmem %s4, 272
    %v7735 = vld [vmem:[%s7734] sm:$0xf]
    %v7736 = vld [vmem:[%s7734 + $0x4] sm:$0xf]
    %v7739 = vunpack.c.l.b16 %v7735
    %v7740 = vunpack.c.l.b16 %v7736
    %v7741 = vpack.c.b16 %v7740, %v7739
    %v7743 = vsel %vm5762, %v7741, 0
    %v7746 = vsel %vm46, %v5748, 0
    %7748 = vmatprep.subr.bf16.mxu0 0
    %7749 = vmatpush1.bf16.msra.mxu0 %v7746
    %7750 = vmatprep.subr.bf16.mxu0 0
    %7751 = vmatpush1.bf16.msra.mxu0 0
    %7752 = vmatprep.subr.bf16.mxu0 0
    %7753 = vmatpush1.bf16.msra.mxu0 0
    %7754 = vmatprep.subr.bf16.mxu0 0
    %7755 = vmatpush1.bf16.msra.mxu0 0
    %7756 = vmatprep.subr.bf16.mxu0 0
    %7757 = vmatpush1.bf16.msra.mxu0 0
    %7758 = vmatprep.subr.bf16.mxu0 0
    %7759 = vmatpush1.bf16.msra.mxu0 0
    %7760 = vmatprep.subr.bf16.mxu0 0
    %7761 = vmatpush1.bf16.msra.mxu0 0
    %7762 = vmatprep.subr.bf16.mxu0 0
    %7763 = vmatpush1.bf16.msra.mxu0 0
    %7764 = vmatprep.subr.bf16.mxu0 0
    %7765 = vmatpush1.bf16.msra.mxu0 0
    %7766 = vmatprep.subr.bf16.mxu0 0
    %7767 = vmatpush1.bf16.msra.mxu0 0
    %7768 = vmatprep.subr.bf16.mxu0 0
    %7769 = vmatpush1.bf16.msra.mxu0 0
    %7770 = vmatprep.subr.bf16.mxu0 0
    %7771 = vmatpush1.bf16.msra.mxu0 0
    %7772 = vmatprep.subr.bf16.mxu0 0
    %7773 = vmatpush1.bf16.msra.mxu0 0
    %7774 = vmatprep.subr.bf16.mxu0 0
    %7775 = vmatpush1.bf16.msra.mxu0 0
    %7776 = vmatprep.subr.bf16.mxu0 0
    %7777 = vmatpush1.bf16.msra.mxu0 0
    %7778 = vmatprep.subr.bf16.mxu0 0
    %7779 = vmatpush1.bf16.msra.mxu0 0
    %7780 = vmatprep.mubr.bf16.mxu0 0
    %7781 = vmatmul.mubr.bf16.gmra.mrb[0].mxu0 %v7743
    %v7782 = vpop.f32.mrb[0].mxu0
    %v7783 = vadd.f32 0.0, %v7782
    %v7784 = vpop.f32.mrb[0].mxu0
    %v7785 = vpop.f32.mrb[0].mxu0
    %v7786 = vadd.f32 0.0, %v7785
    %v7787 = vpop.f32.mrb[0].mxu0
    %7788 = vdwg.mxu0
    %v7789 = vadd.f32 %v7732, %v7783
    %v7790 = vadd.f32 %v7733, %v7786
    %s7791 = scalar_lea.vmem %s4, 280
    %v7792 = vld [vmem:[%s7791] sm:$0xf]
    %v7793 = vld [vmem:[%s7791 + $0x4] sm:$0xf]
    %v7796 = vunpack.c.l.b16 %v7792
    %v7797 = vunpack.c.l.b16 %v7793
    %v7798 = vpack.c.b16 %v7797, %v7796
    %7800 = vrot.lane.b32.xlu0 %v5748, 64
    %v7801 = vpop.permute.xlu0 %7800
    %v7803 = vsel %vm5762, %v7798, 0
    %v7806 = vsel %vm46, %v7801, 0
    %7808 = vmatprep.subr.bf16.mxu0 0
    %7809 = vmatpush1.bf16.msra.mxu0 %v7806
    %7810 = vmatprep.subr.bf16.mxu0 0
    %7811 = vmatpush1.bf16.msra.mxu0 0
    %7812 = vmatprep.subr.bf16.mxu0 0
    %7813 = vmatpush1.bf16.msra.mxu0 0
    %7814 = vmatprep.subr.bf16.mxu0 0
    %7815 = vmatpush1.bf16.msra.mxu0 0
    %7816 = vmatprep.subr.bf16.mxu0 0
    %7817 = vmatpush1.bf16.msra.mxu0 0
    %7818 = vmatprep.subr.bf16.mxu0 0
    %7819 = vmatpush1.bf16.msra.mxu0 0
    %7820 = vmatprep.subr.bf16.mxu0 0
    %7821 = vmatpush1.bf16.msra.mxu0 0
    %7822 = vmatprep.subr.bf16.mxu0 0
    %7823 = vmatpush1.bf16.msra.mxu0 0
    %7824 = vmatprep.subr.bf16.mxu0 0
    %7825 = vmatpush1.bf16.msra.mxu0 0
    %7826 = vmatprep.subr.bf16.mxu0 0
    %7827 = vmatpush1.bf16.msra.mxu0 0
    %7828 = vmatprep.subr.bf16.mxu0 0
    %7829 = vmatpush1.bf16.msra.mxu0 0
    %7830 = vmatprep.subr.bf16.mxu0 0
    %7831 = vmatpush1.bf16.msra.mxu0 0
    %7832 = vmatprep.subr.bf16.mxu0 0
    %7833 = vmatpush1.bf16.msra.mxu0 0
    %7834 = vmatprep.subr.bf16.mxu0 0
    %7835 = vmatpush1.bf16.msra.mxu0 0
    %7836 = vmatprep.subr.bf16.mxu0 0
    %7837 = vmatpush1.bf16.msra.mxu0 0
    %7838 = vmatprep.subr.bf16.mxu0 0
    %7839 = vmatpush1.bf16.msra.mxu0 0
    %7840 = vmatprep.mubr.bf16.mxu0 0
    %7841 = vmatmul.mubr.bf16.gmra.mrb[0].mxu0 %v7803
    %v7842 = vpop.f32.mrb[0].mxu0
    %v7843 = vadd.f32 0.0, %v7842
    %v7844 = vpop.f32.mrb[0].mxu0
    %v7845 = vpop.f32.mrb[0].mxu0
    %v7846 = vadd.f32 0.0, %v7845
    %v7847 = vpop.f32.mrb[0].mxu0
    %7848 = vdwg.mxu0
    %v7849 = vadd.f32 %v7789, %v7843
    %v7850 = vadd.f32 %v7790, %v7846
    %v7851 = vld [vmem:[%s5] sm:$0xff]
    %v7852 = vld [vmem:[%s5 + $0x8] sm:$0xff]
    %7854 = vset.pattern.permute.xlu0 0
    %7855 = vperm.xlu0 %7854, %v7851
    %v7856 = vpop.permute.xlu0 %7855
    %7859 = vset.pattern.permute.xlu0 0
    %7860 = vperm.xlu0 %7859, %v7852
    %v7861 = vpop.permute.xlu0 %7860
    %v7863 = vadd.f32 %v7849, %v7856
    %v7864 = vadd.f32 %v7850, %v7861
    %vm7865 = vcmp.ge.f32.partialorder %v7863, 0.0
    %vm7866 = vcmp.ge.f32.partialorder %v7864, 0.0
    %v7867 = vstv %s2273
    %v7868 = vmul.f32 %v7867, %v7863
    %v7869 = vmul.f32 %v7867, %v7864
    %v7870 = vsel %vm7865, %v7863, %v7868
    %v7871 = vsel %vm7866, %v7864, %v7869
    %v7872 = vld [vmem:[%s161] sm:$0xff]
    %v7873 = vld [vmem:[%s161 + $0x8] sm:$0xff]
    %v7876 = vunpack.c.l.b16 %v7872
    %v7877 = vunpack.c.h.b16 %v7872
    %v7878 = vunpack.c.l.b16 %v7873
    %v7879 = vunpack.c.h.b16 %v7873
    %v7880 = vpack.c.b16 %v7876, %v7876
    %v7881 = vpack.c.b16 %v7877, %v7877
    %v7882 = vpack.c.b16 %v7878, %v7878
    %v7883 = vpack.c.b16 %v7879, %v7879
    %v7888 = vsel %vm4989, %v7883, 0
    %7890 = vmatprep.subr.bf16.mxu0 %v4090
    %7891 = vmatpush1.bf16.msra.mxu0 %v4089
    %7892 = vmatprep.subr.bf16.mxu0 %v4108
    %7893 = vmatpush1.bf16.msra.mxu0 %v4107
    %7894 = vmatprep.subr.bf16.mxu0 %v4126
    %7895 = vmatpush1.bf16.msra.mxu0 %v4125
    %7896 = vmatprep.subr.bf16.mxu0 %v4144
    %7897 = vmatpush1.bf16.msra.mxu0 %v4143
    %7898 = vmatprep.subr.bf16.mxu0 %v4162
    %7899 = vmatpush1.bf16.msra.mxu0 %v4161
    %7900 = vmatprep.subr.bf16.mxu0 %v4180
    %7901 = vmatpush1.bf16.msra.mxu0 %v4179
    %7902 = vmatprep.subr.bf16.mxu0 %v4198
    %7903 = vmatpush1.bf16.msra.mxu0 %v4197
    %7904 = vmatprep.subr.bf16.mxu0 %v4216
    %7905 = vmatpush1.bf16.msra.mxu0 %v4215
    %7906 = vmatprep.subr.bf16.mxu0 %v4234
    %7907 = vmatpush1.bf16.msra.mxu0 %v4233
    %7908 = vmatprep.subr.bf16.mxu0 %v4252
    %7909 = vmatpush1.bf16.msra.mxu0 %v4251
    %7910 = vmatprep.subr.bf16.mxu0 %v4270
    %7911 = vmatpush1.bf16.msra.mxu0 %v4269
    %7912 = vmatprep.subr.bf16.mxu0 %v4288
    %7913 = vmatpush1.bf16.msra.mxu0 %v4287
    %7914 = vmatprep.subr.bf16.mxu0 %v4306
    %7915 = vmatpush1.bf16.msra.mxu0 %v4305
    %7916 = vmatprep.subr.bf16.mxu0 %v4324
    %7917 = vmatpush1.bf16.msra.mxu0 %v4323
    %7918 = vmatprep.subr.bf16.mxu0 %v4342
    %7919 = vmatpush1.bf16.msra.mxu0 %v4341
    %7920 = vmatprep.subr.bf16.mxu0 %v4360
    %7921 = vmatpush1.bf16.msra.mxu0 %v4359
    %7922 = vmatprep.mubr.bf16.mxu0 %v7881
    %7923 = vmatmul.mubr.bf16.gmra.mrb[0].mxu0 %v7880
    %v7924 = vpop.f32.mrb[0].mxu0
    %v7925 = vadd.f32 0.0, %v7924
    %v7926 = vpop.f32.mrb[0].mxu0
    %v7927 = vadd.f32 0.0, %v7926
    %v7928 = vpop.f32.mrb[0].mxu0
    %v7929 = vpop.f32.mrb[0].mxu0
    %7930 = vdwg.mxu0
    %7931 = vmatprep.subr.bf16.mxu0 %v4378
    %7932 = vmatpush1.bf16.msra.mxu0 %v4377
    %7933 = vmatprep.subr.bf16.mxu0 %v4396
    %7934 = vmatpush1.bf16.msra.mxu0 %v4395
    %7935 = vmatprep.subr.bf16.mxu0 %v4414
    %7936 = vmatpush1.bf16.msra.mxu0 %v4413
    %7937 = vmatprep.subr.bf16.mxu0 %v4432
    %7938 = vmatpush1.bf16.msra.mxu0 %v4431
    %7939 = vmatprep.subr.bf16.mxu0 %v4450
    %7940 = vmatpush1.bf16.msra.mxu0 %v4449
    %7941 = vmatprep.subr.bf16.mxu0 %v4468
    %7942 = vmatpush1.bf16.msra.mxu0 %v4467
    %7943 = vmatprep.subr.bf16.mxu0 %v4486
    %7944 = vmatpush1.bf16.msra.mxu0 %v4485
    %7945 = vmatprep.subr.bf16.mxu0 %v4504
    %7946 = vmatpush1.bf16.msra.mxu0 %v4503
    %7947 = vmatprep.subr.bf16.mxu0 %v4522
    %7948 = vmatpush1.bf16.msra.mxu0 %v4521
    %7949 = vmatprep.subr.bf16.mxu0 0
    %7950 = vmatpush1.bf16.msra.mxu0 0
    %7951 = vmatprep.subr.bf16.mxu0 0
    %7952 = vmatpush1.bf16.msra.mxu0 0
    %7953 = vmatprep.subr.bf16.mxu0 0
    %7954 = vmatpush1.bf16.msra.mxu0 0
    %7955 = vmatprep.subr.bf16.mxu0 0
    %7956 = vmatpush1.bf16.msra.mxu0 0
    %7957 = vmatprep.subr.bf16.mxu0 0
    %7958 = vmatpush1.bf16.msra.mxu0 0
    %7959 = vmatprep.subr.bf16.mxu0 0
    %7960 = vmatpush1.bf16.msra.mxu0 0
    %7961 = vmatprep.subr.bf16.mxu0 0
    %7962 = vmatpush1.bf16.msra.mxu0 0
    %7963 = vmatprep.mubr.bf16.mxu0 %v7888
    %7964 = vmatmul.mubr.bf16.gmra.mrb[0].mxu0 %v7882
    %v7965 = vpop.f32.mrb[0].mxu0
    %v7966 = vadd.f32 %v7925, %v7965
    %v7967 = vpop.f32.mrb[0].mxu0
    %v7968 = vadd.f32 %v7927, %v7967
    %v7969 = vpop.f32.mrb[0].mxu0
    %v7970 = vpop.f32.mrb[0].mxu0
    %7971 = vdwg.mxu0
    %7972 = vmatprep.subr.bf16.mxu0 %v4092
    %7973 = vmatpush1.bf16.msra.mxu0 %v4091
    %7974 = vmatprep.subr.bf16.mxu0 %v4110
    %7975 = vmatpush1.bf16.msra.mxu0 %v4109
    %7976 = vmatprep.subr.bf16.mxu0 %v4128
    %7977 = vmatpush1.bf16.msra.mxu0 %v4127
    %7978 = vmatprep.subr.bf16.mxu0 %v4146
    %7979 = vmatpush1.bf16.msra.mxu0 %v4145
    %7980 = vmatprep.subr.bf16.mxu0 %v4164
    %7981 = vmatpush1.bf16.msra.mxu0 %v4163
    %7982 = vmatprep.subr.bf16.mxu0 %v4182
    %7983 = vmatpush1.bf16.msra.mxu0 %v4181
    %7984 = vmatprep.subr.bf16.mxu0 %v4200
    %7985 = vmatpush1.bf16.msra.mxu0 %v4199
    %7986 = vmatprep.subr.bf16.mxu0 %v4218
    %7987 = vmatpush1.bf16.msra.mxu0 %v4217
    %7988 = vmatprep.subr.bf16.mxu0 %v4236
    %7989 = vmatpush1.bf16.msra.mxu0 %v4235
    %7990 = vmatprep.subr.bf16.mxu0 %v4254
    %7991 = vmatpush1.bf16.msra.mxu0 %v4253
    %7992 = vmatprep.subr.bf16.mxu0 %v4272
    %7993 = vmatpush1.bf16.msra.mxu0 %v4271
    %7994 = vmatprep.subr.bf16.mxu0 %v4290
    %7995 = vmatpush1.bf16.msra.mxu0 %v4289
    %7996 = vmatprep.subr.bf16.mxu0 %v4308
    %7997 = vmatpush1.bf16.msra.mxu0 %v4307
    %7998 = vmatprep.subr.bf16.mxu0 %v4326
    %7999 = vmatpush1.bf16.msra.mxu0 %v4325
    %8000 = vmatprep.subr.bf16.mxu0 %v4344
    %8001 = vmatpush1.bf16.msra.mxu0 %v4343
    %8002 = vmatprep.subr.bf16.mxu0 %v4362
    %8003 = vmatpush1.bf16.msra.mxu0 %v4361
    %8004 = vmatprep.mubr.bf16.mxu0 %v7881
    %8005 = vmatmul.mubr.bf16.gmra.mrb[0].mxu0 %v7880
    %v8006 = vpop.f32.mrb[0].mxu0
    %v8007 = vadd.f32 0.0, %v8006
    %v8008 = vpop.f32.mrb[0].mxu0
    %v8009 = vadd.f32 0.0, %v8008
    %v8010 = vpop.f32.mrb[0].mxu0
    %v8011 = vpop.f32.mrb[0].mxu0
    %8012 = vdwg.mxu0
    %8013 = vmatprep.subr.bf16.mxu0 %v4380
    %8014 = vmatpush1.bf16.msra.mxu0 %v4379
    %8015 = vmatprep.subr.bf16.mxu0 %v4398
    %8016 = vmatpush1.bf16.msra.mxu0 %v4397
    %8017 = vmatprep.subr.bf16.mxu0 %v4416
    %8018 = vmatpush1.bf16.msra.mxu0 %v4415
    %8019 = vmatprep.subr.bf16.mxu0 %v4434
    %8020 = vmatpush1.bf16.msra.mxu0 %v4433
    %8021 = vmatprep.subr.bf16.mxu0 %v4452
    %8022 = vmatpush1.bf16.msra.mxu0 %v4451
    %8023 = vmatprep.subr.bf16.mxu0 %v4470
    %8024 = vmatpush1.bf16.msra.mxu0 %v4469
    %8025 = vmatprep.subr.bf16.mxu0 %v4488
    %8026 = vmatpush1.bf16.msra.mxu0 %v4487
    %8027 = vmatprep.subr.bf16.mxu0 %v4506
    %8028 = vmatpush1.bf16.msra.mxu0 %v4505
    %8029 = vmatprep.subr.bf16.mxu0 %v4524
    %8030 = vmatpush1.bf16.msra.mxu0 %v4523
    %8031 = vmatprep.subr.bf16.mxu0 0
    %8032 = vmatpush1.bf16.msra.mxu0 0
    %8033 = vmatprep.subr.bf16.mxu0 0
    %8034 = vmatpush1.bf16.msra.mxu0 0
    %8035 = vmatprep.subr.bf16.mxu0 0
    %8036 = vmatpush1.bf16.msra.mxu0 0
    %8037 = vmatprep.subr.bf16.mxu0 0
    %8038 = vmatpush1.bf16.msra.mxu0 0
    %8039 = vmatprep.subr.bf16.mxu0 0
    %8040 = vmatpush1.bf16.msra.mxu0 0
    %8041 = vmatprep.subr.bf16.mxu0 0
    %8042 = vmatpush1.bf16.msra.mxu0 0
    %8043 = vmatprep.subr.bf16.mxu0 0
    %8044 = vmatpush1.bf16.msra.mxu0 0
    %8045 = vmatprep.mubr.bf16.mxu0 %v7888
    %8046 = vmatmul.mubr.bf16.gmra.mrb[0].mxu0 %v7882
    %v8047 = vpop.f32.mrb[0].mxu0
    %v8048 = vadd.f32 %v8007, %v8047
    %v8049 = vpop.f32.mrb[0].mxu0
    %v8050 = vadd.f32 %v8009, %v8049
    %v8051 = vpop.f32.mrb[0].mxu0
    %v8052 = vpop.f32.mrb[0].mxu0
    %8053 = vdwg.mxu0
    %8054 = vmatprep.subr.bf16.mxu0 %v4094
    %8055 = vmatpush1.bf16.msra.mxu0 %v4093
    %8056 = vmatprep.subr.bf16.mxu0 %v4112
    %8057 = vmatpush1.bf16.msra.mxu0 %v4111
    %8058 = vmatprep.subr.bf16.mxu0 %v4130
    %8059 = vmatpush1.bf16.msra.mxu0 %v4129
    %8060 = vmatprep.subr.bf16.mxu0 %v4148
    %8061 = vmatpush1.bf16.msra.mxu0 %v4147
    %8062 = vmatprep.subr.bf16.mxu0 %v4166
    %8063 = vmatpush1.bf16.msra.mxu0 %v4165
    %8064 = vmatprep.subr.bf16.mxu0 %v4184
    %8065 = vmatpush1.bf16.msra.mxu0 %v4183
    %8066 = vmatprep.subr.bf16.mxu0 %v4202
    %8067 = vmatpush1.bf16.msra.mxu0 %v4201
    %8068 = vmatprep.subr.bf16.mxu0 %v4220
    %8069 = vmatpush1.bf16.msra.mxu0 %v4219
    %8070 = vmatprep.subr.bf16.mxu0 %v4238
    %8071 = vmatpush1.bf16.msra.mxu0 %v4237
    %8072 = vmatprep.subr.bf16.mxu0 %v4256
    %8073 = vmatpush1.bf16.msra.mxu0 %v4255
    %8074 = vmatprep.subr.bf16.mxu0 %v4274
    %8075 = vmatpush1.bf16.msra.mxu0 %v4273
    %8076 = vmatprep.subr.bf16.mxu0 %v4292
    %8077 = vmatpush1.bf16.msra.mxu0 %v4291
    %8078 = vmatprep.subr.bf16.mxu0 %v4310
    %8079 = vmatpush1.bf16.msra.mxu0 %v4309
    %8080 = vmatprep.subr.bf16.mxu0 %v4328
    %8081 = vmatpush1.bf16.msra.mxu0 %v4327
    %8082 = vmatprep.subr.bf16.mxu0 %v4346
    %8083 = vmatpush1.bf16.msra.mxu0 %v4345
    %8084 = vmatprep.subr.bf16.mxu0 %v4364
    %8085 = vmatpush1.bf16.msra.mxu0 %v4363
    %8086 = vmatprep.mubr.bf16.mxu0 %v7881
    %8087 = vmatmul.mubr.bf16.gmra.mrb[0].mxu0 %v7880
    %v8088 = vpop.f32.mrb[0].mxu0
    %v8089 = vadd.f32 0.0, %v8088
    %v8090 = vpop.f32.mrb[0].mxu0
    %v8091 = vadd.f32 0.0, %v8090
    %v8092 = vpop.f32.mrb[0].mxu0
    %v8093 = vpop.f32.mrb[0].mxu0
    %8094 = vdwg.mxu0
    %8095 = vmatprep.subr.bf16.mxu0 %v4382
    %8096 = vmatpush1.bf16.msra.mxu0 %v4381
    %8097 = vmatprep.subr.bf16.mxu0 %v4400
    %8098 = vmatpush1.bf16.msra.mxu0 %v4399
    %8099 = vmatprep.subr.bf16.mxu0 %v4418
    %8100 = vmatpush1.bf16.msra.mxu0 %v4417
    %8101 = vmatprep.subr.bf16.mxu0 %v4436
    %8102 = vmatpush1.bf16.msra.mxu0 %v4435
    %8103 = vmatprep.subr.bf16.mxu0 %v4454
    %8104 = vmatpush1.bf16.msra.mxu0 %v4453
    %8105 = vmatprep.subr.bf16.mxu0 %v4472
    %8106 = vmatpush1.bf16.msra.mxu0 %v4471
    %8107 = vmatprep.subr.bf16.mxu0 %v4490
    %8108 = vmatpush1.bf16.msra.mxu0 %v4489
    %8109 = vmatprep.subr.bf16.mxu0 %v4508
    %8110 = vmatpush1.bf16.msra.mxu0 %v4507
    %8111 = vmatprep.subr.bf16.mxu0 %v4526
    %8112 = vmatpush1.bf16.msra.mxu0 %v4525
    %8113 = vmatprep.subr.bf16.mxu0 0
    %8114 = vmatpush1.bf16.msra.mxu0 0
    %8115 = vmatprep.subr.bf16.mxu0 0
    %8116 = vmatpush1.bf16.msra.mxu0 0
    %8117 = vmatprep.subr.bf16.mxu0 0
    %8118 = vmatpush1.bf16.msra.mxu0 0
    %8119 = vmatprep.subr.bf16.mxu0 0
    %8120 = vmatpush1.bf16.msra.mxu0 0
    %8121 = vmatprep.subr.bf16.mxu0 0
    %8122 = vmatpush1.bf16.msra.mxu0 0
    %8123 = vmatprep.subr.bf16.mxu0 0
    %8124 = vmatpush1.bf16.msra.mxu0 0
    %8125 = vmatprep.subr.bf16.mxu0 0
    %8126 = vmatpush1.bf16.msra.mxu0 0
    %8127 = vmatprep.mubr.bf16.mxu0 %v7888
    %8128 = vmatmul.mubr.bf16.gmra.mrb[0].mxu0 %v7882
    %v8129 = vpop.f32.mrb[0].mxu0
    %v8130 = vadd.f32 %v8089, %v8129
    %v8131 = vpop.f32.mrb[0].mxu0
    %v8132 = vadd.f32 %v8091, %v8131
    %v8133 = vpop.f32.mrb[0].mxu0
    %v8134 = vpop.f32.mrb[0].mxu0
    %8135 = vdwg.mxu0
    %8136 = vmatprep.subr.bf16.mxu0 %v4096
    %8137 = vmatpush1.bf16.msra.mxu0 %v4095
    %8138 = vmatprep.subr.bf16.mxu0 %v4114
    %8139 = vmatpush1.bf16.msra.mxu0 %v4113
    %8140 = vmatprep.subr.bf16.mxu0 %v4132
    %8141 = vmatpush1.bf16.msra.mxu0 %v4131
    %8142 = vmatprep.subr.bf16.mxu0 %v4150
    %8143 = vmatpush1.bf16.msra.mxu0 %v4149
    %8144 = vmatprep.subr.bf16.mxu0 %v4168
    %8145 = vmatpush1.bf16.msra.mxu0 %v4167
    %8146 = vmatprep.subr.bf16.mxu0 %v4186
    %8147 = vmatpush1.bf16.msra.mxu0 %v4185
    %8148 = vmatprep.subr.bf16.mxu0 %v4204
    %8149 = vmatpush1.bf16.msra.mxu0 %v4203
    %8150 = vmatprep.subr.bf16.mxu0 %v4222
    %8151 = vmatpush1.bf16.msra.mxu0 %v4221
    %8152 = vmatprep.subr.bf16.mxu0 %v4240
    %8153 = vmatpush1.bf16.msra.mxu0 %v4239
    %8154 = vmatprep.subr.bf16.mxu0 %v4258
    %8155 = vmatpush1.bf16.msra.mxu0 %v4257
    %8156 = vmatprep.subr.bf16.mxu0 %v4276
    %8157 = vmatpush1.bf16.msra.mxu0 %v4275
    %8158 = vmatprep.subr.bf16.mxu0 %v4294
    %8159 = vmatpush1.bf16.msra.mxu0 %v4293
    %8160 = vmatprep.subr.bf16.mxu0 %v4312
    %8161 = vmatpush1.bf16.msra.mxu0 %v4311
    %8162 = vmatprep.subr.bf16.mxu0 %v4330
    %8163 = vmatpush1.bf16.msra.mxu0 %v4329
    %8164 = vmatprep.subr.bf16.mxu0 %v4348
    %8165 = vmatpush1.bf16.msra.mxu0 %v4347
    %8166 = vmatprep.subr.bf16.mxu0 %v4366
    %8167 = vmatpush1.bf16.msra.mxu0 %v4365
    %8168 = vmatprep.mubr.bf16.mxu0 %v7881
    %8169 = vmatmul.mubr.bf16.gmra.mrb[0].mxu0 %v7880
    %v8170 = vpop.f32.mrb[0].mxu0
    %v8171 = vadd.f32 0.0, %v8170
    %v8172 = vpop.f32.mrb[0].mxu0
    %v8173 = vadd.f32 0.0, %v8172
    %v8174 = vpop.f32.mrb[0].mxu0
    %v8175 = vpop.f32.mrb[0].mxu0
    %8176 = vdwg.mxu0
    %8177 = vmatprep.subr.bf16.mxu0 %v4384
    %8178 = vmatpush1.bf16.msra.mxu0 %v4383
    %8179 = vmatprep.subr.bf16.mxu0 %v4402
    %8180 = vmatpush1.bf16.msra.mxu0 %v4401
    %8181 = vmatprep.subr.bf16.mxu0 %v4420
    %8182 = vmatpush1.bf16.msra.mxu0 %v4419
    %8183 = vmatprep.subr.bf16.mxu0 %v4438
    %8184 = vmatpush1.bf16.msra.mxu0 %v4437
    %8185 = vmatprep.subr.bf16.mxu0 %v4456
    %8186 = vmatpush1.bf16.msra.mxu0 %v4455
    %8187 = vmatprep.subr.bf16.mxu0 %v4474
    %8188 = vmatpush1.bf16.msra.mxu0 %v4473
    %8189 = vmatprep.subr.bf16.mxu0 %v4492
    %8190 = vmatpush1.bf16.msra.mxu0 %v4491
    %8191 = vmatprep.subr.bf16.mxu0 %v4510
    %8192 = vmatpush1.bf16.msra.mxu0 %v4509
    %8193 = vmatprep.subr.bf16.mxu0 %v4528
    %8194 = vmatpush1.bf16.msra.mxu0 %v4527
    %8195 = vmatprep.subr.bf16.mxu0 0
    %8196 = vmatpush1.bf16.msra.mxu0 0
    %8197 = vmatprep.subr.bf16.mxu0 0
    %8198 = vmatpush1.bf16.msra.mxu0 0
    %8199 = vmatprep.subr.bf16.mxu0 0
    %8200 = vmatpush1.bf16.msra.mxu0 0
    %8201 = vmatprep.subr.bf16.mxu0 0
    %8202 = vmatpush1.bf16.msra.mxu0 0
    %8203 = vmatprep.subr.bf16.mxu0 0
    %8204 = vmatpush1.bf16.msra.mxu0 0
    %8205 = vmatprep.subr.bf16.mxu0 0
    %8206 = vmatpush1.bf16.msra.mxu0 0
    %8207 = vmatprep.subr.bf16.mxu0 0
    %8208 = vmatpush1.bf16.msra.mxu0 0
    %8209 = vmatprep.mubr.bf16.mxu0 %v7888
    %8210 = vmatmul.mubr.bf16.gmra.mrb[0].mxu0 %v7882
    %v8211 = vpop.f32.mrb[0].mxu0
    %v8212 = vadd.f32 %v8171, %v8211
    %v8213 = vpop.f32.mrb[0].mxu0
    %v8214 = vadd.f32 %v8173, %v8213
    %v8215 = vpop.f32.mrb[0].mxu0
    %v8216 = vpop.f32.mrb[0].mxu0
    %8217 = vdwg.mxu0
    %8218 = vmatprep.subr.bf16.mxu0 %v4098
    %8219 = vmatpush1.bf16.msra.mxu0 %v4097
    %8220 = vmatprep.subr.bf16.mxu0 %v4116
    %8221 = vmatpush1.bf16.msra.mxu0 %v4115
    %8222 = vmatprep.subr.bf16.mxu0 %v4134
    %8223 = vmatpush1.bf16.msra.mxu0 %v4133
    %8224 = vmatprep.subr.bf16.mxu0 %v4152
    %8225 = vmatpush1.bf16.msra.mxu0 %v4151
    %8226 = vmatprep.subr.bf16.mxu0 %v4170
    %8227 = vmatpush1.bf16.msra.mxu0 %v4169
    %8228 = vmatprep.subr.bf16.mxu0 %v4188
    %8229 = vmatpush1.bf16.msra.mxu0 %v4187
    %8230 = vmatprep.subr.bf16.mxu0 %v4206
    %8231 = vmatpush1.bf16.msra.mxu0 %v4205
    %8232 = vmatprep.subr.bf16.mxu0 %v4224
    %8233 = vmatpush1.bf16.msra.mxu0 %v4223
    %8234 = vmatprep.subr.bf16.mxu0 %v4242
    %8235 = vmatpush1.bf16.msra.mxu0 %v4241
    %8236 = vmatprep.subr.bf16.mxu0 %v4260
    %8237 = vmatpush1.bf16.msra.mxu0 %v4259
    %8238 = vmatprep.subr.bf16.mxu0 %v4278
    %8239 = vmatpush1.bf16.msra.mxu0 %v4277
    %8240 = vmatprep.subr.bf16.mxu0 %v4296
    %8241 = vmatpush1.bf16.msra.mxu0 %v4295
    %8242 = vmatprep.subr.bf16.mxu0 %v4314
    %8243 = vmatpush1.bf16.msra.mxu0 %v4313
    %8244 = vmatprep.subr.bf16.mxu0 %v4332
    %8245 = vmatpush1.bf16.msra.mxu0 %v4331
    %8246 = vmatprep.subr.bf16.mxu0 %v4350
    %8247 = vmatpush1.bf16.msra.mxu0 %v4349
    %8248 = vmatprep.subr.bf16.mxu0 %v4368
    %8249 = vmatpush1.bf16.msra.mxu0 %v4367
    %8250 = vmatprep.mubr.bf16.mxu0 %v7881
    %8251 = vmatmul.mubr.bf16.gmra.mrb[0].mxu0 %v7880
    %v8252 = vpop.f32.mrb[0].mxu0
    %v8253 = vadd.f32 0.0, %v8252
    %v8254 = vpop.f32.mrb[0].mxu0
    %v8255 = vadd.f32 0.0, %v8254
    %v8256 = vpop.f32.mrb[0].mxu0
    %v8257 = vpop.f32.mrb[0].mxu0
    %8258 = vdwg.mxu0
    %8259 = vmatprep.subr.bf16.mxu0 %v4386
    %8260 = vmatpush1.bf16.msra.mxu0 %v4385
    %8261 = vmatprep.subr.bf16.mxu0 %v4404
    %8262 = vmatpush1.bf16.msra.mxu0 %v4403
    %8263 = vmatprep.subr.bf16.mxu0 %v4422
    %8264 = vmatpush1.bf16.msra.mxu0 %v4421
    %8265 = vmatprep.subr.bf16.mxu0 %v4440
    %8266 = vmatpush1.bf16.msra.mxu0 %v4439
    %8267 = vmatprep.subr.bf16.mxu0 %v4458
    %8268 = vmatpush1.bf16.msra.mxu0 %v4457
    %8269 = vmatprep.subr.bf16.mxu0 %v4476
    %8270 = vmatpush1.bf16.msra.mxu0 %v4475
    %8271 = vmatprep.subr.bf16.mxu0 %v4494
    %8272 = vmatpush1.bf16.msra.mxu0 %v4493
    %8273 = vmatprep.subr.bf16.mxu0 %v4512
    %8274 = vmatpush1.bf16.msra.mxu0 %v4511
    %8275 = vmatprep.subr.bf16.mxu0 %v4530
    %8276 = vmatpush1.bf16.msra.mxu0 %v4529
    %8277 = vmatprep.subr.bf16.mxu0 0
    %8278 = vmatpush1.bf16.msra.mxu0 0
    %8279 = vmatprep.subr.bf16.mxu0 0
    %8280 = vmatpush1.bf16.msra.mxu0 0
    %8281 = vmatprep.subr.bf16.mxu0 0
    %8282 = vmatpush1.bf16.msra.mxu0 0
    %8283 = vmatprep.subr.bf16.mxu0 0
    %8284 = vmatpush1.bf16.msra.mxu0 0
    %8285 = vmatprep.subr.bf16.mxu0 0
    %8286 = vmatpush1.bf16.msra.mxu0 0
    %8287 = vmatprep.subr.bf16.mxu0 0
    %8288 = vmatpush1.bf16.msra.mxu0 0
    %8289 = vmatprep.subr.bf16.mxu0 0
    %8290 = vmatpush1.bf16.msra.mxu0 0
    %8291 = vmatprep.mubr.bf16.mxu0 %v7888
    %8292 = vmatmul.mubr.bf16.gmra.mrb[0].mxu0 %v7882
    %v8293 = vpop.f32.mrb[0].mxu0
    %v8294 = vadd.f32 %v8253, %v8293
    %v8295 = vpop.f32.mrb[0].mxu0
    %v8296 = vadd.f32 %v8255, %v8295
    %v8297 = vpop.f32.mrb[0].mxu0
    %v8298 = vpop.f32.mrb[0].mxu0
    %8299 = vdwg.mxu0
    %8300 = vmatprep.subr.bf16.mxu0 %v4100
    %8301 = vmatpush1.bf16.msra.mxu0 %v4099
    %8302 = vmatprep.subr.bf16.mxu0 %v4118
    %8303 = vmatpush1.bf16.msra.mxu0 %v4117
    %8304 = vmatprep.subr.bf16.mxu0 %v4136
    %8305 = vmatpush1.bf16.msra.mxu0 %v4135
    %8306 = vmatprep.subr.bf16.mxu0 %v4154
    %8307 = vmatpush1.bf16.msra.mxu0 %v4153
    %8308 = vmatprep.subr.bf16.mxu0 %v4172
    %8309 = vmatpush1.bf16.msra.mxu0 %v4171
    %8310 = vmatprep.subr.bf16.mxu0 %v4190
    %8311 = vmatpush1.bf16.msra.mxu0 %v4189
    %8312 = vmatprep.subr.bf16.mxu0 %v4208
    %8313 = vmatpush1.bf16.msra.mxu0 %v4207
    %8314 = vmatprep.subr.bf16.mxu0 %v4226
    %8315 = vmatpush1.bf16.msra.mxu0 %v4225
    %8316 = vmatprep.subr.bf16.mxu0 %v4244
    %8317 = vmatpush1.bf16.msra.mxu0 %v4243
    %8318 = vmatprep.subr.bf16.mxu0 %v4262
    %8319 = vmatpush1.bf16.msra.mxu0 %v4261
    %8320 = vmatprep.subr.bf16.mxu0 %v4280
    %8321 = vmatpush1.bf16.msra.mxu0 %v4279
    %8322 = vmatprep.subr.bf16.mxu0 %v4298
    %8323 = vmatpush1.bf16.msra.mxu0 %v4297
    %8324 = vmatprep.subr.bf16.mxu0 %v4316
    %8325 = vmatpush1.bf16.msra.mxu0 %v4315
    %8326 = vmatprep.subr.bf16.mxu0 %v4334
    %8327 = vmatpush1.bf16.msra.mxu0 %v4333
    %8328 = vmatprep.subr.bf16.mxu0 %v4352
    %8329 = vmatpush1.bf16.msra.mxu0 %v4351
    %8330 = vmatprep.subr.bf16.mxu0 %v4370
    %8331 = vmatpush1.bf16.msra.mxu0 %v4369
    %8332 = vmatprep.mubr.bf16.mxu0 %v7881
    %8333 = vmatmul.mubr.bf16.gmra.mrb[0].mxu0 %v7880
    %v8334 = vpop.f32.mrb[0].mxu0
    %v8335 = vadd.f32 0.0, %v8334
    %v8336 = vpop.f32.mrb[0].mxu0
    %v8337 = vadd.f32 0.0, %v8336
    %v8338 = vpop.f32.mrb[0].mxu0
    %v8339 = vpop.f32.mrb[0].mxu0
    %8340 = vdwg.mxu0
    %8341 = vmatprep.subr.bf16.mxu0 %v4388
    %8342 = vmatpush1.bf16.msra.mxu0 %v4387
    %8343 = vmatprep.subr.bf16.mxu0 %v4406
    %8344 = vmatpush1.bf16.msra.mxu0 %v4405
    %8345 = vmatprep.subr.bf16.mxu0 %v4424
    %8346 = vmatpush1.bf16.msra.mxu0 %v4423
    %8347 = vmatprep.subr.bf16.mxu0 %v4442
    %8348 = vmatpush1.bf16.msra.mxu0 %v4441
    %8349 = vmatprep.subr.bf16.mxu0 %v4460
    %8350 = vmatpush1.bf16.msra.mxu0 %v4459
    %8351 = vmatprep.subr.bf16.mxu0 %v4478
    %8352 = vmatpush1.bf16.msra.mxu0 %v4477
    %8353 = vmatprep.subr.bf16.mxu0 %v4496
    %8354 = vmatpush1.bf16.msra.mxu0 %v4495
    %8355 = vmatprep.subr.bf16.mxu0 %v4514
    %8356 = vmatpush1.bf16.msra.mxu0 %v4513
    %8357 = vmatprep.subr.bf16.mxu0 %v4532
    %8358 = vmatpush1.bf16.msra.mxu0 %v4531
    %8359 = vmatprep.subr.bf16.mxu0 0
    %8360 = vmatpush1.bf16.msra.mxu0 0
    %8361 = vmatprep.subr.bf16.mxu0 0
    %8362 = vmatpush1.bf16.msra.mxu0 0
    %8363 = vmatprep.subr.bf16.mxu0 0
    %8364 = vmatpush1.bf16.msra.mxu0 0
    %8365 = vmatprep.subr.bf16.mxu0 0
    %8366 = vmatpush1.bf16.msra.mxu0 0
    %8367 = vmatprep.subr.bf16.mxu0 0
    %8368 = vmatpush1.bf16.msra.mxu0 0
    %8369 = vmatprep.subr.bf16.mxu0 0
    %8370 = vmatpush1.bf16.msra.mxu0 0
    %8371 = vmatprep.subr.bf16.mxu0 0
    %8372 = vmatpush1.bf16.msra.mxu0 0
    %8373 = vmatprep.mubr.bf16.mxu0 %v7888
    %8374 = vmatmul.mubr.bf16.gmra.mrb[0].mxu0 %v7882
    %v8375 = vpop.f32.mrb[0].mxu0
    %v8376 = vadd.f32 %v8335, %v8375
    %v8377 = vpop.f32.mrb[0].mxu0
    %v8378 = vadd.f32 %v8337, %v8377
    %v8379 = vpop.f32.mrb[0].mxu0
    %v8380 = vpop.f32.mrb[0].mxu0
    %8381 = vdwg.mxu0
    %8382 = vmatprep.subr.bf16.mxu0 %v4102
    %8383 = vmatpush1.bf16.msra.mxu0 %v4101
    %8384 = vmatprep.subr.bf16.mxu0 %v4120
    %8385 = vmatpush1.bf16.msra.mxu0 %v4119
    %8386 = vmatprep.subr.bf16.mxu0 %v4138
    %8387 = vmatpush1.bf16.msra.mxu0 %v4137
    %8388 = vmatprep.subr.bf16.mxu0 %v4156
    %8389 = vmatpush1.bf16.msra.mxu0 %v4155
    %8390 = vmatprep.subr.bf16.mxu0 %v4174
    %8391 = vmatpush1.bf16.msra.mxu0 %v4173
    %8392 = vmatprep.subr.bf16.mxu0 %v4192
    %8393 = vmatpush1.bf16.msra.mxu0 %v4191
    %8394 = vmatprep.subr.bf16.mxu0 %v4210
    %8395 = vmatpush1.bf16.msra.mxu0 %v4209
    %8396 = vmatprep.subr.bf16.mxu0 %v4228
    %8397 = vmatpush1.bf16.msra.mxu0 %v4227
    %8398 = vmatprep.subr.bf16.mxu0 %v4246
    %8399 = vmatpush1.bf16.msra.mxu0 %v4245
    %8400 = vmatprep.subr.bf16.mxu0 %v4264
    %8401 = vmatpush1.bf16.msra.mxu0 %v4263
    %8402 = vmatprep.subr.bf16.mxu0 %v4282
    %8403 = vmatpush1.bf16.msra.mxu0 %v4281
    %8404 = vmatprep.subr.bf16.mxu0 %v4300
    %8405 = vmatpush1.bf16.msra.mxu0 %v4299
    %8406 = vmatprep.subr.bf16.mxu0 %v4318
    %8407 = vmatpush1.bf16.msra.mxu0 %v4317
    %8408 = vmatprep.subr.bf16.mxu0 %v4336
    %8409 = vmatpush1.bf16.msra.mxu0 %v4335
    %8410 = vmatprep.subr.bf16.mxu0 %v4354
    %8411 = vmatpush1.bf16.msra.mxu0 %v4353
    %8412 = vmatprep.subr.bf16.mxu0 %v4372
    %8413 = vmatpush1.bf16.msra.mxu0 %v4371
    %8414 = vmatprep.mubr.bf16.mxu0 %v7881
    %8415 = vmatmul.mubr.bf16.gmra.mrb[0].mxu0 %v7880
    %v8416 = vpop.f32.mrb[0].mxu0
    %v8417 = vadd.f32 0.0, %v8416
    %v8418 = vpop.f32.mrb[0].mxu0
    %v8419 = vadd.f32 0.0, %v8418
    %v8420 = vpop.f32.mrb[0].mxu0
    %v8421 = vpop.f32.mrb[0].mxu0
    %8422 = vdwg.mxu0
    %8423 = vmatprep.subr.bf16.mxu0 %v4390
    %8424 = vmatpush1.bf16.msra.mxu0 %v4389
    %8425 = vmatprep.subr.bf16.mxu0 %v4408
    %8426 = vmatpush1.bf16.msra.mxu0 %v4407
    %8427 = vmatprep.subr.bf16.mxu0 %v4426
    %8428 = vmatpush1.bf16.msra.mxu0 %v4425
    %8429 = vmatprep.subr.bf16.mxu0 %v4444
    %8430 = vmatpush1.bf16.msra.mxu0 %v4443
    %8431 = vmatprep.subr.bf16.mxu0 %v4462
    %8432 = vmatpush1.bf16.msra.mxu0 %v4461
    %8433 = vmatprep.subr.bf16.mxu0 %v4480
    %8434 = vmatpush1.bf16.msra.mxu0 %v4479
    %8435 = vmatprep.subr.bf16.mxu0 %v4498
    %8436 = vmatpush1.bf16.msra.mxu0 %v4497
    %8437 = vmatprep.subr.bf16.mxu0 %v4516
    %8438 = vmatpush1.bf16.msra.mxu0 %v4515
    %8439 = vmatprep.subr.bf16.mxu0 %v4534
    %8440 = vmatpush1.bf16.msra.mxu0 %v4533
    %8441 = vmatprep.subr.bf16.mxu0 0
    %8442 = vmatpush1.bf16.msra.mxu0 0
    %8443 = vmatprep.subr.bf16.mxu0 0
    %8444 = vmatpush1.bf16.msra.mxu0 0
    %8445 = vmatprep.subr.bf16.mxu0 0
    %8446 = vmatpush1.bf16.msra.mxu0 0
    %8447 = vmatprep.subr.bf16.mxu0 0
    %8448 = vmatpush1.bf16.msra.mxu0 0
    %8449 = vmatprep.subr.bf16.mxu0 0
    %8450 = vmatpush1.bf16.msra.mxu0 0
    %8451 = vmatprep.subr.bf16.mxu0 0
    %8452 = vmatpush1.bf16.msra.mxu0 0
    %8453 = vmatprep.subr.bf16.mxu0 0
    %8454 = vmatpush1.bf16.msra.mxu0 0
    %8455 = vmatprep.mubr.bf16.mxu0 %v7888
    %8456 = vmatmul.mubr.bf16.gmra.mrb[0].mxu0 %v7882
    %v8457 = vpop.f32.mrb[0].mxu0
    %v8458 = vadd.f32 %v8417, %v8457
    %v8459 = vpop.f32.mrb[0].mxu0
    %v8460 = vadd.f32 %v8419, %v8459
    %v8461 = vpop.f32.mrb[0].mxu0
    %v8462 = vpop.f32.mrb[0].mxu0
    %8463 = vdwg.mxu0
    %8464 = vmatprep.subr.bf16.mxu0 %v4104
    %8465 = vmatpush1.bf16.msra.mxu0 %v4103
    %8466 = vmatprep.subr.bf16.mxu0 %v4122
    %8467 = vmatpush1.bf16.msra.mxu0 %v4121
    %8468 = vmatprep.subr.bf16.mxu0 %v4140
    %8469 = vmatpush1.bf16.msra.mxu0 %v4139
    %8470 = vmatprep.subr.bf16.mxu0 %v4158
    %8471 = vmatpush1.bf16.msra.mxu0 %v4157
    %8472 = vmatprep.subr.bf16.mxu0 %v4176
    %8473 = vmatpush1.bf16.msra.mxu0 %v4175
    %8474 = vmatprep.subr.bf16.mxu0 %v4194
    %8475 = vmatpush1.bf16.msra.mxu0 %v4193
    %8476 = vmatprep.subr.bf16.mxu0 %v4212
    %8477 = vmatpush1.bf16.msra.mxu0 %v4211
    %8478 = vmatprep.subr.bf16.mxu0 %v4230
    %8479 = vmatpush1.bf16.msra.mxu0 %v4229
    %8480 = vmatprep.subr.bf16.mxu0 %v4248
    %8481 = vmatpush1.bf16.msra.mxu0 %v4247
    %8482 = vmatprep.subr.bf16.mxu0 %v4266
    %8483 = vmatpush1.bf16.msra.mxu0 %v4265
    %8484 = vmatprep.subr.bf16.mxu0 %v4284
    %8485 = vmatpush1.bf16.msra.mxu0 %v4283
    %8486 = vmatprep.subr.bf16.mxu0 %v4302
    %8487 = vmatpush1.bf16.msra.mxu0 %v4301
    %8488 = vmatprep.subr.bf16.mxu0 %v4320
    %8489 = vmatpush1.bf16.msra.mxu0 %v4319
    %8490 = vmatprep.subr.bf16.mxu0 %v4338
    %8491 = vmatpush1.bf16.msra.mxu0 %v4337
    %8492 = vmatprep.subr.bf16.mxu0 %v4356
    %8493 = vmatpush1.bf16.msra.mxu0 %v4355
    %8494 = vmatprep.subr.bf16.mxu0 %v4374
    %8495 = vmatpush1.bf16.msra.mxu0 %v4373
    %8496 = vmatprep.mubr.bf16.mxu0 %v7881
    %8497 = vmatmul.mubr.bf16.gmra.mrb[0].mxu0 %v7880
    %v8498 = vpop.f32.mrb[0].mxu0
    %v8499 = vadd.f32 0.0, %v8498
    %v8500 = vpop.f32.mrb[0].mxu0
    %v8501 = vadd.f32 0.0, %v8500
    %v8502 = vpop.f32.mrb[0].mxu0
    %v8503 = vpop.f32.mrb[0].mxu0
    %8504 = vdwg.mxu0
    %8505 = vmatprep.subr.bf16.mxu0 %v4392
    %8506 = vmatpush1.bf16.msra.mxu0 %v4391
    %8507 = vmatprep.subr.bf16.mxu0 %v4410
    %8508 = vmatpush1.bf16.msra.mxu0 %v4409
    %8509 = vmatprep.subr.bf16.mxu0 %v4428
    %8510 = vmatpush1.bf16.msra.mxu0 %v4427
    %8511 = vmatprep.subr.bf16.mxu0 %v4446
    %8512 = vmatpush1.bf16.msra.mxu0 %v4445
    %8513 = vmatprep.subr.bf16.mxu0 %v4464
    %8514 = vmatpush1.bf16.msra.mxu0 %v4463
    %8515 = vmatprep.subr.bf16.mxu0 %v4482
    %8516 = vmatpush1.bf16.msra.mxu0 %v4481
    %8517 = vmatprep.subr.bf16.mxu0 %v4500
    %8518 = vmatpush1.bf16.msra.mxu0 %v4499
    %8519 = vmatprep.subr.bf16.mxu0 %v4518
    %8520 = vmatpush1.bf16.msra.mxu0 %v4517
    %8521 = vmatprep.subr.bf16.mxu0 %v4536
    %8522 = vmatpush1.bf16.msra.mxu0 %v4535
    %8523 = vmatprep.subr.bf16.mxu0 0
    %8524 = vmatpush1.bf16.msra.mxu0 0
    %8525 = vmatprep.subr.bf16.mxu0 0
    %8526 = vmatpush1.bf16.msra.mxu0 0
    %8527 = vmatprep.subr.bf16.mxu0 0
    %8528 = vmatpush1.bf16.msra.mxu0 0
    %8529 = vmatprep.subr.bf16.mxu0 0
    %8530 = vmatpush1.bf16.msra.mxu0 0
    %8531 = vmatprep.subr.bf16.mxu0 0
    %8532 = vmatpush1.bf16.msra.mxu0 0
    %8533 = vmatprep.subr.bf16.mxu0 0
    %8534 = vmatpush1.bf16.msra.mxu0 0
    %8535 = vmatprep.subr.bf16.mxu0 0
    %8536 = vmatpush1.bf16.msra.mxu0 0
    %8537 = vmatprep.mubr.bf16.mxu0 %v7888
    %8538 = vmatmul.mubr.bf16.gmra.mrb[0].mxu0 %v7882
    %v8539 = vpop.f32.mrb[0].mxu0
    %v8540 = vadd.f32 %v8499, %v8539
    %v8541 = vpop.f32.mrb[0].mxu0
    %v8542 = vadd.f32 %v8501, %v8541
    %v8543 = vpop.f32.mrb[0].mxu0
    %v8544 = vpop.f32.mrb[0].mxu0
    %8545 = vdwg.mxu0
    %8546 = vmatprep.subr.bf16.mxu0 %v4106
    %8547 = vmatpush1.bf16.msra.mxu0 %v4105
    %8548 = vmatprep.subr.bf16.mxu0 %v4124
    %8549 = vmatpush1.bf16.msra.mxu0 %v4123
    %8550 = vmatprep.subr.bf16.mxu0 %v4142
    %8551 = vmatpush1.bf16.msra.mxu0 %v4141
    %8552 = vmatprep.subr.bf16.mxu0 %v4160
    %8553 = vmatpush1.bf16.msra.mxu0 %v4159
    %8554 = vmatprep.subr.bf16.mxu0 %v4178
    %8555 = vmatpush1.bf16.msra.mxu0 %v4177
    %8556 = vmatprep.subr.bf16.mxu0 %v4196
    %8557 = vmatpush1.bf16.msra.mxu0 %v4195
    %8558 = vmatprep.subr.bf16.mxu0 %v4214
    %8559 = vmatpush1.bf16.msra.mxu0 %v4213
    %8560 = vmatprep.subr.bf16.mxu0 %v4232
    %8561 = vmatpush1.bf16.msra.mxu0 %v4231
    %8562 = vmatprep.subr.bf16.mxu0 %v4250
    %8563 = vmatpush1.bf16.msra.mxu0 %v4249
    %8564 = vmatprep.subr.bf16.mxu0 %v4268
    %8565 = vmatpush1.bf16.msra.mxu0 %v4267
    %8566 = vmatprep.subr.bf16.mxu0 %v4286
    %8567 = vmatpush1.bf16.msra.mxu0 %v4285
    %8568 = vmatprep.subr.bf16.mxu0 %v4304
    %8569 = vmatpush1.bf16.msra.mxu0 %v4303
    %8570 = vmatprep.subr.bf16.mxu0 %v4322
    %8571 = vmatpush1.bf16.msra.mxu0 %v4321
    %8572 = vmatprep.subr.bf16.mxu0 %v4340
    %8573 = vmatpush1.bf16.msra.mxu0 %v4339
    %8574 = vmatprep.subr.bf16.mxu0 %v4358
    %8575 = vmatpush1.bf16.msra.mxu0 %v4357
    %8576 = vmatprep.subr.bf16.mxu0 %v4376
    %8577 = vmatpush1.bf16.msra.mxu0 %v4375
    %8578 = vmatprep.mubr.bf16.mxu0 %v7881
    %8579 = vmatmul.mubr.bf16.gmra.mrb[0].mxu0 %v7880
    %v8580 = vpop.f32.mrb[0].mxu0
    %v8581 = vadd.f32 0.0, %v8580
    %v8582 = vpop.f32.mrb[0].mxu0
    %v8583 = vadd.f32 0.0, %v8582
    %v8584 = vpop.f32.mrb[0].mxu0
    %v8585 = vpop.f32.mrb[0].mxu0
    %8586 = vdwg.mxu0
    %8587 = vmatprep.subr.bf16.mxu0 %v4394
    %8588 = vmatpush1.bf16.msra.mxu0 %v4393
    %8589 = vmatprep.subr.bf16.mxu0 %v4412
    %8590 = vmatpush1.bf16.msra.mxu0 %v4411
    %8591 = vmatprep.subr.bf16.mxu0 %v4430
    %8592 = vmatpush1.bf16.msra.mxu0 %v4429
    %8593 = vmatprep.subr.bf16.mxu0 %v4448
    %8594 = vmatpush1.bf16.msra.mxu0 %v4447
    %8595 = vmatprep.subr.bf16.mxu0 %v4466
    %8596 = vmatpush1.bf16.msra.mxu0 %v4465
    %8597 = vmatprep.subr.bf16.mxu0 %v4484
    %8598 = vmatpush1.bf16.msra.mxu0 %v4483
    %8599 = vmatprep.subr.bf16.mxu0 %v4502
    %8600 = vmatpush1.bf16.msra.mxu0 %v4501
    %8601 = vmatprep.subr.bf16.mxu0 %v4520
    %8602 = vmatpush1.bf16.msra.mxu0 %v4519
    %8603 = vmatprep.subr.bf16.mxu0 %v4538
    %8604 = vmatpush1.bf16.msra.mxu0 %v4537
    %8605 = vmatprep.subr.bf16.mxu0 0
    %8606 = vmatpush1.bf16.msra.mxu0 0
    %8607 = vmatprep.subr.bf16.mxu0 0
    %8608 = vmatpush1.bf16.msra.mxu0 0
    %8609 = vmatprep.subr.bf16.mxu0 0
    %8610 = vmatpush1.bf16.msra.mxu0 0
    %8611 = vmatprep.subr.bf16.mxu0 0
    %8612 = vmatpush1.bf16.msra.mxu0 0
    %8613 = vmatprep.subr.bf16.mxu0 0
    %8614 = vmatpush1.bf16.msra.mxu0 0
    %8615 = vmatprep.subr.bf16.mxu0 0
    %8616 = vmatpush1.bf16.msra.mxu0 0
    %8617 = vmatprep.subr.bf16.mxu0 0
    %8618 = vmatpush1.bf16.msra.mxu0 0
    %8619 = vmatprep.mubr.bf16.mxu0 %v7888
    %8620 = vmatmul.mubr.bf16.gmra.mrb[0].mxu0 %v7882
    %v8621 = vpop.f32.mrb[0].mxu0
    %v8622 = vadd.f32 %v8581, %v8621
    %v8623 = vpop.f32.mrb[0].mxu0
    %v8624 = vadd.f32 %v8583, %v8623
    %v8625 = vpop.f32.mrb[0].mxu0
    %v8626 = vpop.f32.mrb[0].mxu0
    %8627 = vdwg.mxu0
    %v8628 = vpack.c.bf16 %v7966, %v7966
    %v8629 = vpack.c.bf16 %v7968, %v7968
    %v8630 = vpack.c.bf16 %v8048, %v8048
    %v8631 = vpack.c.bf16 %v8050, %v8050
    %v8632 = vpack.c.bf16 %v8130, %v8130
    %v8633 = vpack.c.bf16 %v8132, %v8132
    %v8634 = vpack.c.bf16 %v8212, %v8212
    %v8635 = vpack.c.bf16 %v8214, %v8214
    %v8636 = vpack.c.bf16 %v8294, %v8294
    %v8637 = vpack.c.bf16 %v8296, %v8296
    %v8638 = vpack.c.bf16 %v8376, %v8376
    %v8639 = vpack.c.bf16 %v8378, %v8378
    %v8640 = vpack.c.bf16 %v8458, %v8458
    %v8641 = vpack.c.bf16 %v8460, %v8460
    %v8642 = vpack.c.bf16 %v8540, %v8540
    %v8643 = vpack.c.bf16 %v8542, %v8542
    %v8644 = vpack.c.bf16 %v8622, %v8622
    %v8645 = vpack.c.bf16 %v8624, %v8624
    %8647 = vrot.lane.b32.xlu0 %v8628, 64
    %v8648 = vpop.permute.xlu0 %8647
    %v8650 = vsel %vm46, %v8648, 0
    %8652 = vmatprep.subr.bf16.mxu0 0
    %8653 = vmatpush1.bf16.msra.mxu0 %v8650
    %8654 = vmatprep.subr.bf16.mxu0 0
    %8655 = vmatpush1.bf16.msra.mxu0 0
    %8656 = vmatprep.subr.bf16.mxu0 0
    %8657 = vmatpush1.bf16.msra.mxu0 0
    %8658 = vmatprep.subr.bf16.mxu0 0
    %8659 = vmatpush1.bf16.msra.mxu0 0
    %8660 = vmatprep.subr.bf16.mxu0 0
    %8661 = vmatpush1.bf16.msra.mxu0 0
    %8662 = vmatprep.subr.bf16.mxu0 0
    %8663 = vmatpush1.bf16.msra.mxu0 0
    %8664 = vmatprep.subr.bf16.mxu0 0
    %8665 = vmatpush1.bf16.msra.mxu0 0
    %8666 = vmatprep.subr.bf16.mxu0 0
    %8667 = vmatpush1.bf16.msra.mxu0 0
    %8668 = vmatprep.subr.bf16.mxu0 0
    %8669 = vmatpush1.bf16.msra.mxu0 0
    %8670 = vmatprep.subr.bf16.mxu0 0
    %8671 = vmatpush1.bf16.msra.mxu0 0
    %8672 = vmatprep.subr.bf16.mxu0 0
    %8673 = vmatpush1.bf16.msra.mxu0 0
    %8674 = vmatprep.subr.bf16.mxu0 0
    %8675 = vmatpush1.bf16.msra.mxu0 0
    %8676 = vmatprep.subr.bf16.mxu0 0
    %8677 = vmatpush1.bf16.msra.mxu0 0
    %8678 = vmatprep.subr.bf16.mxu0 0
    %8679 = vmatpush1.bf16.msra.mxu0 0
    %8680 = vmatprep.subr.bf16.mxu0 0
    %8681 = vmatpush1.bf16.msra.mxu0 0
    %8682 = vmatprep.subr.bf16.mxu0 0
    %8683 = vmatpush1.bf16.msra.mxu0 0
    %8684 = vmatprep.mubr.bf16.mxu0 0
    %8685 = vmatmul.mubr.bf16.gmra.mrb[0].mxu0 %v5764
    %v8686 = vpop.f32.mrb[0].mxu0
    %v8687 = vadd.f32 0.0, %v8686
    %v8688 = vpop.f32.mrb[0].mxu0
    %v8689 = vpop.f32.mrb[0].mxu0
    %v8690 = vadd.f32 0.0, %v8689
    %v8691 = vpop.f32.mrb[0].mxu0
    %8692 = vdwg.mxu0
    %v8694 = vsel %vm46, %v8628, 0
    %8696 = vmatprep.subr.bf16.mxu0 0
    %8697 = vmatpush1.bf16.msra.mxu0 %v8694
    %8698 = vmatprep.subr.bf16.mxu0 0
    %8699 = vmatpush1.bf16.msra.mxu0 0
    %8700 = vmatprep.subr.bf16.mxu0 0
    %8701 = vmatpush1.bf16.msra.mxu0 0
    %8702 = vmatprep.subr.bf16.mxu0 0
    %8703 = vmatpush1.bf16.msra.mxu0 0
    %8704 = vmatprep.subr.bf16.mxu0 0
    %8705 = vmatpush1.bf16.msra.mxu0 0
    %8706 = vmatprep.subr.bf16.mxu0 0
    %8707 = vmatpush1.bf16.msra.mxu0 0
    %8708 = vmatprep.subr.bf16.mxu0 0
    %8709 = vmatpush1.bf16.msra.mxu0 0
    %8710 = vmatprep.subr.bf16.mxu0 0
    %8711 = vmatpush1.bf16.msra.mxu0 0
    %8712 = vmatprep.subr.bf16.mxu0 0
    %8713 = vmatpush1.bf16.msra.mxu0 0
    %8714 = vmatprep.subr.bf16.mxu0 0
    %8715 = vmatpush1.bf16.msra.mxu0 0
    %8716 = vmatprep.subr.bf16.mxu0 0
    %8717 = vmatpush1.bf16.msra.mxu0 0
    %8718 = vmatprep.subr.bf16.mxu0 0
    %8719 = vmatpush1.bf16.msra.mxu0 0
    %8720 = vmatprep.subr.bf16.mxu0 0
    %8721 = vmatpush1.bf16.msra.mxu0 0
    %8722 = vmatprep.subr.bf16.mxu0 0
    %8723 = vmatpush1.bf16.msra.mxu0 0
    %8724 = vmatprep.subr.bf16.mxu0 0
    %8725 = vmatpush1.bf16.msra.mxu0 0
    %8726 = vmatprep.subr.bf16.mxu0 0
    %8727 = vmatpush1.bf16.msra.mxu0 0
    %8728 = vmatprep.mubr.bf16.mxu0 0
    %8729 = vmatmul.mubr.bf16.gmra.mrb[0].mxu0 %v5816
    %v8730 = vpop.f32.mrb[0].mxu0
    %v8731 = vadd.f32 %v8687, %v8730
    %v8732 = vpop.f32.mrb[0].mxu0
    %v8733 = vpop.f32.mrb[0].mxu0
    %v8734 = vadd.f32 %v8690, %v8733
    %v8735 = vpop.f32.mrb[0].mxu0
    %8736 = vdwg.mxu0
    %v8738 = vsel %vm46, %v8629, 0
    %8740 = vmatprep.subr.bf16.mxu0 0
    %8741 = vmatpush1.bf16.msra.mxu0 %v8738
    %8742 = vmatprep.subr.bf16.mxu0 0
    %8743 = vmatpush1.bf16.msra.mxu0 0
    %8744 = vmatprep.subr.bf16.mxu0 0
    %8745 = vmatpush1.bf16.msra.mxu0 0
    %8746 = vmatprep.subr.bf16.mxu0 0
    %8747 = vmatpush1.bf16.msra.mxu0 0
    %8748 = vmatprep.subr.bf16.mxu0 0
    %8749 = vmatpush1.bf16.msra.mxu0 0
    %8750 = vmatprep.subr.bf16.mxu0 0
    %8751 = vmatpush1.bf16.msra.mxu0 0
    %8752 = vmatprep.subr.bf16.mxu0 0
    %8753 = vmatpush1.bf16.msra.mxu0 0
    %8754 = vmatprep.subr.bf16.mxu0 0
    %8755 = vmatpush1.bf16.msra.mxu0 0
    %8756 = vmatprep.subr.bf16.mxu0 0
    %8757 = vmatpush1.bf16.msra.mxu0 0
    %8758 = vmatprep.subr.bf16.mxu0 0
    %8759 = vmatpush1.bf16.msra.mxu0 0
    %8760 = vmatprep.subr.bf16.mxu0 0
    %8761 = vmatpush1.bf16.msra.mxu0 0
    %8762 = vmatprep.subr.bf16.mxu0 0
    %8763 = vmatpush1.bf16.msra.mxu0 0
    %8764 = vmatprep.subr.bf16.mxu0 0
    %8765 = vmatpush1.bf16.msra.mxu0 0
    %8766 = vmatprep.subr.bf16.mxu0 0
    %8767 = vmatpush1.bf16.msra.mxu0 0
    %8768 = vmatprep.subr.bf16.mxu0 0
    %8769 = vmatpush1.bf16.msra.mxu0 0
    %8770 = vmatprep.subr.bf16.mxu0 0
    %8771 = vmatpush1.bf16.msra.mxu0 0
    %8772 = vmatprep.mubr.bf16.mxu0 0
    %8773 = vmatmul.mubr.bf16.gmra.mrb[0].mxu0 %v5871
    %v8774 = vpop.f32.mrb[0].mxu0
    %v8775 = vadd.f32 0.0, %v8774
    %v8776 = vpop.f32.mrb[0].mxu0
    %v8777 = vpop.f32.mrb[0].mxu0
    %v8778 = vadd.f32 0.0, %v8777
    %v8779 = vpop.f32.mrb[0].mxu0
    %8780 = vdwg.mxu0
    %v8781 = vadd.f32 %v8731, %v8775
    %v8782 = vadd.f32 %v8734, %v8778
    %8784 = vrot.lane.b32.xlu0 %v8629, 64
    %v8785 = vpop.permute.xlu0 %8784
    %v8787 = vsel %vm46, %v8785, 0
    %8789 = vmatprep.subr.bf16.mxu0 0
    %8790 = vmatpush1.bf16.msra.mxu0 %v8787
    %8791 = vmatprep.subr.bf16.mxu0 0
    %8792 = vmatpush1.bf16.msra.mxu0 0
    %8793 = vmatprep.subr.bf16.mxu0 0
    %8794 = vmatpush1.bf16.msra.mxu0 0
    %8795 = vmatprep.subr.bf16.mxu0 0
    %8796 = vmatpush1.bf16.msra.mxu0 0
    %8797 = vmatprep.subr.bf16.mxu0 0
    %8798 = vmatpush1.bf16.msra.mxu0 0
    %8799 = vmatprep.subr.bf16.mxu0 0
    %8800 = vmatpush1.bf16.msra.mxu0 0
    %8801 = vmatprep.subr.bf16.mxu0 0
    %8802 = vmatpush1.bf16.msra.mxu0 0
    %8803 = vmatprep.subr.bf16.mxu0 0
    %8804 = vmatpush1.bf16.msra.mxu0 0
    %8805 = vmatprep.subr.bf16.mxu0 0
    %8806 = vmatpush1.bf16.msra.mxu0 0
    %8807 = vmatprep.subr.bf16.mxu0 0
    %8808 = vmatpush1.bf16.msra.mxu0 0
    %8809 = vmatprep.subr.bf16.mxu0 0
    %8810 = vmatpush1.bf16.msra.mxu0 0
    %8811 = vmatprep.subr.bf16.mxu0 0
    %8812 = vmatpush1.bf16.msra.mxu0 0
    %8813 = vmatprep.subr.bf16.mxu0 0
    %8814 = vmatpush1.bf16.msra.mxu0 0
    %8815 = vmatprep.subr.bf16.mxu0 0
    %8816 = vmatpush1.bf16.msra.mxu0 0
    %8817 = vmatprep.subr.bf16.mxu0 0
    %8818 = vmatpush1.bf16.msra.mxu0 0
    %8819 = vmatprep.subr.bf16.mxu0 0
    %8820 = vmatpush1.bf16.msra.mxu0 0
    %8821 = vmatprep.mubr.bf16.mxu0 0
    %8822 = vmatmul.mubr.bf16.gmra.mrb[0].mxu0 %v5931
    %v8823 = vpop.f32.mrb[0].mxu0
    %v8824 = vadd.f32 0.0, %v8823
    %v8825 = vpop.f32.mrb[0].mxu0
    %v8826 = vpop.f32.mrb[0].mxu0
    %v8827 = vadd.f32 0.0, %v8826
    %v8828 = vpop.f32.mrb[0].mxu0
    %8829 = vdwg.mxu0
    %v8830 = vadd.f32 %v8781, %v8824
    %v8831 = vadd.f32 %v8782, %v8827
    %v8833 = vsel %vm46, %v8630, 0
    %8835 = vmatprep.subr.bf16.mxu0 0
    %8836 = vmatpush1.bf16.msra.mxu0 %v8833
    %8837 = vmatprep.subr.bf16.mxu0 0
    %8838 = vmatpush1.bf16.msra.mxu0 0
    %8839 = vmatprep.subr.bf16.mxu0 0
    %8840 = vmatpush1.bf16.msra.mxu0 0
    %8841 = vmatprep.subr.bf16.mxu0 0
    %8842 = vmatpush1.bf16.msra.mxu0 0
    %8843 = vmatprep.subr.bf16.mxu0 0
    %8844 = vmatpush1.bf16.msra.mxu0 0
    %8845 = vmatprep.subr.bf16.mxu0 0
    %8846 = vmatpush1.bf16.msra.mxu0 0
    %8847 = vmatprep.subr.bf16.mxu0 0
    %8848 = vmatpush1.bf16.msra.mxu0 0
    %8849 = vmatprep.subr.bf16.mxu0 0
    %8850 = vmatpush1.bf16.msra.mxu0 0
    %8851 = vmatprep.subr.bf16.mxu0 0
    %8852 = vmatpush1.bf16.msra.mxu0 0
    %8853 = vmatprep.subr.bf16.mxu0 0
    %8854 = vmatpush1.bf16.msra.mxu0 0
    %8855 = vmatprep.subr.bf16.mxu0 0
    %8856 = vmatpush1.bf16.msra.mxu0 0
    %8857 = vmatprep.subr.bf16.mxu0 0
    %8858 = vmatpush1.bf16.msra.mxu0 0
    %8859 = vmatprep.subr.bf16.mxu0 0
    %8860 = vmatpush1.bf16.msra.mxu0 0
    %8861 = vmatprep.subr.bf16.mxu0 0
    %8862 = vmatpush1.bf16.msra.mxu0 0
    %8863 = vmatprep.subr.bf16.mxu0 0
    %8864 = vmatpush1.bf16.msra.mxu0 0
    %8865 = vmatprep.subr.bf16.mxu0 0
    %8866 = vmatpush1.bf16.msra.mxu0 0
    %8867 = vmatprep.mubr.bf16.mxu0 0
    %8868 = vmatmul.mubr.bf16.gmra.mrb[0].mxu0 %v5988
    %v8869 = vpop.f32.mrb[0].mxu0
    %v8870 = vadd.f32 0.0, %v8869
    %v8871 = vpop.f32.mrb[0].mxu0
    %v8872 = vpop.f32.mrb[0].mxu0
    %v8873 = vadd.f32 0.0, %v8872
    %v8874 = vpop.f32.mrb[0].mxu0
    %8875 = vdwg.mxu0
    %v8876 = vadd.f32 %v8830, %v8870
    %v8877 = vadd.f32 %v8831, %v8873
    %8879 = vrot.lane.b32.xlu0 %v8630, 64
    %v8880 = vpop.permute.xlu0 %8879
    %v8882 = vsel %vm46, %v8880, 0
    %8884 = vmatprep.subr.bf16.mxu0 0
    %8885 = vmatpush1.bf16.msra.mxu0 %v8882
    %8886 = vmatprep.subr.bf16.mxu0 0
    %8887 = vmatpush1.bf16.msra.mxu0 0
    %8888 = vmatprep.subr.bf16.mxu0 0
    %8889 = vmatpush1.bf16.msra.mxu0 0
    %8890 = vmatprep.subr.bf16.mxu0 0
    %8891 = vmatpush1.bf16.msra.mxu0 0
    %8892 = vmatprep.subr.bf16.mxu0 0
    %8893 = vmatpush1.bf16.msra.mxu0 0
    %8894 = vmatprep.subr.bf16.mxu0 0
    %8895 = vmatpush1.bf16.msra.mxu0 0
    %8896 = vmatprep.subr.bf16.mxu0 0
    %8897 = vmatpush1.bf16.msra.mxu0 0
    %8898 = vmatprep.subr.bf16.mxu0 0
    %8899 = vmatpush1.bf16.msra.mxu0 0
    %8900 = vmatprep.subr.bf16.mxu0 0
    %8901 = vmatpush1.bf16.msra.mxu0 0
    %8902 = vmatprep.subr.bf16.mxu0 0
    %8903 = vmatpush1.bf16.msra.mxu0 0
    %8904 = vmatprep.subr.bf16.mxu0 0
    %8905 = vmatpush1.bf16.msra.mxu0 0
    %8906 = vmatprep.subr.bf16.mxu0 0
    %8907 = vmatpush1.bf16.msra.mxu0 0
    %8908 = vmatprep.subr.bf16.mxu0 0
    %8909 = vmatpush1.bf16.msra.mxu0 0
    %8910 = vmatprep.subr.bf16.mxu0 0
    %8911 = vmatpush1.bf16.msra.mxu0 0
    %8912 = vmatprep.subr.bf16.mxu0 0
    %8913 = vmatpush1.bf16.msra.mxu0 0
    %8914 = vmatprep.subr.bf16.mxu0 0
    %8915 = vmatpush1.bf16.msra.mxu0 0
    %8916 = vmatprep.mubr.bf16.mxu0 0
    %8917 = vmatmul.mubr.bf16.gmra.mrb[0].mxu0 %v6048
    %v8918 = vpop.f32.mrb[0].mxu0
    %v8919 = vadd.f32 0.0, %v8918
    %v8920 = vpop.f32.mrb[0].mxu0
    %v8921 = vpop.f32.mrb[0].mxu0
    %v8922 = vadd.f32 0.0, %v8921
    %v8923 = vpop.f32.mrb[0].mxu0
    %8924 = vdwg.mxu0
    %v8925 = vadd.f32 %v8876, %v8919
    %v8926 = vadd.f32 %v8877, %v8922
    %v8928 = vsel %vm46, %v8631, 0
    %8930 = vmatprep.subr.bf16.mxu0 0
    %8931 = vmatpush1.bf16.msra.mxu0 %v8928
    %8932 = vmatprep.subr.bf16.mxu0 0
    %8933 = vmatpush1.bf16.msra.mxu0 0
    %8934 = vmatprep.subr.bf16.mxu0 0
    %8935 = vmatpush1.bf16.msra.mxu0 0
    %8936 = vmatprep.subr.bf16.mxu0 0
    %8937 = vmatpush1.bf16.msra.mxu0 0
    %8938 = vmatprep.subr.bf16.mxu0 0
    %8939 = vmatpush1.bf16.msra.mxu0 0
    %8940 = vmatprep.subr.bf16.mxu0 0
    %8941 = vmatpush1.bf16.msra.mxu0 0
    %8942 = vmatprep.subr.bf16.mxu0 0
    %8943 = vmatpush1.bf16.msra.mxu0 0
    %8944 = vmatprep.subr.bf16.mxu0 0
    %8945 = vmatpush1.bf16.msra.mxu0 0
    %8946 = vmatprep.subr.bf16.mxu0 0
    %8947 = vmatpush1.bf16.msra.mxu0 0
    %8948 = vmatprep.subr.bf16.mxu0 0
    %8949 = vmatpush1.bf16.msra.mxu0 0
    %8950 = vmatprep.subr.bf16.mxu0 0
    %8951 = vmatpush1.bf16.msra.mxu0 0
    %8952 = vmatprep.subr.bf16.mxu0 0
    %8953 = vmatpush1.bf16.msra.mxu0 0
    %8954 = vmatprep.subr.bf16.mxu0 0
    %8955 = vmatpush1.bf16.msra.mxu0 0
    %8956 = vmatprep.subr.bf16.mxu0 0
    %8957 = vmatpush1.bf16.msra.mxu0 0
    %8958 = vmatprep.subr.bf16.mxu0 0
    %8959 = vmatpush1.bf16.msra.mxu0 0
    %8960 = vmatprep.subr.bf16.mxu0 0
    %8961 = vmatpush1.bf16.msra.mxu0 0
    %8962 = vmatprep.mubr.bf16.mxu0 0
    %8963 = vmatmul.mubr.bf16.gmra.mrb[0].mxu0 %v6105
    %v8964 = vpop.f32.mrb[0].mxu0
    %v8965 = vadd.f32 0.0, %v8964
    %v8966 = vpop.f32.mrb[0].mxu0
    %v8967 = vpop.f32.mrb[0].mxu0
    %v8968 = vadd.f32 0.0, %v8967
    %v8969 = vpop.f32.mrb[0].mxu0
    %8970 = vdwg.mxu0
    %v8971 = vadd.f32 %v8925, %v8965
    %v8972 = vadd.f32 %v8926, %v8968
    %8974 = vrot.lane.b32.xlu0 %v8631, 64
    %v8975 = vpop.permute.xlu0 %8974
    %v8977 = vsel %vm46, %v8975, 0
    %8979 = vmatprep.subr.bf16.mxu0 0
    %8980 = vmatpush1.bf16.msra.mxu0 %v8977
    %8981 = vmatprep.subr.bf16.mxu0 0
    %8982 = vmatpush1.bf16.msra.mxu0 0
    %8983 = vmatprep.subr.bf16.mxu0 0
    %8984 = vmatpush1.bf16.msra.mxu0 0
    %8985 = vmatprep.subr.bf16.mxu0 0
    %8986 = vmatpush1.bf16.msra.mxu0 0
    %8987 = vmatprep.subr.bf16.mxu0 0
    %8988 = vmatpush1.bf16.msra.mxu0 0
    %8989 = vmatprep.subr.bf16.mxu0 0
    %8990 = vmatpush1.bf16.msra.mxu0 0
    %8991 = vmatprep.subr.bf16.mxu0 0
    %8992 = vmatpush1.bf16.msra.mxu0 0
    %8993 = vmatprep.subr.bf16.mxu0 0
    %8994 = vmatpush1.bf16.msra.mxu0 0
    %8995 = vmatprep.subr.bf16.mxu0 0
    %8996 = vmatpush1.bf16.msra.mxu0 0
    %8997 = vmatprep.subr.bf16.mxu0 0
    %8998 = vmatpush1.bf16.msra.mxu0 0
    %8999 = vmatprep.subr.bf16.mxu0 0
    %9000 = vmatpush1.bf16.msra.mxu0 0
    %9001 = vmatprep.subr.bf16.mxu0 0
    %9002 = vmatpush1.bf16.msra.mxu0 0
    %9003 = vmatprep.subr.bf16.mxu0 0
    %9004 = vmatpush1.bf16.msra.mxu0 0
    %9005 = vmatprep.subr.bf16.mxu0 0
    %9006 = vmatpush1.bf16.msra.mxu0 0
    %9007 = vmatprep.subr.bf16.mxu0 0
    %9008 = vmatpush1.bf16.msra.mxu0 0
    %9009 = vmatprep.subr.bf16.mxu0 0
    %9010 = vmatpush1.bf16.msra.mxu0 0
    %9011 = vmatprep.mubr.bf16.mxu0 0
    %9012 = vmatmul.mubr.bf16.gmra.mrb[0].mxu0 %v6165
    %v9013 = vpop.f32.mrb[0].mxu0
    %v9014 = vadd.f32 0.0, %v9013
    %v9015 = vpop.f32.mrb[0].mxu0
    %v9016 = vpop.f32.mrb[0].mxu0
    %v9017 = vadd.f32 0.0, %v9016
    %v9018 = vpop.f32.mrb[0].mxu0
    %9019 = vdwg.mxu0
    %v9020 = vadd.f32 %v8971, %v9014
    %v9021 = vadd.f32 %v8972, %v9017
    %v9023 = vsel %vm46, %v8632, 0
    %9025 = vmatprep.subr.bf16.mxu0 0
    %9026 = vmatpush1.bf16.msra.mxu0 %v9023
    %9027 = vmatprep.subr.bf16.mxu0 0
    %9028 = vmatpush1.bf16.msra.mxu0 0
    %9029 = vmatprep.subr.bf16.mxu0 0
    %9030 = vmatpush1.bf16.msra.mxu0 0
    %9031 = vmatprep.subr.bf16.mxu0 0
    %9032 = vmatpush1.bf16.msra.mxu0 0
    %9033 = vmatprep.subr.bf16.mxu0 0
    %9034 = vmatpush1.bf16.msra.mxu0 0
    %9035 = vmatprep.subr.bf16.mxu0 0
    %9036 = vmatpush1.bf16.msra.mxu0 0
    %9037 = vmatprep.subr.bf16.mxu0 0
    %9038 = vmatpush1.bf16.msra.mxu0 0
    %9039 = vmatprep.subr.bf16.mxu0 0
    %9040 = vmatpush1.bf16.msra.mxu0 0
    %9041 = vmatprep.subr.bf16.mxu0 0
    %9042 = vmatpush1.bf16.msra.mxu0 0
    %9043 = vmatprep.subr.bf16.mxu0 0
    %9044 = vmatpush1.bf16.msra.mxu0 0
    %9045 = vmatprep.subr.bf16.mxu0 0
    %9046 = vmatpush1.bf16.msra.mxu0 0
    %9047 = vmatprep.subr.bf16.mxu0 0
    %9048 = vmatpush1.bf16.msra.mxu0 0
    %9049 = vmatprep.subr.bf16.mxu0 0
    %9050 = vmatpush1.bf16.msra.mxu0 0
    %9051 = vmatprep.subr.bf16.mxu0 0
    %9052 = vmatpush1.bf16.msra.mxu0 0
    %9053 = vmatprep.subr.bf16.mxu0 0
    %9054 = vmatpush1.bf16.msra.mxu0 0
    %9055 = vmatprep.subr.bf16.mxu0 0
    %9056 = vmatpush1.bf16.msra.mxu0 0
    %9057 = vmatprep.mubr.bf16.mxu0 0
    %9058 = vmatmul.mubr.bf16.gmra.mrb[0].mxu0 %v6222
    %v9059 = vpop.f32.mrb[0].mxu0
    %v9060 = vadd.f32 0.0, %v9059
    %v9061 = vpop.f32.mrb[0].mxu0
    %v9062 = vpop.f32.mrb[0].mxu0
    %v9063 = vadd.f32 0.0, %v9062
    %v9064 = vpop.f32.mrb[0].mxu0
    %9065 = vdwg.mxu0
    %v9066 = vadd.f32 %v9020, %v9060
    %v9067 = vadd.f32 %v9021, %v9063
    %9069 = vrot.lane.b32.xlu0 %v8632, 64
    %v9070 = vpop.permute.xlu0 %9069
    %v9072 = vsel %vm46, %v9070, 0
    %9074 = vmatprep.subr.bf16.mxu0 0
    %9075 = vmatpush1.bf16.msra.mxu0 %v9072
    %9076 = vmatprep.subr.bf16.mxu0 0
    %9077 = vmatpush1.bf16.msra.mxu0 0
    %9078 = vmatprep.subr.bf16.mxu0 0
    %9079 = vmatpush1.bf16.msra.mxu0 0
    %9080 = vmatprep.subr.bf16.mxu0 0
    %9081 = vmatpush1.bf16.msra.mxu0 0
    %9082 = vmatprep.subr.bf16.mxu0 0
    %9083 = vmatpush1.bf16.msra.mxu0 0
    %9084 = vmatprep.subr.bf16.mxu0 0
    %9085 = vmatpush1.bf16.msra.mxu0 0
    %9086 = vmatprep.subr.bf16.mxu0 0
    %9087 = vmatpush1.bf16.msra.mxu0 0
    %9088 = vmatprep.subr.bf16.mxu0 0
    %9089 = vmatpush1.bf16.msra.mxu0 0
    %9090 = vmatprep.subr.bf16.mxu0 0
    %9091 = vmatpush1.bf16.msra.mxu0 0
    %9092 = vmatprep.subr.bf16.mxu0 0
    %9093 = vmatpush1.bf16.msra.mxu0 0
    %9094 = vmatprep.subr.bf16.mxu0 0
    %9095 = vmatpush1.bf16.msra.mxu0 0
    %9096 = vmatprep.subr.bf16.mxu0 0
    %9097 = vmatpush1.bf16.msra.mxu0 0
    %9098 = vmatprep.subr.bf16.mxu0 0
    %9099 = vmatpush1.bf16.msra.mxu0 0
    %9100 = vmatprep.subr.bf16.mxu0 0
    %9101 = vmatpush1.bf16.msra.mxu0 0
    %9102 = vmatprep.subr.bf16.mxu0 0
    %9103 = vmatpush1.bf16.msra.mxu0 0
    %9104 = vmatprep.subr.bf16.mxu0 0
    %9105 = vmatpush1.bf16.msra.mxu0 0
    %9106 = vmatprep.mubr.bf16.mxu0 0
    %9107 = vmatmul.mubr.bf16.gmra.mrb[0].mxu0 %v6282
    %v9108 = vpop.f32.mrb[0].mxu0
    %v9109 = vadd.f32 0.0, %v9108
    %v9110 = vpop.f32.mrb[0].mxu0
    %v9111 = vpop.f32.mrb[0].mxu0
    %v9112 = vadd.f32 0.0, %v9111
    %v9113 = vpop.f32.mrb[0].mxu0
    %9114 = vdwg.mxu0
    %v9115 = vadd.f32 %v9066, %v9109
    %v9116 = vadd.f32 %v9067, %v9112
    %v9118 = vsel %vm46, %v8633, 0
    %9120 = vmatprep.subr.bf16.mxu0 0
    %9121 = vmatpush1.bf16.msra.mxu0 %v9118
    %9122 = vmatprep.subr.bf16.mxu0 0
    %9123 = vmatpush1.bf16.msra.mxu0 0
    %9124 = vmatprep.subr.bf16.mxu0 0
    %9125 = vmatpush1.bf16.msra.mxu0 0
    %9126 = vmatprep.subr.bf16.mxu0 0
    %9127 = vmatpush1.bf16.msra.mxu0 0
    %9128 = vmatprep.subr.bf16.mxu0 0
    %9129 = vmatpush1.bf16.msra.mxu0 0
    %9130 = vmatprep.subr.bf16.mxu0 0
    %9131 = vmatpush1.bf16.msra.mxu0 0
    %9132 = vmatprep.subr.bf16.mxu0 0
    %9133 = vmatpush1.bf16.msra.mxu0 0
    %9134 = vmatprep.subr.bf16.mxu0 0
    %9135 = vmatpush1.bf16.msra.mxu0 0
    %9136 = vmatprep.subr.bf16.mxu0 0
    %9137 = vmatpush1.bf16.msra.mxu0 0
    %9138 = vmatprep.subr.bf16.mxu0 0
    %9139 = vmatpush1.bf16.msra.mxu0 0
    %9140 = vmatprep.subr.bf16.mxu0 0
    %9141 = vmatpush1.bf16.msra.mxu0 0
    %9142 = vmatprep.subr.bf16.mxu0 0
    %9143 = vmatpush1.bf16.msra.mxu0 0
    %9144 = vmatprep.subr.bf16.mxu0 0
    %9145 = vmatpush1.bf16.msra.mxu0 0
    %9146 = vmatprep.subr.bf16.mxu0 0
    %9147 = vmatpush1.bf16.msra.mxu0 0
    %9148 = vmatprep.subr.bf16.mxu0 0
    %9149 = vmatpush1.bf16.msra.mxu0 0
    %9150 = vmatprep.subr.bf16.mxu0 0
    %9151 = vmatpush1.bf16.msra.mxu0 0
    %9152 = vmatprep.mubr.bf16.mxu0 0
    %9153 = vmatmul.mubr.bf16.gmra.mrb[0].mxu0 %v6339
    %v9154 = vpop.f32.mrb[0].mxu0
    %v9155 = vadd.f32 0.0, %v9154
    %v9156 = vpop.f32.mrb[0].mxu0
    %v9157 = vpop.f32.mrb[0].mxu0
    %v9158 = vadd.f32 0.0, %v9157
    %v9159 = vpop.f32.mrb[0].mxu0
    %9160 = vdwg.mxu0
    %v9161 = vadd.f32 %v9115, %v9155
    %v9162 = vadd.f32 %v9116, %v9158
    %9164 = vrot.lane.b32.xlu0 %v8633, 64
    %v9165 = vpop.permute.xlu0 %9164
    %v9167 = vsel %vm46, %v9165, 0
    %9169 = vmatprep.subr.bf16.mxu0 0
    %9170 = vmatpush1.bf16.msra.mxu0 %v9167
    %9171 = vmatprep.subr.bf16.mxu0 0
    %9172 = vmatpush1.bf16.msra.mxu0 0
    %9173 = vmatprep.subr.bf16.mxu0 0
    %9174 = vmatpush1.bf16.msra.mxu0 0
    %9175 = vmatprep.subr.bf16.mxu0 0
    %9176 = vmatpush1.bf16.msra.mxu0 0
    %9177 = vmatprep.subr.bf16.mxu0 0
    %9178 = vmatpush1.bf16.msra.mxu0 0
    %9179 = vmatprep.subr.bf16.mxu0 0
    %9180 = vmatpush1.bf16.msra.mxu0 0
    %9181 = vmatprep.subr.bf16.mxu0 0
    %9182 = vmatpush1.bf16.msra.mxu0 0
    %9183 = vmatprep.subr.bf16.mxu0 0
    %9184 = vmatpush1.bf16.msra.mxu0 0
    %9185 = vmatprep.subr.bf16.mxu0 0
    %9186 = vmatpush1.bf16.msra.mxu0 0
    %9187 = vmatprep.subr.bf16.mxu0 0
    %9188 = vmatpush1.bf16.msra.mxu0 0
    %9189 = vmatprep.subr.bf16.mxu0 0
    %9190 = vmatpush1.bf16.msra.mxu0 0
    %9191 = vmatprep.subr.bf16.mxu0 0
    %9192 = vmatpush1.bf16.msra.mxu0 0
    %9193 = vmatprep.subr.bf16.mxu0 0
    %9194 = vmatpush1.bf16.msra.mxu0 0
    %9195 = vmatprep.subr.bf16.mxu0 0
    %9196 = vmatpush1.bf16.msra.mxu0 0
    %9197 = vmatprep.subr.bf16.mxu0 0
    %9198 = vmatpush1.bf16.msra.mxu0 0
    %9199 = vmatprep.subr.bf16.mxu0 0
    %9200 = vmatpush1.bf16.msra.mxu0 0
    %9201 = vmatprep.mubr.bf16.mxu0 0
    %9202 = vmatmul.mubr.bf16.gmra.mrb[0].mxu0 %v6399
    %v9203 = vpop.f32.mrb[0].mxu0
    %v9204 = vadd.f32 0.0, %v9203
    %v9205 = vpop.f32.mrb[0].mxu0
    %v9206 = vpop.f32.mrb[0].mxu0
    %v9207 = vadd.f32 0.0, %v9206
    %v9208 = vpop.f32.mrb[0].mxu0
    %9209 = vdwg.mxu0
    %v9210 = vadd.f32 %v9161, %v9204
    %v9211 = vadd.f32 %v9162, %v9207
    %v9213 = vsel %vm46, %v8634, 0
    %9215 = vmatprep.subr.bf16.mxu0 0
    %9216 = vmatpush1.bf16.msra.mxu0 %v9213
    %9217 = vmatprep.subr.bf16.mxu0 0
    %9218 = vmatpush1.bf16.msra.mxu0 0
    %9219 = vmatprep.subr.bf16.mxu0 0
    %9220 = vmatpush1.bf16.msra.mxu0 0
    %9221 = vmatprep.subr.bf16.mxu0 0
    %9222 = vmatpush1.bf16.msra.mxu0 0
    %9223 = vmatprep.subr.bf16.mxu0 0
    %9224 = vmatpush1.bf16.msra.mxu0 0
    %9225 = vmatprep.subr.bf16.mxu0 0
    %9226 = vmatpush1.bf16.msra.mxu0 0
    %9227 = vmatprep.subr.bf16.mxu0 0
    %9228 = vmatpush1.bf16.msra.mxu0 0
    %9229 = vmatprep.subr.bf16.mxu0 0
    %9230 = vmatpush1.bf16.msra.mxu0 0
    %9231 = vmatprep.subr.bf16.mxu0 0
    %9232 = vmatpush1.bf16.msra.mxu0 0
    %9233 = vmatprep.subr.bf16.mxu0 0
    %9234 = vmatpush1.bf16.msra.mxu0 0
    %9235 = vmatprep.subr.bf16.mxu0 0
    %9236 = vmatpush1.bf16.msra.mxu0 0
    %9237 = vmatprep.subr.bf16.mxu0 0
    %9238 = vmatpush1.bf16.msra.mxu0 0
    %9239 = vmatprep.subr.bf16.mxu0 0
    %9240 = vmatpush1.bf16.msra.mxu0 0
    %9241 = vmatprep.subr.bf16.mxu0 0
    %9242 = vmatpush1.bf16.msra.mxu0 0
    %9243 = vmatprep.subr.bf16.mxu0 0
    %9244 = vmatpush1.bf16.msra.mxu0 0
    %9245 = vmatprep.subr.bf16.mxu0 0
    %9246 = vmatpush1.bf16.msra.mxu0 0
    %9247 = vmatprep.mubr.bf16.mxu0 0
    %9248 = vmatmul.mubr.bf16.gmra.mrb[0].mxu0 %v6456
    %v9249 = vpop.f32.mrb[0].mxu0
    %v9250 = vadd.f32 0.0, %v9249
    %v9251 = vpop.f32.mrb[0].mxu0
    %v9252 = vpop.f32.mrb[0].mxu0
    %v9253 = vadd.f32 0.0, %v9252
    %v9254 = vpop.f32.mrb[0].mxu0
    %9255 = vdwg.mxu0
    %v9256 = vadd.f32 %v9210, %v9250
    %v9257 = vadd.f32 %v9211, %v9253
    %9259 = vrot.lane.b32.xlu0 %v8634, 64
    %v9260 = vpop.permute.xlu0 %9259
    %v9262 = vsel %vm46, %v9260, 0
    %9264 = vmatprep.subr.bf16.mxu0 0
    %9265 = vmatpush1.bf16.msra.mxu0 %v9262
    %9266 = vmatprep.subr.bf16.mxu0 0
    %9267 = vmatpush1.bf16.msra.mxu0 0
    %9268 = vmatprep.subr.bf16.mxu0 0
    %9269 = vmatpush1.bf16.msra.mxu0 0
    %9270 = vmatprep.subr.bf16.mxu0 0
    %9271 = vmatpush1.bf16.msra.mxu0 0
    %9272 = vmatprep.subr.bf16.mxu0 0
    %9273 = vmatpush1.bf16.msra.mxu0 0
    %9274 = vmatprep.subr.bf16.mxu0 0
    %9275 = vmatpush1.bf16.msra.mxu0 0
    %9276 = vmatprep.subr.bf16.mxu0 0
    %9277 = vmatpush1.bf16.msra.mxu0 0
    %9278 = vmatprep.subr.bf16.mxu0 0
    %9279 = vmatpush1.bf16.msra.mxu0 0
    %9280 = vmatprep.subr.bf16.mxu0 0
    %9281 = vmatpush1.bf16.msra.mxu0 0
    %9282 = vmatprep.subr.bf16.mxu0 0
    %9283 = vmatpush1.bf16.msra.mxu0 0
    %9284 = vmatprep.subr.bf16.mxu0 0
    %9285 = vmatpush1.bf16.msra.mxu0 0
    %9286 = vmatprep.subr.bf16.mxu0 0
    %9287 = vmatpush1.bf16.msra.mxu0 0
    %9288 = vmatprep.subr.bf16.mxu0 0
    %9289 = vmatpush1.bf16.msra.mxu0 0
    %9290 = vmatprep.subr.bf16.mxu0 0
    %9291 = vmatpush1.bf16.msra.mxu0 0
    %9292 = vmatprep.subr.bf16.mxu0 0
    %9293 = vmatpush1.bf16.msra.mxu0 0
    %9294 = vmatprep.subr.bf16.mxu0 0
    %9295 = vmatpush1.bf16.msra.mxu0 0
    %9296 = vmatprep.mubr.bf16.mxu0 0
    %9297 = vmatmul.mubr.bf16.gmra.mrb[0].mxu0 %v6516
    %v9298 = vpop.f32.mrb[0].mxu0
    %v9299 = vadd.f32 0.0, %v9298
    %v9300 = vpop.f32.mrb[0].mxu0
    %v9301 = vpop.f32.mrb[0].mxu0
    %v9302 = vadd.f32 0.0, %v9301
    %v9303 = vpop.f32.mrb[0].mxu0
    %9304 = vdwg.mxu0
    %v9305 = vadd.f32 %v9256, %v9299
    %v9306 = vadd.f32 %v9257, %v9302
    %v9308 = vsel %vm46, %v8635, 0
    %9310 = vmatprep.subr.bf16.mxu0 0
    %9311 = vmatpush1.bf16.msra.mxu0 %v9308
    %9312 = vmatprep.subr.bf16.mxu0 0
    %9313 = vmatpush1.bf16.msra.mxu0 0
    %9314 = vmatprep.subr.bf16.mxu0 0
    %9315 = vmatpush1.bf16.msra.mxu0 0
    %9316 = vmatprep.subr.bf16.mxu0 0
    %9317 = vmatpush1.bf16.msra.mxu0 0
    %9318 = vmatprep.subr.bf16.mxu0 0
    %9319 = vmatpush1.bf16.msra.mxu0 0
    %9320 = vmatprep.subr.bf16.mxu0 0
    %9321 = vmatpush1.bf16.msra.mxu0 0
    %9322 = vmatprep.subr.bf16.mxu0 0
    %9323 = vmatpush1.bf16.msra.mxu0 0
    %9324 = vmatprep.subr.bf16.mxu0 0
    %9325 = vmatpush1.bf16.msra.mxu0 0
    %9326 = vmatprep.subr.bf16.mxu0 0
    %9327 = vmatpush1.bf16.msra.mxu0 0
    %9328 = vmatprep.subr.bf16.mxu0 0
    %9329 = vmatpush1.bf16.msra.mxu0 0
    %9330 = vmatprep.subr.bf16.mxu0 0
    %9331 = vmatpush1.bf16.msra.mxu0 0
    %9332 = vmatprep.subr.bf16.mxu0 0
    %9333 = vmatpush1.bf16.msra.mxu0 0
    %9334 = vmatprep.subr.bf16.mxu0 0
    %9335 = vmatpush1.bf16.msra.mxu0 0
    %9336 = vmatprep.subr.bf16.mxu0 0
    %9337 = vmatpush1.bf16.msra.mxu0 0
    %9338 = vmatprep.subr.bf16.mxu0 0
    %9339 = vmatpush1.bf16.msra.mxu0 0
    %9340 = vmatprep.subr.bf16.mxu0 0
    %9341 = vmatpush1.bf16.msra.mxu0 0
    %9342 = vmatprep.mubr.bf16.mxu0 0
    %9343 = vmatmul.mubr.bf16.gmra.mrb[0].mxu0 %v6573
    %v9344 = vpop.f32.mrb[0].mxu0
    %v9345 = vadd.f32 0.0, %v9344
    %v9346 = vpop.f32.mrb[0].mxu0
    %v9347 = vpop.f32.mrb[0].mxu0
    %v9348 = vadd.f32 0.0, %v9347
    %v9349 = vpop.f32.mrb[0].mxu0
    %9350 = vdwg.mxu0
    %v9351 = vadd.f32 %v9305, %v9345
    %v9352 = vadd.f32 %v9306, %v9348
    %9354 = vrot.lane.b32.xlu0 %v8635, 64
    %v9355 = vpop.permute.xlu0 %9354
    %v9357 = vsel %vm46, %v9355, 0
    %9359 = vmatprep.subr.bf16.mxu0 0
    %9360 = vmatpush1.bf16.msra.mxu0 %v9357
    %9361 = vmatprep.subr.bf16.mxu0 0
    %9362 = vmatpush1.bf16.msra.mxu0 0
    %9363 = vmatprep.subr.bf16.mxu0 0
    %9364 = vmatpush1.bf16.msra.mxu0 0
    %9365 = vmatprep.subr.bf16.mxu0 0
    %9366 = vmatpush1.bf16.msra.mxu0 0
    %9367 = vmatprep.subr.bf16.mxu0 0
    %9368 = vmatpush1.bf16.msra.mxu0 0
    %9369 = vmatprep.subr.bf16.mxu0 0
    %9370 = vmatpush1.bf16.msra.mxu0 0
    %9371 = vmatprep.subr.bf16.mxu0 0
    %9372 = vmatpush1.bf16.msra.mxu0 0
    %9373 = vmatprep.subr.bf16.mxu0 0
    %9374 = vmatpush1.bf16.msra.mxu0 0
    %9375 = vmatprep.subr.bf16.mxu0 0
    %9376 = vmatpush1.bf16.msra.mxu0 0
    %9377 = vmatprep.subr.bf16.mxu0 0
    %9378 = vmatpush1.bf16.msra.mxu0 0
    %9379 = vmatprep.subr.bf16.mxu0 0
    %9380 = vmatpush1.bf16.msra.mxu0 0
    %9381 = vmatprep.subr.bf16.mxu0 0
    %9382 = vmatpush1.bf16.msra.mxu0 0
    %9383 = vmatprep.subr.bf16.mxu0 0
    %9384 = vmatpush1.bf16.msra.mxu0 0
    %9385 = vmatprep.subr.bf16.mxu0 0
    %9386 = vmatpush1.bf16.msra.mxu0 0
    %9387 = vmatprep.subr.bf16.mxu0 0
    %9388 = vmatpush1.bf16.msra.mxu0 0
    %9389 = vmatprep.subr.bf16.mxu0 0
    %9390 = vmatpush1.bf16.msra.mxu0 0
    %9391 = vmatprep.mubr.bf16.mxu0 0
    %9392 = vmatmul.mubr.bf16.gmra.mrb[0].mxu0 %v6633
    %v9393 = vpop.f32.mrb[0].mxu0
    %v9394 = vadd.f32 0.0, %v9393
    %v9395 = vpop.f32.mrb[0].mxu0
    %v9396 = vpop.f32.mrb[0].mxu0
    %v9397 = vadd.f32 0.0, %v9396
    %v9398 = vpop.f32.mrb[0].mxu0
    %9399 = vdwg.mxu0
    %v9400 = vadd.f32 %v9351, %v9394
    %v9401 = vadd.f32 %v9352, %v9397
    %v9403 = vsel %vm46, %v8636, 0
    %9405 = vmatprep.subr.bf16.mxu0 0
    %9406 = vmatpush1.bf16.msra.mxu0 %v9403
    %9407 = vmatprep.subr.bf16.mxu0 0
    %9408 = vmatpush1.bf16.msra.mxu0 0
    %9409 = vmatprep.subr.bf16.mxu0 0
    %9410 = vmatpush1.bf16.msra.mxu0 0
    %9411 = vmatprep.subr.bf16.mxu0 0
    %9412 = vmatpush1.bf16.msra.mxu0 0
    %9413 = vmatprep.subr.bf16.mxu0 0
    %9414 = vmatpush1.bf16.msra.mxu0 0
    %9415 = vmatprep.subr.bf16.mxu0 0
    %9416 = vmatpush1.bf16.msra.mxu0 0
    %9417 = vmatprep.subr.bf16.mxu0 0
    %9418 = vmatpush1.bf16.msra.mxu0 0
    %9419 = vmatprep.subr.bf16.mxu0 0
    %9420 = vmatpush1.bf16.msra.mxu0 0
    %9421 = vmatprep.subr.bf16.mxu0 0
    %9422 = vmatpush1.bf16.msra.mxu0 0
    %9423 = vmatprep.subr.bf16.mxu0 0
    %9424 = vmatpush1.bf16.msra.mxu0 0
    %9425 = vmatprep.subr.bf16.mxu0 0
    %9426 = vmatpush1.bf16.msra.mxu0 0
    %9427 = vmatprep.subr.bf16.mxu0 0
    %9428 = vmatpush1.bf16.msra.mxu0 0
    %9429 = vmatprep.subr.bf16.mxu0 0
    %9430 = vmatpush1.bf16.msra.mxu0 0
    %9431 = vmatprep.subr.bf16.mxu0 0
    %9432 = vmatpush1.bf16.msra.mxu0 0
    %9433 = vmatprep.subr.bf16.mxu0 0
    %9434 = vmatpush1.bf16.msra.mxu0 0
    %9435 = vmatprep.subr.bf16.mxu0 0
    %9436 = vmatpush1.bf16.msra.mxu0 0
    %9437 = vmatprep.mubr.bf16.mxu0 0
    %9438 = vmatmul.mubr.bf16.gmra.mrb[0].mxu0 %v6690
    %v9439 = vpop.f32.mrb[0].mxu0
    %v9440 = vadd.f32 0.0, %v9439
    %v9441 = vpop.f32.mrb[0].mxu0
    %v9442 = vpop.f32.mrb[0].mxu0
    %v9443 = vadd.f32 0.0, %v9442
    %v9444 = vpop.f32.mrb[0].mxu0
    %9445 = vdwg.mxu0
    %v9446 = vadd.f32 %v9400, %v9440
    %v9447 = vadd.f32 %v9401, %v9443
    %9449 = vrot.lane.b32.xlu0 %v8636, 64
    %v9450 = vpop.permute.xlu0 %9449
    %v9452 = vsel %vm46, %v9450, 0
    %9454 = vmatprep.subr.bf16.mxu0 0
    %9455 = vmatpush1.bf16.msra.mxu0 %v9452
    %9456 = vmatprep.subr.bf16.mxu0 0
    %9457 = vmatpush1.bf16.msra.mxu0 0
    %9458 = vmatprep.subr.bf16.mxu0 0
    %9459 = vmatpush1.bf16.msra.mxu0 0
    %9460 = vmatprep.subr.bf16.mxu0 0
    %9461 = vmatpush1.bf16.msra.mxu0 0
    %9462 = vmatprep.subr.bf16.mxu0 0
    %9463 = vmatpush1.bf16.msra.mxu0 0
    %9464 = vmatprep.subr.bf16.mxu0 0
    %9465 = vmatpush1.bf16.msra.mxu0 0
    %9466 = vmatprep.subr.bf16.mxu0 0
    %9467 = vmatpush1.bf16.msra.mxu0 0
    %9468 = vmatprep.subr.bf16.mxu0 0
    %9469 = vmatpush1.bf16.msra.mxu0 0
    %9470 = vmatprep.subr.bf16.mxu0 0
    %9471 = vmatpush1.bf16.msra.mxu0 0
    %9472 = vmatprep.subr.bf16.mxu0 0
    %9473 = vmatpush1.bf16.msra.mxu0 0
    %9474 = vmatprep.subr.bf16.mxu0 0
    %9475 = vmatpush1.bf16.msra.mxu0 0
    %9476 = vmatprep.subr.bf16.mxu0 0
    %9477 = vmatpush1.bf16.msra.mxu0 0
    %9478 = vmatprep.subr.bf16.mxu0 0
    %9479 = vmatpush1.bf16.msra.mxu0 0
    %9480 = vmatprep.subr.bf16.mxu0 0
    %9481 = vmatpush1.bf16.msra.mxu0 0
    %9482 = vmatprep.subr.bf16.mxu0 0
    %9483 = vmatpush1.bf16.msra.mxu0 0
    %9484 = vmatprep.subr.bf16.mxu0 0
    %9485 = vmatpush1.bf16.msra.mxu0 0
    %9486 = vmatprep.mubr.bf16.mxu0 0
    %9487 = vmatmul.mubr.bf16.gmra.mrb[0].mxu0 %v6750
    %v9488 = vpop.f32.mrb[0].mxu0
    %v9489 = vadd.f32 0.0, %v9488
    %v9490 = vpop.f32.mrb[0].mxu0
    %v9491 = vpop.f32.mrb[0].mxu0
    %v9492 = vadd.f32 0.0, %v9491
    %v9493 = vpop.f32.mrb[0].mxu0
    %9494 = vdwg.mxu0
    %v9495 = vadd.f32 %v9446, %v9489
    %v9496 = vadd.f32 %v9447, %v9492
    %v9498 = vsel %vm46, %v8637, 0
    %9500 = vmatprep.subr.bf16.mxu0 0
    %9501 = vmatpush1.bf16.msra.mxu0 %v9498
    %9502 = vmatprep.subr.bf16.mxu0 0
    %9503 = vmatpush1.bf16.msra.mxu0 0
    %9504 = vmatprep.subr.bf16.mxu0 0
    %9505 = vmatpush1.bf16.msra.mxu0 0
    %9506 = vmatprep.subr.bf16.mxu0 0
    %9507 = vmatpush1.bf16.msra.mxu0 0
    %9508 = vmatprep.subr.bf16.mxu0 0
    %9509 = vmatpush1.bf16.msra.mxu0 0
    %9510 = vmatprep.subr.bf16.mxu0 0
    %9511 = vmatpush1.bf16.msra.mxu0 0
    %9512 = vmatprep.subr.bf16.mxu0 0
    %9513 = vmatpush1.bf16.msra.mxu0 0
    %9514 = vmatprep.subr.bf16.mxu0 0
    %9515 = vmatpush1.bf16.msra.mxu0 0
    %9516 = vmatprep.subr.bf16.mxu0 0
    %9517 = vmatpush1.bf16.msra.mxu0 0
    %9518 = vmatprep.subr.bf16.mxu0 0
    %9519 = vmatpush1.bf16.msra.mxu0 0
    %9520 = vmatprep.subr.bf16.mxu0 0
    %9521 = vmatpush1.bf16.msra.mxu0 0
    %9522 = vmatprep.subr.bf16.mxu0 0
    %9523 = vmatpush1.bf16.msra.mxu0 0
    %9524 = vmatprep.subr.bf16.mxu0 0
    %9525 = vmatpush1.bf16.msra.mxu0 0
    %9526 = vmatprep.subr.bf16.mxu0 0
    %9527 = vmatpush1.bf16.msra.mxu0 0
    %9528 = vmatprep.subr.bf16.mxu0 0
    %9529 = vmatpush1.bf16.msra.mxu0 0
    %9530 = vmatprep.subr.bf16.mxu0 0
    %9531 = vmatpush1.bf16.msra.mxu0 0
    %9532 = vmatprep.mubr.bf16.mxu0 0
    %9533 = vmatmul.mubr.bf16.gmra.mrb[0].mxu0 %v6807
    %v9534 = vpop.f32.mrb[0].mxu0
    %v9535 = vadd.f32 0.0, %v9534
    %v9536 = vpop.f32.mrb[0].mxu0
    %v9537 = vpop.f32.mrb[0].mxu0
    %v9538 = vadd.f32 0.0, %v9537
    %v9539 = vpop.f32.mrb[0].mxu0
    %9540 = vdwg.mxu0
    %v9541 = vadd.f32 %v9495, %v9535
    %v9542 = vadd.f32 %v9496, %v9538
    %9544 = vrot.lane.b32.xlu0 %v8637, 64
    %v9545 = vpop.permute.xlu0 %9544
    %v9547 = vsel %vm46, %v9545, 0
    %9549 = vmatprep.subr.bf16.mxu0 0
    %9550 = vmatpush1.bf16.msra.mxu0 %v9547
    %9551 = vmatprep.subr.bf16.mxu0 0
    %9552 = vmatpush1.bf16.msra.mxu0 0
    %9553 = vmatprep.subr.bf16.mxu0 0
    %9554 = vmatpush1.bf16.msra.mxu0 0
    %9555 = vmatprep.subr.bf16.mxu0 0
    %9556 = vmatpush1.bf16.msra.mxu0 0
    %9557 = vmatprep.subr.bf16.mxu0 0
    %9558 = vmatpush1.bf16.msra.mxu0 0
    %9559 = vmatprep.subr.bf16.mxu0 0
    %9560 = vmatpush1.bf16.msra.mxu0 0
    %9561 = vmatprep.subr.bf16.mxu0 0
    %9562 = vmatpush1.bf16.msra.mxu0 0
    %9563 = vmatprep.subr.bf16.mxu0 0
    %9564 = vmatpush1.bf16.msra.mxu0 0
    %9565 = vmatprep.subr.bf16.mxu0 0
    %9566 = vmatpush1.bf16.msra.mxu0 0
    %9567 = vmatprep.subr.bf16.mxu0 0
    %9568 = vmatpush1.bf16.msra.mxu0 0
    %9569 = vmatprep.subr.bf16.mxu0 0
    %9570 = vmatpush1.bf16.msra.mxu0 0
    %9571 = vmatprep.subr.bf16.mxu0 0
    %9572 = vmatpush1.bf16.msra.mxu0 0
    %9573 = vmatprep.subr.bf16.mxu0 0
    %9574 = vmatpush1.bf16.msra.mxu0 0
    %9575 = vmatprep.subr.bf16.mxu0 0
    %9576 = vmatpush1.bf16.msra.mxu0 0
    %9577 = vmatprep.subr.bf16.mxu0 0
    %9578 = vmatpush1.bf16.msra.mxu0 0
    %9579 = vmatprep.subr.bf16.mxu0 0
    %9580 = vmatpush1.bf16.msra.mxu0 0
    %9581 = vmatprep.mubr.bf16.mxu0 0
    %9582 = vmatmul.mubr.bf16.gmra.mrb[0].mxu0 %v6867
    %v9583 = vpop.f32.mrb[0].mxu0
    %v9584 = vadd.f32 0.0, %v9583
    %v9585 = vpop.f32.mrb[0].mxu0
    %v9586 = vpop.f32.mrb[0].mxu0
    %v9587 = vadd.f32 0.0, %v9586
    %v9588 = vpop.f32.mrb[0].mxu0
    %9589 = vdwg.mxu0
    %v9590 = vadd.f32 %v9541, %v9584
    %v9591 = vadd.f32 %v9542, %v9587
    %v9593 = vsel %vm46, %v8638, 0
    %9595 = vmatprep.subr.bf16.mxu0 0
    %9596 = vmatpush1.bf16.msra.mxu0 %v9593
    %9597 = vmatprep.subr.bf16.mxu0 0
    %9598 = vmatpush1.bf16.msra.mxu0 0
    %9599 = vmatprep.subr.bf16.mxu0 0
    %9600 = vmatpush1.bf16.msra.mxu0 0
    %9601 = vmatprep.subr.bf16.mxu0 0
    %9602 = vmatpush1.bf16.msra.mxu0 0
    %9603 = vmatprep.subr.bf16.mxu0 0
    %9604 = vmatpush1.bf16.msra.mxu0 0
    %9605 = vmatprep.subr.bf16.mxu0 0
    %9606 = vmatpush1.bf16.msra.mxu0 0
    %9607 = vmatprep.subr.bf16.mxu0 0
    %9608 = vmatpush1.bf16.msra.mxu0 0
    %9609 = vmatprep.subr.bf16.mxu0 0
    %9610 = vmatpush1.bf16.msra.mxu0 0
    %9611 = vmatprep.subr.bf16.mxu0 0
    %9612 = vmatpush1.bf16.msra.mxu0 0
    %9613 = vmatprep.subr.bf16.mxu0 0
    %9614 = vmatpush1.bf16.msra.mxu0 0
    %9615 = vmatprep.subr.bf16.mxu0 0
    %9616 = vmatpush1.bf16.msra.mxu0 0
    %9617 = vmatprep.subr.bf16.mxu0 0
    %9618 = vmatpush1.bf16.msra.mxu0 0
    %9619 = vmatprep.subr.bf16.mxu0 0
    %9620 = vmatpush1.bf16.msra.mxu0 0
    %9621 = vmatprep.subr.bf16.mxu0 0
    %9622 = vmatpush1.bf16.msra.mxu0 0
    %9623 = vmatprep.subr.bf16.mxu0 0
    %9624 = vmatpush1.bf16.msra.mxu0 0
    %9625 = vmatprep.subr.bf16.mxu0 0
    %9626 = vmatpush1.bf16.msra.mxu0 0
    %9627 = vmatprep.mubr.bf16.mxu0 0
    %9628 = vmatmul.mubr.bf16.gmra.mrb[0].mxu0 %v6924
    %v9629 = vpop.f32.mrb[0].mxu0
    %v9630 = vadd.f32 0.0, %v9629
    %v9631 = vpop.f32.mrb[0].mxu0
    %v9632 = vpop.f32.mrb[0].mxu0
    %v9633 = vadd.f32 0.0, %v9632
    %v9634 = vpop.f32.mrb[0].mxu0
    %9635 = vdwg.mxu0
    %v9636 = vadd.f32 %v9590, %v9630
    %v9637 = vadd.f32 %v9591, %v9633
    %9639 = vrot.lane.b32.xlu0 %v8638, 64
    %v9640 = vpop.permute.xlu0 %9639
    %v9642 = vsel %vm46, %v9640, 0
    %9644 = vmatprep.subr.bf16.mxu0 0
    %9645 = vmatpush1.bf16.msra.mxu0 %v9642
    %9646 = vmatprep.subr.bf16.mxu0 0
    %9647 = vmatpush1.bf16.msra.mxu0 0
    %9648 = vmatprep.subr.bf16.mxu0 0
    %9649 = vmatpush1.bf16.msra.mxu0 0
    %9650 = vmatprep.subr.bf16.mxu0 0
    %9651 = vmatpush1.bf16.msra.mxu0 0
    %9652 = vmatprep.subr.bf16.mxu0 0
    %9653 = vmatpush1.bf16.msra.mxu0 0
    %9654 = vmatprep.subr.bf16.mxu0 0
    %9655 = vmatpush1.bf16.msra.mxu0 0
    %9656 = vmatprep.subr.bf16.mxu0 0
    %9657 = vmatpush1.bf16.msra.mxu0 0
    %9658 = vmatprep.subr.bf16.mxu0 0
    %9659 = vmatpush1.bf16.msra.mxu0 0
    %9660 = vmatprep.subr.bf16.mxu0 0
    %9661 = vmatpush1.bf16.msra.mxu0 0
    %9662 = vmatprep.subr.bf16.mxu0 0
    %9663 = vmatpush1.bf16.msra.mxu0 0
    %9664 = vmatprep.subr.bf16.mxu0 0
    %9665 = vmatpush1.bf16.msra.mxu0 0
    %9666 = vmatprep.subr.bf16.mxu0 0
    %9667 = vmatpush1.bf16.msra.mxu0 0
    %9668 = vmatprep.subr.bf16.mxu0 0
    %9669 = vmatpush1.bf16.msra.mxu0 0
    %9670 = vmatprep.subr.bf16.mxu0 0
    %9671 = vmatpush1.bf16.msra.mxu0 0
    %9672 = vmatprep.subr.bf16.mxu0 0
    %9673 = vmatpush1.bf16.msra.mxu0 0
    %9674 = vmatprep.subr.bf16.mxu0 0
    %9675 = vmatpush1.bf16.msra.mxu0 0
    %9676 = vmatprep.mubr.bf16.mxu0 0
    %9677 = vmatmul.mubr.bf16.gmra.mrb[0].mxu0 %v6984
    %v9678 = vpop.f32.mrb[0].mxu0
    %v9679 = vadd.f32 0.0, %v9678
    %v9680 = vpop.f32.mrb[0].mxu0
    %v9681 = vpop.f32.mrb[0].mxu0
    %v9682 = vadd.f32 0.0, %v9681
    %v9683 = vpop.f32.mrb[0].mxu0
    %9684 = vdwg.mxu0
    %v9685 = vadd.f32 %v9636, %v9679
    %v9686 = vadd.f32 %v9637, %v9682
    %v9688 = vsel %vm46, %v8639, 0
    %9690 = vmatprep.subr.bf16.mxu0 0
    %9691 = vmatpush1.bf16.msra.mxu0 %v9688
    %9692 = vmatprep.subr.bf16.mxu0 0
    %9693 = vmatpush1.bf16.msra.mxu0 0
    %9694 = vmatprep.subr.bf16.mxu0 0
    %9695 = vmatpush1.bf16.msra.mxu0 0
    %9696 = vmatprep.subr.bf16.mxu0 0
    %9697 = vmatpush1.bf16.msra.mxu0 0
    %9698 = vmatprep.subr.bf16.mxu0 0
    %9699 = vmatpush1.bf16.msra.mxu0 0
    %9700 = vmatprep.subr.bf16.mxu0 0
    %9701 = vmatpush1.bf16.msra.mxu0 0
    %9702 = vmatprep.subr.bf16.mxu0 0
    %9703 = vmatpush1.bf16.msra.mxu0 0
    %9704 = vmatprep.subr.bf16.mxu0 0
    %9705 = vmatpush1.bf16.msra.mxu0 0
    %9706 = vmatprep.subr.bf16.mxu0 0
    %9707 = vmatpush1.bf16.msra.mxu0 0
    %9708 = vmatprep.subr.bf16.mxu0 0
    %9709 = vmatpush1.bf16.msra.mxu0 0
    %9710 = vmatprep.subr.bf16.mxu0 0
    %9711 = vmatpush1.bf16.msra.mxu0 0
    %9712 = vmatprep.subr.bf16.mxu0 0
    %9713 = vmatpush1.bf16.msra.mxu0 0
    %9714 = vmatprep.subr.bf16.mxu0 0
    %9715 = vmatpush1.bf16.msra.mxu0 0
    %9716 = vmatprep.subr.bf16.mxu0 0
    %9717 = vmatpush1.bf16.msra.mxu0 0
    %9718 = vmatprep.subr.bf16.mxu0 0
    %9719 = vmatpush1.bf16.msra.mxu0 0
    %9720 = vmatprep.subr.bf16.mxu0 0
    %9721 = vmatpush1.bf16.msra.mxu0 0
    %9722 = vmatprep.mubr.bf16.mxu0 0
    %9723 = vmatmul.mubr.bf16.gmra.mrb[0].mxu0 %v7041
    %v9724 = vpop.f32.mrb[0].mxu0
    %v9725 = vadd.f32 0.0, %v9724
    %v9726 = vpop.f32.mrb[0].mxu0
    %v9727 = vpop.f32.mrb[0].mxu0
    %v9728 = vadd.f32 0.0, %v9727
    %v9729 = vpop.f32.mrb[0].mxu0
    %9730 = vdwg.mxu0
    %v9731 = vadd.f32 %v9685, %v9725
    %v9732 = vadd.f32 %v9686, %v9728
    %9734 = vrot.lane.b32.xlu0 %v8639, 64
    %v9735 = vpop.permute.xlu0 %9734
    %v9737 = vsel %vm46, %v9735, 0
    %9739 = vmatprep.subr.bf16.mxu0 0
    %9740 = vmatpush1.bf16.msra.mxu0 %v9737
    %9741 = vmatprep.subr.bf16.mxu0 0
    %9742 = vmatpush1.bf16.msra.mxu0 0
    %9743 = vmatprep.subr.bf16.mxu0 0
    %9744 = vmatpush1.bf16.msra.mxu0 0
    %9745 = vmatprep.subr.bf16.mxu0 0
    %9746 = vmatpush1.bf16.msra.mxu0 0
    %9747 = vmatprep.subr.bf16.mxu0 0
    %9748 = vmatpush1.bf16.msra.mxu0 0
    %9749 = vmatprep.subr.bf16.mxu0 0
    %9750 = vmatpush1.bf16.msra.mxu0 0
    %9751 = vmatprep.subr.bf16.mxu0 0
    %9752 = vmatpush1.bf16.msra.mxu0 0
    %9753 = vmatprep.subr.bf16.mxu0 0
    %9754 = vmatpush1.bf16.msra.mxu0 0
    %9755 = vmatprep.subr.bf16.mxu0 0
    %9756 = vmatpush1.bf16.msra.mxu0 0
    %9757 = vmatprep.subr.bf16.mxu0 0
    %9758 = vmatpush1.bf16.msra.mxu0 0
    %9759 = vmatprep.subr.bf16.mxu0 0
    %9760 = vmatpush1.bf16.msra.mxu0 0
    %9761 = vmatprep.subr.bf16.mxu0 0
    %9762 = vmatpush1.bf16.msra.mxu0 0
    %9763 = vmatprep.subr.bf16.mxu0 0
    %9764 = vmatpush1.bf16.msra.mxu0 0
    %9765 = vmatprep.subr.bf16.mxu0 0
    %9766 = vmatpush1.bf16.msra.mxu0 0
    %9767 = vmatprep.subr.bf16.mxu0 0
    %9768 = vmatpush1.bf16.msra.mxu0 0
    %9769 = vmatprep.subr.bf16.mxu0 0
    %9770 = vmatpush1.bf16.msra.mxu0 0
    %9771 = vmatprep.mubr.bf16.mxu0 0
    %9772 = vmatmul.mubr.bf16.gmra.mrb[0].mxu0 %v7101
    %v9773 = vpop.f32.mrb[0].mxu0
    %v9774 = vadd.f32 0.0, %v9773
    %v9775 = vpop.f32.mrb[0].mxu0
    %v9776 = vpop.f32.mrb[0].mxu0
    %v9777 = vadd.f32 0.0, %v9776
    %v9778 = vpop.f32.mrb[0].mxu0
    %9779 = vdwg.mxu0
    %v9780 = vadd.f32 %v9731, %v9774
    %v9781 = vadd.f32 %v9732, %v9777
    %v9783 = vsel %vm46, %v8640, 0
    %9785 = vmatprep.subr.bf16.mxu0 0
    %9786 = vmatpush1.bf16.msra.mxu0 %v9783
    %9787 = vmatprep.subr.bf16.mxu0 0
    %9788 = vmatpush1.bf16.msra.mxu0 0
    %9789 = vmatprep.subr.bf16.mxu0 0
    %9790 = vmatpush1.bf16.msra.mxu0 0
    %9791 = vmatprep.subr.bf16.mxu0 0
    %9792 = vmatpush1.bf16.msra.mxu0 0
    %9793 = vmatprep.subr.bf16.mxu0 0
    %9794 = vmatpush1.bf16.msra.mxu0 0
    %9795 = vmatprep.subr.bf16.mxu0 0
    %9796 = vmatpush1.bf16.msra.mxu0 0
    %9797 = vmatprep.subr.bf16.mxu0 0
    %9798 = vmatpush1.bf16.msra.mxu0 0
    %9799 = vmatprep.subr.bf16.mxu0 0
    %9800 = vmatpush1.bf16.msra.mxu0 0
    %9801 = vmatprep.subr.bf16.mxu0 0
    %9802 = vmatpush1.bf16.msra.mxu0 0
    %9803 = vmatprep.subr.bf16.mxu0 0
    %9804 = vmatpush1.bf16.msra.mxu0 0
    %9805 = vmatprep.subr.bf16.mxu0 0
    %9806 = vmatpush1.bf16.msra.mxu0 0
    %9807 = vmatprep.subr.bf16.mxu0 0
    %9808 = vmatpush1.bf16.msra.mxu0 0
    %9809 = vmatprep.subr.bf16.mxu0 0
    %9810 = vmatpush1.bf16.msra.mxu0 0
    %9811 = vmatprep.subr.bf16.mxu0 0
    %9812 = vmatpush1.bf16.msra.mxu0 0
    %9813 = vmatprep.subr.bf16.mxu0 0
    %9814 = vmatpush1.bf16.msra.mxu0 0
    %9815 = vmatprep.subr.bf16.mxu0 0
    %9816 = vmatpush1.bf16.msra.mxu0 0
    %9817 = vmatprep.mubr.bf16.mxu0 0
    %9818 = vmatmul.mubr.bf16.gmra.mrb[0].mxu0 %v7158
    %v9819 = vpop.f32.mrb[0].mxu0
    %v9820 = vadd.f32 0.0, %v9819
    %v9821 = vpop.f32.mrb[0].mxu0
    %v9822 = vpop.f32.mrb[0].mxu0
    %v9823 = vadd.f32 0.0, %v9822
    %v9824 = vpop.f32.mrb[0].mxu0
    %9825 = vdwg.mxu0
    %v9826 = vadd.f32 %v9780, %v9820
    %v9827 = vadd.f32 %v9781, %v9823
    %9829 = vrot.lane.b32.xlu0 %v8640, 64
    %v9830 = vpop.permute.xlu0 %9829
    %v9832 = vsel %vm46, %v9830, 0
    %9834 = vmatprep.subr.bf16.mxu0 0
    %9835 = vmatpush1.bf16.msra.mxu0 %v9832
    %9836 = vmatprep.subr.bf16.mxu0 0
    %9837 = vmatpush1.bf16.msra.mxu0 0
    %9838 = vmatprep.subr.bf16.mxu0 0
    %9839 = vmatpush1.bf16.msra.mxu0 0
    %9840 = vmatprep.subr.bf16.mxu0 0
    %9841 = vmatpush1.bf16.msra.mxu0 0
    %9842 = vmatprep.subr.bf16.mxu0 0
    %9843 = vmatpush1.bf16.msra.mxu0 0
    %9844 = vmatprep.subr.bf16.mxu0 0
    %9845 = vmatpush1.bf16.msra.mxu0 0
    %9846 = vmatprep.subr.bf16.mxu0 0
    %9847 = vmatpush1.bf16.msra.mxu0 0
    %9848 = vmatprep.subr.bf16.mxu0 0
    %9849 = vmatpush1.bf16.msra.mxu0 0
    %9850 = vmatprep.subr.bf16.mxu0 0
    %9851 = vmatpush1.bf16.msra.mxu0 0
    %9852 = vmatprep.subr.bf16.mxu0 0
    %9853 = vmatpush1.bf16.msra.mxu0 0
    %9854 = vmatprep.subr.bf16.mxu0 0
    %9855 = vmatpush1.bf16.msra.mxu0 0
    %9856 = vmatprep.subr.bf16.mxu0 0
    %9857 = vmatpush1.bf16.msra.mxu0 0
    %9858 = vmatprep.subr.bf16.mxu0 0
    %9859 = vmatpush1.bf16.msra.mxu0 0
    %9860 = vmatprep.subr.bf16.mxu0 0
    %9861 = vmatpush1.bf16.msra.mxu0 0
    %9862 = vmatprep.subr.bf16.mxu0 0
    %9863 = vmatpush1.bf16.msra.mxu0 0
    %9864 = vmatprep.subr.bf16.mxu0 0
    %9865 = vmatpush1.bf16.msra.mxu0 0
    %9866 = vmatprep.mubr.bf16.mxu0 0
    %9867 = vmatmul.mubr.bf16.gmra.mrb[0].mxu0 %v7218
    %v9868 = vpop.f32.mrb[0].mxu0
    %v9869 = vadd.f32 0.0, %v9868
    %v9870 = vpop.f32.mrb[0].mxu0
    %v9871 = vpop.f32.mrb[0].mxu0
    %v9872 = vadd.f32 0.0, %v9871
    %v9873 = vpop.f32.mrb[0].mxu0
    %9874 = vdwg.mxu0
    %v9875 = vadd.f32 %v9826, %v9869
    %v9876 = vadd.f32 %v9827, %v9872
    %v9878 = vsel %vm46, %v8641, 0
    %9880 = vmatprep.subr.bf16.mxu0 0
    %9881 = vmatpush1.bf16.msra.mxu0 %v9878
    %9882 = vmatprep.subr.bf16.mxu0 0
    %9883 = vmatpush1.bf16.msra.mxu0 0
    %9884 = vmatprep.subr.bf16.mxu0 0
    %9885 = vmatpush1.bf16.msra.mxu0 0
    %9886 = vmatprep.subr.bf16.mxu0 0
    %9887 = vmatpush1.bf16.msra.mxu0 0
    %9888 = vmatprep.subr.bf16.mxu0 0
    %9889 = vmatpush1.bf16.msra.mxu0 0
    %9890 = vmatprep.subr.bf16.mxu0 0
    %9891 = vmatpush1.bf16.msra.mxu0 0
    %9892 = vmatprep.subr.bf16.mxu0 0
    %9893 = vmatpush1.bf16.msra.mxu0 0
    %9894 = vmatprep.subr.bf16.mxu0 0
    %9895 = vmatpush1.bf16.msra.mxu0 0
    %9896 = vmatprep.subr.bf16.mxu0 0
    %9897 = vmatpush1.bf16.msra.mxu0 0
    %9898 = vmatprep.subr.bf16.mxu0 0
    %9899 = vmatpush1.bf16.msra.mxu0 0
    %9900 = vmatprep.subr.bf16.mxu0 0
    %9901 = vmatpush1.bf16.msra.mxu0 0
    %9902 = vmatprep.subr.bf16.mxu0 0
    %9903 = vmatpush1.bf16.msra.mxu0 0
    %9904 = vmatprep.subr.bf16.mxu0 0
    %9905 = vmatpush1.bf16.msra.mxu0 0
    %9906 = vmatprep.subr.bf16.mxu0 0
    %9907 = vmatpush1.bf16.msra.mxu0 0
    %9908 = vmatprep.subr.bf16.mxu0 0
    %9909 = vmatpush1.bf16.msra.mxu0 0
    %9910 = vmatprep.subr.bf16.mxu0 0
    %9911 = vmatpush1.bf16.msra.mxu0 0
    %9912 = vmatprep.mubr.bf16.mxu0 0
    %9913 = vmatmul.mubr.bf16.gmra.mrb[0].mxu0 %v7275
    %v9914 = vpop.f32.mrb[0].mxu0
    %v9915 = vadd.f32 0.0, %v9914
    %v9916 = vpop.f32.mrb[0].mxu0
    %v9917 = vpop.f32.mrb[0].mxu0
    %v9918 = vadd.f32 0.0, %v9917
    %v9919 = vpop.f32.mrb[0].mxu0
    %9920 = vdwg.mxu0
    %v9921 = vadd.f32 %v9875, %v9915
    %v9922 = vadd.f32 %v9876, %v9918
    %9924 = vrot.lane.b32.xlu0 %v8641, 64
    %v9925 = vpop.permute.xlu0 %9924
    %v9927 = vsel %vm46, %v9925, 0
    %9929 = vmatprep.subr.bf16.mxu0 0
    %9930 = vmatpush1.bf16.msra.mxu0 %v9927
    %9931 = vmatprep.subr.bf16.mxu0 0
    %9932 = vmatpush1.bf16.msra.mxu0 0
    %9933 = vmatprep.subr.bf16.mxu0 0
    %9934 = vmatpush1.bf16.msra.mxu0 0
    %9935 = vmatprep.subr.bf16.mxu0 0
    %9936 = vmatpush1.bf16.msra.mxu0 0
    %9937 = vmatprep.subr.bf16.mxu0 0
    %9938 = vmatpush1.bf16.msra.mxu0 0
    %9939 = vmatprep.subr.bf16.mxu0 0
    %9940 = vmatpush1.bf16.msra.mxu0 0
    %9941 = vmatprep.subr.bf16.mxu0 0
    %9942 = vmatpush1.bf16.msra.mxu0 0
    %9943 = vmatprep.subr.bf16.mxu0 0
    %9944 = vmatpush1.bf16.msra.mxu0 0
    %9945 = vmatprep.subr.bf16.mxu0 0
    %9946 = vmatpush1.bf16.msra.mxu0 0
    %9947 = vmatprep.subr.bf16.mxu0 0
    %9948 = vmatpush1.bf16.msra.mxu0 0
    %9949 = vmatprep.subr.bf16.mxu0 0
    %9950 = vmatpush1.bf16.msra.mxu0 0
    %9951 = vmatprep.subr.bf16.mxu0 0
    %9952 = vmatpush1.bf16.msra.mxu0 0
    %9953 = vmatprep.subr.bf16.mxu0 0
    %9954 = vmatpush1.bf16.msra.mxu0 0
    %9955 = vmatprep.subr.bf16.mxu0 0
    %9956 = vmatpush1.bf16.msra.mxu0 0
    %9957 = vmatprep.subr.bf16.mxu0 0
    %9958 = vmatpush1.bf16.msra.mxu0 0
    %9959 = vmatprep.subr.bf16.mxu0 0
    %9960 = vmatpush1.bf16.msra.mxu0 0
    %9961 = vmatprep.mubr.bf16.mxu0 0
    %9962 = vmatmul.mubr.bf16.gmra.mrb[0].mxu0 %v7335
    %v9963 = vpop.f32.mrb[0].mxu0
    %v9964 = vadd.f32 0.0, %v9963
    %v9965 = vpop.f32.mrb[0].mxu0
    %v9966 = vpop.f32.mrb[0].mxu0
    %v9967 = vadd.f32 0.0, %v9966
    %v9968 = vpop.f32.mrb[0].mxu0
    %9969 = vdwg.mxu0
    %v9970 = vadd.f32 %v9921, %v9964
    %v9971 = vadd.f32 %v9922, %v9967
    %v9973 = vsel %vm46, %v8642, 0
    %9975 = vmatprep.subr.bf16.mxu0 0
    %9976 = vmatpush1.bf16.msra.mxu0 %v9973
    %9977 = vmatprep.subr.bf16.mxu0 0
    %9978 = vmatpush1.bf16.msra.mxu0 0
    %9979 = vmatprep.subr.bf16.mxu0 0
    %9980 = vmatpush1.bf16.msra.mxu0 0
    %9981 = vmatprep.subr.bf16.mxu0 0
    %9982 = vmatpush1.bf16.msra.mxu0 0
    %9983 = vmatprep.subr.bf16.mxu0 0
    %9984 = vmatpush1.bf16.msra.mxu0 0
    %9985 = vmatprep.subr.bf16.mxu0 0
    %9986 = vmatpush1.bf16.msra.mxu0 0
    %9987 = vmatprep.subr.bf16.mxu0 0
    %9988 = vmatpush1.bf16.msra.mxu0 0
    %9989 = vmatprep.subr.bf16.mxu0 0
    %9990 = vmatpush1.bf16.msra.mxu0 0
    %9991 = vmatprep.subr.bf16.mxu0 0
    %9992 = vmatpush1.bf16.msra.mxu0 0
    %9993 = vmatprep.subr.bf16.mxu0 0
    %9994 = vmatpush1.bf16.msra.mxu0 0
    %9995 = vmatprep.subr.bf16.mxu0 0
    %9996 = vmatpush1.bf16.msra.mxu0 0
    %9997 = vmatprep.subr.bf16.mxu0 0
    %9998 = vmatpush1.bf16.msra.mxu0 0
    %9999 = vmatprep.subr.bf16.mxu0 0
    %10000 = vmatpush1.bf16.msra.mxu0 0
    %10001 = vmatprep.subr.bf16.mxu0 0
    %10002 = vmatpush1.bf16.msra.mxu0 0
    %10003 = vmatprep.subr.bf16.mxu0 0
    %10004 = vmatpush1.bf16.msra.mxu0 0
    %10005 = vmatprep.subr.bf16.mxu0 0
    %10006 = vmatpush1.bf16.msra.mxu0 0
    %10007 = vmatprep.mubr.bf16.mxu0 0
    %10008 = vmatmul.mubr.bf16.gmra.mrb[0].mxu0 %v7392
    %v10009 = vpop.f32.mrb[0].mxu0
    %v10010 = vadd.f32 0.0, %v10009
    %v10011 = vpop.f32.mrb[0].mxu0
    %v10012 = vpop.f32.mrb[0].mxu0
    %v10013 = vadd.f32 0.0, %v10012
    %v10014 = vpop.f32.mrb[0].mxu0
    %10015 = vdwg.mxu0
    %v10016 = vadd.f32 %v9970, %v10010
    %v10017 = vadd.f32 %v9971, %v10013
    %10019 = vrot.lane.b32.xlu0 %v8642, 64
    %v10020 = vpop.permute.xlu0 %10019
    %v10022 = vsel %vm46, %v10020, 0
    %10024 = vmatprep.subr.bf16.mxu0 0
    %10025 = vmatpush1.bf16.msra.mxu0 %v10022
    %10026 = vmatprep.subr.bf16.mxu0 0
    %10027 = vmatpush1.bf16.msra.mxu0 0
    %10028 = vmatprep.subr.bf16.mxu0 0
    %10029 = vmatpush1.bf16.msra.mxu0 0
    %10030 = vmatprep.subr.bf16.mxu0 0
    %10031 = vmatpush1.bf16.msra.mxu0 0
    %10032 = vmatprep.subr.bf16.mxu0 0
    %10033 = vmatpush1.bf16.msra.mxu0 0
    %10034 = vmatprep.subr.bf16.mxu0 0
    %10035 = vmatpush1.bf16.msra.mxu0 0
    %10036 = vmatprep.subr.bf16.mxu0 0
    %10037 = vmatpush1.bf16.msra.mxu0 0
    %10038 = vmatprep.subr.bf16.mxu0 0
    %10039 = vmatpush1.bf16.msra.mxu0 0
    %10040 = vmatprep.subr.bf16.mxu0 0
    %10041 = vmatpush1.bf16.msra.mxu0 0
    %10042 = vmatprep.subr.bf16.mxu0 0
    %10043 = vmatpush1.bf16.msra.mxu0 0
    %10044 = vmatprep.subr.bf16.mxu0 0
    %10045 = vmatpush1.bf16.msra.mxu0 0
    %10046 = vmatprep.subr.bf16.mxu0 0
    %10047 = vmatpush1.bf16.msra.mxu0 0
    %10048 = vmatprep.subr.bf16.mxu0 0
    %10049 = vmatpush1.bf16.msra.mxu0 0
    %10050 = vmatprep.subr.bf16.mxu0 0
    %10051 = vmatpush1.bf16.msra.mxu0 0
    %10052 = vmatprep.subr.bf16.mxu0 0
    %10053 = vmatpush1.bf16.msra.mxu0 0
    %10054 = vmatprep.subr.bf16.mxu0 0
    %10055 = vmatpush1.bf16.msra.mxu0 0
    %10056 = vmatprep.mubr.bf16.mxu0 0
    %10057 = vmatmul.mubr.bf16.gmra.mrb[0].mxu0 %v7452
    %v10058 = vpop.f32.mrb[0].mxu0
    %v10059 = vadd.f32 0.0, %v10058
    %v10060 = vpop.f32.mrb[0].mxu0
    %v10061 = vpop.f32.mrb[0].mxu0
    %v10062 = vadd.f32 0.0, %v10061
    %v10063 = vpop.f32.mrb[0].mxu0
    %10064 = vdwg.mxu0
    %v10065 = vadd.f32 %v10016, %v10059
    %v10066 = vadd.f32 %v10017, %v10062
    %v10068 = vsel %vm46, %v8643, 0
    %10070 = vmatprep.subr.bf16.mxu0 0
    %10071 = vmatpush1.bf16.msra.mxu0 %v10068
    %10072 = vmatprep.subr.bf16.mxu0 0
    %10073 = vmatpush1.bf16.msra.mxu0 0
    %10074 = vmatprep.subr.bf16.mxu0 0
    %10075 = vmatpush1.bf16.msra.mxu0 0
    %10076 = vmatprep.subr.bf16.mxu0 0
    %10077 = vmatpush1.bf16.msra.mxu0 0
    %10078 = vmatprep.subr.bf16.mxu0 0
    %10079 = vmatpush1.bf16.msra.mxu0 0
    %10080 = vmatprep.subr.bf16.mxu0 0
    %10081 = vmatpush1.bf16.msra.mxu0 0
    %10082 = vmatprep.subr.bf16.mxu0 0
    %10083 = vmatpush1.bf16.msra.mxu0 0
    %10084 = vmatprep.subr.bf16.mxu0 0
    %10085 = vmatpush1.bf16.msra.mxu0 0
    %10086 = vmatprep.subr.bf16.mxu0 0
    %10087 = vmatpush1.bf16.msra.mxu0 0
    %10088 = vmatprep.subr.bf16.mxu0 0
    %10089 = vmatpush1.bf16.msra.mxu0 0
    %10090 = vmatprep.subr.bf16.mxu0 0
    %10091 = vmatpush1.bf16.msra.mxu0 0
    %10092 = vmatprep.subr.bf16.mxu0 0
    %10093 = vmatpush1.bf16.msra.mxu0 0
    %10094 = vmatprep.subr.bf16.mxu0 0
    %10095 = vmatpush1.bf16.msra.mxu0 0
    %10096 = vmatprep.subr.bf16.mxu0 0
    %10097 = vmatpush1.bf16.msra.mxu0 0
    %10098 = vmatprep.subr.bf16.mxu0 0
    %10099 = vmatpush1.bf16.msra.mxu0 0
    %10100 = vmatprep.subr.bf16.mxu0 0
    %10101 = vmatpush1.bf16.msra.mxu0 0
    %10102 = vmatprep.mubr.bf16.mxu0 0
    %10103 = vmatmul.mubr.bf16.gmra.mrb[0].mxu0 %v7509
    %v10104 = vpop.f32.mrb[0].mxu0
    %v10105 = vadd.f32 0.0, %v10104
    %v10106 = vpop.f32.mrb[0].mxu0
    %v10107 = vpop.f32.mrb[0].mxu0
    %v10108 = vadd.f32 0.0, %v10107
    %v10109 = vpop.f32.mrb[0].mxu0
    %10110 = vdwg.mxu0
    %v10111 = vadd.f32 %v10065, %v10105
    %v10112 = vadd.f32 %v10066, %v10108
    %10114 = vrot.lane.b32.xlu0 %v8643, 64
    %v10115 = vpop.permute.xlu0 %10114
    %v10117 = vsel %vm46, %v10115, 0
    %10119 = vmatprep.subr.bf16.mxu0 0
    %10120 = vmatpush1.bf16.msra.mxu0 %v10117
    %10121 = vmatprep.subr.bf16.mxu0 0
    %10122 = vmatpush1.bf16.msra.mxu0 0
    %10123 = vmatprep.subr.bf16.mxu0 0
    %10124 = vmatpush1.bf16.msra.mxu0 0
    %10125 = vmatprep.subr.bf16.mxu0 0
    %10126 = vmatpush1.bf16.msra.mxu0 0
    %10127 = vmatprep.subr.bf16.mxu0 0
    %10128 = vmatpush1.bf16.msra.mxu0 0
    %10129 = vmatprep.subr.bf16.mxu0 0
    %10130 = vmatpush1.bf16.msra.mxu0 0
    %10131 = vmatprep.subr.bf16.mxu0 0
    %10132 = vmatpush1.bf16.msra.mxu0 0
    %10133 = vmatprep.subr.bf16.mxu0 0
    %10134 = vmatpush1.bf16.msra.mxu0 0
    %10135 = vmatprep.subr.bf16.mxu0 0
    %10136 = vmatpush1.bf16.msra.mxu0 0
    %10137 = vmatprep.subr.bf16.mxu0 0
    %10138 = vmatpush1.bf16.msra.mxu0 0
    %10139 = vmatprep.subr.bf16.mxu0 0
    %10140 = vmatpush1.bf16.msra.mxu0 0
    %10141 = vmatprep.subr.bf16.mxu0 0
    %10142 = vmatpush1.bf16.msra.mxu0 0
    %10143 = vmatprep.subr.bf16.mxu0 0
    %10144 = vmatpush1.bf16.msra.mxu0 0
    %10145 = vmatprep.subr.bf16.mxu0 0
    %10146 = vmatpush1.bf16.msra.mxu0 0
    %10147 = vmatprep.subr.bf16.mxu0 0
    %10148 = vmatpush1.bf16.msra.mxu0 0
    %10149 = vmatprep.subr.bf16.mxu0 0
    %10150 = vmatpush1.bf16.msra.mxu0 0
    %10151 = vmatprep.mubr.bf16.mxu0 0
    %10152 = vmatmul.mubr.bf16.gmra.mrb[0].mxu0 %v7569
    %v10153 = vpop.f32.mrb[0].mxu0
    %v10154 = vadd.f32 0.0, %v10153
    %v10155 = vpop.f32.mrb[0].mxu0
    %v10156 = vpop.f32.mrb[0].mxu0
    %v10157 = vadd.f32 0.0, %v10156
    %v10158 = vpop.f32.mrb[0].mxu0
    %10159 = vdwg.mxu0
    %v10160 = vadd.f32 %v10111, %v10154
    %v10161 = vadd.f32 %v10112, %v10157
    %v10163 = vsel %vm46, %v8644, 0
    %10165 = vmatprep.subr.bf16.mxu0 0
    %10166 = vmatpush1.bf16.msra.mxu0 %v10163
    %10167 = vmatprep.subr.bf16.mxu0 0
    %10168 = vmatpush1.bf16.msra.mxu0 0
    %10169 = vmatprep.subr.bf16.mxu0 0
    %10170 = vmatpush1.bf16.msra.mxu0 0
    %10171 = vmatprep.subr.bf16.mxu0 0
    %10172 = vmatpush1.bf16.msra.mxu0 0
    %10173 = vmatprep.subr.bf16.mxu0 0
    %10174 = vmatpush1.bf16.msra.mxu0 0
    %10175 = vmatprep.subr.bf16.mxu0 0
    %10176 = vmatpush1.bf16.msra.mxu0 0
    %10177 = vmatprep.subr.bf16.mxu0 0
    %10178 = vmatpush1.bf16.msra.mxu0 0
    %10179 = vmatprep.subr.bf16.mxu0 0
    %10180 = vmatpush1.bf16.msra.mxu0 0
    %10181 = vmatprep.subr.bf16.mxu0 0
    %10182 = vmatpush1.bf16.msra.mxu0 0
    %10183 = vmatprep.subr.bf16.mxu0 0
    %10184 = vmatpush1.bf16.msra.mxu0 0
    %10185 = vmatprep.subr.bf16.mxu0 0
    %10186 = vmatpush1.bf16.msra.mxu0 0
    %10187 = vmatprep.subr.bf16.mxu0 0
    %10188 = vmatpush1.bf16.msra.mxu0 0
    %10189 = vmatprep.subr.bf16.mxu0 0
    %10190 = vmatpush1.bf16.msra.mxu0 0
    %10191 = vmatprep.subr.bf16.mxu0 0
    %10192 = vmatpush1.bf16.msra.mxu0 0
    %10193 = vmatprep.subr.bf16.mxu0 0
    %10194 = vmatpush1.bf16.msra.mxu0 0
    %10195 = vmatprep.subr.bf16.mxu0 0
    %10196 = vmatpush1.bf16.msra.mxu0 0
    %10197 = vmatprep.mubr.bf16.mxu0 0
    %10198 = vmatmul.mubr.bf16.gmra.mrb[0].mxu0 %v7626
    %v10199 = vpop.f32.mrb[0].mxu0
    %v10200 = vadd.f32 0.0, %v10199
    %v10201 = vpop.f32.mrb[0].mxu0
    %v10202 = vpop.f32.mrb[0].mxu0
    %v10203 = vadd.f32 0.0, %v10202
    %v10204 = vpop.f32.mrb[0].mxu0
    %10205 = vdwg.mxu0
    %v10206 = vadd.f32 %v10160, %v10200
    %v10207 = vadd.f32 %v10161, %v10203
    %10209 = vrot.lane.b32.xlu0 %v8644, 64
    %v10210 = vpop.permute.xlu0 %10209
    %v10212 = vsel %vm46, %v10210, 0
    %10214 = vmatprep.subr.bf16.mxu0 0
    %10215 = vmatpush1.bf16.msra.mxu0 %v10212
    %10216 = vmatprep.subr.bf16.mxu0 0
    %10217 = vmatpush1.bf16.msra.mxu0 0
    %10218 = vmatprep.subr.bf16.mxu0 0
    %10219 = vmatpush1.bf16.msra.mxu0 0
    %10220 = vmatprep.subr.bf16.mxu0 0
    %10221 = vmatpush1.bf16.msra.mxu0 0
    %10222 = vmatprep.subr.bf16.mxu0 0
    %10223 = vmatpush1.bf16.msra.mxu0 0
    %10224 = vmatprep.subr.bf16.mxu0 0
    %10225 = vmatpush1.bf16.msra.mxu0 0
    %10226 = vmatprep.subr.bf16.mxu0 0
    %10227 = vmatpush1.bf16.msra.mxu0 0
    %10228 = vmatprep.subr.bf16.mxu0 0
    %10229 = vmatpush1.bf16.msra.mxu0 0
    %10230 = vmatprep.subr.bf16.mxu0 0
    %10231 = vmatpush1.bf16.msra.mxu0 0
    %10232 = vmatprep.subr.bf16.mxu0 0
    %10233 = vmatpush1.bf16.msra.mxu0 0
    %10234 = vmatprep.subr.bf16.mxu0 0
    %10235 = vmatpush1.bf16.msra.mxu0 0
    %10236 = vmatprep.subr.bf16.mxu0 0
    %10237 = vmatpush1.bf16.msra.mxu0 0
    %10238 = vmatprep.subr.bf16.mxu0 0
    %10239 = vmatpush1.bf16.msra.mxu0 0
    %10240 = vmatprep.subr.bf16.mxu0 0
    %10241 = vmatpush1.bf16.msra.mxu0 0
    %10242 = vmatprep.subr.bf16.mxu0 0
    %10243 = vmatpush1.bf16.msra.mxu0 0
    %10244 = vmatprep.subr.bf16.mxu0 0
    %10245 = vmatpush1.bf16.msra.mxu0 0
    %10246 = vmatprep.mubr.bf16.mxu0 0
    %10247 = vmatmul.mubr.bf16.gmra.mrb[0].mxu0 %v7686
    %v10248 = vpop.f32.mrb[0].mxu0
    %v10249 = vadd.f32 0.0, %v10248
    %v10250 = vpop.f32.mrb[0].mxu0
    %v10251 = vpop.f32.mrb[0].mxu0
    %v10252 = vadd.f32 0.0, %v10251
    %v10253 = vpop.f32.mrb[0].mxu0
    %10254 = vdwg.mxu0
    %v10255 = vadd.f32 %v10206, %v10249
    %v10256 = vadd.f32 %v10207, %v10252
    %v10258 = vsel %vm46, %v8645, 0
    %10260 = vmatprep.subr.bf16.mxu0 0
    %10261 = vmatpush1.bf16.msra.mxu0 %v10258
    %10262 = vmatprep.subr.bf16.mxu0 0
    %10263 = vmatpush1.bf16.msra.mxu0 0
    %10264 = vmatprep.subr.bf16.mxu0 0
    %10265 = vmatpush1.bf16.msra.mxu0 0
    %10266 = vmatprep.subr.bf16.mxu0 0
    %10267 = vmatpush1.bf16.msra.mxu0 0
    %10268 = vmatprep.subr.bf16.mxu0 0
    %10269 = vmatpush1.bf16.msra.mxu0 0
    %10270 = vmatprep.subr.bf16.mxu0 0
    %10271 = vmatpush1.bf16.msra.mxu0 0
    %10272 = vmatprep.subr.bf16.mxu0 0
    %10273 = vmatpush1.bf16.msra.mxu0 0
    %10274 = vmatprep.subr.bf16.mxu0 0
    %10275 = vmatpush1.bf16.msra.mxu0 0
    %10276 = vmatprep.subr.bf16.mxu0 0
    %10277 = vmatpush1.bf16.msra.mxu0 0
    %10278 = vmatprep.subr.bf16.mxu0 0
    %10279 = vmatpush1.bf16.msra.mxu0 0
    %10280 = vmatprep.subr.bf16.mxu0 0
    %10281 = vmatpush1.bf16.msra.mxu0 0
    %10282 = vmatprep.subr.bf16.mxu0 0
    %10283 = vmatpush1.bf16.msra.mxu0 0
    %10284 = vmatprep.subr.bf16.mxu0 0
    %10285 = vmatpush1.bf16.msra.mxu0 0
    %10286 = vmatprep.subr.bf16.mxu0 0
    %10287 = vmatpush1.bf16.msra.mxu0 0
    %10288 = vmatprep.subr.bf16.mxu0 0
    %10289 = vmatpush1.bf16.msra.mxu0 0
    %10290 = vmatprep.subr.bf16.mxu0 0
    %10291 = vmatpush1.bf16.msra.mxu0 0
    %10292 = vmatprep.mubr.bf16.mxu0 0
    %10293 = vmatmul.mubr.bf16.gmra.mrb[0].mxu0 %v7743
    %v10294 = vpop.f32.mrb[0].mxu0
    %v10295 = vadd.f32 0.0, %v10294
    %v10296 = vpop.f32.mrb[0].mxu0
    %v10297 = vpop.f32.mrb[0].mxu0
    %v10298 = vadd.f32 0.0, %v10297
    %v10299 = vpop.f32.mrb[0].mxu0
    %10300 = vdwg.mxu0
    %v10301 = vadd.f32 %v10255, %v10295
    %v10302 = vadd.f32 %v10256, %v10298
    %10304 = vrot.lane.b32.xlu0 %v8645, 64
    %v10305 = vpop.permute.xlu0 %10304
    %v10307 = vsel %vm46, %v10305, 0
    %10309 = vmatprep.subr.bf16.mxu0 0
    %10310 = vmatpush1.bf16.msra.mxu0 %v10307
    %10311 = vmatprep.subr.bf16.mxu0 0
    %10312 = vmatpush1.bf16.msra.mxu0 0
    %10313 = vmatprep.subr.bf16.mxu0 0
    %10314 = vmatpush1.bf16.msra.mxu0 0
    %10315 = vmatprep.subr.bf16.mxu0 0
    %10316 = vmatpush1.bf16.msra.mxu0 0
    %10317 = vmatprep.subr.bf16.mxu0 0
    %10318 = vmatpush1.bf16.msra.mxu0 0
    %10319 = vmatprep.subr.bf16.mxu0 0
    %10320 = vmatpush1.bf16.msra.mxu0 0
    %10321 = vmatprep.subr.bf16.mxu0 0
    %10322 = vmatpush1.bf16.msra.mxu0 0
    %10323 = vmatprep.subr.bf16.mxu0 0
    %10324 = vmatpush1.bf16.msra.mxu0 0
    %10325 = vmatprep.subr.bf16.mxu0 0
    %10326 = vmatpush1.bf16.msra.mxu0 0
    %10327 = vmatprep.subr.bf16.mxu0 0
    %10328 = vmatpush1.bf16.msra.mxu0 0
    %10329 = vmatprep.subr.bf16.mxu0 0
    %10330 = vmatpush1.bf16.msra.mxu0 0
    %10331 = vmatprep.subr.bf16.mxu0 0
    %10332 = vmatpush1.bf16.msra.mxu0 0
    %10333 = vmatprep.subr.bf16.mxu0 0
    %10334 = vmatpush1.bf16.msra.mxu0 0
    %10335 = vmatprep.subr.bf16.mxu0 0
    %10336 = vmatpush1.bf16.msra.mxu0 0
    %10337 = vmatprep.subr.bf16.mxu0 0
    %10338 = vmatpush1.bf16.msra.mxu0 0
    %10339 = vmatprep.subr.bf16.mxu0 0
    %10340 = vmatpush1.bf16.msra.mxu0 0
    %10341 = vmatprep.mubr.bf16.mxu0 0
    %10342 = vmatmul.mubr.bf16.gmra.mrb[0].mxu0 %v7803
    %v10343 = vpop.f32.mrb[0].mxu0
    %v10344 = vadd.f32 0.0, %v10343
    %v10345 = vpop.f32.mrb[0].mxu0
    %v10346 = vpop.f32.mrb[0].mxu0
    %v10347 = vadd.f32 0.0, %v10346
    %v10348 = vpop.f32.mrb[0].mxu0
    %10349 = vdwg.mxu0
    %v10350 = vadd.f32 %v10301, %v10344
    %v10351 = vadd.f32 %v10302, %v10347
    %v10352 = vadd.f32 %v10350, %v7856
    %v10353 = vadd.f32 %v10351, %v7861
    %vm10354 = vcmp.ge.f32.partialorder %v10352, 0.0
    %vm10355 = vcmp.ge.f32.partialorder %v10353, 0.0
    %v10356 = vmul.f32 %v7867, %v10352
    %v10357 = vmul.f32 %v7867, %v10353
    %v10358 = vsel %vm10354, %v10352, %v10356
    %v10359 = vsel %vm10355, %v10353, %v10357
    %10362 = vrot.lane.b32.xlu0 %v10358, 64
    %v10363 = vpop.permute.xlu0 %10362
    %10364 = vrot.lane.b32.xlu0 %v10359, 64
    %v10365 = vpop.permute.xlu0 %10364
    %v10368 = vsel %vm198, %v7870, %v10363
    %v10369 = vsel %vm198, %v7871, %v10365
    %10370 = vst [vmem:[%s7] sm:$0xff] %v10368
    %10371 = vst [vmem:[%s7 + $0x8] sm:$0xff] %v10369
    // Predicated region
    $region34: #{rnet_d_forward.1} parent=1 // pred_check
      _
    $region35: #{rnet_d_forward.1} parent=1 // pred_check_branch
      %10373 = sbr.rel (0) target = $region37
    $region36: #{rnet_d_forward.1} parent=1 // pred_region
      _
    $region37: #{rnet_d_forward.1} parent=1 // pred_fallthru
      _
    // Predicated region
    $region38: #{rnet_d_forward.1} parent=1 // pred_check
      _
    $region39: #{rnet_d_forward.1} parent=1 // pred_check_branch
      %10375 = sbr.rel (0) target = $region41
    $region40: #{rnet_d_forward.1} parent=1 // pred_region
      _
    $region41: #{rnet_d_forward.1} parent=1 // pred_fallthru
      _
    %10376 = vsyncpa [#allocation5], 1

</llo_original>
